<compile_context>
chip_gen: v7x
topology: tpu7x:2x2x1
jax: 0.10.0
libtpu: 0.0.40
codegen_flags: <defaults>
</compile_context>

<pallas_src>
import jax
import jax.numpy as jnp
from jax import lax
from jax.experimental import pallas as pl
from jax.experimental.pallas import tpu as pltpu


_COMPILER_PARAMS = pltpu.CompilerParams(
    dimension_semantics=("parallel",),
    vmem_limit_bytes=48 * 1024 * 1024,
)


# ----------------------------------------------------------------------------
# Fused Pallas kernel: conv1 + conv2 + conv3 + fc1 + fc2 + log-softmax
# ----------------------------------------------------------------------------
def _actor_fused_kernel(s2d_ref, low_ref,
                        c1w_ref, c1b_ref, c2w_ref, c2b_ref, c3w_ref, c3b_ref,
                        f1aw_ref, f1bw_ref, f1b_ref, f2w_ref, f2b_ref,
                        logp_ref, h1_ref):
    """One batch tile of the whole actor forward.

    s2d_ref : (tb, 17, 17*16*C) bf16   space-to-depth image rows
    low_ref : (tb, S)           bf16   low-dim states
    c1w_ref : (2, 17*16*C, 512) bf16   bi-block-diagonal conv1 weight (/255 folded)
    c1b_ref : (1, 512) f32             conv1 bias tiled over 16 output columns
    c2w_ref : (4, 512, 256) bf16       per-kernel-row block-diagonal conv2 weight
    c2b_ref : (1, 256) f32             conv2 bias tiled over 4 output columns
    c3w_ref : (1024, 64) bf16          conv3 weight in (p2, q2, cin) patch order
    f1aw/f1bw/f2w : bf16               fc weights (fc1 split for the concat)
    logp_ref: (tb, A) f32              log-softmax(action logits)
    h1_ref  : (tb, 16, 512) bf16 VMEM  conv1 activation scratch
    """
    tb = s2d_ref.shape[0]
    L = s2d_ref.shape[2]

    # ---- conv1 (8x8, stride 4) + bias + ReLU: two big batched matmuls -------
    xa = s2d_ref[:, 0:16, :].reshape(tb * 16, L)       # s2d row i   (di = 0)
    xb = s2d_ref[:, 1:17, :].reshape(tb * 16, L)       # s2d row i+1 (di = 1)
    acc1 = jnp.dot(xa, c1w_ref[0], preferred_element_type=jnp.float32)
    acc1 = acc1 + jnp.dot(xb, c1w_ref[1], preferred_element_type=jnp.float32)
    h1 = jnp.maximum(acc1 + c1b_ref[...], 0.0)         # (tb*16, 512), one bias bcast
    # rows = (b, i), lanes = (j, c) == flattened NHWC (16, 16, 32) per image
    h1_ref[...] = h1.reshape(tb, 16, 512).astype(jnp.bfloat16)

    # ---- conv2 (4x4, stride 4, non-overlapping) + bias + ReLU ---------------
    # For output row-group p2 and kernel row i2, conv1 row 4*p2+i2 is contracted
    # against a weight that is block-diagonal over the output column q2, so each
    # partial result is already lane-dense: lanes = (q2, out_ch) = 256.
    c2b = c2b_ref[...]
    parts = []
    for p2 in range(4):
        acc2 = jnp.dot(h1_ref[:, 4 * p2, :], c2w_ref[0],
                       preferred_element_type=jnp.float32)
        for i2 in range(1, 4):
            acc2 = acc2 + jnp.dot(h1_ref[:, 4 * p2 + i2, :], c2w_ref[i2],
                                  preferred_element_type=jnp.float32)
        parts.append(jnp.maximum(acc2 + c2b, 0.0).astype(jnp.bfloat16))
    # conv3's single 4x4 patch, flattened lane-dense in (p2, q2, cin) order
    x3 = jnp.concatenate(parts, axis=-1)                # (tb, 1024) bf16

    # ---- conv3 (whole 4x4 patch -> plain matmul) + ReLU ---------------------
    h3 = jnp.maximum(
        jnp.dot(x3, c3w_ref[...], preferred_element_type=jnp.float32)
        + c3b_ref[...], 0.0)                            # (tb, 64)

    # ---- fc1 on concat([conv_features, low_dim_state]) == split-weight sum --
    h = jnp.maximum(
        jnp.dot(h3.astype(jnp.bfloat16), f1aw_ref[...],
                preferred_element_type=jnp.float32)
        + jnp.dot(low_ref[...], f1bw_ref[...],
                  preferred_element_type=jnp.float32)
        + f1b_ref[...], 0.0)                            # (tb, H)

    # ---- fc2 + log-softmax (log-probs computed directly from the logits) ----
    logits = (jnp.dot(h.astype(jnp.bfloat16), f2w_ref[...],
                      preferred_element_type=jnp.float32) + f2b_ref[...])
    m = jnp.max(logits, axis=-1, keepdims=True)
    lse = m + jnp.log(jnp.sum(jnp.exp(logits - m), axis=-1, keepdims=True))
    logp_ref[...] = logits - lse


def _pick_batch_tile(n, max_tile=64):
    """Multiple of 8 (sublane-aligned blocks), capped for VMEM, and >=2 grid
    steps when N allows so both v7x TensorCores get work."""
    if n <= 8:
        return n
    tb = min(max_tile, (n + 1) // 2)
    return max(8, (tb // 8) * 8)


def actor_fused(s2d, low, p, *, max_batch_tile=64):
    n, r, l = s2d.shape
    s = low.shape[1]
    a = p["fc2_w"].shape[1]
    tb = _pick_batch_tile(n, max_batch_tile)
    return pl.pallas_call(
        _actor_fused_kernel,
        out_shape=jax.ShapeDtypeStruct((n, a), jnp.float32),
        grid=(pl.cdiv(n, tb),),
        in_specs=[
            pl.BlockSpec((tb, r, l), lambda i: (i, 0, 0)),
            pl.BlockSpec((tb, s), lambda i: (i, 0)),
            pl.BlockSpec(p["conv1_w"].shape, lambda i: (0, 0, 0)),
            pl.BlockSpec(p["conv1_b"].shape, lambda i: (0, 0)),
            pl.BlockSpec(p["conv2_w"].shape, lambda i: (0, 0, 0)),
            pl.BlockSpec(p["conv2_b"].shape, lambda i: (0, 0)),
            pl.BlockSpec(p["conv3_w"].shape, lambda i: (0, 0)),
            pl.BlockSpec(p["conv3_b"].shape, lambda i: (0, 0)),
            pl.BlockSpec(p["fc1a_w"].shape, lambda i: (0, 0)),
            pl.BlockSpec(p["fc1b_w"].shape, lambda i: (0, 0)),
            pl.BlockSpec(p["fc1_b"].shape, lambda i: (0, 0)),
            pl.BlockSpec(p["fc2_w"].shape, lambda i: (0, 0)),
            pl.BlockSpec(p["fc2_b"].shape, lambda i: (0, 0)),
        ],
        out_specs=pl.BlockSpec((tb, a), lambda i: (i, 0)),
        scratch_shapes=[pltpu.VMEM((tb, 16, 512), jnp.bfloat16)],
        compiler_params=_COMPILER_PARAMS,
    )(s2d, low, p["conv1_w"], p["conv1_b"], p["conv2_w"], p["conv2_b"],
      p["conv3_w"], p["conv3_b"], p["fc1a_w"], p["fc1b_w"], p["fc1_b"],
      p["fc2_w"], p["fc2_b"])


# ----------------------------------------------------------------------------
# Parameters: PyTorch-layout init + one-time conversion to kernel layout
# ----------------------------------------------------------------------------
def init_torch_params(key, n_in_channels, state_size, action_size, hidden_units):
    """Random init in PyTorch layout (OIHW conv, (out,in) linear)."""
    ks = jax.random.split(key, 10)

    def u(k, shape, fan_in):
        bound = 1.0 / jnp.sqrt(jnp.float32(fan_in))
        return jax.random.uniform(k, shape, jnp.float32, -bound, bound)

    im_feature_size = 64  # 68x68 -> 16x16 -> 4x4 -> 1x1, 64 channels
    fan = im_feature_size + state_size
    return {
        "w1": u(ks[0], (32, n_in_channels, 8, 8), n_in_channels * 64),
        "b1": u(ks[1], (32,), n_in_channels * 64),
        "w2": u(ks[2], (64, 32, 4, 4), 32 * 16),
        "b2": u(ks[3], (64,), 32 * 16),
        "w3": u(ks[4], (64, 64, 4, 4), 64 * 16),
        "b3": u(ks[5], (64,), 64 * 16),
        "fc1_w": u(ks[6], (hidden_units, fan), fan),
        "fc1_b": u(ks[7], (hidden_units,), fan),
        "fc2_w": u(ks[8], (action_size, hidden_units), hidden_units),
        "fc2_b": u(ks[9], (action_size,), hidden_units),
    }


def prepare_params(tp, n_in_channels):
    """One-time conversion: pre-transposed bf16 matmul operands, /255 folded."""
    c = n_in_channels
    # conv1 tap weight Wt[di,dj][(u*4+v)*C + ch, o] = w1[o, ch, 4di+u, 4dj+v]/255
    wt = jnp.transpose(tp["w1"].reshape(32, c, 2, 4, 2, 4), (2, 4, 3, 5, 1, 0))
    wt = wt.reshape(2, 2, 16 * c, 32) * (1.0 / 255.0)
    # bi-block-diagonal over the 17 space-to-depth column blocks -> 16 outputs:
    # Wbd[di][16C*s + k, 32*q + o] = Wt[di,0][k,o]*(s==q) + Wt[di,1][k,o]*(s==q+1)
    sel0 = jnp.eye(17, 16, dtype=jnp.float32)          # dj = 0
    sel1 = jnp.eye(17, 16, k=-1, dtype=jnp.float32)    # dj = 1
    w_bd = (jnp.einsum("sq,dko->dskqo", sel0, wt[:, 0])
            + jnp.einsum("sq,dko->dskqo", sel1, wt[:, 1]))
    w_bd = w_bd.reshape(2, 17 * 16 * c, 16 * 32).astype(jnp.bfloat16)

    # conv2: per-kernel-row (i2) weight, block-diagonal over the output column
    # q2:  W2bd[i2][(4*q2'+j2)*32 + c, q2*64 + o] = w2[o, c, i2, j2] * (q2'==q2)
    wt2 = jnp.transpose(tp["w2"], (2, 3, 1, 0))                  # (i2, j2, c, o)
    w2bd = jnp.einsum("pq,ijco->ipjcqo", jnp.eye(4, dtype=jnp.float32), wt2)
    w2bd = w2bd.reshape(4, 4 * 4 * 32, 4 * 64).astype(jnp.bfloat16)

    # conv3: single 4x4 patch matmul weight in (p2, q2, cin) patch order
    w3 = jnp.transpose(tp["w3"], (2, 3, 1, 0)).reshape(16 * 64, 64)

    # fc1 split into image-feature and low-dim-state parts (== concat matmul)
    fc1a = tp["fc1_w"][:, :64].T
    fc1b = tp["fc1_w"][:, 64:].T
    fc2 = tp["fc2_w"].T
    return {
        "conv1_w": w_bd,
        "conv1_b": jnp.tile(tp["b1"], 16).reshape(1, 512).astype(jnp.float32),
        "conv2_w": w2bd,
        "conv2_b": jnp.tile(tp["b2"], 4).reshape(1, 256).astype(jnp.float32),
        "conv3_w": w3.astype(jnp.bfloat16),
        "conv3_b": tp["b3"].reshape(1, 64).astype(jnp.float32),
        "fc1a_w": fc1a.astype(jnp.bfloat16),
        "fc1b_w": fc1b.astype(jnp.bfloat16),
        "fc1_b": tp["fc1_b"].reshape(1, -1).astype(jnp.float32),
        "fc2_w": fc2.astype(jnp.bfloat16),
        "fc2_b": tp["fc2_b"].reshape(1, -1).astype(jnp.float32),
    }


# ----------------------------------------------------------------------------
# Actor forward
# ----------------------------------------------------------------------------
def actor_forward(params, state, sample_key, training=False):
    low = state["low_dim_states"].astype(jnp.bfloat16)          # (N, S)
    img = state["top_down_rgb"].astype(jnp.bfloat16)            # (N, C, 68, 68)
    n, c, h, w = img.shape
    assert h == 68 and w == 68, "conv1 kernel is specialized to 68x68 images"
    # TODO(synk): general image_dim (PyTorch infers the flatten size with a
    # dummy pass); this fused kernel is specialized to 68x68 inputs.

    # space-to-depth in bf16 (duplication-free, half the HBM traffic of f32):
    # (N,C,68,68) -> (N, 17, 17*16*C); row r holds the 4x4 pixel blocks of
    # image rows 4r..4r+3 in (col-block, u, v, ch) order.  /255 is folded into
    # the conv1 weight.
    s2d = (img.reshape(n, c, 17, 4, 17, 4)
              .transpose(0, 2, 4, 3, 5, 1)
              .reshape(n, 17, 17 * 16 * c))

    # Whole conv stack + fc head + log-softmax in one fused Pallas kernel.
    log_action_probabilities = actor_fused(s2d, low, params)

    # Categorical(action_probs).sample()
    action = jax.random.categorical(sample_key, log_action_probabilities,
                                    axis=-1)
    # torch.argmax(action_probs) flattens over the whole (N, A) tensor;
    # argmax of log-probs == argmax of probs (log is monotone).
    max_prob_action = jnp.argmax(log_action_probabilities)

    if training:
        return action, log_action_probabilities, {}
    return action, log_action_probabilities, max_prob_action


# ----------------------------------------------------------------------------
# f32 XLA reference (for a numerical self-check in __main__)
# ----------------------------------------------------------------------------
def _reference_log_probs(tp, state):
    img = state["top_down_rgb"].astype(jnp.float32) / 255.0
    low = state["low_dim_states"].astype(jnp.float32)
    dn = ("NCHW", "OIHW", "NCHW")
    x = img
    x = jax.nn.relu(lax.conv_general_dilated(x, tp["w1"], (4, 4), "VALID",
                                             dimension_numbers=dn)
                    + tp["b1"].reshape(1, -1, 1, 1))
    x = jax.nn.relu(lax.conv_general_dilated(x, tp["w2"], (4, 4), "VALID",
                                             dimension_numbers=dn)
                    + tp["b2"].reshape(1, -1, 1, 1))
    x = jax.nn.relu(lax.conv_general_dilated(x, tp["w3"], (4, 4), "VALID",
                                             dimension_numbers=dn)
                    + tp["b3"].reshape(1, -1, 1, 1))
    feat = x.reshape(x.shape[0], -1)
    h = jax.nn.relu(jnp.concatenate([feat, low], axis=-1) @ tp["fc1_w"].T
                    + tp["fc1_b"])
    logits = h @ tp["fc2_w"].T + tp["fc2_b"]
    probs = jax.nn.softmax(logits, axis=-1)
    probs = probs + (probs == 0.0).astype(jnp.float32) * 1e-8
    return jnp.log(probs)


# ----------------------------------------------------------------------------
if __name__ == "__main__":
    key = jax.random.PRNGKey(0)
    pkey, imkey, skey, akey = jax.random.split(key, 4)

    # 68x68 is the smallest image the 3-conv stack (8/4, 4/4, 4/4) accepts.
    N, Cin, H, W = 2, 3, 68, 68
    state_size, action_size, hidden_units = 8, 4, 32

    torch_params = init_torch_params(pkey, Cin, state_size, action_size,
                                     hidden_units)
    params = prepare_params(torch_params, Cin)

    state = {
        "top_down_rgb": jax.random.uniform(imkey, (N, Cin, H, W),
                                           jnp.float32, 0.0, 255.0),
        "low_dim_states": jax.random.normal(skey, (N, state_size), jnp.float32),
    }

    fwd = jax.jit(actor_forward, static_argnames=("training",))
    action, log_probs, max_prob_action = fwd(params, state, akey)
    jax.block_until_ready((action, log_probs, max_prob_action))

    assert action.shape == (N,)
    assert log_probs.shape == (N, action_size)
    assert max_prob_action.shape == ()
    assert bool(jnp.all(jnp.isfinite(log_probs)))

    # Numerical self-check against the f32 XLA reference (bf16 matmul operands
    # keep the log-probs within a few 1e-3 at these scales; 0.1 is generous).
    ref_lp = _reference_log_probs(torch_params, state)
    max_err = float(jnp.max(jnp.abs(log_probs - ref_lp)))
    assert max_err < 0.1, f"log-prob mismatch vs f32 reference: {max_err}"

    print("KERNEL_OK")
</pallas_src>

<mosaic_0001>
module attributes {stable_mosaic.version = 11 : i64} {
  func.func @_actor_fused_kernel(%arg0: i32, %arg1: memref<2x17x816xbf16, #tpu.memory_space<vmem>>, %arg2: memref<2x8xbf16, #tpu.memory_space<vmem>>, %arg3: memref<2x816x512xbf16, #tpu.memory_space<vmem>>, %arg4: memref<1x512xf32, #tpu.memory_space<vmem>>, %arg5: memref<4x512x256xbf16, #tpu.memory_space<vmem>>, %arg6: memref<1x256xf32, #tpu.memory_space<vmem>>, %arg7: memref<1024x64xbf16, #tpu.memory_space<vmem>>, %arg8: memref<1x64xf32, #tpu.memory_space<vmem>>, %arg9: memref<64x32xbf16, #tpu.memory_space<vmem>>, %arg10: memref<8x32xbf16, #tpu.memory_space<vmem>>, %arg11: memref<1x32xf32, #tpu.memory_space<vmem>>, %arg12: memref<32x4xbf16, #tpu.memory_space<vmem>>, %arg13: memref<1x4xf32, #tpu.memory_space<vmem>>, %arg14: memref<2x4xf32, #tpu.memory_space<vmem>>, %arg15: memref<2x16x512xbf16, #tpu.memory_space<vmem>>) attributes {dimension_semantics = [#tpu.dimension_semantics<parallel>], iteration_bounds = array<i64: 1>, scalar_prefetch = 0 : i64, scratch_operands = 1 : i64, tpu.core_type = #tpu.core_type<tc>, window_params = [{transform_indices = @transform_0, window_bounds = array<i64: 2, 17, 816>}, {transform_indices = @transform_1, window_bounds = array<i64: 2, 8>}, {pipeline_mode = #tpu.pipeline_mode<synchronous>, transform_indices = @transform_2, window_bounds = array<i64: 2, 816, 512>}, {pipeline_mode = #tpu.pipeline_mode<synchronous>, transform_indices = @transform_3, window_bounds = array<i64: 1, 512>}, {pipeline_mode = #tpu.pipeline_mode<synchronous>, transform_indices = @transform_4, window_bounds = array<i64: 4, 512, 256>}, {pipeline_mode = #tpu.pipeline_mode<synchronous>, transform_indices = @transform_5, window_bounds = array<i64: 1, 256>}, {pipeline_mode = #tpu.pipeline_mode<synchronous>, transform_indices = @transform_6, window_bounds = array<i64: 1024, 64>}, {pipeline_mode = #tpu.pipeline_mode<synchronous>, transform_indices = @transform_7, window_bounds = array<i64: 1, 64>}, {pipeline_mode = #tpu.pipeline_mode<synchronous>, transform_indices = @transform_8, window_bounds = array<i64: 64, 32>}, {pipeline_mode = #tpu.pipeline_mode<synchronous>, transform_indices = @transform_9, window_bounds = array<i64: 8, 32>}, {pipeline_mode = #tpu.pipeline_mode<synchronous>, transform_indices = @transform_10, window_bounds = array<i64: 1, 32>}, {pipeline_mode = #tpu.pipeline_mode<synchronous>, transform_indices = @transform_11, window_bounds = array<i64: 32, 4>}, {pipeline_mode = #tpu.pipeline_mode<synchronous>, transform_indices = @transform_12, window_bounds = array<i64: 1, 4>}, {transform_indices = @transform_13, window_bounds = array<i64: 2, 4>}]} {
    %c0 = arith.constant 0 : index
    %c0_0 = arith.constant 0 : index
    %c0_1 = arith.constant 0 : index
    %0 = vector.load %arg1[%c0, %c0_0, %c0_1] : memref<2x17x816xbf16, #tpu.memory_space<vmem>>, vector<2x16x816xbf16>
    %1 = vector.shape_cast %0 : vector<2x16x816xbf16> to vector<32x816xbf16>
    %c0_2 = arith.constant 0 : index
    %c1 = arith.constant 1 : index
    %c0_3 = arith.constant 0 : index
    %2 = vector.load %arg1[%c0_2, %c1, %c0_3] : memref<2x17x816xbf16, #tpu.memory_space<vmem>>, vector<2x16x816xbf16>
    %3 = vector.shape_cast %2 : vector<2x16x816xbf16> to vector<32x816xbf16>
    %c0_4 = arith.constant 0 : index
    %c0_5 = arith.constant 0 : index
    %c0_6 = arith.constant 0 : index
    %4 = vector.load %arg3[%c0_4, %c0_5, %c0_6] : memref<2x816x512xbf16, #tpu.memory_space<vmem>>, vector<1x816x512xbf16>
    %5 = vector.shape_cast %4 : vector<1x816x512xbf16> to vector<816x512xbf16>
    %cst = arith.constant dense<0.000000e+00> : vector<32x512xf32>
    %6 = tpu.matmul %1, %5, %cst {dimension_numbers = #tpu.dot_dimension_numbers<[1], [0], [0], [1], [0, 0, 1, 1], [], []>} : vector<32x816xbf16>, vector<816x512xbf16>, vector<32x512xf32> -> vector<32x512xf32>
    %c1_7 = arith.constant 1 : index
    %c0_8 = arith.constant 0 : index
    %c0_9 = arith.constant 0 : index
    %7 = vector.load %arg3[%c1_7, %c0_8, %c0_9] : memref<2x816x512xbf16, #tpu.memory_space<vmem>>, vector<1x816x512xbf16>
    %8 = vector.shape_cast %7 : vector<1x816x512xbf16> to vector<816x512xbf16>
    %cst_10 = arith.constant dense<0.000000e+00> : vector<32x512xf32>
    %9 = tpu.matmul %3, %8, %cst_10 {dimension_numbers = #tpu.dot_dimension_numbers<[1], [0], [0], [1], [0, 0, 1, 1], [], []>} : vector<32x816xbf16>, vector<816x512xbf16>, vector<32x512xf32> -> vector<32x512xf32>
    %10 = arith.addf %6, %9 : vector<32x512xf32>
    %c0_11 = arith.constant 0 : index
    %c0_12 = arith.constant 0 : index
    %11 = vector.load %arg4[%c0_11, %c0_12] : memref<1x512xf32, #tpu.memory_space<vmem>>, vector<1x512xf32>
    %12 = vector.broadcast %11 : vector<1x512xf32> to vector<32x512xf32>
    %13 = arith.addf %10, %12 : vector<32x512xf32>
    %cst_13 = arith.constant 0.000000e+00 : f32
    %14 = vector.broadcast %cst_13 : f32 to vector<32x512xf32>
    %15 = arith.maximumf %13, %14 : vector<32x512xf32>
    %16 = vector.shape_cast %15 : vector<32x512xf32> to vector<2x16x512xf32>
    %17 = arith.truncf %16 : vector<2x16x512xf32> to vector<2x16x512xbf16>
    %c0_14 = arith.constant 0 : index
    %c0_15 = arith.constant 0 : index
    %c0_16 = arith.constant 0 : index
    %18 = vector.load %arg15[%c0_14, %c0_15, %c0_16] : memref<2x16x512xbf16, #tpu.memory_space<vmem>>, vector<2x16x512xbf16>
    tpu.vector_store %arg15[%c0_14, %c0_15, %c0_16], %17 {strides = array<i32>} : memref<2x16x512xbf16, #tpu.memory_space<vmem>>, vector<2x16x512xbf16>,
    %c0_17 = arith.constant 0 : index
    %c0_18 = arith.constant 0 : index
    %19 = vector.load %arg6[%c0_17, %c0_18] : memref<1x256xf32, #tpu.memory_space<vmem>>, vector<1x256xf32>
    %c0_19 = arith.constant 0 : index
    %c0_20 = arith.constant 0 : index
    %c0_21 = arith.constant 0 : index
    %20 = vector.load %arg15[%c0_19, %c0_20, %c0_21] : memref<2x16x512xbf16, #tpu.memory_space<vmem>>, vector<2x1x512xbf16>
    %21 = vector.shape_cast %20 : vector<2x1x512xbf16> to vector<2x512xbf16>
    %c0_22 = arith.constant 0 : index
    %c0_23 = arith.constant 0 : index
    %c0_24 = arith.constant 0 : index
    %22 = vector.load %arg5[%c0_22, %c0_23, %c0_24] : memref<4x512x256xbf16, #tpu.memory_space<vmem>>, vector<1x512x256xbf16>
    %23 = vector.shape_cast %22 : vector<1x512x256xbf16> to vector<512x256xbf16>
    %cst_25 = arith.constant dense<0.000000e+00> : vector<2x256xf32>
    %24 = tpu.matmul %21, %23, %cst_25 {dimension_numbers = #tpu.dot_dimension_numbers<[1], [0], [0], [1], [0, 0, 1, 1], [], []>} : vector<2x512xbf16>, vector<512x256xbf16>, vector<2x256xf32> -> vector<2x256xf32>
    %c0_26 = arith.constant 0 : index
    %c1_27 = arith.constant 1 : index
    %c0_28 = arith.constant 0 : index
    %25 = vector.load %arg15[%c0_26, %c1_27, %c0_28] : memref<2x16x512xbf16, #tpu.memory_space<vmem>>, vector<2x1x512xbf16>
    %26 = vector.shape_cast %25 : vector<2x1x512xbf16> to vector<2x512xbf16>
    %c1_29 = arith.constant 1 : index
    %c0_30 = arith.constant 0 : index
    %c0_31 = arith.constant 0 : index
    %27 = vector.load %arg5[%c1_29, %c0_30, %c0_31] : memref<4x512x256xbf16, #tpu.memory_space<vmem>>, vector<1x512x256xbf16>
    %28 = vector.shape_cast %27 : vector<1x512x256xbf16> to vector<512x256xbf16>
    %cst_32 = arith.constant dense<0.000000e+00> : vector<2x256xf32>
    %29 = tpu.matmul %26, %28, %cst_32 {dimension_numbers = #tpu.dot_dimension_numbers<[1], [0], [0], [1], [0, 0, 1, 1], [], []>} : vector<2x512xbf16>, vector<512x256xbf16>, vector<2x256xf32> -> vector<2x256xf32>
    %30 = arith.addf %24, %29 : vector<2x256xf32>
    %c0_33 = arith.constant 0 : index
    %c2 = arith.constant 2 : index
    %c0_34 = arith.constant 0 : index
    %31 = vector.load %arg15[%c0_33, %c2, %c0_34] : memref<2x16x512xbf16, #tpu.memory_space<vmem>>, vector<2x1x512xbf16>
    %32 = vector.shape_cast %31 : vector<2x1x512xbf16> to vector<2x512xbf16>
    %c2_35 = arith.constant 2 : index
    %c0_36 = arith.constant 0 : index
    %c0_37 = arith.constant 0 : index
    %33 = vector.load %arg5[%c2_35, %c0_36, %c0_37] : memref<4x512x256xbf16, #tpu.memory_space<vmem>>, vector<1x512x256xbf16>
    %34 = vector.shape_cast %33 : vector<1x512x256xbf16> to vector<512x256xbf16>
    %cst_38 = arith.constant dense<0.000000e+00> : vector<2x256xf32>
    %35 = tpu.matmul %32, %34, %cst_38 {dimension_numbers = #tpu.dot_dimension_numbers<[1], [0], [0], [1], [0, 0, 1, 1], [], []>} : vector<2x512xbf16>, vector<512x256xbf16>, vector<2x256xf32> -> vector<2x256xf32>
    %36 = arith.addf %30, %35 : vector<2x256xf32>
    %c0_39 = arith.constant 0 : index
    %c3 = arith.constant 3 : index
    %c0_40 = arith.constant 0 : index
    %37 = vector.load %arg15[%c0_39, %c3, %c0_40] : memref<2x16x512xbf16, #tpu.memory_space<vmem>>, vector<2x1x512xbf16>
    %38 = vector.shape_cast %37 : vector<2x1x512xbf16> to vector<2x512xbf16>
    %c3_41 = arith.constant 3 : index
    %c0_42 = arith.constant 0 : index
    %c0_43 = arith.constant 0 : index
    %39 = vector.load %arg5[%c3_41, %c0_42, %c0_43] : memref<4x512x256xbf16, #tpu.memory_space<vmem>>, vector<1x512x256xbf16>
    %40 = vector.shape_cast %39 : vector<1x512x256xbf16> to vector<512x256xbf16>
    %cst_44 = arith.constant dense<0.000000e+00> : vector<2x256xf32>
    %41 = tpu.matmul %38, %40, %cst_44 {dimension_numbers = #tpu.dot_dimension_numbers<[1], [0], [0], [1], [0, 0, 1, 1], [], []>} : vector<2x512xbf16>, vector<512x256xbf16>, vector<2x256xf32> -> vector<2x256xf32>
    %42 = arith.addf %36, %41 : vector<2x256xf32>
    %43 = vector.broadcast %19 : vector<1x256xf32> to vector<2x256xf32>
    %44 = arith.addf %42, %43 : vector<2x256xf32>
    %cst_45 = arith.constant 0.000000e+00 : f32
    %45 = vector.broadcast %cst_45 : f32 to vector<2x256xf32>
    %46 = arith.maximumf %44, %45 : vector<2x256xf32>
    %47 = arith.truncf %46 : vector<2x256xf32> to vector<2x256xbf16>
    %c0_46 = arith.constant 0 : index
    %c4 = arith.constant 4 : index
    %c0_47 = arith.constant 0 : index
    %48 = vector.load %arg15[%c0_46, %c4, %c0_47] : memref<2x16x512xbf16, #tpu.memory_space<vmem>>, vector<2x1x512xbf16>
    %49 = vector.shape_cast %48 : vector<2x1x512xbf16> to vector<2x512xbf16>
    %c0_48 = arith.constant 0 : index
    %c0_49 = arith.constant 0 : index
    %c0_50 = arith.constant 0 : index
    %50 = vector.load %arg5[%c0_48, %c0_49, %c0_50] : memref<4x512x256xbf16, #tpu.memory_space<vmem>>, vector<1x512x256xbf16>
    %51 = vector.shape_cast %50 : vector<1x512x256xbf16> to vector<512x256xbf16>
    %cst_51 = arith.constant dense<0.000000e+00> : vector<2x256xf32>
    %52 = tpu.matmul %49, %51, %cst_51 {dimension_numbers = #tpu.dot_dimension_numbers<[1], [0], [0], [1], [0, 0, 1, 1], [], []>} : vector<2x512xbf16>, vector<512x256xbf16>, vector<2x256xf32> -> vector<2x256xf32>
    %c0_52 = arith.constant 0 : index
    %c5 = arith.constant 5 : index
    %c0_53 = arith.constant 0 : index
    %53 = vector.load %arg15[%c0_52, %c5, %c0_53] : memref<2x16x512xbf16, #tpu.memory_space<vmem>>, vector<2x1x512xbf16>
    %54 = vector.shape_cast %53 : vector<2x1x512xbf16> to vector<2x512xbf16>
    %c1_54 = arith.constant 1 : index
    %c0_55 = arith.constant 0 : index
    %c0_56 = arith.constant 0 : index
    %55 = vector.load %arg5[%c1_54, %c0_55, %c0_56] : memref<4x512x256xbf16, #tpu.memory_space<vmem>>, vector<1x512x256xbf16>
    %56 = vector.shape_cast %55 : vector<1x512x256xbf16> to vector<512x256xbf16>
    %cst_57 = arith.constant dense<0.000000e+00> : vector<2x256xf32>
    %57 = tpu.matmul %54, %56, %cst_57 {dimension_numbers = #tpu.dot_dimension_numbers<[1], [0], [0], [1], [0, 0, 1, 1], [], []>} : vector<2x512xbf16>, vector<512x256xbf16>, vector<2x256xf32> -> vector<2x256xf32>
    %58 = arith.addf %52, %57 : vector<2x256xf32>
    %c0_58 = arith.constant 0 : index
    %c6 = arith.constant 6 : index
    %c0_59 = arith.constant 0 : index
    %59 = vector.load %arg15[%c0_58, %c6, %c0_59] : memref<2x16x512xbf16, #tpu.memory_space<vmem>>, vector<2x1x512xbf16>
    %60 = vector.shape_cast %59 : vector<2x1x512xbf16> to vector<2x512xbf16>
    %c2_60 = arith.constant 2 : index
    %c0_61 = arith.constant 0 : index
    %c0_62 = arith.constant 0 : index
    %61 = vector.load %arg5[%c2_60, %c0_61, %c0_62] : memref<4x512x256xbf16, #tpu.memory_space<vmem>>, vector<1x512x256xbf16>
    %62 = vector.shape_cast %61 : vector<1x512x256xbf16> to vector<512x256xbf16>
    %cst_63 = arith.constant dense<0.000000e+00> : vector<2x256xf32>
    %63 = tpu.matmul %60, %62, %cst_63 {dimension_numbers = #tpu.dot_dimension_numbers<[1], [0], [0], [1], [0, 0, 1, 1], [], []>} : vector<2x512xbf16>, vector<512x256xbf16>, vector<2x256xf32> -> vector<2x256xf32>
    %64 = arith.addf %58, %63 : vector<2x256xf32>
    %c0_64 = arith.constant 0 : index
    %c7 = arith.constant 7 : index
    %c0_65 = arith.constant 0 : index
    %65 = vector.load %arg15[%c0_64, %c7, %c0_65] : memref<2x16x512xbf16, #tpu.memory_space<vmem>>, vector<2x1x512xbf16>
    %66 = vector.shape_cast %65 : vector<2x1x512xbf16> to vector<2x512xbf16>
    %c3_66 = arith.constant 3 : index
    %c0_67 = arith.constant 0 : index
    %c0_68 = arith.constant 0 : index
    %67 = vector.load %arg5[%c3_66, %c0_67, %c0_68] : memref<4x512x256xbf16, #tpu.memory_space<vmem>>, vector<1x512x256xbf16>
    %68 = vector.shape_cast %67 : vector<1x512x256xbf16> to vector<512x256xbf16>
    %cst_69 = arith.constant dense<0.000000e+00> : vector<2x256xf32>
    %69 = tpu.matmul %66, %68, %cst_69 {dimension_numbers = #tpu.dot_dimension_numbers<[1], [0], [0], [1], [0, 0, 1, 1], [], []>} : vector<2x512xbf16>, vector<512x256xbf16>, vector<2x256xf32> -> vector<2x256xf32>
    %70 = arith.addf %64, %69 : vector<2x256xf32>
    %71 = vector.broadcast %19 : vector<1x256xf32> to vector<2x256xf32>
    %72 = arith.addf %70, %71 : vector<2x256xf32>
    %cst_70 = arith.constant 0.000000e+00 : f32
    %73 = vector.broadcast %cst_70 : f32 to vector<2x256xf32>
    %74 = arith.maximumf %72, %73 : vector<2x256xf32>
    %75 = arith.truncf %74 : vector<2x256xf32> to vector<2x256xbf16>
    %c0_71 = arith.constant 0 : index
    %c8 = arith.constant 8 : index
    %c0_72 = arith.constant 0 : index
    %76 = vector.load %arg15[%c0_71, %c8, %c0_72] : memref<2x16x512xbf16, #tpu.memory_space<vmem>>, vector<2x1x512xbf16>
    %77 = vector.shape_cast %76 : vector<2x1x512xbf16> to vector<2x512xbf16>
    %c0_73 = arith.constant 0 : index
    %c0_74 = arith.constant 0 : index
    %c0_75 = arith.constant 0 : index
    %78 = vector.load %arg5[%c0_73, %c0_74, %c0_75] : memref<4x512x256xbf16, #tpu.memory_space<vmem>>, vector<1x512x256xbf16>
    %79 = vector.shape_cast %78 : vector<1x512x256xbf16> to vector<512x256xbf16>
    %cst_76 = arith.constant dense<0.000000e+00> : vector<2x256xf32>
    %80 = tpu.matmul %77, %79, %cst_76 {dimension_numbers = #tpu.dot_dimension_numbers<[1], [0], [0], [1], [0, 0, 1, 1], [], []>} : vector<2x512xbf16>, vector<512x256xbf16>, vector<2x256xf32> -> vector<2x256xf32>
    %c0_77 = arith.constant 0 : index
    %c9 = arith.constant 9 : index
    %c0_78 = arith.constant 0 : index
    %81 = vector.load %arg15[%c0_77, %c9, %c0_78] : memref<2x16x512xbf16, #tpu.memory_space<vmem>>, vector<2x1x512xbf16>
    %82 = vector.shape_cast %81 : vector<2x1x512xbf16> to vector<2x512xbf16>
    %c1_79 = arith.constant 1 : index
    %c0_80 = arith.constant 0 : index
    %c0_81 = arith.constant 0 : index
    %83 = vector.load %arg5[%c1_79, %c0_80, %c0_81] : memref<4x512x256xbf16, #tpu.memory_space<vmem>>, vector<1x512x256xbf16>
    %84 = vector.shape_cast %83 : vector<1x512x256xbf16> to vector<512x256xbf16>
    %cst_82 = arith.constant dense<0.000000e+00> : vector<2x256xf32>
    %85 = tpu.matmul %82, %84, %cst_82 {dimension_numbers = #tpu.dot_dimension_numbers<[1], [0], [0], [1], [0, 0, 1, 1], [], []>} : vector<2x512xbf16>, vector<512x256xbf16>, vector<2x256xf32> -> vector<2x256xf32>
    %86 = arith.addf %80, %85 : vector<2x256xf32>
    %c0_83 = arith.constant 0 : index
    %c10 = arith.constant 10 : index
    %c0_84 = arith.constant 0 : index
    %87 = vector.load %arg15[%c0_83, %c10, %c0_84] : memref<2x16x512xbf16, #tpu.memory_space<vmem>>, vector<2x1x512xbf16>
    %88 = vector.shape_cast %87 : vector<2x1x512xbf16> to vector<2x512xbf16>
    %c2_85 = arith.constant 2 : index
    %c0_86 = arith.constant 0 : index
    %c0_87 = arith.constant 0 : index
    %89 = vector.load %arg5[%c2_85, %c0_86, %c0_87] : memref<4x512x256xbf16, #tpu.memory_space<vmem>>, vector<1x512x256xbf16>
    %90 = vector.shape_cast %89 : vector<1x512x256xbf16> to vector<512x256xbf16>
    %cst_88 = arith.constant dense<0.000000e+00> : vector<2x256xf32>
    %91 = tpu.matmul %88, %90, %cst_88 {dimension_numbers = #tpu.dot_dimension_numbers<[1], [0], [0], [1], [0, 0, 1, 1], [], []>} : vector<2x512xbf16>, vector<512x256xbf16>, vector<2x256xf32> -> vector<2x256xf32>
    %92 = arith.addf %86, %91 : vector<2x256xf32>
    %c0_89 = arith.constant 0 : index
    %c11 = arith.constant 11 : index
    %c0_90 = arith.constant 0 : index
    %93 = vector.load %arg15[%c0_89, %c11, %c0_90] : memref<2x16x512xbf16, #tpu.memory_space<vmem>>, vector<2x1x512xbf16>
    %94 = vector.shape_cast %93 : vector<2x1x512xbf16> to vector<2x512xbf16>
    %c3_91 = arith.constant 3 : index
    %c0_92 = arith.constant 0 : index
    %c0_93 = arith.constant 0 : index
    %95 = vector.load %arg5[%c3_91, %c0_92, %c0_93] : memref<4x512x256xbf16, #tpu.memory_space<vmem>>, vector<1x512x256xbf16>
    %96 = vector.shape_cast %95 : vector<1x512x256xbf16> to vector<512x256xbf16>
    %cst_94 = arith.constant dense<0.000000e+00> : vector<2x256xf32>
    %97 = tpu.matmul %94, %96, %cst_94 {dimension_numbers = #tpu.dot_dimension_numbers<[1], [0], [0], [1], [0, 0, 1, 1], [], []>} : vector<2x512xbf16>, vector<512x256xbf16>, vector<2x256xf32> -> vector<2x256xf32>
    %98 = arith.addf %92, %97 : vector<2x256xf32>
    %99 = vector.broadcast %19 : vector<1x256xf32> to vector<2x256xf32>
    %100 = arith.addf %98, %99 : vector<2x256xf32>
    %cst_95 = arith.constant 0.000000e+00 : f32
    %101 = vector.broadcast %cst_95 : f32 to vector<2x256xf32>
    %102 = arith.maximumf %100, %101 : vector<2x256xf32>
    %103 = arith.truncf %102 : vector<2x256xf32> to vector<2x256xbf16>
    %c0_96 = arith.constant 0 : index
    %c12 = arith.constant 12 : index
    %c0_97 = arith.constant 0 : index
    %104 = vector.load %arg15[%c0_96, %c12, %c0_97] : memref<2x16x512xbf16, #tpu.memory_space<vmem>>, vector<2x1x512xbf16>
    %105 = vector.shape_cast %104 : vector<2x1x512xbf16> to vector<2x512xbf16>
    %c0_98 = arith.constant 0 : index
    %c0_99 = arith.constant 0 : index
    %c0_100 = arith.constant 0 : index
    %106 = vector.load %arg5[%c0_98, %c0_99, %c0_100] : memref<4x512x256xbf16, #tpu.memory_space<vmem>>, vector<1x512x256xbf16>
    %107 = vector.shape_cast %106 : vector<1x512x256xbf16> to vector<512x256xbf16>
    %cst_101 = arith.constant dense<0.000000e+00> : vector<2x256xf32>
    %108 = tpu.matmul %105, %107, %cst_101 {dimension_numbers = #tpu.dot_dimension_numbers<[1], [0], [0], [1], [0, 0, 1, 1], [], []>} : vector<2x512xbf16>, vector<512x256xbf16>, vector<2x256xf32> -> vector<2x256xf32>
    %c0_102 = arith.constant 0 : index
    %c13 = arith.constant 13 : index
    %c0_103 = arith.constant 0 : index
    %109 = vector.load %arg15[%c0_102, %c13, %c0_103] : memref<2x16x512xbf16, #tpu.memory_space<vmem>>, vector<2x1x512xbf16>
    %110 = vector.shape_cast %109 : vector<2x1x512xbf16> to vector<2x512xbf16>
    %c1_104 = arith.constant 1 : index
    %c0_105 = arith.constant 0 : index
    %c0_106 = arith.constant 0 : index
    %111 = vector.load %arg5[%c1_104, %c0_105, %c0_106] : memref<4x512x256xbf16, #tpu.memory_space<vmem>>, vector<1x512x256xbf16>
    %112 = vector.shape_cast %111 : vector<1x512x256xbf16> to vector<512x256xbf16>
    %cst_107 = arith.constant dense<0.000000e+00> : vector<2x256xf32>
    %113 = tpu.matmul %110, %112, %cst_107 {dimension_numbers = #tpu.dot_dimension_numbers<[1], [0], [0], [1], [0, 0, 1, 1], [], []>} : vector<2x512xbf16>, vector<512x256xbf16>, vector<2x256xf32> -> vector<2x256xf32>
    %114 = arith.addf %108, %113 : vector<2x256xf32>
    %c0_108 = arith.constant 0 : index
    %c14 = arith.constant 14 : index
    %c0_109 = arith.constant 0 : index
    %115 = vector.load %arg15[%c0_108, %c14, %c0_109] : memref<2x16x512xbf16, #tpu.memory_space<vmem>>, vector<2x1x512xbf16>
    %116 = vector.shape_cast %115 : vector<2x1x512xbf16> to vector<2x512xbf16>
    %c2_110 = arith.constant 2 : index
    %c0_111 = arith.constant 0 : index
    %c0_112 = arith.constant 0 : index
    %117 = vector.load %arg5[%c2_110, %c0_111, %c0_112] : memref<4x512x256xbf16, #tpu.memory_space<vmem>>, vector<1x512x256xbf16>
    %118 = vector.shape_cast %117 : vector<1x512x256xbf16> to vector<512x256xbf16>
    %cst_113 = arith.constant dense<0.000000e+00> : vector<2x256xf32>
    %119 = tpu.matmul %116, %118, %cst_113 {dimension_numbers = #tpu.dot_dimension_numbers<[1], [0], [0], [1], [0, 0, 1, 1], [], []>} : vector<2x512xbf16>, vector<512x256xbf16>, vector<2x256xf32> -> vector<2x256xf32>
    %120 = arith.addf %114, %119 : vector<2x256xf32>
    %c0_114 = arith.constant 0 : index
    %c15 = arith.constant 15 : index
    %c0_115 = arith.constant 0 : index
    %121 = vector.load %arg15[%c0_114, %c15, %c0_115] : memref<2x16x512xbf16, #tpu.memory_space<vmem>>, vector<2x1x512xbf16>
    %122 = vector.shape_cast %121 : vector<2x1x512xbf16> to vector<2x512xbf16>
    %c3_116 = arith.constant 3 : index
    %c0_117 = arith.constant 0 : index
    %c0_118 = arith.constant 0 : index
    %123 = vector.load %arg5[%c3_116, %c0_117, %c0_118] : memref<4x512x256xbf16, #tpu.memory_space<vmem>>, vector<1x512x256xbf16>
    %124 = vector.shape_cast %123 : vector<1x512x256xbf16> to vector<512x256xbf16>
    %cst_119 = arith.constant dense<0.000000e+00> : vector<2x256xf32>
    %125 = tpu.matmul %122, %124, %cst_119 {dimension_numbers = #tpu.dot_dimension_numbers<[1], [0], [0], [1], [0, 0, 1, 1], [], []>} : vector<2x512xbf16>, vector<512x256xbf16>, vector<2x256xf32> -> vector<2x256xf32>
    %126 = arith.addf %120, %125 : vector<2x256xf32>
    %127 = vector.broadcast %19 : vector<1x256xf32> to vector<2x256xf32>
    %128 = arith.addf %126, %127 : vector<2x256xf32>
    %cst_120 = arith.constant 0.000000e+00 : f32
    %129 = vector.broadcast %cst_120 : f32 to vector<2x256xf32>
    %130 = arith.maximumf %128, %129 : vector<2x256xf32>
    %131 = arith.truncf %130 : vector<2x256xf32> to vector<2x256xbf16>
    %132 = tpu.concatenate %47, %75, %103, %131 in 1 : vector<2x256xbf16>, vector<2x256xbf16>, vector<2x256xbf16>, vector<2x256xbf16> -> vector<2x1024xbf16>
    %c0_121 = arith.constant 0 : index
    %c0_122 = arith.constant 0 : index
    %133 = vector.load %arg7[%c0_121, %c0_122] : memref<1024x64xbf16, #tpu.memory_space<vmem>>, vector<1024x64xbf16>
    %cst_123 = arith.constant dense<0.000000e+00> : vector<2x64xf32>
    %134 = tpu.matmul %132, %133, %cst_123 {dimension_numbers = #tpu.dot_dimension_numbers<[1], [0], [0], [1], [0, 0, 1, 1], [], []>} : vector<2x1024xbf16>, vector<1024x64xbf16>, vector<2x64xf32> -> vector<2x64xf32>
    %c0_124 = arith.constant 0 : index
    %c0_125 = arith.constant 0 : index
    %135 = vector.load %arg8[%c0_124, %c0_125] : memref<1x64xf32, #tpu.memory_space<vmem>>, vector<1x64xf32>
    %136 = vector.broadcast %135 : vector<1x64xf32> to vector<2x64xf32>
    %137 = arith.addf %134, %136 : vector<2x64xf32>
    %cst_126 = arith.constant 0.000000e+00 : f32
    %138 = vector.broadcast %cst_126 : f32 to vector<2x64xf32>
    %139 = arith.maximumf %137, %138 : vector<2x64xf32>
    %140 = arith.truncf %139 : vector<2x64xf32> to vector<2x64xbf16>
    %c0_127 = arith.constant 0 : index
    %c0_128 = arith.constant 0 : index
    %141 = vector.load %arg9[%c0_127, %c0_128] : memref<64x32xbf16, #tpu.memory_space<vmem>>, vector<64x32xbf16>
    %cst_129 = arith.constant dense<0.000000e+00> : vector<2x32xf32>
    %142 = tpu.matmul %140, %141, %cst_129 {dimension_numbers = #tpu.dot_dimension_numbers<[1], [0], [0], [1], [0, 0, 1, 1], [], []>} : vector<2x64xbf16>, vector<64x32xbf16>, vector<2x32xf32> -> vector<2x32xf32>
    %c0_130 = arith.constant 0 : index
    %c0_131 = arith.constant 0 : index
    %143 = vector.load %arg2[%c0_130, %c0_131] : memref<2x8xbf16, #tpu.memory_space<vmem>>, vector<2x8xbf16>
    %c0_132 = arith.constant 0 : index
    %c0_133 = arith.constant 0 : index
    %144 = vector.load %arg10[%c0_132, %c0_133] : memref<8x32xbf16, #tpu.memory_space<vmem>>, vector<8x32xbf16>
    %cst_134 = arith.constant dense<0.000000e+00> : vector<2x32xf32>
    %145 = tpu.matmul %143, %144, %cst_134 {dimension_numbers = #tpu.dot_dimension_numbers<[1], [0], [0], [1], [0, 0, 1, 1], [], []>} : vector<2x8xbf16>, vector<8x32xbf16>, vector<2x32xf32> -> vector<2x32xf32>
    %146 = arith.addf %142, %145 : vector<2x32xf32>
    %c0_135 = arith.constant 0 : index
    %c0_136 = arith.constant 0 : index
    %147 = vector.load %arg11[%c0_135, %c0_136] : memref<1x32xf32, #tpu.memory_space<vmem>>, vector<1x32xf32>
    %148 = vector.broadcast %147 : vector<1x32xf32> to vector<2x32xf32>
    %149 = arith.addf %146, %148 : vector<2x32xf32>
    %cst_137 = arith.constant 0.000000e+00 : f32
    %150 = vector.broadcast %cst_137 : f32 to vector<2x32xf32>
    %151 = arith.maximumf %149, %150 : vector<2x32xf32>
    %152 = arith.truncf %151 : vector<2x32xf32> to vector<2x32xbf16>
    %c0_138 = arith.constant 0 : index
    %c0_139 = arith.constant 0 : index
    %153 = vector.load %arg12[%c0_138, %c0_139] : memref<32x4xbf16, #tpu.memory_space<vmem>>, vector<32x4xbf16>
    %cst_140 = arith.constant dense<0.000000e+00> : vector<2x4xf32>
    %154 = tpu.matmul %152, %153, %cst_140 {dimension_numbers = #tpu.dot_dimension_numbers<[1], [0], [0], [1], [0, 0, 1, 1], [], []>} : vector<2x32xbf16>, vector<32x4xbf16>, vector<2x4xf32> -> vector<2x4xf32>
    %c0_141 = arith.constant 0 : index
    %c0_142 = arith.constant 0 : index
    %155 = vector.load %arg13[%c0_141, %c0_142] : memref<1x4xf32, #tpu.memory_space<vmem>>, vector<1x4xf32>
    %156 = vector.broadcast %155 : vector<1x4xf32> to vector<2x4xf32>
    %157 = arith.addf %154, %156 : vector<2x4xf32>
    %cst_143 = arith.constant dense<0xFF800000> : vector<2xf32>
    %158 = vector.multi_reduction <maximumf>, %157, %cst_143 [1] : vector<2x4xf32> to vector<2xf32>
    %159 = vector.shape_cast %158 : vector<2xf32> to vector<2x1xf32>
    %160 = vector.broadcast %159 : vector<2x1xf32> to vector<2x4xf32>
    %161 = arith.subf %157, %160 : vector<2x4xf32>
    %162 = math.exp %161 : vector<2x4xf32>
    %cst_144 = arith.constant dense<0.000000e+00> : vector<2xf32>
    %163 = vector.multi_reduction <add>, %162, %cst_144 [1] : vector<2x4xf32> to vector<2xf32>
    %164 = vector.shape_cast %163 : vector<2xf32> to vector<2x1xf32>
    %165 = math.log %164 : vector<2x1xf32>
    %166 = arith.addf %159, %165 : vector<2x1xf32>
    %167 = vector.broadcast %166 : vector<2x1xf32> to vector<2x4xf32>
    %168 = arith.subf %157, %167 : vector<2x4xf32>
    %c0_145 = arith.constant 0 : index
    %c0_146 = arith.constant 0 : index
    %169 = vector.load %arg14[%c0_145, %c0_146] : memref<2x4xf32, #tpu.memory_space<vmem>>, vector<2x4xf32>
    tpu.vector_store %arg14[%c0_145, %c0_146], %168 {strides = array<i32>} : memref<2x4xf32, #tpu.memory_space<vmem>>, vector<2x4xf32>,
    return
  }
  func.func @transform_0(%arg0: i32) -> (i32, i32, i32) {
    %c0_i32 = arith.constant 0 : i32
    %c0_i32_0 = arith.constant 0 : i32
    %c0_i32_1 = arith.constant 0 : i32
    return %arg0, %c0_i32, %c0_i32_0 : i32, i32, i32
  }
  func.func @transform_1(%arg0: i32) -> (i32, i32) {
    %c0_i32 = arith.constant 0 : i32
    %c0_i32_0 = arith.constant 0 : i32
    return %arg0, %c0_i32 : i32, i32
  }
  func.func @transform_2(%arg0: i32) -> (i32, i32, i32) {
    %c0_i32 = arith.constant 0 : i32
    %c0_i32_0 = arith.constant 0 : i32
    %c0_i32_1 = arith.constant 0 : i32
    %c0_i32_2 = arith.constant 0 : i32
    return %c0_i32, %c0_i32_0, %c0_i32_1 : i32, i32, i32
  }
  func.func @transform_3(%arg0: i32) -> (i32, i32) {
    %c0_i32 = arith.constant 0 : i32
    %c0_i32_0 = arith.constant 0 : i32
    %c0_i32_1 = arith.constant 0 : i32
    return %c0_i32, %c0_i32_0 : i32, i32
  }
  func.func @transform_4(%arg0: i32) -> (i32, i32, i32) {
    %c0_i32 = arith.constant 0 : i32
    %c0_i32_0 = arith.constant 0 : i32
    %c0_i32_1 = arith.constant 0 : i32
    %c0_i32_2 = arith.constant 0 : i32
    return %c0_i32, %c0_i32_0, %c0_i32_1 : i32, i32, i32
  }
  func.func @transform_5(%arg0: i32) -> (i32, i32) {
    %c0_i32 = arith.constant 0 : i32
    %c0_i32_0 = arith.constant 0 : i32
    %c0_i32_1 = arith.constant 0 : i32
    return %c0_i32, %c0_i32_0 : i32, i32
  }
  func.func @transform_6(%arg0: i32) -> (i32, i32) {
    %c0_i32 = arith.constant 0 : i32
    %c0_i32_0 = arith.constant 0 : i32
    %c0_i32_1 = arith.constant 0 : i32
    return %c0_i32, %c0_i32_0 : i32, i32
  }
  func.func @transform_7(%arg0: i32) -> (i32, i32) {
    %c0_i32 = arith.constant 0 : i32
    %c0_i32_0 = arith.constant 0 : i32
    %c0_i32_1 = arith.constant 0 : i32
    return %c0_i32, %c0_i32_0 : i32, i32
  }
  func.func @transform_8(%arg0: i32) -> (i32, i32) {
    %c0_i32 = arith.constant 0 : i32
    %c0_i32_0 = arith.constant 0 : i32
    %c0_i32_1 = arith.constant 0 : i32
    return %c0_i32, %c0_i32_0 : i32, i32
  }
  func.func @transform_9(%arg0: i32) -> (i32, i32) {
    %c0_i32 = arith.constant 0 : i32
    %c0_i32_0 = arith.constant 0 : i32
    %c0_i32_1 = arith.constant 0 : i32
    return %c0_i32, %c0_i32_0 : i32, i32
  }
  func.func @transform_10(%arg0: i32) -> (i32, i32) {
    %c0_i32 = arith.constant 0 : i32
    %c0_i32_0 = arith.constant 0 : i32
    %c0_i32_1 = arith.constant 0 : i32
    return %c0_i32, %c0_i32_0 : i32, i32
  }
  func.func @transform_11(%arg0: i32) -> (i32, i32) {
    %c0_i32 = arith.constant 0 : i32
    %c0_i32_0 = arith.constant 0 : i32
    %c0_i32_1 = arith.constant 0 : i32
    return %c0_i32, %c0_i32_0 : i32, i32
  }
  func.func @transform_12(%arg0: i32) -> (i32, i32) {
    %c0_i32 = arith.constant 0 : i32
    %c0_i32_0 = arith.constant 0 : i32
    %c0_i32_1 = arith.constant 0 : i32
    return %c0_i32, %c0_i32_0 : i32, i32
  }
  func.func @transform_13(%arg0: i32) -> (i32, i32) {
    %c0_i32 = arith.constant 0 : i32
    %c0_i32_0 = arith.constant 0 : i32
    return %arg0, %c0_i32 : i32, i32
  }
}

</mosaic_0001>

<llo_original>
// kernel: actor_forward.1
$region0: #{actor_forward.1}
  #allocation0 [shape = 'u32[]', space=smem, size = 0x4, offset = 0x4, fixed_abs, tag = 'smem constant byte address 0x4 - core index']
  #allocation1 [shape = 'u32[144,128]{1,0:T(1,128)}', space=vmem, size = 0x12000, scoped, tag = 'internal scratch']
  #allocation2 [shape = 'bf16[2,16,512]{2,1,0:T(16,128)(2,1)}', space=vmem, size = 0x8000, scoped, tag = 'scratch operand']
  %s0 = inlined_call_operand.vmem [shape: bf16[2,17,816], index: 0, kind: input, shape index: {}]
  %s1 = inlined_call_operand.vmem [shape: bf16[2,8], index: 1, kind: input, shape index: {}]
  %s2 = inlined_call_operand.vmem [shape: bf16[2,816,512], index: 2, kind: input, shape index: {}]
  %s3 = inlined_call_operand.vmem [shape: f32[1,512], index: 3, kind: input, shape index: {}]
  %s4 = inlined_call_operand.vmem [shape: bf16[4,512,256], index: 4, kind: input, shape index: {}]
  %s5 = inlined_call_operand.vmem [shape: f32[1,256], index: 5, kind: input, shape index: {}]
  %s6 = inlined_call_operand.vmem [shape: bf16[1024,64], index: 6, kind: input, shape index: {}]
  %s7 = inlined_call_operand.vmem [shape: f32[1,64], index: 7, kind: input, shape index: {}]
  %s8 = inlined_call_operand.vmem [shape: bf16[64,32], index: 8, kind: input, shape index: {}]
  %s9 = inlined_call_operand.vmem [shape: bf16[8,32], index: 9, kind: input, shape index: {}]
  %s10 = inlined_call_operand.vmem [shape: f32[1,32], index: 10, kind: input, shape index: {}]
  %s11 = inlined_call_operand.vmem [shape: bf16[32,4], index: 11, kind: input, shape index: {}]
  %s12 = inlined_call_operand.vmem [shape: f32[1,4], index: 12, kind: input, shape index: {}]
  %s13 = inlined_call_operand.vmem [shape: f32[2,4], index: 13, kind: output, shape index: {}]
  %s14 = sld [smem:[#allocation0]]
  $region62: #{actor_forward.1} parent=0
    _
  %s16 = ssub.s32 1, %s14
  %s17 = scalar_select 0, %s16, %s14
  // Predicated region
  $region2: #{actor_forward.1} parent=0 // pred_check
    _
  $region3: #{actor_forward.1} parent=0 // pred_check_branch
    %19 = sbr.rel (0) target = $region5
  $region4: #{actor_forward.1} parent=0 // pred_region
    _
  $region5: #{actor_forward.1} parent=0 // pred_fallthru
    _
  // Predicated region
  $region6: #{actor_forward.1} parent=0 // pred_check
    _
  $region7: #{actor_forward.1} parent=0 // pred_check_branch
    %21 = sbr.rel (0) target = $region9
  $region8: #{actor_forward.1} parent=0 // pred_region
    _
  $region9: #{actor_forward.1} parent=0 // pred_fallthru
    _
  // Predicated region
  $region10: #{actor_forward.1} parent=0 // pred_check
    _
  $region11: #{actor_forward.1} parent=0 // pred_check_branch
    %23 = sbr.rel (0) target = $region13
  $region12: #{actor_forward.1} parent=0 // pred_region
    _
  $region13: #{actor_forward.1} parent=0 // pred_fallthru
    _
  // Predicated region
  $region14: #{actor_forward.1} parent=0 // pred_check
    _
  $region15: #{actor_forward.1} parent=0 // pred_check_branch
    %25 = sbr.rel (0) target = $region17
  $region16: #{actor_forward.1} parent=0 // pred_region
    _
  $region17: #{actor_forward.1} parent=0 // pred_fallthru
    _
  // Predicated region
  $region18: #{actor_forward.1} parent=0 // pred_check
    _
  $region19: #{actor_forward.1} parent=0 // pred_check_branch
    %27 = sbr.rel (0) target = $region21
  $region20: #{actor_forward.1} parent=0 // pred_region
    _
  $region21: #{actor_forward.1} parent=0 // pred_fallthru
    _
  // Predicated region
  $region22: #{actor_forward.1} parent=0 // pred_check
    _
  $region23: #{actor_forward.1} parent=0 // pred_check_branch
    %29 = sbr.rel (0) target = $region25
  $region24: #{actor_forward.1} parent=0 // pred_region
    _
  $region25: #{actor_forward.1} parent=0 // pred_fallthru
    _
  // Predicated region
  $region26: #{actor_forward.1} parent=0 // pred_check
    _
  $region27: #{actor_forward.1} parent=0 // pred_check_branch
    %31 = sbr.rel (0) target = $region29
  $region28: #{actor_forward.1} parent=0 // pred_region
    _
  $region29: #{actor_forward.1} parent=0 // pred_fallthru
    _
  // Predicated region
  $region30: #{actor_forward.1} parent=0 // pred_check
    _
  $region31: #{actor_forward.1} parent=0 // pred_check_branch
    %33 = sbr.rel (0) target = $region33
  $region32: #{actor_forward.1} parent=0 // pred_region
    _
  $region33: #{actor_forward.1} parent=0 // pred_fallthru
    _
  // Predicated region
  $region34: #{actor_forward.1} parent=0 // pred_check
    _
  $region35: #{actor_forward.1} parent=0 // pred_check_branch
    %35 = sbr.rel (0) target = $region37
  $region36: #{actor_forward.1} parent=0 // pred_region
    _
  $region37: #{actor_forward.1} parent=0 // pred_fallthru
    _
  // Predicated region
  $region38: #{actor_forward.1} parent=0 // pred_check
    _
  $region39: #{actor_forward.1} parent=0 // pred_check_branch
    %37 = sbr.rel (0) target = $region41
  $region40: #{actor_forward.1} parent=0 // pred_region
    _
  $region41: #{actor_forward.1} parent=0 // pred_fallthru
    _
  // Predicated region
  $region42: #{actor_forward.1} parent=0 // pred_check
    _
  $region43: #{actor_forward.1} parent=0 // pred_check_branch
    %39 = sbr.rel (0) target = $region45
  $region44: #{actor_forward.1} parent=0 // pred_region
    _
  $region45: #{actor_forward.1} parent=0 // pred_fallthru
    _
  // Predicated region
  $region46: #{actor_forward.1} parent=0 // pred_check
    _
  $region47: #{actor_forward.1} parent=0 // pred_check_branch
    %41 = sbr.rel (0) target = $region49
  $region48: #{actor_forward.1} parent=0 // pred_region
    _
  $region49: #{actor_forward.1} parent=0 // pred_fallthru
    _
  // Predicated region
  $region50: #{actor_forward.1} parent=0 // pred_check
    _
  $region51: #{actor_forward.1} parent=0 // pred_check_branch
    %43 = sbr.rel (0) target = $region53
  $region52: #{actor_forward.1} parent=0 // pred_region
    _
  $region53: #{actor_forward.1} parent=0 // pred_fallthru
    _
  %v45 = vld [vmem:[%s0] sm:$0xff]
  %v46 = vld [vmem:[%s0 + $0x8] sm:$0xff]
  %v47 = vld [vmem:[%s0 + $0x10] sm:$0xff]
  %v48 = vld [vmem:[%s0 + $0x18] sm:$0xf]
  %v49 = vld [vmem:[%s0 + $0x1c] sm:$0xff]
  %v50 = vld [vmem:[%s0 + $0x24] sm:$0xff]
  %v51 = vld [vmem:[%s0 + $0x2c] sm:$0xff]
  %v52 = vld [vmem:[%s0 + $0x34] sm:$0xf]
  %v53 = vld [vmem:[%s0 + $0x54] sm:$0xff]
  %v54 = vld [vmem:[%s0 + $0x5c] sm:$0xff]
  %v55 = vld [vmem:[%s0 + $0x64] sm:$0xff]
  %v56 = vld [vmem:[%s0 + $0x6c] sm:$0xf]
  %v57 = vld [vmem:[%s0 + $0x70] sm:$0xff]
  %v58 = vld [vmem:[%s0 + $0x78] sm:$0xff]
  %v59 = vld [vmem:[%s0 + $0x80] sm:$0xff]
  %v60 = vld [vmem:[%s0 + $0x88] sm:$0xf]
  %v61 = vld [vmem:[%s0 + $0x38] sm:$0x11]
  %v62 = vld [vmem:[%s0 + $0x40] sm:$0x11]
  %v63 = vld [vmem:[%s0 + $0x48] sm:$0x11]
  %v64 = vld [vmem:[%s0 + $0x50] sm:$0x1]
  %v65 = vld [vmem:[%s0 + $0x8c] sm:$0x11]
  %v66 = vld [vmem:[%s0 + $0x94] sm:$0x11]
  %v67 = vld [vmem:[%s0 + $0x9c] sm:$0x11]
  %v68 = vld [vmem:[%s0 + $0xa4] sm:$0x1]
  %vm69 = vsmask.f32 3328
  %vm70 = vsmask.f32 7440
  %vm71 = vmor %vm69, %vm70
  %v73 = vshrl.u32 %v45, 16
  %v75 = vrot.slane %v73, 4
  %v76 = vshll.u32 %v45, 16
  %v78 = vrot.slane %v76, 5
  %v79 = vor.u32 %v75, %v78
  %v80 = vrot.slane %v79, 4
  %v82 = vshll.u32 %v49, 16
  %v84 = vrot.slane %v82, 5
  %v85 = vsel %vm71, %v80, %v84
  %v87 = vshrl.u32 %v46, 16
  %v89 = vrot.slane %v87, 4
  %v90 = vshll.u32 %v46, 16
  %v92 = vrot.slane %v90, 5
  %v93 = vor.u32 %v89, %v92
  %v94 = vrot.slane %v93, 4
  %v96 = vshll.u32 %v50, 16
  %v98 = vrot.slane %v96, 5
  %v99 = vsel %vm71, %v94, %v98
  %v101 = vshrl.u32 %v47, 16
  %v103 = vrot.slane %v101, 4
  %v104 = vshll.u32 %v47, 16
  %v106 = vrot.slane %v104, 5
  %v107 = vor.u32 %v103, %v106
  %v108 = vrot.slane %v107, 4
  %v110 = vshll.u32 %v51, 16
  %v112 = vrot.slane %v110, 5
  %v113 = vsel %vm71, %v108, %v112
  %v115 = vshrl.u32 %v48, 16
  %v117 = vrot.slane %v115, 4
  %v118 = vshll.u32 %v48, 16
  %v120 = vrot.slane %v118, 5
  %v121 = vor.u32 %v117, %v120
  %v122 = vrot.slane %v121, 4
  %v124 = vshll.u32 %v52, 16
  %v126 = vrot.slane %v124, 5
  %v127 = vsel %vm71, %v122, %v126
  %v128 = vshrl.u32 %v49, 16
  %v130 = vrot.slane %v128, 4
  %v131 = vor.u32 %v130, %v84
  %v132 = vrot.slane %v131, 4
  %v134 = vshll.u32 %v61, 16
  %v136 = vrot.slane %v134, 5
  %v137 = vsel %vm71, %v132, %v136
  %v138 = vshrl.u32 %v50, 16
  %v140 = vrot.slane %v138, 4
  %v141 = vor.u32 %v140, %v98
  %v142 = vrot.slane %v141, 4
  %v144 = vshll.u32 %v62, 16
  %v146 = vrot.slane %v144, 5
  %v147 = vsel %vm71, %v142, %v146
  %v148 = vshrl.u32 %v51, 16
  %v150 = vrot.slane %v148, 4
  %v151 = vor.u32 %v150, %v112
  %v152 = vrot.slane %v151, 4
  %v154 = vshll.u32 %v63, 16
  %v156 = vrot.slane %v154, 5
  %v157 = vsel %vm71, %v152, %v156
  %v158 = vshrl.u32 %v52, 16
  %v160 = vrot.slane %v158, 4
  %v161 = vor.u32 %v160, %v126
  %v162 = vrot.slane %v161, 4
  %v164 = vshll.u32 %v64, 16
  %v166 = vrot.slane %v164, 5
  %v167 = vsel %vm71, %v162, %v166
  %v169 = vshrl.u32 %v53, 16
  %v171 = vrot.slane %v169, 4
  %v172 = vshll.u32 %v53, 16
  %v174 = vrot.slane %v172, 5
  %v175 = vor.u32 %v171, %v174
  %v176 = vrot.slane %v175, 4
  %v178 = vshll.u32 %v57, 16
  %v180 = vrot.slane %v178, 5
  %v181 = vsel %vm71, %v176, %v180
  %v183 = vshrl.u32 %v54, 16
  %v185 = vrot.slane %v183, 4
  %v186 = vshll.u32 %v54, 16
  %v188 = vrot.slane %v186, 5
  %v189 = vor.u32 %v185, %v188
  %v190 = vrot.slane %v189, 4
  %v192 = vshll.u32 %v58, 16
  %v194 = vrot.slane %v192, 5
  %v195 = vsel %vm71, %v190, %v194
  %v197 = vshrl.u32 %v55, 16
  %v199 = vrot.slane %v197, 4
  %v200 = vshll.u32 %v55, 16
  %v202 = vrot.slane %v200, 5
  %v203 = vor.u32 %v199, %v202
  %v204 = vrot.slane %v203, 4
  %v206 = vshll.u32 %v59, 16
  %v208 = vrot.slane %v206, 5
  %v209 = vsel %vm71, %v204, %v208
  %v211 = vshrl.u32 %v56, 16
  %v213 = vrot.slane %v211, 4
  %v214 = vshll.u32 %v56, 16
  %v216 = vrot.slane %v214, 5
  %v217 = vor.u32 %v213, %v216
  %v218 = vrot.slane %v217, 4
  %v220 = vshll.u32 %v60, 16
  %v222 = vrot.slane %v220, 5
  %v223 = vsel %vm71, %v218, %v222
  %v224 = vshrl.u32 %v57, 16
  %v226 = vrot.slane %v224, 4
  %v227 = vor.u32 %v226, %v180
  %v228 = vrot.slane %v227, 4
  %v230 = vshll.u32 %v65, 16
  %v232 = vrot.slane %v230, 5
  %v233 = vsel %vm71, %v228, %v232
  %v234 = vshrl.u32 %v58, 16
  %v236 = vrot.slane %v234, 4
  %v237 = vor.u32 %v236, %v194
  %v238 = vrot.slane %v237, 4
  %v240 = vshll.u32 %v66, 16
  %v242 = vrot.slane %v240, 5
  %v243 = vsel %vm71, %v238, %v242
  %v244 = vshrl.u32 %v59, 16
  %v246 = vrot.slane %v244, 4
  %v247 = vor.u32 %v246, %v208
  %v248 = vrot.slane %v247, 4
  %v250 = vshll.u32 %v67, 16
  %v252 = vrot.slane %v250, 5
  %v253 = vsel %vm71, %v248, %v252
  %v254 = vshrl.u32 %v60, 16
  %v256 = vrot.slane %v254, 4
  %v257 = vor.u32 %v256, %v222
  %v258 = vrot.slane %v257, 4
  %v260 = vshll.u32 %v68, 16
  %v262 = vrot.slane %v260, 5
  %v263 = vsel %vm71, %v258, %v262
  %v264 = vld [vmem:[%s2] sm:$0xff]
  %v265 = vld [vmem:[%s2 + $0x8] sm:$0xff]
  %v266 = vld [vmem:[%s2 + $0x10] sm:$0xff]
  %v267 = vld [vmem:[%s2 + $0x18] sm:$0xff]
  %v268 = vld [vmem:[%s2 + $0x20] sm:$0xff]
  %v269 = vld [vmem:[%s2 + $0x28] sm:$0xff]
  %v270 = vld [vmem:[%s2 + $0x30] sm:$0xff]
  %v271 = vld [vmem:[%s2 + $0x38] sm:$0xff]
  %v272 = vld [vmem:[%s2 + $0x40] sm:$0xff]
  %v273 = vld [vmem:[%s2 + $0x48] sm:$0xff]
  %v274 = vld [vmem:[%s2 + $0x50] sm:$0xff]
  %v275 = vld [vmem:[%s2 + $0x58] sm:$0xff]
  %v276 = vld [vmem:[%s2 + $0x60] sm:$0xff]
  %v277 = vld [vmem:[%s2 + $0x68] sm:$0xff]
  %v278 = vld [vmem:[%s2 + $0x70] sm:$0xff]
  %v279 = vld [vmem:[%s2 + $0x78] sm:$0xff]
  %v280 = vld [vmem:[%s2 + $0x80] sm:$0xff]
  %v281 = vld [vmem:[%s2 + $0x88] sm:$0xff]
  %v282 = vld [vmem:[%s2 + $0x90] sm:$0xff]
  %v283 = vld [vmem:[%s2 + $0x98] sm:$0xff]
  %v284 = vld [vmem:[%s2 + $0xa0] sm:$0xff]
  %v285 = vld [vmem:[%s2 + $0xa8] sm:$0xff]
  %v286 = vld [vmem:[%s2 + $0xb0] sm:$0xff]
  %v287 = vld [vmem:[%s2 + $0xb8] sm:$0xff]
  %v288 = vld [vmem:[%s2 + $0xc0] sm:$0xff]
  %v289 = vld [vmem:[%s2 + $0xc8] sm:$0xff]
  %v290 = vld [vmem:[%s2 + $0xd0] sm:$0xff]
  %v291 = vld [vmem:[%s2 + $0xd8] sm:$0xff]
  %v292 = vld [vmem:[%s2 + $0xe0] sm:$0xff]
  %v293 = vld [vmem:[%s2 + $0xe8] sm:$0xff]
  %v294 = vld [vmem:[%s2 + $0xf0] sm:$0xff]
  %v295 = vld [vmem:[%s2 + $0xf8] sm:$0xff]
  %v296 = vld [vmem:[%s2 + $0x100] sm:$0xff]
  %v297 = vld [vmem:[%s2 + $0x108] sm:$0xff]
  %v298 = vld [vmem:[%s2 + $0x110] sm:$0xff]
  %v299 = vld [vmem:[%s2 + $0x118] sm:$0xff]
  %v300 = vld [vmem:[%s2 + $0x120] sm:$0xff]
  %v301 = vld [vmem:[%s2 + $0x128] sm:$0xff]
  %v302 = vld [vmem:[%s2 + $0x130] sm:$0xff]
  %v303 = vld [vmem:[%s2 + $0x138] sm:$0xff]
  %v304 = vld [vmem:[%s2 + $0x140] sm:$0xff]
  %v305 = vld [vmem:[%s2 + $0x148] sm:$0xff]
  %v306 = vld [vmem:[%s2 + $0x150] sm:$0xff]
  %v307 = vld [vmem:[%s2 + $0x158] sm:$0xff]
  %v308 = vld [vmem:[%s2 + $0x160] sm:$0xff]
  %v309 = vld [vmem:[%s2 + $0x168] sm:$0xff]
  %v310 = vld [vmem:[%s2 + $0x170] sm:$0xff]
  %v311 = vld [vmem:[%s2 + $0x178] sm:$0xff]
  %v312 = vld [vmem:[%s2 + $0x180] sm:$0xff]
  %v313 = vld [vmem:[%s2 + $0x188] sm:$0xff]
  %v314 = vld [vmem:[%s2 + $0x190] sm:$0xff]
  %v315 = vld [vmem:[%s2 + $0x198] sm:$0xff]
  %v316 = vld [vmem:[%s2 + $0x1a0] sm:$0xff]
  %v317 = vld [vmem:[%s2 + $0x1a8] sm:$0xff]
  %v318 = vld [vmem:[%s2 + $0x1b0] sm:$0xff]
  %v319 = vld [vmem:[%s2 + $0x1b8] sm:$0xff]
  %v320 = vld [vmem:[%s2 + $0x1c0] sm:$0xff]
  %v321 = vld [vmem:[%s2 + $0x1c8] sm:$0xff]
  %v322 = vld [vmem:[%s2 + $0x1d0] sm:$0xff]
  %v323 = vld [vmem:[%s2 + $0x1d8] sm:$0xff]
  %v324 = vld [vmem:[%s2 + $0x1e0] sm:$0xff]
  %v325 = vld [vmem:[%s2 + $0x1e8] sm:$0xff]
  %v326 = vld [vmem:[%s2 + $0x1f0] sm:$0xff]
  %v327 = vld [vmem:[%s2 + $0x1f8] sm:$0xff]
  %v328 = vld [vmem:[%s2 + $0x200] sm:$0xff]
  %v329 = vld [vmem:[%s2 + $0x208] sm:$0xff]
  %v330 = vld [vmem:[%s2 + $0x210] sm:$0xff]
  %v331 = vld [vmem:[%s2 + $0x218] sm:$0xff]
  %v332 = vld [vmem:[%s2 + $0x220] sm:$0xff]
  %v333 = vld [vmem:[%s2 + $0x228] sm:$0xff]
  %v334 = vld [vmem:[%s2 + $0x230] sm:$0xff]
  %v335 = vld [vmem:[%s2 + $0x238] sm:$0xff]
  %v336 = vld [vmem:[%s2 + $0x240] sm:$0xff]
  %v337 = vld [vmem:[%s2 + $0x248] sm:$0xff]
  %v338 = vld [vmem:[%s2 + $0x250] sm:$0xff]
  %v339 = vld [vmem:[%s2 + $0x258] sm:$0xff]
  %v340 = vld [vmem:[%s2 + $0x260] sm:$0xff]
  %v341 = vld [vmem:[%s2 + $0x268] sm:$0xff]
  %v342 = vld [vmem:[%s2 + $0x270] sm:$0xff]
  %v343 = vld [vmem:[%s2 + $0x278] sm:$0xff]
  %v344 = vld [vmem:[%s2 + $0x280] sm:$0xff]
  %v345 = vld [vmem:[%s2 + $0x288] sm:$0xff]
  %v346 = vld [vmem:[%s2 + $0x290] sm:$0xff]
  %v347 = vld [vmem:[%s2 + $0x298] sm:$0xff]
  %v348 = vld [vmem:[%s2 + $0x2a0] sm:$0xff]
  %v349 = vld [vmem:[%s2 + $0x2a8] sm:$0xff]
  %v350 = vld [vmem:[%s2 + $0x2b0] sm:$0xff]
  %v351 = vld [vmem:[%s2 + $0x2b8] sm:$0xff]
  %v352 = vld [vmem:[%s2 + $0x2c0] sm:$0xff]
  %v353 = vld [vmem:[%s2 + $0x2c8] sm:$0xff]
  %v354 = vld [vmem:[%s2 + $0x2d0] sm:$0xff]
  %v355 = vld [vmem:[%s2 + $0x2d8] sm:$0xff]
  %v356 = vld [vmem:[%s2 + $0x2e0] sm:$0xff]
  %v357 = vld [vmem:[%s2 + $0x2e8] sm:$0xff]
  %v358 = vld [vmem:[%s2 + $0x2f0] sm:$0xff]
  %v359 = vld [vmem:[%s2 + $0x2f8] sm:$0xff]
  %v360 = vld [vmem:[%s2 + $0x300] sm:$0xff]
  %v361 = vld [vmem:[%s2 + $0x308] sm:$0xff]
  %v362 = vld [vmem:[%s2 + $0x310] sm:$0xff]
  %v363 = vld [vmem:[%s2 + $0x318] sm:$0xff]
  %v364 = vld [vmem:[%s2 + $0x320] sm:$0xff]
  %v365 = vld [vmem:[%s2 + $0x328] sm:$0xff]
  %v366 = vld [vmem:[%s2 + $0x330] sm:$0xff]
  %v367 = vld [vmem:[%s2 + $0x338] sm:$0xff]
  %v368 = vld [vmem:[%s2 + $0x340] sm:$0xff]
  %v369 = vld [vmem:[%s2 + $0x348] sm:$0xff]
  %v370 = vld [vmem:[%s2 + $0x350] sm:$0xff]
  %v371 = vld [vmem:[%s2 + $0x358] sm:$0xff]
  %v372 = vld [vmem:[%s2 + $0x360] sm:$0xff]
  %v373 = vld [vmem:[%s2 + $0x368] sm:$0xff]
  %v374 = vld [vmem:[%s2 + $0x370] sm:$0xff]
  %v375 = vld [vmem:[%s2 + $0x378] sm:$0xff]
  %v376 = vld [vmem:[%s2 + $0x380] sm:$0xff]
  %v377 = vld [vmem:[%s2 + $0x388] sm:$0xff]
  %v378 = vld [vmem:[%s2 + $0x390] sm:$0xff]
  %v379 = vld [vmem:[%s2 + $0x398] sm:$0xff]
  %v380 = vld [vmem:[%s2 + $0x3a0] sm:$0xff]
  %v381 = vld [vmem:[%s2 + $0x3a8] sm:$0xff]
  %v382 = vld [vmem:[%s2 + $0x3b0] sm:$0xff]
  %v383 = vld [vmem:[%s2 + $0x3b8] sm:$0xff]
  %v384 = vld [vmem:[%s2 + $0x3c0] sm:$0xff]
  %v385 = vld [vmem:[%s2 + $0x3c8] sm:$0xff]
  %v386 = vld [vmem:[%s2 + $0x3d0] sm:$0xff]
  %v387 = vld [vmem:[%s2 + $0x3d8] sm:$0xff]
  %v388 = vld [vmem:[%s2 + $0x3e0] sm:$0xff]
  %v389 = vld [vmem:[%s2 + $0x3e8] sm:$0xff]
  %v390 = vld [vmem:[%s2 + $0x3f0] sm:$0xff]
  %v391 = vld [vmem:[%s2 + $0x3f8] sm:$0xff]
  %v392 = vld [vmem:[%s2 + $0x400] sm:$0xff]
  %v393 = vld [vmem:[%s2 + $0x408] sm:$0xff]
  %v394 = vld [vmem:[%s2 + $0x410] sm:$0xff]
  %v395 = vld [vmem:[%s2 + $0x418] sm:$0xff]
  %v396 = vld [vmem:[%s2 + $0x420] sm:$0xff]
  %v397 = vld [vmem:[%s2 + $0x428] sm:$0xff]
  %v398 = vld [vmem:[%s2 + $0x430] sm:$0xff]
  %v399 = vld [vmem:[%s2 + $0x438] sm:$0xff]
  %v400 = vld [vmem:[%s2 + $0x440] sm:$0xff]
  %v401 = vld [vmem:[%s2 + $0x448] sm:$0xff]
  %v402 = vld [vmem:[%s2 + $0x450] sm:$0xff]
  %v403 = vld [vmem:[%s2 + $0x458] sm:$0xff]
  %v404 = vld [vmem:[%s2 + $0x460] sm:$0xff]
  %v405 = vld [vmem:[%s2 + $0x468] sm:$0xff]
  %v406 = vld [vmem:[%s2 + $0x470] sm:$0xff]
  %v407 = vld [vmem:[%s2 + $0x478] sm:$0xff]
  %v408 = vld [vmem:[%s2 + $0x480] sm:$0xff]
  %v409 = vld [vmem:[%s2 + $0x488] sm:$0xff]
  %v410 = vld [vmem:[%s2 + $0x490] sm:$0xff]
  %v411 = vld [vmem:[%s2 + $0x498] sm:$0xff]
  %v412 = vld [vmem:[%s2 + $0x4a0] sm:$0xff]
  %v413 = vld [vmem:[%s2 + $0x4a8] sm:$0xff]
  %v414 = vld [vmem:[%s2 + $0x4b0] sm:$0xff]
  %v415 = vld [vmem:[%s2 + $0x4b8] sm:$0xff]
  %v416 = vld [vmem:[%s2 + $0x4c0] sm:$0xff]
  %v417 = vld [vmem:[%s2 + $0x4c8] sm:$0xff]
  %v418 = vld [vmem:[%s2 + $0x4d0] sm:$0xff]
  %v419 = vld [vmem:[%s2 + $0x4d8] sm:$0xff]
  %v420 = vld [vmem:[%s2 + $0x4e0] sm:$0xff]
  %v421 = vld [vmem:[%s2 + $0x4e8] sm:$0xff]
  %v422 = vld [vmem:[%s2 + $0x4f0] sm:$0xff]
  %v423 = vld [vmem:[%s2 + $0x4f8] sm:$0xff]
  %v424 = vld [vmem:[%s2 + $0x500] sm:$0xff]
  %v425 = vld [vmem:[%s2 + $0x508] sm:$0xff]
  %v426 = vld [vmem:[%s2 + $0x510] sm:$0xff]
  %v427 = vld [vmem:[%s2 + $0x518] sm:$0xff]
  %v428 = vld [vmem:[%s2 + $0x520] sm:$0xff]
  %v429 = vld [vmem:[%s2 + $0x528] sm:$0xff]
  %v430 = vld [vmem:[%s2 + $0x530] sm:$0xff]
  %v431 = vld [vmem:[%s2 + $0x538] sm:$0xff]
  %v432 = vld [vmem:[%s2 + $0x540] sm:$0xff]
  %v433 = vld [vmem:[%s2 + $0x548] sm:$0xff]
  %v434 = vld [vmem:[%s2 + $0x550] sm:$0xff]
  %v435 = vld [vmem:[%s2 + $0x558] sm:$0xff]
  %v436 = vld [vmem:[%s2 + $0x560] sm:$0xff]
  %v437 = vld [vmem:[%s2 + $0x568] sm:$0xff]
  %v438 = vld [vmem:[%s2 + $0x570] sm:$0xff]
  %v439 = vld [vmem:[%s2 + $0x578] sm:$0xff]
  %v440 = vld [vmem:[%s2 + $0x580] sm:$0xff]
  %v441 = vld [vmem:[%s2 + $0x588] sm:$0xff]
  %v442 = vld [vmem:[%s2 + $0x590] sm:$0xff]
  %v443 = vld [vmem:[%s2 + $0x598] sm:$0xff]
  %v444 = vld [vmem:[%s2 + $0x5a0] sm:$0xff]
  %v445 = vld [vmem:[%s2 + $0x5a8] sm:$0xff]
  %v446 = vld [vmem:[%s2 + $0x5b0] sm:$0xff]
  %v447 = vld [vmem:[%s2 + $0x5b8] sm:$0xff]
  %v448 = vld [vmem:[%s2 + $0x5c0] sm:$0xff]
  %v449 = vld [vmem:[%s2 + $0x5c8] sm:$0xff]
  %v450 = vld [vmem:[%s2 + $0x5d0] sm:$0xff]
  %v451 = vld [vmem:[%s2 + $0x5d8] sm:$0xff]
  %v452 = vld [vmem:[%s2 + $0x5e0] sm:$0xff]
  %v453 = vld [vmem:[%s2 + $0x5e8] sm:$0xff]
  %v454 = vld [vmem:[%s2 + $0x5f0] sm:$0xff]
  %v455 = vld [vmem:[%s2 + $0x5f8] sm:$0xff]
  %v456 = vld [vmem:[%s2 + $0x600] sm:$0xff]
  %v457 = vld [vmem:[%s2 + $0x608] sm:$0xff]
  %v458 = vld [vmem:[%s2 + $0x610] sm:$0xff]
  %v459 = vld [vmem:[%s2 + $0x618] sm:$0xff]
  %v460 = vld [vmem:[%s2 + $0x620] sm:$0xff]
  %v461 = vld [vmem:[%s2 + $0x628] sm:$0xff]
  %v462 = vld [vmem:[%s2 + $0x630] sm:$0xff]
  %v463 = vld [vmem:[%s2 + $0x638] sm:$0xff]
  %v464 = vld [vmem:[%s2 + $0x640] sm:$0xff]
  %v465 = vld [vmem:[%s2 + $0x648] sm:$0xff]
  %v466 = vld [vmem:[%s2 + $0x650] sm:$0xff]
  %v467 = vld [vmem:[%s2 + $0x658] sm:$0xff]
  %s468 = scalar_lea.vmem %s2, 1632
  %v469 = vld [vmem:[%s468] sm:$0xff]
  %v470 = vld [vmem:[%s468 + $0x8] sm:$0xff]
  %v471 = vld [vmem:[%s468 + $0x10] sm:$0xff]
  %v472 = vld [vmem:[%s468 + $0x18] sm:$0xff]
  %v473 = vld [vmem:[%s468 + $0x20] sm:$0xff]
  %v474 = vld [vmem:[%s468 + $0x28] sm:$0xff]
  %v475 = vld [vmem:[%s468 + $0x30] sm:$0xff]
  %v476 = vld [vmem:[%s468 + $0x38] sm:$0xff]
  %v477 = vld [vmem:[%s468 + $0x40] sm:$0xff]
  %v478 = vld [vmem:[%s468 + $0x48] sm:$0xff]
  %v479 = vld [vmem:[%s468 + $0x50] sm:$0xff]
  %v480 = vld [vmem:[%s468 + $0x58] sm:$0xff]
  %v481 = vld [vmem:[%s468 + $0x60] sm:$0xff]
  %v482 = vld [vmem:[%s468 + $0x68] sm:$0xff]
  %v483 = vld [vmem:[%s468 + $0x70] sm:$0xff]
  %v484 = vld [vmem:[%s468 + $0x78] sm:$0xff]
  %v485 = vld [vmem:[%s468 + $0x80] sm:$0xff]
  %v486 = vld [vmem:[%s468 + $0x88] sm:$0xff]
  %v487 = vld [vmem:[%s468 + $0x90] sm:$0xff]
  %v488 = vld [vmem:[%s468 + $0x98] sm:$0xff]
  %v489 = vld [vmem:[%s468 + $0xa0] sm:$0xff]
  %v490 = vld [vmem:[%s468 + $0xa8] sm:$0xff]
  %v491 = vld [vmem:[%s468 + $0xb0] sm:$0xff]
  %v492 = vld [vmem:[%s468 + $0xb8] sm:$0xff]
  %v493 = vld [vmem:[%s468 + $0xc0] sm:$0xff]
  %v494 = vld [vmem:[%s468 + $0xc8] sm:$0xff]
  %v495 = vld [vmem:[%s468 + $0xd0] sm:$0xff]
  %v496 = vld [vmem:[%s468 + $0xd8] sm:$0xff]
  %v497 = vld [vmem:[%s468 + $0xe0] sm:$0xff]
  %v498 = vld [vmem:[%s468 + $0xe8] sm:$0xff]
  %v499 = vld [vmem:[%s468 + $0xf0] sm:$0xff]
  %v500 = vld [vmem:[%s468 + $0xf8] sm:$0xff]
  %v501 = vld [vmem:[%s468 + $0x100] sm:$0xff]
  %v502 = vld [vmem:[%s468 + $0x108] sm:$0xff]
  %v503 = vld [vmem:[%s468 + $0x110] sm:$0xff]
  %v504 = vld [vmem:[%s468 + $0x118] sm:$0xff]
  %v505 = vld [vmem:[%s468 + $0x120] sm:$0xff]
  %v506 = vld [vmem:[%s468 + $0x128] sm:$0xff]
  %v507 = vld [vmem:[%s468 + $0x130] sm:$0xff]
  %v508 = vld [vmem:[%s468 + $0x138] sm:$0xff]
  %v509 = vld [vmem:[%s468 + $0x140] sm:$0xff]
  %v510 = vld [vmem:[%s468 + $0x148] sm:$0xff]
  %v511 = vld [vmem:[%s468 + $0x150] sm:$0xff]
  %v512 = vld [vmem:[%s468 + $0x158] sm:$0xff]
  %v513 = vld [vmem:[%s468 + $0x160] sm:$0xff]
  %v514 = vld [vmem:[%s468 + $0x168] sm:$0xff]
  %v515 = vld [vmem:[%s468 + $0x170] sm:$0xff]
  %v516 = vld [vmem:[%s468 + $0x178] sm:$0xff]
  %v517 = vld [vmem:[%s468 + $0x180] sm:$0xff]
  %v518 = vld [vmem:[%s468 + $0x188] sm:$0xff]
  %v519 = vld [vmem:[%s468 + $0x190] sm:$0xff]
  %v520 = vld [vmem:[%s468 + $0x198] sm:$0xff]
  %v521 = vld [vmem:[%s468 + $0x1a0] sm:$0xff]
  %v522 = vld [vmem:[%s468 + $0x1a8] sm:$0xff]
  %v523 = vld [vmem:[%s468 + $0x1b0] sm:$0xff]
  %v524 = vld [vmem:[%s468 + $0x1b8] sm:$0xff]
  %v525 = vld [vmem:[%s468 + $0x1c0] sm:$0xff]
  %v526 = vld [vmem:[%s468 + $0x1c8] sm:$0xff]
  %v527 = vld [vmem:[%s468 + $0x1d0] sm:$0xff]
  %v528 = vld [vmem:[%s468 + $0x1d8] sm:$0xff]
  %v529 = vld [vmem:[%s468 + $0x1e0] sm:$0xff]
  %v530 = vld [vmem:[%s468 + $0x1e8] sm:$0xff]
  %v531 = vld [vmem:[%s468 + $0x1f0] sm:$0xff]
  %v532 = vld [vmem:[%s468 + $0x1f8] sm:$0xff]
  %v533 = vld [vmem:[%s468 + $0x200] sm:$0xff]
  %v534 = vld [vmem:[%s468 + $0x208] sm:$0xff]
  %v535 = vld [vmem:[%s468 + $0x210] sm:$0xff]
  %v536 = vld [vmem:[%s468 + $0x218] sm:$0xff]
  %v537 = vld [vmem:[%s468 + $0x220] sm:$0xff]
  %v538 = vld [vmem:[%s468 + $0x228] sm:$0xff]
  %v539 = vld [vmem:[%s468 + $0x230] sm:$0xff]
  %v540 = vld [vmem:[%s468 + $0x238] sm:$0xff]
  %v541 = vld [vmem:[%s468 + $0x240] sm:$0xff]
  %v542 = vld [vmem:[%s468 + $0x248] sm:$0xff]
  %v543 = vld [vmem:[%s468 + $0x250] sm:$0xff]
  %v544 = vld [vmem:[%s468 + $0x258] sm:$0xff]
  %v545 = vld [vmem:[%s468 + $0x260] sm:$0xff]
  %v546 = vld [vmem:[%s468 + $0x268] sm:$0xff]
  %v547 = vld [vmem:[%s468 + $0x270] sm:$0xff]
  %v548 = vld [vmem:[%s468 + $0x278] sm:$0xff]
  %v549 = vld [vmem:[%s468 + $0x280] sm:$0xff]
  %v550 = vld [vmem:[%s468 + $0x288] sm:$0xff]
  %v551 = vld [vmem:[%s468 + $0x290] sm:$0xff]
  %v552 = vld [vmem:[%s468 + $0x298] sm:$0xff]
  %v553 = vld [vmem:[%s468 + $0x2a0] sm:$0xff]
  %v554 = vld [vmem:[%s468 + $0x2a8] sm:$0xff]
  %v555 = vld [vmem:[%s468 + $0x2b0] sm:$0xff]
  %v556 = vld [vmem:[%s468 + $0x2b8] sm:$0xff]
  %v557 = vld [vmem:[%s468 + $0x2c0] sm:$0xff]
  %v558 = vld [vmem:[%s468 + $0x2c8] sm:$0xff]
  %v559 = vld [vmem:[%s468 + $0x2d0] sm:$0xff]
  %v560 = vld [vmem:[%s468 + $0x2d8] sm:$0xff]
  %v561 = vld [vmem:[%s468 + $0x2e0] sm:$0xff]
  %v562 = vld [vmem:[%s468 + $0x2e8] sm:$0xff]
  %v563 = vld [vmem:[%s468 + $0x2f0] sm:$0xff]
  %v564 = vld [vmem:[%s468 + $0x2f8] sm:$0xff]
  %v565 = vld [vmem:[%s468 + $0x300] sm:$0xff]
  %v566 = vld [vmem:[%s468 + $0x308] sm:$0xff]
  %v567 = vld [vmem:[%s468 + $0x310] sm:$0xff]
  %v568 = vld [vmem:[%s468 + $0x318] sm:$0xff]
  %v569 = vld [vmem:[%s468 + $0x320] sm:$0xff]
  %v570 = vld [vmem:[%s468 + $0x328] sm:$0xff]
  %v571 = vld [vmem:[%s468 + $0x330] sm:$0xff]
  %v572 = vld [vmem:[%s468 + $0x338] sm:$0xff]
  %v573 = vld [vmem:[%s468 + $0x340] sm:$0xff]
  %v574 = vld [vmem:[%s468 + $0x348] sm:$0xff]
  %v575 = vld [vmem:[%s468 + $0x350] sm:$0xff]
  %v576 = vld [vmem:[%s468 + $0x358] sm:$0xff]
  %v577 = vld [vmem:[%s468 + $0x360] sm:$0xff]
  %v578 = vld [vmem:[%s468 + $0x368] sm:$0xff]
  %v579 = vld [vmem:[%s468 + $0x370] sm:$0xff]
  %v580 = vld [vmem:[%s468 + $0x378] sm:$0xff]
  %v581 = vld [vmem:[%s468 + $0x380] sm:$0xff]
  %v582 = vld [vmem:[%s468 + $0x388] sm:$0xff]
  %v583 = vld [vmem:[%s468 + $0x390] sm:$0xff]
  %v584 = vld [vmem:[%s468 + $0x398] sm:$0xff]
  %v585 = vld [vmem:[%s468 + $0x3a0] sm:$0xff]
  %v586 = vld [vmem:[%s468 + $0x3a8] sm:$0xff]
  %v587 = vld [vmem:[%s468 + $0x3b0] sm:$0xff]
  %v588 = vld [vmem:[%s468 + $0x3b8] sm:$0xff]
  %v589 = vld [vmem:[%s468 + $0x3c0] sm:$0xff]
  %v590 = vld [vmem:[%s468 + $0x3c8] sm:$0xff]
  %v591 = vld [vmem:[%s468 + $0x3d0] sm:$0xff]
  %v592 = vld [vmem:[%s468 + $0x3d8] sm:$0xff]
  %v593 = vld [vmem:[%s468 + $0x3e0] sm:$0xff]
  %v594 = vld [vmem:[%s468 + $0x3e8] sm:$0xff]
  %v595 = vld [vmem:[%s468 + $0x3f0] sm:$0xff]
  %v596 = vld [vmem:[%s468 + $0x3f8] sm:$0xff]
  %v597 = vld [vmem:[%s468 + $0x400] sm:$0xff]
  %v598 = vld [vmem:[%s468 + $0x408] sm:$0xff]
  %v599 = vld [vmem:[%s468 + $0x410] sm:$0xff]
  %v600 = vld [vmem:[%s468 + $0x418] sm:$0xff]
  %v601 = vld [vmem:[%s468 + $0x420] sm:$0xff]
  %v602 = vld [vmem:[%s468 + $0x428] sm:$0xff]
  %v603 = vld [vmem:[%s468 + $0x430] sm:$0xff]
  %v604 = vld [vmem:[%s468 + $0x438] sm:$0xff]
  %v605 = vld [vmem:[%s468 + $0x440] sm:$0xff]
  %v606 = vld [vmem:[%s468 + $0x448] sm:$0xff]
  %v607 = vld [vmem:[%s468 + $0x450] sm:$0xff]
  %v608 = vld [vmem:[%s468 + $0x458] sm:$0xff]
  %v609 = vld [vmem:[%s468 + $0x460] sm:$0xff]
  %v610 = vld [vmem:[%s468 + $0x468] sm:$0xff]
  %v611 = vld [vmem:[%s468 + $0x470] sm:$0xff]
  %v612 = vld [vmem:[%s468 + $0x478] sm:$0xff]
  %v613 = vld [vmem:[%s468 + $0x480] sm:$0xff]
  %v614 = vld [vmem:[%s468 + $0x488] sm:$0xff]
  %v615 = vld [vmem:[%s468 + $0x490] sm:$0xff]
  %v616 = vld [vmem:[%s468 + $0x498] sm:$0xff]
  %v617 = vld [vmem:[%s468 + $0x4a0] sm:$0xff]
  %v618 = vld [vmem:[%s468 + $0x4a8] sm:$0xff]
  %v619 = vld [vmem:[%s468 + $0x4b0] sm:$0xff]
  %v620 = vld [vmem:[%s468 + $0x4b8] sm:$0xff]
  %v621 = vld [vmem:[%s468 + $0x4c0] sm:$0xff]
  %v622 = vld [vmem:[%s468 + $0x4c8] sm:$0xff]
  %v623 = vld [vmem:[%s468 + $0x4d0] sm:$0xff]
  %v624 = vld [vmem:[%s468 + $0x4d8] sm:$0xff]
  %v625 = vld [vmem:[%s468 + $0x4e0] sm:$0xff]
  %v626 = vld [vmem:[%s468 + $0x4e8] sm:$0xff]
  %v627 = vld [vmem:[%s468 + $0x4f0] sm:$0xff]
  %v628 = vld [vmem:[%s468 + $0x4f8] sm:$0xff]
  %v629 = vld [vmem:[%s468 + $0x500] sm:$0xff]
  %v630 = vld [vmem:[%s468 + $0x508] sm:$0xff]
  %v631 = vld [vmem:[%s468 + $0x510] sm:$0xff]
  %v632 = vld [vmem:[%s468 + $0x518] sm:$0xff]
  %v633 = vld [vmem:[%s468 + $0x520] sm:$0xff]
  %v634 = vld [vmem:[%s468 + $0x528] sm:$0xff]
  %v635 = vld [vmem:[%s468 + $0x530] sm:$0xff]
  %v636 = vld [vmem:[%s468 + $0x538] sm:$0xff]
  %v637 = vld [vmem:[%s468 + $0x540] sm:$0xff]
  %v638 = vld [vmem:[%s468 + $0x548] sm:$0xff]
  %v639 = vld [vmem:[%s468 + $0x550] sm:$0xff]
  %v640 = vld [vmem:[%s468 + $0x558] sm:$0xff]
  %v641 = vld [vmem:[%s468 + $0x560] sm:$0xff]
  %v642 = vld [vmem:[%s468 + $0x568] sm:$0xff]
  %v643 = vld [vmem:[%s468 + $0x570] sm:$0xff]
  %v644 = vld [vmem:[%s468 + $0x578] sm:$0xff]
  %v645 = vld [vmem:[%s468 + $0x580] sm:$0xff]
  %v646 = vld [vmem:[%s468 + $0x588] sm:$0xff]
  %v647 = vld [vmem:[%s468 + $0x590] sm:$0xff]
  %v648 = vld [vmem:[%s468 + $0x598] sm:$0xff]
  %v649 = vld [vmem:[%s468 + $0x5a0] sm:$0xff]
  %v650 = vld [vmem:[%s468 + $0x5a8] sm:$0xff]
  %v651 = vld [vmem:[%s468 + $0x5b0] sm:$0xff]
  %v652 = vld [vmem:[%s468 + $0x5b8] sm:$0xff]
  %v653 = vld [vmem:[%s468 + $0x5c0] sm:$0xff]
  %v654 = vld [vmem:[%s468 + $0x5c8] sm:$0xff]
  %v655 = vld [vmem:[%s468 + $0x5d0] sm:$0xff]
  %v656 = vld [vmem:[%s468 + $0x5d8] sm:$0xff]
  %v657 = vld [vmem:[%s468 + $0x5e0] sm:$0xff]
  %v658 = vld [vmem:[%s468 + $0x5e8] sm:$0xff]
  %v659 = vld [vmem:[%s468 + $0x5f0] sm:$0xff]
  %v660 = vld [vmem:[%s468 + $0x5f8] sm:$0xff]
  %v661 = vld [vmem:[%s468 + $0x600] sm:$0xff]
  %v662 = vld [vmem:[%s468 + $0x608] sm:$0xff]
  %v663 = vld [vmem:[%s468 + $0x610] sm:$0xff]
  %v664 = vld [vmem:[%s468 + $0x618] sm:$0xff]
  %v665 = vld [vmem:[%s468 + $0x620] sm:$0xff]
  %v666 = vld [vmem:[%s468 + $0x628] sm:$0xff]
  %v667 = vld [vmem:[%s468 + $0x630] sm:$0xff]
  %v668 = vld [vmem:[%s468 + $0x638] sm:$0xff]
  %v669 = vld [vmem:[%s468 + $0x640] sm:$0xff]
  %v670 = vld [vmem:[%s468 + $0x648] sm:$0xff]
  %v671 = vld [vmem:[%s468 + $0x650] sm:$0xff]
  %v672 = vld [vmem:[%s468 + $0x658] sm:$0xff]
  %v673 = vunpack.c.l.b16 %v85
  %v674 = vunpack.c.h.b16 %v85
  %v675 = vunpack.c.l.b16 %v99
  %v676 = vunpack.c.h.b16 %v99
  %v677 = vunpack.c.l.b16 %v113
  %v678 = vunpack.c.h.b16 %v113
  %v679 = vunpack.c.l.b16 %v127
  %v680 = vunpack.c.l.b16 %v137
  %v681 = vunpack.c.h.b16 %v137
  %v682 = vunpack.c.l.b16 %v147
  %v683 = vunpack.c.h.b16 %v147
  %v684 = vunpack.c.l.b16 %v157
  %v685 = vunpack.c.h.b16 %v157
  %v686 = vunpack.c.l.b16 %v167
  %v687 = vunpack.c.l.b16 %v181
  %v688 = vunpack.c.h.b16 %v181
  %v689 = vunpack.c.l.b16 %v195
  %v690 = vunpack.c.h.b16 %v195
  %v691 = vunpack.c.l.b16 %v209
  %v692 = vunpack.c.h.b16 %v209
  %v693 = vunpack.c.l.b16 %v223
  %v694 = vunpack.c.l.b16 %v233
  %v695 = vunpack.c.h.b16 %v233
  %v696 = vunpack.c.l.b16 %v243
  %v697 = vunpack.c.h.b16 %v243
  %v698 = vunpack.c.l.b16 %v253
  %v699 = vunpack.c.h.b16 %v253
  %v700 = vunpack.c.l.b16 %v263
  %v701 = vpack.c.b16 %v680, %v673
  %v702 = vpack.c.b16 %v681, %v674
  %v703 = vpack.c.b16 %v682, %v675
  %v704 = vpack.c.b16 %v683, %v676
  %v705 = vpack.c.b16 %v684, %v677
  %v706 = vpack.c.b16 %v685, %v678
  %v707 = vpack.c.b16 %v686, %v679
  %v708 = vpack.c.b16 %v694, %v687
  %v709 = vpack.c.b16 %v695, %v688
  %v710 = vpack.c.b16 %v696, %v689
  %v711 = vpack.c.b16 %v697, %v690
  %v712 = vpack.c.b16 %v698, %v691
  %v713 = vpack.c.b16 %v699, %v692
  %v714 = vpack.c.b16 %v700, %v693
  %v931 = vunpack.c.l.b16 %v469
  %v932 = vunpack.c.h.b16 %v469
  %v933 = vunpack.c.l.b16 %v470
  %v934 = vunpack.c.h.b16 %v470
  %v935 = vunpack.c.l.b16 %v471
  %v936 = vunpack.c.h.b16 %v471
  %v937 = vunpack.c.l.b16 %v472
  %v938 = vunpack.c.h.b16 %v472
  %v939 = vunpack.c.l.b16 %v473
  %v940 = vunpack.c.h.b16 %v473
  %v941 = vunpack.c.l.b16 %v474
  %v942 = vunpack.c.h.b16 %v474
  %v943 = vunpack.c.l.b16 %v475
  %v944 = vunpack.c.h.b16 %v475
  %v945 = vunpack.c.l.b16 %v476
  %v946 = vunpack.c.h.b16 %v476
  %v947 = vunpack.c.l.b16 %v477
  %v948 = vunpack.c.h.b16 %v477
  %v949 = vunpack.c.l.b16 %v478
  %v950 = vunpack.c.h.b16 %v478
  %v951 = vunpack.c.l.b16 %v479
  %v952 = vunpack.c.h.b16 %v479
  %v953 = vunpack.c.l.b16 %v480
  %v954 = vunpack.c.h.b16 %v480
  %v955 = vunpack.c.l.b16 %v481
  %v956 = vunpack.c.h.b16 %v481
  %v957 = vunpack.c.l.b16 %v482
  %v958 = vunpack.c.h.b16 %v482
  %v959 = vunpack.c.l.b16 %v483
  %v960 = vunpack.c.h.b16 %v483
  %v961 = vunpack.c.l.b16 %v484
  %v962 = vunpack.c.h.b16 %v484
  %v963 = vunpack.c.l.b16 %v485
  %v964 = vunpack.c.h.b16 %v485
  %v965 = vunpack.c.l.b16 %v486
  %v966 = vunpack.c.h.b16 %v486
  %v967 = vunpack.c.l.b16 %v487
  %v968 = vunpack.c.h.b16 %v487
  %v969 = vunpack.c.l.b16 %v488
  %v970 = vunpack.c.h.b16 %v488
  %v971 = vunpack.c.l.b16 %v489
  %v972 = vunpack.c.h.b16 %v489
  %v973 = vunpack.c.l.b16 %v490
  %v974 = vunpack.c.h.b16 %v490
  %v975 = vunpack.c.l.b16 %v491
  %v976 = vunpack.c.h.b16 %v491
  %v977 = vunpack.c.l.b16 %v492
  %v978 = vunpack.c.h.b16 %v492
  %v979 = vunpack.c.l.b16 %v493
  %v980 = vunpack.c.h.b16 %v493
  %v981 = vunpack.c.l.b16 %v494
  %v982 = vunpack.c.h.b16 %v494
  %v983 = vunpack.c.l.b16 %v495
  %v984 = vunpack.c.h.b16 %v495
  %v985 = vunpack.c.l.b16 %v496
  %v986 = vunpack.c.h.b16 %v496
  %v987 = vunpack.c.l.b16 %v497
  %v988 = vunpack.c.h.b16 %v497
  %v989 = vunpack.c.l.b16 %v498
  %v990 = vunpack.c.h.b16 %v498
  %v991 = vunpack.c.l.b16 %v499
  %v992 = vunpack.c.h.b16 %v499
  %v993 = vunpack.c.l.b16 %v500
  %v994 = vunpack.c.h.b16 %v500
  %v995 = vunpack.c.l.b16 %v501
  %v996 = vunpack.c.h.b16 %v501
  %v997 = vunpack.c.l.b16 %v502
  %v998 = vunpack.c.h.b16 %v502
  %v999 = vunpack.c.l.b16 %v503
  %v1000 = vunpack.c.h.b16 %v503
  %v1001 = vunpack.c.l.b16 %v504
  %v1002 = vunpack.c.h.b16 %v504
  %v1003 = vunpack.c.l.b16 %v505
  %v1004 = vunpack.c.h.b16 %v505
  %v1005 = vunpack.c.l.b16 %v506
  %v1006 = vunpack.c.h.b16 %v506
  %v1007 = vunpack.c.l.b16 %v507
  %v1008 = vunpack.c.h.b16 %v507
  %v1009 = vunpack.c.l.b16 %v508
  %v1010 = vunpack.c.h.b16 %v508
  %v1011 = vunpack.c.l.b16 %v509
  %v1012 = vunpack.c.h.b16 %v509
  %v1013 = vunpack.c.l.b16 %v510
  %v1014 = vunpack.c.h.b16 %v510
  %v1015 = vunpack.c.l.b16 %v511
  %v1016 = vunpack.c.h.b16 %v511
  %v1017 = vunpack.c.l.b16 %v512
  %v1018 = vunpack.c.h.b16 %v512
  %v1019 = vunpack.c.l.b16 %v513
  %v1020 = vunpack.c.h.b16 %v513
  %v1021 = vunpack.c.l.b16 %v514
  %v1022 = vunpack.c.h.b16 %v514
  %v1023 = vunpack.c.l.b16 %v515
  %v1024 = vunpack.c.h.b16 %v515
  %v1025 = vunpack.c.l.b16 %v516
  %v1026 = vunpack.c.h.b16 %v516
  %v1027 = vunpack.c.l.b16 %v517
  %v1028 = vunpack.c.h.b16 %v517
  %v1029 = vunpack.c.l.b16 %v518
  %v1030 = vunpack.c.h.b16 %v518
  %v1031 = vunpack.c.l.b16 %v519
  %v1032 = vunpack.c.h.b16 %v519
  %v1033 = vunpack.c.l.b16 %v520
  %v1034 = vunpack.c.h.b16 %v520
  %v1035 = vunpack.c.l.b16 %v521
  %v1036 = vunpack.c.h.b16 %v521
  %v1037 = vunpack.c.l.b16 %v522
  %v1038 = vunpack.c.h.b16 %v522
  %v1039 = vunpack.c.l.b16 %v523
  %v1040 = vunpack.c.h.b16 %v523
  %v1041 = vunpack.c.l.b16 %v524
  %v1042 = vunpack.c.h.b16 %v524
  %v1043 = vunpack.c.l.b16 %v525
  %v1044 = vunpack.c.h.b16 %v525
  %v1045 = vunpack.c.l.b16 %v526
  %v1046 = vunpack.c.h.b16 %v526
  %v1047 = vunpack.c.l.b16 %v527
  %v1048 = vunpack.c.h.b16 %v527
  %v1049 = vunpack.c.l.b16 %v528
  %v1050 = vunpack.c.h.b16 %v528
  %v1051 = vunpack.c.l.b16 %v529
  %v1052 = vunpack.c.h.b16 %v529
  %v1053 = vunpack.c.l.b16 %v530
  %v1054 = vunpack.c.h.b16 %v530
  %v1055 = vunpack.c.l.b16 %v531
  %v1056 = vunpack.c.h.b16 %v531
  %v1057 = vunpack.c.l.b16 %v532
  %v1058 = vunpack.c.h.b16 %v532
  %v1059 = vunpack.c.l.b16 %v533
  %v1060 = vunpack.c.h.b16 %v533
  %v1061 = vunpack.c.l.b16 %v534
  %v1062 = vunpack.c.h.b16 %v534
  %v1063 = vunpack.c.l.b16 %v535
  %v1064 = vunpack.c.h.b16 %v535
  %v1065 = vunpack.c.l.b16 %v536
  %v1066 = vunpack.c.h.b16 %v536
  %v1067 = vunpack.c.l.b16 %v537
  %v1068 = vunpack.c.h.b16 %v537
  %v1069 = vunpack.c.l.b16 %v538
  %v1070 = vunpack.c.h.b16 %v538
  %v1071 = vunpack.c.l.b16 %v539
  %v1072 = vunpack.c.h.b16 %v539
  %v1073 = vunpack.c.l.b16 %v540
  %v1074 = vunpack.c.h.b16 %v540
  %v1075 = vunpack.c.l.b16 %v541
  %v1076 = vunpack.c.h.b16 %v541
  %v1077 = vunpack.c.l.b16 %v542
  %v1078 = vunpack.c.h.b16 %v542
  %v1079 = vunpack.c.l.b16 %v543
  %v1080 = vunpack.c.h.b16 %v543
  %v1081 = vunpack.c.l.b16 %v544
  %v1082 = vunpack.c.h.b16 %v544
  %v1083 = vunpack.c.l.b16 %v545
  %v1084 = vunpack.c.h.b16 %v545
  %v1085 = vunpack.c.l.b16 %v546
  %v1086 = vunpack.c.h.b16 %v546
  %v1087 = vunpack.c.l.b16 %v547
  %v1088 = vunpack.c.h.b16 %v547
  %v1089 = vunpack.c.l.b16 %v548
  %v1090 = vunpack.c.h.b16 %v548
  %v1091 = vunpack.c.l.b16 %v549
  %v1092 = vunpack.c.h.b16 %v549
  %v1093 = vunpack.c.l.b16 %v550
  %v1094 = vunpack.c.h.b16 %v550
  %v1095 = vunpack.c.l.b16 %v551
  %v1096 = vunpack.c.h.b16 %v551
  %v1097 = vunpack.c.l.b16 %v552
  %v1098 = vunpack.c.h.b16 %v552
  %v1099 = vunpack.c.l.b16 %v553
  %v1100 = vunpack.c.h.b16 %v553
  %v1101 = vunpack.c.l.b16 %v554
  %v1102 = vunpack.c.h.b16 %v554
  %v1103 = vunpack.c.l.b16 %v555
  %v1104 = vunpack.c.h.b16 %v555
  %v1105 = vunpack.c.l.b16 %v556
  %v1106 = vunpack.c.h.b16 %v556
  %v1107 = vunpack.c.l.b16 %v557
  %v1108 = vunpack.c.h.b16 %v557
  %v1109 = vunpack.c.l.b16 %v558
  %v1110 = vunpack.c.h.b16 %v558
  %v1111 = vunpack.c.l.b16 %v559
  %v1112 = vunpack.c.h.b16 %v559
  %v1113 = vunpack.c.l.b16 %v560
  %v1114 = vunpack.c.h.b16 %v560
  %v1115 = vunpack.c.l.b16 %v561
  %v1116 = vunpack.c.h.b16 %v561
  %v1117 = vunpack.c.l.b16 %v562
  %v1118 = vunpack.c.h.b16 %v562
  %v1119 = vunpack.c.l.b16 %v563
  %v1120 = vunpack.c.h.b16 %v563
  %v1121 = vunpack.c.l.b16 %v564
  %v1122 = vunpack.c.h.b16 %v564
  %v1123 = vunpack.c.l.b16 %v565
  %v1124 = vunpack.c.h.b16 %v565
  %v1125 = vunpack.c.l.b16 %v566
  %v1126 = vunpack.c.h.b16 %v566
  %v1127 = vunpack.c.l.b16 %v567
  %v1128 = vunpack.c.h.b16 %v567
  %v1129 = vunpack.c.l.b16 %v568
  %v1130 = vunpack.c.h.b16 %v568
  %v1131 = vunpack.c.l.b16 %v569
  %v1132 = vunpack.c.h.b16 %v569
  %v1133 = vunpack.c.l.b16 %v570
  %v1134 = vunpack.c.h.b16 %v570
  %v1135 = vunpack.c.l.b16 %v571
  %v1136 = vunpack.c.h.b16 %v571
  %v1137 = vunpack.c.l.b16 %v572
  %v1138 = vunpack.c.h.b16 %v572
  %v1139 = vunpack.c.l.b16 %v573
  %v1140 = vunpack.c.h.b16 %v573
  %v1141 = vunpack.c.l.b16 %v574
  %v1142 = vunpack.c.h.b16 %v574
  %v1143 = vunpack.c.l.b16 %v575
  %v1144 = vunpack.c.h.b16 %v575
  %v1145 = vunpack.c.l.b16 %v576
  %v1146 = vunpack.c.h.b16 %v576
  %v1147 = vunpack.c.l.b16 %v577
  %v1148 = vunpack.c.h.b16 %v577
  %v1149 = vunpack.c.l.b16 %v578
  %v1150 = vunpack.c.h.b16 %v578
  %v1151 = vunpack.c.l.b16 %v579
  %v1152 = vunpack.c.h.b16 %v579
  %v1153 = vunpack.c.l.b16 %v580
  %v1154 = vunpack.c.h.b16 %v580
  %v1155 = vunpack.c.l.b16 %v581
  %v1156 = vunpack.c.h.b16 %v581
  %v1157 = vunpack.c.l.b16 %v582
  %v1158 = vunpack.c.h.b16 %v582
  %v1159 = vunpack.c.l.b16 %v583
  %v1160 = vunpack.c.h.b16 %v583
  %v1161 = vunpack.c.l.b16 %v584
  %v1162 = vunpack.c.h.b16 %v584
  %v1163 = vunpack.c.l.b16 %v585
  %v1164 = vunpack.c.h.b16 %v585
  %v1165 = vunpack.c.l.b16 %v586
  %v1166 = vunpack.c.h.b16 %v586
  %v1167 = vunpack.c.l.b16 %v587
  %v1168 = vunpack.c.h.b16 %v587
  %v1169 = vunpack.c.l.b16 %v588
  %v1170 = vunpack.c.h.b16 %v588
  %v1171 = vunpack.c.l.b16 %v589
  %v1172 = vunpack.c.h.b16 %v589
  %v1173 = vunpack.c.l.b16 %v590
  %v1174 = vunpack.c.h.b16 %v590
  %v1175 = vunpack.c.l.b16 %v591
  %v1176 = vunpack.c.h.b16 %v591
  %v1177 = vunpack.c.l.b16 %v592
  %v1178 = vunpack.c.h.b16 %v592
  %v1179 = vunpack.c.l.b16 %v593
  %v1180 = vunpack.c.h.b16 %v593
  %v1181 = vunpack.c.l.b16 %v594
  %v1182 = vunpack.c.h.b16 %v594
  %v1183 = vunpack.c.l.b16 %v595
  %v1184 = vunpack.c.h.b16 %v595
  %v1185 = vunpack.c.l.b16 %v596
  %v1186 = vunpack.c.h.b16 %v596
  %v1187 = vunpack.c.l.b16 %v597
  %v1188 = vunpack.c.h.b16 %v597
  %v1189 = vunpack.c.l.b16 %v598
  %v1190 = vunpack.c.h.b16 %v598
  %v1191 = vunpack.c.l.b16 %v599
  %v1192 = vunpack.c.h.b16 %v599
  %v1193 = vunpack.c.l.b16 %v600
  %v1194 = vunpack.c.h.b16 %v600
  %v1195 = vunpack.c.l.b16 %v601
  %v1196 = vunpack.c.h.b16 %v601
  %v1197 = vunpack.c.l.b16 %v602
  %v1198 = vunpack.c.h.b16 %v602
  %v1199 = vunpack.c.l.b16 %v603
  %v1200 = vunpack.c.h.b16 %v603
  %v1201 = vunpack.c.l.b16 %v604
  %v1202 = vunpack.c.h.b16 %v604
  %v1203 = vunpack.c.l.b16 %v605
  %v1204 = vunpack.c.h.b16 %v605
  %v1205 = vunpack.c.l.b16 %v606
  %v1206 = vunpack.c.h.b16 %v606
  %v1207 = vunpack.c.l.b16 %v607
  %v1208 = vunpack.c.h.b16 %v607
  %v1209 = vunpack.c.l.b16 %v608
  %v1210 = vunpack.c.h.b16 %v608
  %v1211 = vunpack.c.l.b16 %v609
  %v1212 = vunpack.c.h.b16 %v609
  %v1213 = vunpack.c.l.b16 %v610
  %v1214 = vunpack.c.h.b16 %v610
  %v1215 = vunpack.c.l.b16 %v611
  %v1216 = vunpack.c.h.b16 %v611
  %v1217 = vunpack.c.l.b16 %v612
  %v1218 = vunpack.c.h.b16 %v612
  %v1219 = vunpack.c.l.b16 %v613
  %v1220 = vunpack.c.h.b16 %v613
  %v1221 = vunpack.c.l.b16 %v614
  %v1222 = vunpack.c.h.b16 %v614
  %v1223 = vunpack.c.l.b16 %v615
  %v1224 = vunpack.c.h.b16 %v615
  %v1225 = vunpack.c.l.b16 %v616
  %v1226 = vunpack.c.h.b16 %v616
  %v1227 = vunpack.c.l.b16 %v617
  %v1228 = vunpack.c.h.b16 %v617
  %v1229 = vunpack.c.l.b16 %v618
  %v1230 = vunpack.c.h.b16 %v618
  %v1231 = vunpack.c.l.b16 %v619
  %v1232 = vunpack.c.h.b16 %v619
  %v1233 = vunpack.c.l.b16 %v620
  %v1234 = vunpack.c.h.b16 %v620
  %v1235 = vunpack.c.l.b16 %v621
  %v1236 = vunpack.c.h.b16 %v621
  %v1237 = vunpack.c.l.b16 %v622
  %v1238 = vunpack.c.h.b16 %v622
  %v1239 = vunpack.c.l.b16 %v623
  %v1240 = vunpack.c.h.b16 %v623
  %v1241 = vunpack.c.l.b16 %v624
  %v1242 = vunpack.c.h.b16 %v624
  %v1243 = vunpack.c.l.b16 %v625
  %v1244 = vunpack.c.h.b16 %v625
  %v1245 = vunpack.c.l.b16 %v626
  %v1246 = vunpack.c.h.b16 %v626
  %v1247 = vunpack.c.l.b16 %v627
  %v1248 = vunpack.c.h.b16 %v627
  %v1249 = vunpack.c.l.b16 %v628
  %v1250 = vunpack.c.h.b16 %v628
  %v1251 = vunpack.c.l.b16 %v629
  %v1252 = vunpack.c.h.b16 %v629
  %v1253 = vunpack.c.l.b16 %v630
  %v1254 = vunpack.c.h.b16 %v630
  %v1255 = vunpack.c.l.b16 %v631
  %v1256 = vunpack.c.h.b16 %v631
  %v1257 = vunpack.c.l.b16 %v632
  %v1258 = vunpack.c.h.b16 %v632
  %v1259 = vunpack.c.l.b16 %v633
  %v1260 = vunpack.c.h.b16 %v633
  %v1261 = vunpack.c.l.b16 %v634
  %v1262 = vunpack.c.h.b16 %v634
  %v1263 = vunpack.c.l.b16 %v635
  %v1264 = vunpack.c.h.b16 %v635
  %v1265 = vunpack.c.l.b16 %v636
  %v1266 = vunpack.c.h.b16 %v636
  %v1267 = vunpack.c.l.b16 %v637
  %v1268 = vunpack.c.h.b16 %v637
  %v1269 = vunpack.c.l.b16 %v638
  %v1270 = vunpack.c.h.b16 %v638
  %v1271 = vunpack.c.l.b16 %v639
  %v1272 = vunpack.c.h.b16 %v639
  %v1273 = vunpack.c.l.b16 %v640
  %v1274 = vunpack.c.h.b16 %v640
  %v1275 = vunpack.c.l.b16 %v641
  %v1276 = vunpack.c.h.b16 %v641
  %v1277 = vunpack.c.l.b16 %v642
  %v1278 = vunpack.c.h.b16 %v642
  %v1279 = vunpack.c.l.b16 %v643
  %v1280 = vunpack.c.h.b16 %v643
  %v1281 = vunpack.c.l.b16 %v644
  %v1282 = vunpack.c.h.b16 %v644
  %v1283 = vunpack.c.l.b16 %v645
  %v1284 = vunpack.c.h.b16 %v645
  %v1285 = vunpack.c.l.b16 %v646
  %v1286 = vunpack.c.h.b16 %v646
  %v1287 = vunpack.c.l.b16 %v647
  %v1288 = vunpack.c.h.b16 %v647
  %v1289 = vunpack.c.l.b16 %v648
  %v1290 = vunpack.c.h.b16 %v648
  %v1291 = vunpack.c.l.b16 %v649
  %v1292 = vunpack.c.h.b16 %v649
  %v1293 = vunpack.c.l.b16 %v650
  %v1294 = vunpack.c.h.b16 %v650
  %v1295 = vunpack.c.l.b16 %v651
  %v1296 = vunpack.c.h.b16 %v651
  %v1297 = vunpack.c.l.b16 %v652
  %v1298 = vunpack.c.h.b16 %v652
  %v1299 = vunpack.c.l.b16 %v653
  %v1300 = vunpack.c.h.b16 %v653
  %v1301 = vunpack.c.l.b16 %v654
  %v1302 = vunpack.c.h.b16 %v654
  %v1303 = vunpack.c.l.b16 %v655
  %v1304 = vunpack.c.h.b16 %v655
  %v1305 = vunpack.c.l.b16 %v656
  %v1306 = vunpack.c.h.b16 %v656
  %v1307 = vunpack.c.l.b16 %v657
  %v1308 = vunpack.c.h.b16 %v657
  %v1309 = vunpack.c.l.b16 %v658
  %v1310 = vunpack.c.h.b16 %v658
  %v1311 = vunpack.c.l.b16 %v659
  %v1312 = vunpack.c.h.b16 %v659
  %v1313 = vunpack.c.l.b16 %v660
  %v1314 = vunpack.c.h.b16 %v660
  %v1315 = vunpack.c.l.b16 %v661
  %v1316 = vunpack.c.h.b16 %v661
  %v1317 = vunpack.c.l.b16 %v662
  %v1318 = vunpack.c.h.b16 %v662
  %v1319 = vunpack.c.l.b16 %v663
  %v1320 = vunpack.c.h.b16 %v663
  %v1321 = vunpack.c.l.b16 %v664
  %v1322 = vunpack.c.h.b16 %v664
  %v1323 = vunpack.c.l.b16 %v665
  %v1324 = vunpack.c.h.b16 %v665
  %v1325 = vunpack.c.l.b16 %v666
  %v1326 = vunpack.c.h.b16 %v666
  %v1327 = vunpack.c.l.b16 %v667
  %v1328 = vunpack.c.h.b16 %v667
  %v1329 = vunpack.c.l.b16 %v668
  %v1330 = vunpack.c.h.b16 %v668
  %v1331 = vunpack.c.l.b16 %v669
  %v1332 = vunpack.c.h.b16 %v669
  %v1333 = vunpack.c.l.b16 %v670
  %v1334 = vunpack.c.h.b16 %v670
  %v1335 = vunpack.c.l.b16 %v671
  %v1336 = vunpack.c.h.b16 %v671
  %v1337 = vunpack.c.l.b16 %v672
  %v1338 = vunpack.c.h.b16 %v672
  %v1339 = vpack.c.b16 %v935, %v931
  %v1340 = vpack.c.b16 %v936, %v932
  %v1341 = vpack.c.b16 %v937, %v933
  %v1342 = vpack.c.b16 %v938, %v934
  %v1343 = vpack.c.b16 %v943, %v939
  %v1344 = vpack.c.b16 %v944, %v940
  %v1345 = vpack.c.b16 %v945, %v941
  %v1346 = vpack.c.b16 %v946, %v942
  %v1347 = vpack.c.b16 %v951, %v947
  %v1348 = vpack.c.b16 %v952, %v948
  %v1349 = vpack.c.b16 %v953, %v949
  %v1350 = vpack.c.b16 %v954, %v950
  %v1351 = vpack.c.b16 %v959, %v955
  %v1352 = vpack.c.b16 %v960, %v956
  %v1353 = vpack.c.b16 %v961, %v957
  %v1354 = vpack.c.b16 %v962, %v958
  %v1355 = vpack.c.b16 %v967, %v963
  %v1356 = vpack.c.b16 %v968, %v964
  %v1357 = vpack.c.b16 %v969, %v965
  %v1358 = vpack.c.b16 %v970, %v966
  %v1359 = vpack.c.b16 %v975, %v971
  %v1360 = vpack.c.b16 %v976, %v972
  %v1361 = vpack.c.b16 %v977, %v973
  %v1362 = vpack.c.b16 %v978, %v974
  %v1363 = vpack.c.b16 %v983, %v979
  %v1364 = vpack.c.b16 %v984, %v980
  %v1365 = vpack.c.b16 %v985, %v981
  %v1366 = vpack.c.b16 %v986, %v982
  %v1367 = vpack.c.b16 %v991, %v987
  %v1368 = vpack.c.b16 %v992, %v988
  %v1369 = vpack.c.b16 %v993, %v989
  %v1370 = vpack.c.b16 %v994, %v990
  %v1371 = vpack.c.b16 %v999, %v995
  %v1372 = vpack.c.b16 %v1000, %v996
  %v1373 = vpack.c.b16 %v1001, %v997
  %v1374 = vpack.c.b16 %v1002, %v998
  %v1375 = vpack.c.b16 %v1007, %v1003
  %v1376 = vpack.c.b16 %v1008, %v1004
  %v1377 = vpack.c.b16 %v1009, %v1005
  %v1378 = vpack.c.b16 %v1010, %v1006
  %v1379 = vpack.c.b16 %v1015, %v1011
  %v1380 = vpack.c.b16 %v1016, %v1012
  %v1381 = vpack.c.b16 %v1017, %v1013
  %v1382 = vpack.c.b16 %v1018, %v1014
  %v1383 = vpack.c.b16 %v1023, %v1019
  %v1384 = vpack.c.b16 %v1024, %v1020
  %v1385 = vpack.c.b16 %v1025, %v1021
  %v1386 = vpack.c.b16 %v1026, %v1022
  %v1387 = vpack.c.b16 %v1031, %v1027
  %v1388 = vpack.c.b16 %v1032, %v1028
  %v1389 = vpack.c.b16 %v1033, %v1029
  %v1390 = vpack.c.b16 %v1034, %v1030
  %v1391 = vpack.c.b16 %v1039, %v1035
  %v1392 = vpack.c.b16 %v1040, %v1036
  %v1393 = vpack.c.b16 %v1041, %v1037
  %v1394 = vpack.c.b16 %v1042, %v1038
  %v1395 = vpack.c.b16 %v1047, %v1043
  %v1396 = vpack.c.b16 %v1048, %v1044
  %v1397 = vpack.c.b16 %v1049, %v1045
  %v1398 = vpack.c.b16 %v1050, %v1046
  %v1399 = vpack.c.b16 %v1055, %v1051
  %v1400 = vpack.c.b16 %v1056, %v1052
  %v1401 = vpack.c.b16 %v1057, %v1053
  %v1402 = vpack.c.b16 %v1058, %v1054
  %v1403 = vpack.c.b16 %v1063, %v1059
  %v1404 = vpack.c.b16 %v1064, %v1060
  %v1405 = vpack.c.b16 %v1065, %v1061
  %v1406 = vpack.c.b16 %v1066, %v1062
  %v1407 = vpack.c.b16 %v1071, %v1067
  %v1408 = vpack.c.b16 %v1072, %v1068
  %v1409 = vpack.c.b16 %v1073, %v1069
  %v1410 = vpack.c.b16 %v1074, %v1070
  %v1411 = vpack.c.b16 %v1079, %v1075
  %v1412 = vpack.c.b16 %v1080, %v1076
  %v1413 = vpack.c.b16 %v1081, %v1077
  %v1414 = vpack.c.b16 %v1082, %v1078
  %v1415 = vpack.c.b16 %v1087, %v1083
  %v1416 = vpack.c.b16 %v1088, %v1084
  %v1417 = vpack.c.b16 %v1089, %v1085
  %v1418 = vpack.c.b16 %v1090, %v1086
  %v1419 = vpack.c.b16 %v1095, %v1091
  %v1420 = vpack.c.b16 %v1096, %v1092
  %v1421 = vpack.c.b16 %v1097, %v1093
  %v1422 = vpack.c.b16 %v1098, %v1094
  %v1423 = vpack.c.b16 %v1103, %v1099
  %v1424 = vpack.c.b16 %v1104, %v1100
  %v1425 = vpack.c.b16 %v1105, %v1101
  %v1426 = vpack.c.b16 %v1106, %v1102
  %v1427 = vpack.c.b16 %v1111, %v1107
  %v1428 = vpack.c.b16 %v1112, %v1108
  %v1429 = vpack.c.b16 %v1113, %v1109
  %v1430 = vpack.c.b16 %v1114, %v1110
  %v1431 = vpack.c.b16 %v1119, %v1115
  %v1432 = vpack.c.b16 %v1120, %v1116
  %v1433 = vpack.c.b16 %v1121, %v1117
  %v1434 = vpack.c.b16 %v1122, %v1118
  %v1435 = vpack.c.b16 %v1127, %v1123
  %v1436 = vpack.c.b16 %v1128, %v1124
  %v1437 = vpack.c.b16 %v1129, %v1125
  %v1438 = vpack.c.b16 %v1130, %v1126
  %v1439 = vpack.c.b16 %v1135, %v1131
  %v1440 = vpack.c.b16 %v1136, %v1132
  %v1441 = vpack.c.b16 %v1137, %v1133
  %v1442 = vpack.c.b16 %v1138, %v1134
  %v1443 = vpack.c.b16 %v1143, %v1139
  %v1444 = vpack.c.b16 %v1144, %v1140
  %v1445 = vpack.c.b16 %v1145, %v1141
  %v1446 = vpack.c.b16 %v1146, %v1142
  %v1447 = vpack.c.b16 %v1151, %v1147
  %v1448 = vpack.c.b16 %v1152, %v1148
  %v1449 = vpack.c.b16 %v1153, %v1149
  %v1450 = vpack.c.b16 %v1154, %v1150
  %v1451 = vpack.c.b16 %v1159, %v1155
  %v1452 = vpack.c.b16 %v1160, %v1156
  %v1453 = vpack.c.b16 %v1161, %v1157
  %v1454 = vpack.c.b16 %v1162, %v1158
  %v1455 = vpack.c.b16 %v1167, %v1163
  %v1456 = vpack.c.b16 %v1168, %v1164
  %v1457 = vpack.c.b16 %v1169, %v1165
  %v1458 = vpack.c.b16 %v1170, %v1166
  %v1459 = vpack.c.b16 %v1175, %v1171
  %v1460 = vpack.c.b16 %v1176, %v1172
  %v1461 = vpack.c.b16 %v1177, %v1173
  %v1462 = vpack.c.b16 %v1178, %v1174
  %v1463 = vpack.c.b16 %v1183, %v1179
  %v1464 = vpack.c.b16 %v1184, %v1180
  %v1465 = vpack.c.b16 %v1185, %v1181
  %v1466 = vpack.c.b16 %v1186, %v1182
  %v1467 = vpack.c.b16 %v1191, %v1187
  %v1468 = vpack.c.b16 %v1192, %v1188
  %v1469 = vpack.c.b16 %v1193, %v1189
  %v1470 = vpack.c.b16 %v1194, %v1190
  %v1471 = vpack.c.b16 %v1199, %v1195
  %v1472 = vpack.c.b16 %v1200, %v1196
  %v1473 = vpack.c.b16 %v1201, %v1197
  %v1474 = vpack.c.b16 %v1202, %v1198
  %v1475 = vpack.c.b16 %v1207, %v1203
  %v1476 = vpack.c.b16 %v1208, %v1204
  %v1477 = vpack.c.b16 %v1209, %v1205
  %v1478 = vpack.c.b16 %v1210, %v1206
  %v1479 = vpack.c.b16 %v1215, %v1211
  %v1480 = vpack.c.b16 %v1216, %v1212
  %v1481 = vpack.c.b16 %v1217, %v1213
  %v1482 = vpack.c.b16 %v1218, %v1214
  %v1483 = vpack.c.b16 %v1223, %v1219
  %v1484 = vpack.c.b16 %v1224, %v1220
  %v1485 = vpack.c.b16 %v1225, %v1221
  %v1486 = vpack.c.b16 %v1226, %v1222
  %v1487 = vpack.c.b16 %v1231, %v1227
  %v1488 = vpack.c.b16 %v1232, %v1228
  %v1489 = vpack.c.b16 %v1233, %v1229
  %v1490 = vpack.c.b16 %v1234, %v1230
  %v1491 = vpack.c.b16 %v1239, %v1235
  %v1492 = vpack.c.b16 %v1240, %v1236
  %v1493 = vpack.c.b16 %v1241, %v1237
  %v1494 = vpack.c.b16 %v1242, %v1238
  %v1495 = vpack.c.b16 %v1247, %v1243
  %v1496 = vpack.c.b16 %v1248, %v1244
  %v1497 = vpack.c.b16 %v1249, %v1245
  %v1498 = vpack.c.b16 %v1250, %v1246
  %v1499 = vpack.c.b16 %v1255, %v1251
  %v1500 = vpack.c.b16 %v1256, %v1252
  %v1501 = vpack.c.b16 %v1257, %v1253
  %v1502 = vpack.c.b16 %v1258, %v1254
  %v1503 = vpack.c.b16 %v1263, %v1259
  %v1504 = vpack.c.b16 %v1264, %v1260
  %v1505 = vpack.c.b16 %v1265, %v1261
  %v1506 = vpack.c.b16 %v1266, %v1262
  %v1507 = vpack.c.b16 %v1271, %v1267
  %v1508 = vpack.c.b16 %v1272, %v1268
  %v1509 = vpack.c.b16 %v1273, %v1269
  %v1510 = vpack.c.b16 %v1274, %v1270
  %v1511 = vpack.c.b16 %v1279, %v1275
  %v1512 = vpack.c.b16 %v1280, %v1276
  %v1513 = vpack.c.b16 %v1281, %v1277
  %v1514 = vpack.c.b16 %v1282, %v1278
  %v1515 = vpack.c.b16 %v1287, %v1283
  %v1516 = vpack.c.b16 %v1288, %v1284
  %v1517 = vpack.c.b16 %v1289, %v1285
  %v1518 = vpack.c.b16 %v1290, %v1286
  %v1519 = vpack.c.b16 %v1295, %v1291
  %v1520 = vpack.c.b16 %v1296, %v1292
  %v1521 = vpack.c.b16 %v1297, %v1293
  %v1522 = vpack.c.b16 %v1298, %v1294
  %v1523 = vpack.c.b16 %v1303, %v1299
  %v1524 = vpack.c.b16 %v1304, %v1300
  %v1525 = vpack.c.b16 %v1305, %v1301
  %v1526 = vpack.c.b16 %v1306, %v1302
  %v1527 = vpack.c.b16 %v1311, %v1307
  %v1528 = vpack.c.b16 %v1312, %v1308
  %v1529 = vpack.c.b16 %v1313, %v1309
  %v1530 = vpack.c.b16 %v1314, %v1310
  %v1531 = vpack.c.b16 %v1319, %v1315
  %v1532 = vpack.c.b16 %v1320, %v1316
  %v1533 = vpack.c.b16 %v1321, %v1317
  %v1534 = vpack.c.b16 %v1322, %v1318
  %v1535 = vpack.c.b16 %v1327, %v1323
  %v1536 = vpack.c.b16 %v1328, %v1324
  %v1537 = vpack.c.b16 %v1329, %v1325
  %v1538 = vpack.c.b16 %v1330, %v1326
  %v1539 = vpack.c.b16 %v1335, %v1331
  %v1540 = vpack.c.b16 %v1336, %v1332
  %v1541 = vpack.c.b16 %v1337, %v1333
  %v1542 = vpack.c.b16 %v1338, %v1334
  %vm1747 = vcmask 392192
  %v1749 = vsel %vm1747, %v707, 0
  %v1752 = vsel %vm1747, %v714, 0
  %1754 = vmatprep.subr.bf16.mxu0 %v1340
  %1755 = vmatpush1.bf16.msra.mxu0 %v1339
  %1756 = vmatprep.subr.bf16.mxu0 %v1344
  %1757 = vmatpush1.bf16.msra.mxu0 %v1343
  %1758 = vmatprep.subr.bf16.mxu0 %v1348
  %1759 = vmatpush1.bf16.msra.mxu0 %v1347
  %1760 = vmatprep.subr.bf16.mxu0 %v1352
  %1761 = vmatpush1.bf16.msra.mxu0 %v1351
  %1762 = vmatprep.subr.bf16.mxu0 %v1356
  %1763 = vmatpush1.bf16.msra.mxu0 %v1355
  %1764 = vmatprep.subr.bf16.mxu0 %v1360
  %1765 = vmatpush1.bf16.msra.mxu0 %v1359
  %1766 = vmatprep.subr.bf16.mxu0 %v1364
  %1767 = vmatpush1.bf16.msra.mxu0 %v1363
  %1768 = vmatprep.subr.bf16.mxu0 %v1368
  %1769 = vmatpush1.bf16.msra.mxu0 %v1367
  %1770 = vmatprep.subr.bf16.mxu0 %v1372
  %1771 = vmatpush1.bf16.msra.mxu0 %v1371
  %1772 = vmatprep.subr.bf16.mxu0 %v1376
  %1773 = vmatpush1.bf16.msra.mxu0 %v1375
  %1774 = vmatprep.subr.bf16.mxu0 %v1380
  %1775 = vmatpush1.bf16.msra.mxu0 %v1379
  %1776 = vmatprep.subr.bf16.mxu0 %v1384
  %1777 = vmatpush1.bf16.msra.mxu0 %v1383
  %1778 = vmatprep.subr.bf16.mxu0 %v1388
  %1779 = vmatpush1.bf16.msra.mxu0 %v1387
  %1780 = vmatprep.subr.bf16.mxu0 %v1392
  %1781 = vmatpush1.bf16.msra.mxu0 %v1391
  %1782 = vmatprep.subr.bf16.mxu0 %v1396
  %1783 = vmatpush1.bf16.msra.mxu0 %v1395
  %1784 = vmatprep.subr.bf16.mxu0 %v1400
  %1785 = vmatpush1.bf16.msra.mxu0 %v1399
  %1786 = vmatprep.mubr.bf16.mxu0 %v702
  %1787 = vmatmul.mubr.bf16.gmra.mrb[0].mxu0 %v701
  %v1788 = vpop.f32.mrb[0].mxu0
  %v1789 = vadd.f32 0.0, %v1788
  %v1790 = vpop.f32.mrb[0].mxu0
  %v1791 = vadd.f32 0.0, %v1790
  %v1792 = vpop.f32.mrb[0].mxu0
  %v1793 = vadd.f32 0.0, %v1792
  %v1794 = vpop.f32.mrb[0].mxu0
  %v1795 = vadd.f32 0.0, %v1794
  %1796 = vmatprep.mubr.bf16.mxu0 %v709
  %1797 = vmatmul.mubr.bf16.gmra.mrb[0].mxu0 %v708
  %v1798 = vpop.f32.mrb[0].mxu0
  %v1799 = vadd.f32 0.0, %v1798
  %v1800 = vpop.f32.mrb[0].mxu0
  %v1801 = vadd.f32 0.0, %v1800
  %v1802 = vpop.f32.mrb[0].mxu0
  %v1803 = vadd.f32 0.0, %v1802
  %v1804 = vpop.f32.mrb[0].mxu0
  %v1805 = vadd.f32 0.0, %v1804
  %1806 = vdwg.mxu0
  %1807 = vmatprep.subr.bf16.mxu0 %v1404
  %1808 = vmatpush1.bf16.msra.mxu0 %v1403
  %1809 = vmatprep.subr.bf16.mxu0 %v1408
  %1810 = vmatpush1.bf16.msra.mxu0 %v1407
  %1811 = vmatprep.subr.bf16.mxu0 %v1412
  %1812 = vmatpush1.bf16.msra.mxu0 %v1411
  %1813 = vmatprep.subr.bf16.mxu0 %v1416
  %1814 = vmatpush1.bf16.msra.mxu0 %v1415
  %1815 = vmatprep.subr.bf16.mxu0 %v1420
  %1816 = vmatpush1.bf16.msra.mxu0 %v1419
  %1817 = vmatprep.subr.bf16.mxu0 %v1424
  %1818 = vmatpush1.bf16.msra.mxu0 %v1423
  %1819 = vmatprep.subr.bf16.mxu0 %v1428
  %1820 = vmatpush1.bf16.msra.mxu0 %v1427
  %1821 = vmatprep.subr.bf16.mxu0 %v1432
  %1822 = vmatpush1.bf16.msra.mxu0 %v1431
  %1823 = vmatprep.subr.bf16.mxu0 %v1436
  %1824 = vmatpush1.bf16.msra.mxu0 %v1435
  %1825 = vmatprep.subr.bf16.mxu0 %v1440
  %1826 = vmatpush1.bf16.msra.mxu0 %v1439
  %1827 = vmatprep.subr.bf16.mxu0 %v1444
  %1828 = vmatpush1.bf16.msra.mxu0 %v1443
  %1829 = vmatprep.subr.bf16.mxu0 %v1448
  %1830 = vmatpush1.bf16.msra.mxu0 %v1447
  %1831 = vmatprep.subr.bf16.mxu0 %v1452
  %1832 = vmatpush1.bf16.msra.mxu0 %v1451
  %1833 = vmatprep.subr.bf16.mxu0 %v1456
  %1834 = vmatpush1.bf16.msra.mxu0 %v1455
  %1835 = vmatprep.subr.bf16.mxu0 %v1460
  %1836 = vmatpush1.bf16.msra.mxu0 %v1459
  %1837 = vmatprep.subr.bf16.mxu0 %v1464
  %1838 = vmatpush1.bf16.msra.mxu0 %v1463
  %1839 = vmatprep.mubr.bf16.mxu0 %v704
  %1840 = vmatmul.mubr.bf16.gmra.mrb[0].mxu0 %v703
  %v1841 = vpop.f32.mrb[0].mxu0
  %v1842 = vadd.f32 %v1789, %v1841
  %v1843 = vpop.f32.mrb[0].mxu0
  %v1844 = vadd.f32 %v1791, %v1843
  %v1845 = vpop.f32.mrb[0].mxu0
  %v1846 = vadd.f32 %v1793, %v1845
  %v1847 = vpop.f32.mrb[0].mxu0
  %v1848 = vadd.f32 %v1795, %v1847
  %1849 = vmatprep.mubr.bf16.mxu0 %v711
  %1850 = vmatmul.mubr.bf16.gmra.mrb[0].mxu0 %v710
  %v1851 = vpop.f32.mrb[0].mxu0
  %v1852 = vadd.f32 %v1799, %v1851
  %v1853 = vpop.f32.mrb[0].mxu0
  %v1854 = vadd.f32 %v1801, %v1853
  %v1855 = vpop.f32.mrb[0].mxu0
  %v1856 = vadd.f32 %v1803, %v1855
  %v1857 = vpop.f32.mrb[0].mxu0
  %v1858 = vadd.f32 %v1805, %v1857
  %1859 = vdwg.mxu0
  %1860 = vmatprep.subr.bf16.mxu0 %v1468
  %1861 = vmatpush1.bf16.msra.mxu0 %v1467
  %1862 = vmatprep.subr.bf16.mxu0 %v1472
  %1863 = vmatpush1.bf16.msra.mxu0 %v1471
  %1864 = vmatprep.subr.bf16.mxu0 %v1476
  %1865 = vmatpush1.bf16.msra.mxu0 %v1475
  %1866 = vmatprep.subr.bf16.mxu0 %v1480
  %1867 = vmatpush1.bf16.msra.mxu0 %v1479
  %1868 = vmatprep.subr.bf16.mxu0 %v1484
  %1869 = vmatpush1.bf16.msra.mxu0 %v1483
  %1870 = vmatprep.subr.bf16.mxu0 %v1488
  %1871 = vmatpush1.bf16.msra.mxu0 %v1487
  %1872 = vmatprep.subr.bf16.mxu0 %v1492
  %1873 = vmatpush1.bf16.msra.mxu0 %v1491
  %1874 = vmatprep.subr.bf16.mxu0 %v1496
  %1875 = vmatpush1.bf16.msra.mxu0 %v1495
  %1876 = vmatprep.subr.bf16.mxu0 %v1500
  %1877 = vmatpush1.bf16.msra.mxu0 %v1499
  %1878 = vmatprep.subr.bf16.mxu0 %v1504
  %1879 = vmatpush1.bf16.msra.mxu0 %v1503
  %1880 = vmatprep.subr.bf16.mxu0 %v1508
  %1881 = vmatpush1.bf16.msra.mxu0 %v1507
  %1882 = vmatprep.subr.bf16.mxu0 %v1512
  %1883 = vmatpush1.bf16.msra.mxu0 %v1511
  %1884 = vmatprep.subr.bf16.mxu0 %v1516
  %1885 = vmatpush1.bf16.msra.mxu0 %v1515
  %1886 = vmatprep.subr.bf16.mxu0 %v1520
  %1887 = vmatpush1.bf16.msra.mxu0 %v1519
  %1888 = vmatprep.subr.bf16.mxu0 %v1524
  %1889 = vmatpush1.bf16.msra.mxu0 %v1523
  %1890 = vmatprep.subr.bf16.mxu0 %v1528
  %1891 = vmatpush1.bf16.msra.mxu0 %v1527
  %1892 = vmatprep.mubr.bf16.mxu0 %v706
  %1893 = vmatmul.mubr.bf16.gmra.mrb[0].mxu0 %v705
  %v1894 = vpop.f32.mrb[0].mxu0
  %v1895 = vadd.f32 %v1842, %v1894
  %v1896 = vpop.f32.mrb[0].mxu0
  %v1897 = vadd.f32 %v1844, %v1896
  %v1898 = vpop.f32.mrb[0].mxu0
  %v1899 = vadd.f32 %v1846, %v1898
  %v1900 = vpop.f32.mrb[0].mxu0
  %v1901 = vadd.f32 %v1848, %v1900
  %1902 = vmatprep.mubr.bf16.mxu0 %v713
  %1903 = vmatmul.mubr.bf16.gmra.mrb[0].mxu0 %v712
  %v1904 = vpop.f32.mrb[0].mxu0
  %v1905 = vadd.f32 %v1852, %v1904
  %v1906 = vpop.f32.mrb[0].mxu0
  %v1907 = vadd.f32 %v1854, %v1906
  %v1908 = vpop.f32.mrb[0].mxu0
  %v1909 = vadd.f32 %v1856, %v1908
  %v1910 = vpop.f32.mrb[0].mxu0
  %v1911 = vadd.f32 %v1858, %v1910
  %1912 = vdwg.mxu0
  %1913 = vmatprep.subr.bf16.mxu0 %v1532
  %1914 = vmatpush1.bf16.msra.mxu0 %v1531
  %1915 = vmatprep.subr.bf16.mxu0 %v1536
  %1916 = vmatpush1.bf16.msra.mxu0 %v1535
  %1917 = vmatprep.subr.bf16.mxu0 %v1540
  %1918 = vmatpush1.bf16.msra.mxu0 %v1539
  %1919 = vmatprep.subr.bf16.mxu0 0
  %1920 = vmatpush1.bf16.msra.mxu0 0
  %1921 = vmatprep.subr.bf16.mxu0 0
  %1922 = vmatpush1.bf16.msra.mxu0 0
  %1923 = vmatprep.subr.bf16.mxu0 0
  %1924 = vmatpush1.bf16.msra.mxu0 0
  %1925 = vmatprep.subr.bf16.mxu0 0
  %1926 = vmatpush1.bf16.msra.mxu0 0
  %1927 = vmatprep.subr.bf16.mxu0 0
  %1928 = vmatpush1.bf16.msra.mxu0 0
  %1929 = vmatprep.subr.bf16.mxu0 0
  %1930 = vmatpush1.bf16.msra.mxu0 0
  %1931 = vmatprep.subr.bf16.mxu0 0
  %1932 = vmatpush1.bf16.msra.mxu0 0
  %1933 = vmatprep.subr.bf16.mxu0 0
  %1934 = vmatpush1.bf16.msra.mxu0 0
  %1935 = vmatprep.subr.bf16.mxu0 0
  %1936 = vmatpush1.bf16.msra.mxu0 0
  %1937 = vmatprep.subr.bf16.mxu0 0
  %1938 = vmatpush1.bf16.msra.mxu0 0
  %1939 = vmatprep.subr.bf16.mxu0 0
  %1940 = vmatpush1.bf16.msra.mxu0 0
  %1941 = vmatprep.subr.bf16.mxu0 0
  %1942 = vmatpush1.bf16.msra.mxu0 0
  %1943 = vmatprep.subr.bf16.mxu0 0
  %1944 = vmatpush1.bf16.msra.mxu0 0
  %1945 = vmatprep.mubr.bf16.mxu0 0
  %1946 = vmatmul.mubr.bf16.gmra.mrb[0].mxu0 %v1749
  %v1947 = vpop.f32.mrb[0].mxu0
  %v1948 = vadd.f32 %v1895, %v1947
  %v1949 = vpop.f32.mrb[0].mxu0
  %v1950 = vadd.f32 %v1897, %v1949
  %v1951 = vpop.f32.mrb[0].mxu0
  %v1952 = vadd.f32 %v1899, %v1951
  %v1953 = vpop.f32.mrb[0].mxu0
  %v1954 = vadd.f32 %v1901, %v1953
  %1955 = vmatprep.mubr.bf16.mxu0 0
  %1956 = vmatmul.mubr.bf16.gmra.mrb[0].mxu0 %v1752
  %v1957 = vpop.f32.mrb[0].mxu0
  %v1958 = vadd.f32 %v1905, %v1957
  %v1959 = vpop.f32.mrb[0].mxu0
  %v1960 = vadd.f32 %v1907, %v1959
  %v1961 = vpop.f32.mrb[0].mxu0
  %v1962 = vadd.f32 %v1909, %v1961
  %v1963 = vpop.f32.mrb[0].mxu0
  %v1964 = vadd.f32 %v1911, %v1963
  %1965 = vdwg.mxu0
  %1966 = vmatprep.subr.bf16.mxu0 %v1342
  %1967 = vmatpush1.bf16.msra.mxu0 %v1341
  %1968 = vmatprep.subr.bf16.mxu0 %v1346
  %1969 = vmatpush1.bf16.msra.mxu0 %v1345
  %1970 = vmatprep.subr.bf16.mxu0 %v1350
  %1971 = vmatpush1.bf16.msra.mxu0 %v1349
  %1972 = vmatprep.subr.bf16.mxu0 %v1354
  %1973 = vmatpush1.bf16.msra.mxu0 %v1353
  %1974 = vmatprep.subr.bf16.mxu0 %v1358
  %1975 = vmatpush1.bf16.msra.mxu0 %v1357
  %1976 = vmatprep.subr.bf16.mxu0 %v1362
  %1977 = vmatpush1.bf16.msra.mxu0 %v1361
  %1978 = vmatprep.subr.bf16.mxu0 %v1366
  %1979 = vmatpush1.bf16.msra.mxu0 %v1365
  %1980 = vmatprep.subr.bf16.mxu0 %v1370
  %1981 = vmatpush1.bf16.msra.mxu0 %v1369
  %1982 = vmatprep.subr.bf16.mxu0 %v1374
  %1983 = vmatpush1.bf16.msra.mxu0 %v1373
  %1984 = vmatprep.subr.bf16.mxu0 %v1378
  %1985 = vmatpush1.bf16.msra.mxu0 %v1377
  %1986 = vmatprep.subr.bf16.mxu0 %v1382
  %1987 = vmatpush1.bf16.msra.mxu0 %v1381
  %1988 = vmatprep.subr.bf16.mxu0 %v1386
  %1989 = vmatpush1.bf16.msra.mxu0 %v1385
  %1990 = vmatprep.subr.bf16.mxu0 %v1390
  %1991 = vmatpush1.bf16.msra.mxu0 %v1389
  %1992 = vmatprep.subr.bf16.mxu0 %v1394
  %1993 = vmatpush1.bf16.msra.mxu0 %v1393
  %1994 = vmatprep.subr.bf16.mxu0 %v1398
  %1995 = vmatpush1.bf16.msra.mxu0 %v1397
  %1996 = vmatprep.subr.bf16.mxu0 %v1402
  %1997 = vmatpush1.bf16.msra.mxu0 %v1401
  %1998 = vmatprep.mubr.bf16.mxu0 %v702
  %1999 = vmatmul.mubr.bf16.gmra.mrb[0].mxu0 %v701
  %v2000 = vpop.f32.mrb[0].mxu0
  %v2001 = vadd.f32 0.0, %v2000
  %v2002 = vpop.f32.mrb[0].mxu0
  %v2003 = vadd.f32 0.0, %v2002
  %v2004 = vpop.f32.mrb[0].mxu0
  %v2005 = vadd.f32 0.0, %v2004
  %v2006 = vpop.f32.mrb[0].mxu0
  %v2007 = vadd.f32 0.0, %v2006
  %2008 = vmatprep.mubr.bf16.mxu0 %v709
  %2009 = vmatmul.mubr.bf16.gmra.mrb[0].mxu0 %v708
  %v2010 = vpop.f32.mrb[0].mxu0
  %v2011 = vadd.f32 0.0, %v2010
  %v2012 = vpop.f32.mrb[0].mxu0
  %v2013 = vadd.f32 0.0, %v2012
  %v2014 = vpop.f32.mrb[0].mxu0
  %v2015 = vadd.f32 0.0, %v2014
  %v2016 = vpop.f32.mrb[0].mxu0
  %v2017 = vadd.f32 0.0, %v2016
  %2018 = vdwg.mxu0
  %2019 = vmatprep.subr.bf16.mxu0 %v1406
  %2020 = vmatpush1.bf16.msra.mxu0 %v1405
  %2021 = vmatprep.subr.bf16.mxu0 %v1410
  %2022 = vmatpush1.bf16.msra.mxu0 %v1409
  %2023 = vmatprep.subr.bf16.mxu0 %v1414
  %2024 = vmatpush1.bf16.msra.mxu0 %v1413
  %2025 = vmatprep.subr.bf16.mxu0 %v1418
  %2026 = vmatpush1.bf16.msra.mxu0 %v1417
  %2027 = vmatprep.subr.bf16.mxu0 %v1422
  %2028 = vmatpush1.bf16.msra.mxu0 %v1421
  %2029 = vmatprep.subr.bf16.mxu0 %v1426
  %2030 = vmatpush1.bf16.msra.mxu0 %v1425
  %2031 = vmatprep.subr.bf16.mxu0 %v1430
  %2032 = vmatpush1.bf16.msra.mxu0 %v1429
  %2033 = vmatprep.subr.bf16.mxu0 %v1434
  %2034 = vmatpush1.bf16.msra.mxu0 %v1433
  %2035 = vmatprep.subr.bf16.mxu0 %v1438
  %2036 = vmatpush1.bf16.msra.mxu0 %v1437
  %2037 = vmatprep.subr.bf16.mxu0 %v1442
  %2038 = vmatpush1.bf16.msra.mxu0 %v1441
  %2039 = vmatprep.subr.bf16.mxu0 %v1446
  %2040 = vmatpush1.bf16.msra.mxu0 %v1445
  %2041 = vmatprep.subr.bf16.mxu0 %v1450
  %2042 = vmatpush1.bf16.msra.mxu0 %v1449
  %2043 = vmatprep.subr.bf16.mxu0 %v1454
  %2044 = vmatpush1.bf16.msra.mxu0 %v1453
  %2045 = vmatprep.subr.bf16.mxu0 %v1458
  %2046 = vmatpush1.bf16.msra.mxu0 %v1457
  %2047 = vmatprep.subr.bf16.mxu0 %v1462
  %2048 = vmatpush1.bf16.msra.mxu0 %v1461
  %2049 = vmatprep.subr.bf16.mxu0 %v1466
  %2050 = vmatpush1.bf16.msra.mxu0 %v1465
  %2051 = vmatprep.mubr.bf16.mxu0 %v704
  %2052 = vmatmul.mubr.bf16.gmra.mrb[0].mxu0 %v703
  %v2053 = vpop.f32.mrb[0].mxu0
  %v2054 = vadd.f32 %v2001, %v2053
  %v2055 = vpop.f32.mrb[0].mxu0
  %v2056 = vadd.f32 %v2003, %v2055
  %v2057 = vpop.f32.mrb[0].mxu0
  %v2058 = vadd.f32 %v2005, %v2057
  %v2059 = vpop.f32.mrb[0].mxu0
  %v2060 = vadd.f32 %v2007, %v2059
  %2061 = vmatprep.mubr.bf16.mxu0 %v711
  %2062 = vmatmul.mubr.bf16.gmra.mrb[0].mxu0 %v710
  %v2063 = vpop.f32.mrb[0].mxu0
  %v2064 = vadd.f32 %v2011, %v2063
  %v2065 = vpop.f32.mrb[0].mxu0
  %v2066 = vadd.f32 %v2013, %v2065
  %v2067 = vpop.f32.mrb[0].mxu0
  %v2068 = vadd.f32 %v2015, %v2067
  %v2069 = vpop.f32.mrb[0].mxu0
  %v2070 = vadd.f32 %v2017, %v2069
  %2071 = vdwg.mxu0
  %2072 = vmatprep.subr.bf16.mxu0 %v1470
  %2073 = vmatpush1.bf16.msra.mxu0 %v1469
  %2074 = vmatprep.subr.bf16.mxu0 %v1474
  %2075 = vmatpush1.bf16.msra.mxu0 %v1473
  %2076 = vmatprep.subr.bf16.mxu0 %v1478
  %2077 = vmatpush1.bf16.msra.mxu0 %v1477
  %2078 = vmatprep.subr.bf16.mxu0 %v1482
  %2079 = vmatpush1.bf16.msra.mxu0 %v1481
  %2080 = vmatprep.subr.bf16.mxu0 %v1486
  %2081 = vmatpush1.bf16.msra.mxu0 %v1485
  %2082 = vmatprep.subr.bf16.mxu0 %v1490
  %2083 = vmatpush1.bf16.msra.mxu0 %v1489
  %2084 = vmatprep.subr.bf16.mxu0 %v1494
  %2085 = vmatpush1.bf16.msra.mxu0 %v1493
  %2086 = vmatprep.subr.bf16.mxu0 %v1498
  %2087 = vmatpush1.bf16.msra.mxu0 %v1497
  %2088 = vmatprep.subr.bf16.mxu0 %v1502
  %2089 = vmatpush1.bf16.msra.mxu0 %v1501
  %2090 = vmatprep.subr.bf16.mxu0 %v1506
  %2091 = vmatpush1.bf16.msra.mxu0 %v1505
  %2092 = vmatprep.subr.bf16.mxu0 %v1510
  %2093 = vmatpush1.bf16.msra.mxu0 %v1509
  %2094 = vmatprep.subr.bf16.mxu0 %v1514
  %2095 = vmatpush1.bf16.msra.mxu0 %v1513
  %2096 = vmatprep.subr.bf16.mxu0 %v1518
  %2097 = vmatpush1.bf16.msra.mxu0 %v1517
  %2098 = vmatprep.subr.bf16.mxu0 %v1522
  %2099 = vmatpush1.bf16.msra.mxu0 %v1521
  %2100 = vmatprep.subr.bf16.mxu0 %v1526
  %2101 = vmatpush1.bf16.msra.mxu0 %v1525
  %2102 = vmatprep.subr.bf16.mxu0 %v1530
  %2103 = vmatpush1.bf16.msra.mxu0 %v1529
  %2104 = vmatprep.mubr.bf16.mxu0 %v706
  %2105 = vmatmul.mubr.bf16.gmra.mrb[0].mxu0 %v705
  %v2106 = vpop.f32.mrb[0].mxu0
  %v2107 = vadd.f32 %v2054, %v2106
  %v2108 = vpop.f32.mrb[0].mxu0
  %v2109 = vadd.f32 %v2056, %v2108
  %v2110 = vpop.f32.mrb[0].mxu0
  %v2111 = vadd.f32 %v2058, %v2110
  %v2112 = vpop.f32.mrb[0].mxu0
  %v2113 = vadd.f32 %v2060, %v2112
  %2114 = vmatprep.mubr.bf16.mxu0 %v713
  %2115 = vmatmul.mubr.bf16.gmra.mrb[0].mxu0 %v712
  %v2116 = vpop.f32.mrb[0].mxu0
  %v2117 = vadd.f32 %v2064, %v2116
  %v2118 = vpop.f32.mrb[0].mxu0
  %v2119 = vadd.f32 %v2066, %v2118
  %v2120 = vpop.f32.mrb[0].mxu0
  %v2121 = vadd.f32 %v2068, %v2120
  %v2122 = vpop.f32.mrb[0].mxu0
  %v2123 = vadd.f32 %v2070, %v2122
  %2124 = vdwg.mxu0
  %2125 = vmatprep.subr.bf16.mxu0 %v1534
  %2126 = vmatpush1.bf16.msra.mxu0 %v1533
  %2127 = vmatprep.subr.bf16.mxu0 %v1538
  %2128 = vmatpush1.bf16.msra.mxu0 %v1537
  %2129 = vmatprep.subr.bf16.mxu0 %v1542
  %2130 = vmatpush1.bf16.msra.mxu0 %v1541
  %2131 = vmatprep.subr.bf16.mxu0 0
  %2132 = vmatpush1.bf16.msra.mxu0 0
  %2133 = vmatprep.subr.bf16.mxu0 0
  %2134 = vmatpush1.bf16.msra.mxu0 0
  %2135 = vmatprep.subr.bf16.mxu0 0
  %2136 = vmatpush1.bf16.msra.mxu0 0
  %2137 = vmatprep.subr.bf16.mxu0 0
  %2138 = vmatpush1.bf16.msra.mxu0 0
  %2139 = vmatprep.subr.bf16.mxu0 0
  %2140 = vmatpush1.bf16.msra.mxu0 0
  %2141 = vmatprep.subr.bf16.mxu0 0
  %2142 = vmatpush1.bf16.msra.mxu0 0
  %2143 = vmatprep.subr.bf16.mxu0 0
  %2144 = vmatpush1.bf16.msra.mxu0 0
  %2145 = vmatprep.subr.bf16.mxu0 0
  %2146 = vmatpush1.bf16.msra.mxu0 0
  %2147 = vmatprep.subr.bf16.mxu0 0
  %2148 = vmatpush1.bf16.msra.mxu0 0
  %2149 = vmatprep.subr.bf16.mxu0 0
  %2150 = vmatpush1.bf16.msra.mxu0 0
  %2151 = vmatprep.subr.bf16.mxu0 0
  %2152 = vmatpush1.bf16.msra.mxu0 0
  %2153 = vmatprep.subr.bf16.mxu0 0
  %2154 = vmatpush1.bf16.msra.mxu0 0
  %2155 = vmatprep.subr.bf16.mxu0 0
  %2156 = vmatpush1.bf16.msra.mxu0 0
  %2157 = vmatprep.mubr.bf16.mxu0 0
  %2158 = vmatmul.mubr.bf16.gmra.mrb[0].mxu0 %v1749
  %v2159 = vpop.f32.mrb[0].mxu0
  %v2160 = vadd.f32 %v2107, %v2159
  %v2161 = vpop.f32.mrb[0].mxu0
  %v2162 = vadd.f32 %v2109, %v2161
  %v2163 = vpop.f32.mrb[0].mxu0
  %v2164 = vadd.f32 %v2111, %v2163
  %v2165 = vpop.f32.mrb[0].mxu0
  %v2166 = vadd.f32 %v2113, %v2165
  %2167 = vmatprep.mubr.bf16.mxu0 0
  %2168 = vmatmul.mubr.bf16.gmra.mrb[0].mxu0 %v1752
  %v2169 = vpop.f32.mrb[0].mxu0
  %v2170 = vadd.f32 %v2117, %v2169
  %v2171 = vpop.f32.mrb[0].mxu0
  %v2172 = vadd.f32 %v2119, %v2171
  %v2173 = vpop.f32.mrb[0].mxu0
  %v2174 = vadd.f32 %v2121, %v2173
  %v2175 = vpop.f32.mrb[0].mxu0
  %v2176 = vadd.f32 %v2123, %v2175
  %2177 = vdwg.mxu0
  %v2194 = vunpack.c.l.b16 %v45
  %v2195 = vunpack.c.h.b16 %v45
  %v2196 = vunpack.c.l.b16 %v46
  %v2197 = vunpack.c.h.b16 %v46
  %v2198 = vunpack.c.l.b16 %v47
  %v2199 = vunpack.c.h.b16 %v47
  %v2200 = vunpack.c.l.b16 %v48
  %v2201 = vunpack.c.l.b16 %v49
  %v2202 = vunpack.c.h.b16 %v49
  %v2203 = vunpack.c.l.b16 %v50
  %v2204 = vunpack.c.h.b16 %v50
  %v2205 = vunpack.c.l.b16 %v51
  %v2206 = vunpack.c.h.b16 %v51
  %v2207 = vunpack.c.l.b16 %v52
  %v2208 = vunpack.c.l.b16 %v53
  %v2209 = vunpack.c.h.b16 %v53
  %v2210 = vunpack.c.l.b16 %v54
  %v2211 = vunpack.c.h.b16 %v54
  %v2212 = vunpack.c.l.b16 %v55
  %v2213 = vunpack.c.h.b16 %v55
  %v2214 = vunpack.c.l.b16 %v56
  %v2215 = vunpack.c.l.b16 %v57
  %v2216 = vunpack.c.h.b16 %v57
  %v2217 = vunpack.c.l.b16 %v58
  %v2218 = vunpack.c.h.b16 %v58
  %v2219 = vunpack.c.l.b16 %v59
  %v2220 = vunpack.c.h.b16 %v59
  %v2221 = vunpack.c.l.b16 %v60
  %v2222 = vpack.c.b16 %v2201, %v2194
  %v2223 = vpack.c.b16 %v2202, %v2195
  %v2224 = vpack.c.b16 %v2203, %v2196
  %v2225 = vpack.c.b16 %v2204, %v2197
  %v2226 = vpack.c.b16 %v2205, %v2198
  %v2227 = vpack.c.b16 %v2206, %v2199
  %v2228 = vpack.c.b16 %v2207, %v2200
  %v2229 = vpack.c.b16 %v2215, %v2208
  %v2230 = vpack.c.b16 %v2216, %v2209
  %v2231 = vpack.c.b16 %v2217, %v2210
  %v2232 = vpack.c.b16 %v2218, %v2211
  %v2233 = vpack.c.b16 %v2219, %v2212
  %v2234 = vpack.c.b16 %v2220, %v2213
  %v2235 = vpack.c.b16 %v2221, %v2214
  %v2452 = vunpack.c.l.b16 %v264
  %v2453 = vunpack.c.h.b16 %v264
  %v2454 = vunpack.c.l.b16 %v265
  %v2455 = vunpack.c.h.b16 %v265
  %v2456 = vunpack.c.l.b16 %v266
  %v2457 = vunpack.c.h.b16 %v266
  %v2458 = vunpack.c.l.b16 %v267
  %v2459 = vunpack.c.h.b16 %v267
  %v2460 = vunpack.c.l.b16 %v268
  %v2461 = vunpack.c.h.b16 %v268
  %v2462 = vunpack.c.l.b16 %v269
  %v2463 = vunpack.c.h.b16 %v269
  %v2464 = vunpack.c.l.b16 %v270
  %v2465 = vunpack.c.h.b16 %v270
  %v2466 = vunpack.c.l.b16 %v271
  %v2467 = vunpack.c.h.b16 %v271
  %v2468 = vunpack.c.l.b16 %v272
  %v2469 = vunpack.c.h.b16 %v272
  %v2470 = vunpack.c.l.b16 %v273
  %v2471 = vunpack.c.h.b16 %v273
  %v2472 = vunpack.c.l.b16 %v274
  %v2473 = vunpack.c.h.b16 %v274
  %v2474 = vunpack.c.l.b16 %v275
  %v2475 = vunpack.c.h.b16 %v275
  %v2476 = vunpack.c.l.b16 %v276
  %v2477 = vunpack.c.h.b16 %v276
  %v2478 = vunpack.c.l.b16 %v277
  %v2479 = vunpack.c.h.b16 %v277
  %v2480 = vunpack.c.l.b16 %v278
  %v2481 = vunpack.c.h.b16 %v278
  %v2482 = vunpack.c.l.b16 %v279
  %v2483 = vunpack.c.h.b16 %v279
  %v2484 = vunpack.c.l.b16 %v280
  %v2485 = vunpack.c.h.b16 %v280
  %v2486 = vunpack.c.l.b16 %v281
  %v2487 = vunpack.c.h.b16 %v281
  %v2488 = vunpack.c.l.b16 %v282
  %v2489 = vunpack.c.h.b16 %v282
  %v2490 = vunpack.c.l.b16 %v283
  %v2491 = vunpack.c.h.b16 %v283
  %v2492 = vunpack.c.l.b16 %v284
  %v2493 = vunpack.c.h.b16 %v284
  %v2494 = vunpack.c.l.b16 %v285
  %v2495 = vunpack.c.h.b16 %v285
  %v2496 = vunpack.c.l.b16 %v286
  %v2497 = vunpack.c.h.b16 %v286
  %v2498 = vunpack.c.l.b16 %v287
  %v2499 = vunpack.c.h.b16 %v287
  %v2500 = vunpack.c.l.b16 %v288
  %v2501 = vunpack.c.h.b16 %v288
  %v2502 = vunpack.c.l.b16 %v289
  %v2503 = vunpack.c.h.b16 %v289
  %v2504 = vunpack.c.l.b16 %v290
  %v2505 = vunpack.c.h.b16 %v290
  %v2506 = vunpack.c.l.b16 %v291
  %v2507 = vunpack.c.h.b16 %v291
  %v2508 = vunpack.c.l.b16 %v292
  %v2509 = vunpack.c.h.b16 %v292
  %v2510 = vunpack.c.l.b16 %v293
  %v2511 = vunpack.c.h.b16 %v293
  %v2512 = vunpack.c.l.b16 %v294
  %v2513 = vunpack.c.h.b16 %v294
  %v2514 = vunpack.c.l.b16 %v295
  %v2515 = vunpack.c.h.b16 %v295
  %v2516 = vunpack.c.l.b16 %v296
  %v2517 = vunpack.c.h.b16 %v296
  %v2518 = vunpack.c.l.b16 %v297
  %v2519 = vunpack.c.h.b16 %v297
  %v2520 = vunpack.c.l.b16 %v298
  %v2521 = vunpack.c.h.b16 %v298
  %v2522 = vunpack.c.l.b16 %v299
  %v2523 = vunpack.c.h.b16 %v299
  %v2524 = vunpack.c.l.b16 %v300
  %v2525 = vunpack.c.h.b16 %v300
  %v2526 = vunpack.c.l.b16 %v301
  %v2527 = vunpack.c.h.b16 %v301
  %v2528 = vunpack.c.l.b16 %v302
  %v2529 = vunpack.c.h.b16 %v302
  %v2530 = vunpack.c.l.b16 %v303
  %v2531 = vunpack.c.h.b16 %v303
  %v2532 = vunpack.c.l.b16 %v304
  %v2533 = vunpack.c.h.b16 %v304
  %v2534 = vunpack.c.l.b16 %v305
  %v2535 = vunpack.c.h.b16 %v305
  %v2536 = vunpack.c.l.b16 %v306
  %v2537 = vunpack.c.h.b16 %v306
  %v2538 = vunpack.c.l.b16 %v307
  %v2539 = vunpack.c.h.b16 %v307
  %v2540 = vunpack.c.l.b16 %v308
  %v2541 = vunpack.c.h.b16 %v308
  %v2542 = vunpack.c.l.b16 %v309
  %v2543 = vunpack.c.h.b16 %v309
  %v2544 = vunpack.c.l.b16 %v310
  %v2545 = vunpack.c.h.b16 %v310
  %v2546 = vunpack.c.l.b16 %v311
  %v2547 = vunpack.c.h.b16 %v311
  %v2548 = vunpack.c.l.b16 %v312
  %v2549 = vunpack.c.h.b16 %v312
  %v2550 = vunpack.c.l.b16 %v313
  %v2551 = vunpack.c.h.b16 %v313
  %v2552 = vunpack.c.l.b16 %v314
  %v2553 = vunpack.c.h.b16 %v314
  %v2554 = vunpack.c.l.b16 %v315
  %v2555 = vunpack.c.h.b16 %v315
  %v2556 = vunpack.c.l.b16 %v316
  %v2557 = vunpack.c.h.b16 %v316
  %v2558 = vunpack.c.l.b16 %v317
  %v2559 = vunpack.c.h.b16 %v317
  %v2560 = vunpack.c.l.b16 %v318
  %v2561 = vunpack.c.h.b16 %v318
  %v2562 = vunpack.c.l.b16 %v319
  %v2563 = vunpack.c.h.b16 %v319
  %v2564 = vunpack.c.l.b16 %v320
  %v2565 = vunpack.c.h.b16 %v320
  %v2566 = vunpack.c.l.b16 %v321
  %v2567 = vunpack.c.h.b16 %v321
  %v2568 = vunpack.c.l.b16 %v322
  %v2569 = vunpack.c.h.b16 %v322
  %v2570 = vunpack.c.l.b16 %v323
  %v2571 = vunpack.c.h.b16 %v323
  %v2572 = vunpack.c.l.b16 %v324
  %v2573 = vunpack.c.h.b16 %v324
  %v2574 = vunpack.c.l.b16 %v325
  %v2575 = vunpack.c.h.b16 %v325
  %v2576 = vunpack.c.l.b16 %v326
  %v2577 = vunpack.c.h.b16 %v326
  %v2578 = vunpack.c.l.b16 %v327
  %v2579 = vunpack.c.h.b16 %v327
  %v2580 = vunpack.c.l.b16 %v328
  %v2581 = vunpack.c.h.b16 %v328
  %v2582 = vunpack.c.l.b16 %v329
  %v2583 = vunpack.c.h.b16 %v329
  %v2584 = vunpack.c.l.b16 %v330
  %v2585 = vunpack.c.h.b16 %v330
  %v2586 = vunpack.c.l.b16 %v331
  %v2587 = vunpack.c.h.b16 %v331
  %v2588 = vunpack.c.l.b16 %v332
  %v2589 = vunpack.c.h.b16 %v332
  %v2590 = vunpack.c.l.b16 %v333
  %v2591 = vunpack.c.h.b16 %v333
  %v2592 = vunpack.c.l.b16 %v334
  %v2593 = vunpack.c.h.b16 %v334
  %v2594 = vunpack.c.l.b16 %v335
  %v2595 = vunpack.c.h.b16 %v335
  %v2596 = vunpack.c.l.b16 %v336
  %v2597 = vunpack.c.h.b16 %v336
  %v2598 = vunpack.c.l.b16 %v337
  %v2599 = vunpack.c.h.b16 %v337
  %v2600 = vunpack.c.l.b16 %v338
  %v2601 = vunpack.c.h.b16 %v338
  %v2602 = vunpack.c.l.b16 %v339
  %v2603 = vunpack.c.h.b16 %v339
  %v2604 = vunpack.c.l.b16 %v340
  %v2605 = vunpack.c.h.b16 %v340
  %v2606 = vunpack.c.l.b16 %v341
  %v2607 = vunpack.c.h.b16 %v341
  %v2608 = vunpack.c.l.b16 %v342
  %v2609 = vunpack.c.h.b16 %v342
  %v2610 = vunpack.c.l.b16 %v343
  %v2611 = vunpack.c.h.b16 %v343
  %v2612 = vunpack.c.l.b16 %v344
  %v2613 = vunpack.c.h.b16 %v344
  %v2614 = vunpack.c.l.b16 %v345
  %v2615 = vunpack.c.h.b16 %v345
  %v2616 = vunpack.c.l.b16 %v346
  %v2617 = vunpack.c.h.b16 %v346
  %v2618 = vunpack.c.l.b16 %v347
  %v2619 = vunpack.c.h.b16 %v347
  %v2620 = vunpack.c.l.b16 %v348
  %v2621 = vunpack.c.h.b16 %v348
  %v2622 = vunpack.c.l.b16 %v349
  %v2623 = vunpack.c.h.b16 %v349
  %v2624 = vunpack.c.l.b16 %v350
  %v2625 = vunpack.c.h.b16 %v350
  %v2626 = vunpack.c.l.b16 %v351
  %v2627 = vunpack.c.h.b16 %v351
  %v2628 = vunpack.c.l.b16 %v352
  %v2629 = vunpack.c.h.b16 %v352
  %v2630 = vunpack.c.l.b16 %v353
  %v2631 = vunpack.c.h.b16 %v353
  %v2632 = vunpack.c.l.b16 %v354
  %v2633 = vunpack.c.h.b16 %v354
  %v2634 = vunpack.c.l.b16 %v355
  %v2635 = vunpack.c.h.b16 %v355
  %v2636 = vunpack.c.l.b16 %v356
  %v2637 = vunpack.c.h.b16 %v356
  %v2638 = vunpack.c.l.b16 %v357
  %v2639 = vunpack.c.h.b16 %v357
  %v2640 = vunpack.c.l.b16 %v358
  %v2641 = vunpack.c.h.b16 %v358
  %v2642 = vunpack.c.l.b16 %v359
  %v2643 = vunpack.c.h.b16 %v359
  %v2644 = vunpack.c.l.b16 %v360
  %v2645 = vunpack.c.h.b16 %v360
  %v2646 = vunpack.c.l.b16 %v361
  %v2647 = vunpack.c.h.b16 %v361
  %v2648 = vunpack.c.l.b16 %v362
  %v2649 = vunpack.c.h.b16 %v362
  %v2650 = vunpack.c.l.b16 %v363
  %v2651 = vunpack.c.h.b16 %v363
  %v2652 = vunpack.c.l.b16 %v364
  %v2653 = vunpack.c.h.b16 %v364
  %v2654 = vunpack.c.l.b16 %v365
  %v2655 = vunpack.c.h.b16 %v365
  %v2656 = vunpack.c.l.b16 %v366
  %v2657 = vunpack.c.h.b16 %v366
  %v2658 = vunpack.c.l.b16 %v367
  %v2659 = vunpack.c.h.b16 %v367
  %v2660 = vunpack.c.l.b16 %v368
  %v2661 = vunpack.c.h.b16 %v368
  %v2662 = vunpack.c.l.b16 %v369
  %v2663 = vunpack.c.h.b16 %v369
  %v2664 = vunpack.c.l.b16 %v370
  %v2665 = vunpack.c.h.b16 %v370
  %v2666 = vunpack.c.l.b16 %v371
  %v2667 = vunpack.c.h.b16 %v371
  %v2668 = vunpack.c.l.b16 %v372
  %v2669 = vunpack.c.h.b16 %v372
  %v2670 = vunpack.c.l.b16 %v373
  %v2671 = vunpack.c.h.b16 %v373
  %v2672 = vunpack.c.l.b16 %v374
  %v2673 = vunpack.c.h.b16 %v374
  %v2674 = vunpack.c.l.b16 %v375
  %v2675 = vunpack.c.h.b16 %v375
  %v2676 = vunpack.c.l.b16 %v376
  %v2677 = vunpack.c.h.b16 %v376
  %v2678 = vunpack.c.l.b16 %v377
  %v2679 = vunpack.c.h.b16 %v377
  %v2680 = vunpack.c.l.b16 %v378
  %v2681 = vunpack.c.h.b16 %v378
  %v2682 = vunpack.c.l.b16 %v379
  %v2683 = vunpack.c.h.b16 %v379
  %v2684 = vunpack.c.l.b16 %v380
  %v2685 = vunpack.c.h.b16 %v380
  %v2686 = vunpack.c.l.b16 %v381
  %v2687 = vunpack.c.h.b16 %v381
  %v2688 = vunpack.c.l.b16 %v382
  %v2689 = vunpack.c.h.b16 %v382
  %v2690 = vunpack.c.l.b16 %v383
  %v2691 = vunpack.c.h.b16 %v383
  %v2692 = vunpack.c.l.b16 %v384
  %v2693 = vunpack.c.h.b16 %v384
  %v2694 = vunpack.c.l.b16 %v385
  %v2695 = vunpack.c.h.b16 %v385
  %v2696 = vunpack.c.l.b16 %v386
  %v2697 = vunpack.c.h.b16 %v386
  %v2698 = vunpack.c.l.b16 %v387
  %v2699 = vunpack.c.h.b16 %v387
  %v2700 = vunpack.c.l.b16 %v388
  %v2701 = vunpack.c.h.b16 %v388
  %v2702 = vunpack.c.l.b16 %v389
  %v2703 = vunpack.c.h.b16 %v389
  %v2704 = vunpack.c.l.b16 %v390
  %v2705 = vunpack.c.h.b16 %v390
  %v2706 = vunpack.c.l.b16 %v391
  %v2707 = vunpack.c.h.b16 %v391
  %v2708 = vunpack.c.l.b16 %v392
  %v2709 = vunpack.c.h.b16 %v392
  %v2710 = vunpack.c.l.b16 %v393
  %v2711 = vunpack.c.h.b16 %v393
  %v2712 = vunpack.c.l.b16 %v394
  %v2713 = vunpack.c.h.b16 %v394
  %v2714 = vunpack.c.l.b16 %v395
  %v2715 = vunpack.c.h.b16 %v395
  %v2716 = vunpack.c.l.b16 %v396
  %v2717 = vunpack.c.h.b16 %v396
  %v2718 = vunpack.c.l.b16 %v397
  %v2719 = vunpack.c.h.b16 %v397
  %v2720 = vunpack.c.l.b16 %v398
  %v2721 = vunpack.c.h.b16 %v398
  %v2722 = vunpack.c.l.b16 %v399
  %v2723 = vunpack.c.h.b16 %v399
  %v2724 = vunpack.c.l.b16 %v400
  %v2725 = vunpack.c.h.b16 %v400
  %v2726 = vunpack.c.l.b16 %v401
  %v2727 = vunpack.c.h.b16 %v401
  %v2728 = vunpack.c.l.b16 %v402
  %v2729 = vunpack.c.h.b16 %v402
  %v2730 = vunpack.c.l.b16 %v403
  %v2731 = vunpack.c.h.b16 %v403
  %v2732 = vunpack.c.l.b16 %v404
  %v2733 = vunpack.c.h.b16 %v404
  %v2734 = vunpack.c.l.b16 %v405
  %v2735 = vunpack.c.h.b16 %v405
  %v2736 = vunpack.c.l.b16 %v406
  %v2737 = vunpack.c.h.b16 %v406
  %v2738 = vunpack.c.l.b16 %v407
  %v2739 = vunpack.c.h.b16 %v407
  %v2740 = vunpack.c.l.b16 %v408
  %v2741 = vunpack.c.h.b16 %v408
  %v2742 = vunpack.c.l.b16 %v409
  %v2743 = vunpack.c.h.b16 %v409
  %v2744 = vunpack.c.l.b16 %v410
  %v2745 = vunpack.c.h.b16 %v410
  %v2746 = vunpack.c.l.b16 %v411
  %v2747 = vunpack.c.h.b16 %v411
  %v2748 = vunpack.c.l.b16 %v412
  %v2749 = vunpack.c.h.b16 %v412
  %v2750 = vunpack.c.l.b16 %v413
  %v2751 = vunpack.c.h.b16 %v413
  %v2752 = vunpack.c.l.b16 %v414
  %v2753 = vunpack.c.h.b16 %v414
  %v2754 = vunpack.c.l.b16 %v415
  %v2755 = vunpack.c.h.b16 %v415
  %v2756 = vunpack.c.l.b16 %v416
  %v2757 = vunpack.c.h.b16 %v416
  %v2758 = vunpack.c.l.b16 %v417
  %v2759 = vunpack.c.h.b16 %v417
  %v2760 = vunpack.c.l.b16 %v418
  %v2761 = vunpack.c.h.b16 %v418
  %v2762 = vunpack.c.l.b16 %v419
  %v2763 = vunpack.c.h.b16 %v419
  %v2764 = vunpack.c.l.b16 %v420
  %v2765 = vunpack.c.h.b16 %v420
  %v2766 = vunpack.c.l.b16 %v421
  %v2767 = vunpack.c.h.b16 %v421
  %v2768 = vunpack.c.l.b16 %v422
  %v2769 = vunpack.c.h.b16 %v422
  %v2770 = vunpack.c.l.b16 %v423
  %v2771 = vunpack.c.h.b16 %v423
  %v2772 = vunpack.c.l.b16 %v424
  %v2773 = vunpack.c.h.b16 %v424
  %v2774 = vunpack.c.l.b16 %v425
  %v2775 = vunpack.c.h.b16 %v425
  %v2776 = vunpack.c.l.b16 %v426
  %v2777 = vunpack.c.h.b16 %v426
  %v2778 = vunpack.c.l.b16 %v427
  %v2779 = vunpack.c.h.b16 %v427
  %v2780 = vunpack.c.l.b16 %v428
  %v2781 = vunpack.c.h.b16 %v428
  %v2782 = vunpack.c.l.b16 %v429
  %v2783 = vunpack.c.h.b16 %v429
  %v2784 = vunpack.c.l.b16 %v430
  %v2785 = vunpack.c.h.b16 %v430
  %v2786 = vunpack.c.l.b16 %v431
  %v2787 = vunpack.c.h.b16 %v431
  %v2788 = vunpack.c.l.b16 %v432
  %v2789 = vunpack.c.h.b16 %v432
  %v2790 = vunpack.c.l.b16 %v433
  %v2791 = vunpack.c.h.b16 %v433
  %v2792 = vunpack.c.l.b16 %v434
  %v2793 = vunpack.c.h.b16 %v434
  %v2794 = vunpack.c.l.b16 %v435
  %v2795 = vunpack.c.h.b16 %v435
  %v2796 = vunpack.c.l.b16 %v436
  %v2797 = vunpack.c.h.b16 %v436
  %v2798 = vunpack.c.l.b16 %v437
  %v2799 = vunpack.c.h.b16 %v437
  %v2800 = vunpack.c.l.b16 %v438
  %v2801 = vunpack.c.h.b16 %v438
  %v2802 = vunpack.c.l.b16 %v439
  %v2803 = vunpack.c.h.b16 %v439
  %v2804 = vunpack.c.l.b16 %v440
  %v2805 = vunpack.c.h.b16 %v440
  %v2806 = vunpack.c.l.b16 %v441
  %v2807 = vunpack.c.h.b16 %v441
  %v2808 = vunpack.c.l.b16 %v442
  %v2809 = vunpack.c.h.b16 %v442
  %v2810 = vunpack.c.l.b16 %v443
  %v2811 = vunpack.c.h.b16 %v443
  %v2812 = vunpack.c.l.b16 %v444
  %v2813 = vunpack.c.h.b16 %v444
  %v2814 = vunpack.c.l.b16 %v445
  %v2815 = vunpack.c.h.b16 %v445
  %v2816 = vunpack.c.l.b16 %v446
  %v2817 = vunpack.c.h.b16 %v446
  %v2818 = vunpack.c.l.b16 %v447
  %v2819 = vunpack.c.h.b16 %v447
  %v2820 = vunpack.c.l.b16 %v448
  %v2821 = vunpack.c.h.b16 %v448
  %v2822 = vunpack.c.l.b16 %v449
  %v2823 = vunpack.c.h.b16 %v449
  %v2824 = vunpack.c.l.b16 %v450
  %v2825 = vunpack.c.h.b16 %v450
  %v2826 = vunpack.c.l.b16 %v451
  %v2827 = vunpack.c.h.b16 %v451
  %v2828 = vunpack.c.l.b16 %v452
  %v2829 = vunpack.c.h.b16 %v452
  %v2830 = vunpack.c.l.b16 %v453
  %v2831 = vunpack.c.h.b16 %v453
  %v2832 = vunpack.c.l.b16 %v454
  %v2833 = vunpack.c.h.b16 %v454
  %v2834 = vunpack.c.l.b16 %v455
  %v2835 = vunpack.c.h.b16 %v455
  %v2836 = vunpack.c.l.b16 %v456
  %v2837 = vunpack.c.h.b16 %v456
  %v2838 = vunpack.c.l.b16 %v457
  %v2839 = vunpack.c.h.b16 %v457
  %v2840 = vunpack.c.l.b16 %v458
  %v2841 = vunpack.c.h.b16 %v458
  %v2842 = vunpack.c.l.b16 %v459
  %v2843 = vunpack.c.h.b16 %v459
  %v2844 = vunpack.c.l.b16 %v460
  %v2845 = vunpack.c.h.b16 %v460
  %v2846 = vunpack.c.l.b16 %v461
  %v2847 = vunpack.c.h.b16 %v461
  %v2848 = vunpack.c.l.b16 %v462
  %v2849 = vunpack.c.h.b16 %v462
  %v2850 = vunpack.c.l.b16 %v463
  %v2851 = vunpack.c.h.b16 %v463
  %v2852 = vunpack.c.l.b16 %v464
  %v2853 = vunpack.c.h.b16 %v464
  %v2854 = vunpack.c.l.b16 %v465
  %v2855 = vunpack.c.h.b16 %v465
  %v2856 = vunpack.c.l.b16 %v466
  %v2857 = vunpack.c.h.b16 %v466
  %v2858 = vunpack.c.l.b16 %v467
  %v2859 = vunpack.c.h.b16 %v467
  %v2860 = vpack.c.b16 %v2456, %v2452
  %v2861 = vpack.c.b16 %v2457, %v2453
  %v2862 = vpack.c.b16 %v2458, %v2454
  %v2863 = vpack.c.b16 %v2459, %v2455
  %v2864 = vpack.c.b16 %v2464, %v2460
  %v2865 = vpack.c.b16 %v2465, %v2461
  %v2866 = vpack.c.b16 %v2466, %v2462
  %v2867 = vpack.c.b16 %v2467, %v2463
  %v2868 = vpack.c.b16 %v2472, %v2468
  %v2869 = vpack.c.b16 %v2473, %v2469
  %v2870 = vpack.c.b16 %v2474, %v2470
  %v2871 = vpack.c.b16 %v2475, %v2471
  %v2872 = vpack.c.b16 %v2480, %v2476
  %v2873 = vpack.c.b16 %v2481, %v2477
  %v2874 = vpack.c.b16 %v2482, %v2478
  %v2875 = vpack.c.b16 %v2483, %v2479
  %v2876 = vpack.c.b16 %v2488, %v2484
  %v2877 = vpack.c.b16 %v2489, %v2485
  %v2878 = vpack.c.b16 %v2490, %v2486
  %v2879 = vpack.c.b16 %v2491, %v2487
  %v2880 = vpack.c.b16 %v2496, %v2492
  %v2881 = vpack.c.b16 %v2497, %v2493
  %v2882 = vpack.c.b16 %v2498, %v2494
  %v2883 = vpack.c.b16 %v2499, %v2495
  %v2884 = vpack.c.b16 %v2504, %v2500
  %v2885 = vpack.c.b16 %v2505, %v2501
  %v2886 = vpack.c.b16 %v2506, %v2502
  %v2887 = vpack.c.b16 %v2507, %v2503
  %v2888 = vpack.c.b16 %v2512, %v2508
  %v2889 = vpack.c.b16 %v2513, %v2509
  %v2890 = vpack.c.b16 %v2514, %v2510
  %v2891 = vpack.c.b16 %v2515, %v2511
  %v2892 = vpack.c.b16 %v2520, %v2516
  %v2893 = vpack.c.b16 %v2521, %v2517
  %v2894 = vpack.c.b16 %v2522, %v2518
  %v2895 = vpack.c.b16 %v2523, %v2519
  %v2896 = vpack.c.b16 %v2528, %v2524
  %v2897 = vpack.c.b16 %v2529, %v2525
  %v2898 = vpack.c.b16 %v2530, %v2526
  %v2899 = vpack.c.b16 %v2531, %v2527
  %v2900 = vpack.c.b16 %v2536, %v2532
  %v2901 = vpack.c.b16 %v2537, %v2533
  %v2902 = vpack.c.b16 %v2538, %v2534
  %v2903 = vpack.c.b16 %v2539, %v2535
  %v2904 = vpack.c.b16 %v2544, %v2540
  %v2905 = vpack.c.b16 %v2545, %v2541
  %v2906 = vpack.c.b16 %v2546, %v2542
  %v2907 = vpack.c.b16 %v2547, %v2543
  %v2908 = vpack.c.b16 %v2552, %v2548
  %v2909 = vpack.c.b16 %v2553, %v2549
  %v2910 = vpack.c.b16 %v2554, %v2550
  %v2911 = vpack.c.b16 %v2555, %v2551
  %v2912 = vpack.c.b16 %v2560, %v2556
  %v2913 = vpack.c.b16 %v2561, %v2557
  %v2914 = vpack.c.b16 %v2562, %v2558
  %v2915 = vpack.c.b16 %v2563, %v2559
  %v2916 = vpack.c.b16 %v2568, %v2564
  %v2917 = vpack.c.b16 %v2569, %v2565
  %v2918 = vpack.c.b16 %v2570, %v2566
  %v2919 = vpack.c.b16 %v2571, %v2567
  %v2920 = vpack.c.b16 %v2576, %v2572
  %v2921 = vpack.c.b16 %v2577, %v2573
  %v2922 = vpack.c.b16 %v2578, %v2574
  %v2923 = vpack.c.b16 %v2579, %v2575
  %v2924 = vpack.c.b16 %v2584, %v2580
  %v2925 = vpack.c.b16 %v2585, %v2581
  %v2926 = vpack.c.b16 %v2586, %v2582
  %v2927 = vpack.c.b16 %v2587, %v2583
  %v2928 = vpack.c.b16 %v2592, %v2588
  %v2929 = vpack.c.b16 %v2593, %v2589
  %v2930 = vpack.c.b16 %v2594, %v2590
  %v2931 = vpack.c.b16 %v2595, %v2591
  %v2932 = vpack.c.b16 %v2600, %v2596
  %v2933 = vpack.c.b16 %v2601, %v2597
  %v2934 = vpack.c.b16 %v2602, %v2598
  %v2935 = vpack.c.b16 %v2603, %v2599
  %v2936 = vpack.c.b16 %v2608, %v2604
  %v2937 = vpack.c.b16 %v2609, %v2605
  %v2938 = vpack.c.b16 %v2610, %v2606
  %v2939 = vpack.c.b16 %v2611, %v2607
  %v2940 = vpack.c.b16 %v2616, %v2612
  %v2941 = vpack.c.b16 %v2617, %v2613
  %v2942 = vpack.c.b16 %v2618, %v2614
  %v2943 = vpack.c.b16 %v2619, %v2615
  %v2944 = vpack.c.b16 %v2624, %v2620
  %v2945 = vpack.c.b16 %v2625, %v2621
  %v2946 = vpack.c.b16 %v2626, %v2622
  %v2947 = vpack.c.b16 %v2627, %v2623
  %v2948 = vpack.c.b16 %v2632, %v2628
  %v2949 = vpack.c.b16 %v2633, %v2629
  %v2950 = vpack.c.b16 %v2634, %v2630
  %v2951 = vpack.c.b16 %v2635, %v2631
  %v2952 = vpack.c.b16 %v2640, %v2636
  %v2953 = vpack.c.b16 %v2641, %v2637
  %v2954 = vpack.c.b16 %v2642, %v2638
  %v2955 = vpack.c.b16 %v2643, %v2639
  %v2956 = vpack.c.b16 %v2648, %v2644
  %v2957 = vpack.c.b16 %v2649, %v2645
  %v2958 = vpack.c.b16 %v2650, %v2646
  %v2959 = vpack.c.b16 %v2651, %v2647
  %v2960 = vpack.c.b16 %v2656, %v2652
  %v2961 = vpack.c.b16 %v2657, %v2653
  %v2962 = vpack.c.b16 %v2658, %v2654
  %v2963 = vpack.c.b16 %v2659, %v2655
  %v2964 = vpack.c.b16 %v2664, %v2660
  %v2965 = vpack.c.b16 %v2665, %v2661
  %v2966 = vpack.c.b16 %v2666, %v2662
  %v2967 = vpack.c.b16 %v2667, %v2663
  %v2968 = vpack.c.b16 %v2672, %v2668
  %v2969 = vpack.c.b16 %v2673, %v2669
  %v2970 = vpack.c.b16 %v2674, %v2670
  %v2971 = vpack.c.b16 %v2675, %v2671
  %v2972 = vpack.c.b16 %v2680, %v2676
  %v2973 = vpack.c.b16 %v2681, %v2677
  %v2974 = vpack.c.b16 %v2682, %v2678
  %v2975 = vpack.c.b16 %v2683, %v2679
  %v2976 = vpack.c.b16 %v2688, %v2684
  %v2977 = vpack.c.b16 %v2689, %v2685
  %v2978 = vpack.c.b16 %v2690, %v2686
  %v2979 = vpack.c.b16 %v2691, %v2687
  %v2980 = vpack.c.b16 %v2696, %v2692
  %v2981 = vpack.c.b16 %v2697, %v2693
  %v2982 = vpack.c.b16 %v2698, %v2694
  %v2983 = vpack.c.b16 %v2699, %v2695
  %v2984 = vpack.c.b16 %v2704, %v2700
  %v2985 = vpack.c.b16 %v2705, %v2701
  %v2986 = vpack.c.b16 %v2706, %v2702
  %v2987 = vpack.c.b16 %v2707, %v2703
  %v2988 = vpack.c.b16 %v2712, %v2708
  %v2989 = vpack.c.b16 %v2713, %v2709
  %v2990 = vpack.c.b16 %v2714, %v2710
  %v2991 = vpack.c.b16 %v2715, %v2711
  %v2992 = vpack.c.b16 %v2720, %v2716
  %v2993 = vpack.c.b16 %v2721, %v2717
  %v2994 = vpack.c.b16 %v2722, %v2718
  %v2995 = vpack.c.b16 %v2723, %v2719
  %v2996 = vpack.c.b16 %v2728, %v2724
  %v2997 = vpack.c.b16 %v2729, %v2725
  %v2998 = vpack.c.b16 %v2730, %v2726
  %v2999 = vpack.c.b16 %v2731, %v2727
  %v3000 = vpack.c.b16 %v2736, %v2732
  %v3001 = vpack.c.b16 %v2737, %v2733
  %v3002 = vpack.c.b16 %v2738, %v2734
  %v3003 = vpack.c.b16 %v2739, %v2735
  %v3004 = vpack.c.b16 %v2744, %v2740
  %v3005 = vpack.c.b16 %v2745, %v2741
  %v3006 = vpack.c.b16 %v2746, %v2742
  %v3007 = vpack.c.b16 %v2747, %v2743
  %v3008 = vpack.c.b16 %v2752, %v2748
  %v3009 = vpack.c.b16 %v2753, %v2749
  %v3010 = vpack.c.b16 %v2754, %v2750
  %v3011 = vpack.c.b16 %v2755, %v2751
  %v3012 = vpack.c.b16 %v2760, %v2756
  %v3013 = vpack.c.b16 %v2761, %v2757
  %v3014 = vpack.c.b16 %v2762, %v2758
  %v3015 = vpack.c.b16 %v2763, %v2759
  %v3016 = vpack.c.b16 %v2768, %v2764
  %v3017 = vpack.c.b16 %v2769, %v2765
  %v3018 = vpack.c.b16 %v2770, %v2766
  %v3019 = vpack.c.b16 %v2771, %v2767
  %v3020 = vpack.c.b16 %v2776, %v2772
  %v3021 = vpack.c.b16 %v2777, %v2773
  %v3022 = vpack.c.b16 %v2778, %v2774
  %v3023 = vpack.c.b16 %v2779, %v2775
  %v3024 = vpack.c.b16 %v2784, %v2780
  %v3025 = vpack.c.b16 %v2785, %v2781
  %v3026 = vpack.c.b16 %v2786, %v2782
  %v3027 = vpack.c.b16 %v2787, %v2783
  %v3028 = vpack.c.b16 %v2792, %v2788
  %v3029 = vpack.c.b16 %v2793, %v2789
  %v3030 = vpack.c.b16 %v2794, %v2790
  %v3031 = vpack.c.b16 %v2795, %v2791
  %v3032 = vpack.c.b16 %v2800, %v2796
  %v3033 = vpack.c.b16 %v2801, %v2797
  %v3034 = vpack.c.b16 %v2802, %v2798
  %v3035 = vpack.c.b16 %v2803, %v2799
  %v3036 = vpack.c.b16 %v2808, %v2804
  %v3037 = vpack.c.b16 %v2809, %v2805
  %v3038 = vpack.c.b16 %v2810, %v2806
  %v3039 = vpack.c.b16 %v2811, %v2807
  %v3040 = vpack.c.b16 %v2816, %v2812
  %v3041 = vpack.c.b16 %v2817, %v2813
  %v3042 = vpack.c.b16 %v2818, %v2814
  %v3043 = vpack.c.b16 %v2819, %v2815
  %v3044 = vpack.c.b16 %v2824, %v2820
  %v3045 = vpack.c.b16 %v2825, %v2821
  %v3046 = vpack.c.b16 %v2826, %v2822
  %v3047 = vpack.c.b16 %v2827, %v2823
  %v3048 = vpack.c.b16 %v2832, %v2828
  %v3049 = vpack.c.b16 %v2833, %v2829
  %v3050 = vpack.c.b16 %v2834, %v2830
  %v3051 = vpack.c.b16 %v2835, %v2831
  %v3052 = vpack.c.b16 %v2840, %v2836
  %v3053 = vpack.c.b16 %v2841, %v2837
  %v3054 = vpack.c.b16 %v2842, %v2838
  %v3055 = vpack.c.b16 %v2843, %v2839
  %v3056 = vpack.c.b16 %v2848, %v2844
  %v3057 = vpack.c.b16 %v2849, %v2845
  %v3058 = vpack.c.b16 %v2850, %v2846
  %v3059 = vpack.c.b16 %v2851, %v2847
  %v3060 = vpack.c.b16 %v2856, %v2852
  %v3061 = vpack.c.b16 %v2857, %v2853
  %v3062 = vpack.c.b16 %v2858, %v2854
  %v3063 = vpack.c.b16 %v2859, %v2855
  %v3269 = vsel %vm1747, %v2228, 0
  %v3272 = vsel %vm1747, %v2235, 0
  %3274 = vmatprep.subr.bf16.mxu0 %v2861
  %3275 = vmatpush1.bf16.msra.mxu0 %v2860
  %3276 = vmatprep.subr.bf16.mxu0 %v2865
  %3277 = vmatpush1.bf16.msra.mxu0 %v2864
  %3278 = vmatprep.subr.bf16.mxu0 %v2869
  %3279 = vmatpush1.bf16.msra.mxu0 %v2868
  %3280 = vmatprep.subr.bf16.mxu0 %v2873
  %3281 = vmatpush1.bf16.msra.mxu0 %v2872
  %3282 = vmatprep.subr.bf16.mxu0 %v2877
  %3283 = vmatpush1.bf16.msra.mxu0 %v2876
  %3284 = vmatprep.subr.bf16.mxu0 %v2881
  %3285 = vmatpush1.bf16.msra.mxu0 %v2880
  %3286 = vmatprep.subr.bf16.mxu0 %v2885
  %3287 = vmatpush1.bf16.msra.mxu0 %v2884
  %3288 = vmatprep.subr.bf16.mxu0 %v2889
  %3289 = vmatpush1.bf16.msra.mxu0 %v2888
  %3290 = vmatprep.subr.bf16.mxu0 %v2893
  %3291 = vmatpush1.bf16.msra.mxu0 %v2892
  %3292 = vmatprep.subr.bf16.mxu0 %v2897
  %3293 = vmatpush1.bf16.msra.mxu0 %v2896
  %3294 = vmatprep.subr.bf16.mxu0 %v2901
  %3295 = vmatpush1.bf16.msra.mxu0 %v2900
  %3296 = vmatprep.subr.bf16.mxu0 %v2905
  %3297 = vmatpush1.bf16.msra.mxu0 %v2904
  %3298 = vmatprep.subr.bf16.mxu0 %v2909
  %3299 = vmatpush1.bf16.msra.mxu0 %v2908
  %3300 = vmatprep.subr.bf16.mxu0 %v2913
  %3301 = vmatpush1.bf16.msra.mxu0 %v2912
  %3302 = vmatprep.subr.bf16.mxu0 %v2917
  %3303 = vmatpush1.bf16.msra.mxu0 %v2916
  %3304 = vmatprep.subr.bf16.mxu0 %v2921
  %3305 = vmatpush1.bf16.msra.mxu0 %v2920
  %3306 = vmatprep.mubr.bf16.mxu0 %v2223
  %3307 = vmatmul.mubr.bf16.gmra.mrb[0].mxu0 %v2222
  %v3308 = vpop.f32.mrb[0].mxu0
  %v3309 = vadd.f32 %v1948, %v3308
  %v3310 = vpop.f32.mrb[0].mxu0
  %v3311 = vadd.f32 %v1950, %v3310
  %v3312 = vpop.f32.mrb[0].mxu0
  %v3313 = vadd.f32 %v1952, %v3312
  %v3314 = vpop.f32.mrb[0].mxu0
  %v3315 = vadd.f32 %v1954, %v3314
  %3316 = vmatprep.mubr.bf16.mxu0 %v2230
  %3317 = vmatmul.mubr.bf16.gmra.mrb[0].mxu0 %v2229
  %v3318 = vpop.f32.mrb[0].mxu0
  %v3319 = vadd.f32 %v1958, %v3318
  %v3320 = vpop.f32.mrb[0].mxu0
  %v3321 = vadd.f32 %v1960, %v3320
  %v3322 = vpop.f32.mrb[0].mxu0
  %v3323 = vadd.f32 %v1962, %v3322
  %v3324 = vpop.f32.mrb[0].mxu0
  %v3325 = vadd.f32 %v1964, %v3324
  %3326 = vdwg.mxu0
  %3327 = vmatprep.subr.bf16.mxu0 %v2925
  %3328 = vmatpush1.bf16.msra.mxu0 %v2924
  %3329 = vmatprep.subr.bf16.mxu0 %v2929
  %3330 = vmatpush1.bf16.msra.mxu0 %v2928
  %3331 = vmatprep.subr.bf16.mxu0 %v2933
  %3332 = vmatpush1.bf16.msra.mxu0 %v2932
  %3333 = vmatprep.subr.bf16.mxu0 %v2937
  %3334 = vmatpush1.bf16.msra.mxu0 %v2936
  %3335 = vmatprep.subr.bf16.mxu0 %v2941
  %3336 = vmatpush1.bf16.msra.mxu0 %v2940
  %3337 = vmatprep.subr.bf16.mxu0 %v2945
  %3338 = vmatpush1.bf16.msra.mxu0 %v2944
  %3339 = vmatprep.subr.bf16.mxu0 %v2949
  %3340 = vmatpush1.bf16.msra.mxu0 %v2948
  %3341 = vmatprep.subr.bf16.mxu0 %v2953
  %3342 = vmatpush1.bf16.msra.mxu0 %v2952
  %3343 = vmatprep.subr.bf16.mxu0 %v2957
  %3344 = vmatpush1.bf16.msra.mxu0 %v2956
  %3345 = vmatprep.subr.bf16.mxu0 %v2961
  %3346 = vmatpush1.bf16.msra.mxu0 %v2960
  %3347 = vmatprep.subr.bf16.mxu0 %v2965
  %3348 = vmatpush1.bf16.msra.mxu0 %v2964
  %3349 = vmatprep.subr.bf16.mxu0 %v2969
  %3350 = vmatpush1.bf16.msra.mxu0 %v2968
  %3351 = vmatprep.subr.bf16.mxu0 %v2973
  %3352 = vmatpush1.bf16.msra.mxu0 %v2972
  %3353 = vmatprep.subr.bf16.mxu0 %v2977
  %3354 = vmatpush1.bf16.msra.mxu0 %v2976
  %3355 = vmatprep.subr.bf16.mxu0 %v2981
  %3356 = vmatpush1.bf16.msra.mxu0 %v2980
  %3357 = vmatprep.subr.bf16.mxu0 %v2985
  %3358 = vmatpush1.bf16.msra.mxu0 %v2984
  %3359 = vmatprep.mubr.bf16.mxu0 %v2225
  %3360 = vmatmul.mubr.bf16.gmra.mrb[0].mxu0 %v2224
  %v3361 = vpop.f32.mrb[0].mxu0
  %v3362 = vadd.f32 %v3309, %v3361
  %v3363 = vpop.f32.mrb[0].mxu0
  %v3364 = vadd.f32 %v3311, %v3363
  %v3365 = vpop.f32.mrb[0].mxu0
  %v3366 = vadd.f32 %v3313, %v3365
  %v3367 = vpop.f32.mrb[0].mxu0
  %v3368 = vadd.f32 %v3315, %v3367
  %3369 = vmatprep.mubr.bf16.mxu0 %v2232
  %3370 = vmatmul.mubr.bf16.gmra.mrb[0].mxu0 %v2231
  %v3371 = vpop.f32.mrb[0].mxu0
  %v3372 = vadd.f32 %v3319, %v3371
  %v3373 = vpop.f32.mrb[0].mxu0
  %v3374 = vadd.f32 %v3321, %v3373
  %v3375 = vpop.f32.mrb[0].mxu0
  %v3376 = vadd.f32 %v3323, %v3375
  %v3377 = vpop.f32.mrb[0].mxu0
  %v3378 = vadd.f32 %v3325, %v3377
  %3379 = vdwg.mxu0
  %3380 = vmatprep.subr.bf16.mxu0 %v2989
  %3381 = vmatpush1.bf16.msra.mxu0 %v2988
  %3382 = vmatprep.subr.bf16.mxu0 %v2993
  %3383 = vmatpush1.bf16.msra.mxu0 %v2992
  %3384 = vmatprep.subr.bf16.mxu0 %v2997
  %3385 = vmatpush1.bf16.msra.mxu0 %v2996
  %3386 = vmatprep.subr.bf16.mxu0 %v3001
  %3387 = vmatpush1.bf16.msra.mxu0 %v3000
  %3388 = vmatprep.subr.bf16.mxu0 %v3005
  %3389 = vmatpush1.bf16.msra.mxu0 %v3004
  %3390 = vmatprep.subr.bf16.mxu0 %v3009
  %3391 = vmatpush1.bf16.msra.mxu0 %v3008
  %3392 = vmatprep.subr.bf16.mxu0 %v3013
  %3393 = vmatpush1.bf16.msra.mxu0 %v3012
  %3394 = vmatprep.subr.bf16.mxu0 %v3017
  %3395 = vmatpush1.bf16.msra.mxu0 %v3016
  %3396 = vmatprep.subr.bf16.mxu0 %v3021
  %3397 = vmatpush1.bf16.msra.mxu0 %v3020
  %3398 = vmatprep.subr.bf16.mxu0 %v3025
  %3399 = vmatpush1.bf16.msra.mxu0 %v3024
  %3400 = vmatprep.subr.bf16.mxu0 %v3029
  %3401 = vmatpush1.bf16.msra.mxu0 %v3028
  %3402 = vmatprep.subr.bf16.mxu0 %v3033
  %3403 = vmatpush1.bf16.msra.mxu0 %v3032
  %3404 = vmatprep.subr.bf16.mxu0 %v3037
  %3405 = vmatpush1.bf16.msra.mxu0 %v3036
  %3406 = vmatprep.subr.bf16.mxu0 %v3041
  %3407 = vmatpush1.bf16.msra.mxu0 %v3040
  %3408 = vmatprep.subr.bf16.mxu0 %v3045
  %3409 = vmatpush1.bf16.msra.mxu0 %v3044
  %3410 = vmatprep.subr.bf16.mxu0 %v3049
  %3411 = vmatpush1.bf16.msra.mxu0 %v3048
  %3412 = vmatprep.mubr.bf16.mxu0 %v2227
  %3413 = vmatmul.mubr.bf16.gmra.mrb[0].mxu0 %v2226
  %v3414 = vpop.f32.mrb[0].mxu0
  %v3415 = vadd.f32 %v3362, %v3414
  %v3416 = vpop.f32.mrb[0].mxu0
  %v3417 = vadd.f32 %v3364, %v3416
  %v3418 = vpop.f32.mrb[0].mxu0
  %v3419 = vadd.f32 %v3366, %v3418
  %v3420 = vpop.f32.mrb[0].mxu0
  %v3421 = vadd.f32 %v3368, %v3420
  %3422 = vmatprep.mubr.bf16.mxu0 %v2234
  %3423 = vmatmul.mubr.bf16.gmra.mrb[0].mxu0 %v2233
  %v3424 = vpop.f32.mrb[0].mxu0
  %v3425 = vadd.f32 %v3372, %v3424
  %v3426 = vpop.f32.mrb[0].mxu0
  %v3427 = vadd.f32 %v3374, %v3426
  %v3428 = vpop.f32.mrb[0].mxu0
  %v3429 = vadd.f32 %v3376, %v3428
  %v3430 = vpop.f32.mrb[0].mxu0
  %v3431 = vadd.f32 %v3378, %v3430
  %3432 = vdwg.mxu0
  %3433 = vmatprep.subr.bf16.mxu0 %v3053
  %3434 = vmatpush1.bf16.msra.mxu0 %v3052
  %3435 = vmatprep.subr.bf16.mxu0 %v3057
  %3436 = vmatpush1.bf16.msra.mxu0 %v3056
  %3437 = vmatprep.subr.bf16.mxu0 %v3061
  %3438 = vmatpush1.bf16.msra.mxu0 %v3060
  %3439 = vmatprep.subr.bf16.mxu0 0
  %3440 = vmatpush1.bf16.msra.mxu0 0
  %3441 = vmatprep.subr.bf16.mxu0 0
  %3442 = vmatpush1.bf16.msra.mxu0 0
  %3443 = vmatprep.subr.bf16.mxu0 0
  %3444 = vmatpush1.bf16.msra.mxu0 0
  %3445 = vmatprep.subr.bf16.mxu0 0
  %3446 = vmatpush1.bf16.msra.mxu0 0
  %3447 = vmatprep.subr.bf16.mxu0 0
  %3448 = vmatpush1.bf16.msra.mxu0 0
  %3449 = vmatprep.subr.bf16.mxu0 0
  %3450 = vmatpush1.bf16.msra.mxu0 0
  %3451 = vmatprep.subr.bf16.mxu0 0
  %3452 = vmatpush1.bf16.msra.mxu0 0
  %3453 = vmatprep.subr.bf16.mxu0 0
  %3454 = vmatpush1.bf16.msra.mxu0 0
  %3455 = vmatprep.subr.bf16.mxu0 0
  %3456 = vmatpush1.bf16.msra.mxu0 0
  %3457 = vmatprep.subr.bf16.mxu0 0
  %3458 = vmatpush1.bf16.msra.mxu0 0
  %3459 = vmatprep.subr.bf16.mxu0 0
  %3460 = vmatpush1.bf16.msra.mxu0 0
  %3461 = vmatprep.subr.bf16.mxu0 0
  %3462 = vmatpush1.bf16.msra.mxu0 0
  %3463 = vmatprep.subr.bf16.mxu0 0
  %3464 = vmatpush1.bf16.msra.mxu0 0
  %3465 = vmatprep.mubr.bf16.mxu0 0
  %3466 = vmatmul.mubr.bf16.gmra.mrb[0].mxu0 %v3269
  %v3467 = vpop.f32.mrb[0].mxu0
  %v3468 = vadd.f32 %v3415, %v3467
  %v3469 = vpop.f32.mrb[0].mxu0
  %v3470 = vadd.f32 %v3417, %v3469
  %v3471 = vpop.f32.mrb[0].mxu0
  %v3472 = vadd.f32 %v3419, %v3471
  %v3473 = vpop.f32.mrb[0].mxu0
  %v3474 = vadd.f32 %v3421, %v3473
  %3475 = vmatprep.mubr.bf16.mxu0 0
  %3476 = vmatmul.mubr.bf16.gmra.mrb[0].mxu0 %v3272
  %v3477 = vpop.f32.mrb[0].mxu0
  %v3478 = vadd.f32 %v3425, %v3477
  %v3479 = vpop.f32.mrb[0].mxu0
  %v3480 = vadd.f32 %v3427, %v3479
  %v3481 = vpop.f32.mrb[0].mxu0
  %v3482 = vadd.f32 %v3429, %v3481
  %v3483 = vpop.f32.mrb[0].mxu0
  %v3484 = vadd.f32 %v3431, %v3483
  %3485 = vdwg.mxu0
  %3486 = vmatprep.subr.bf16.mxu0 %v2863
  %3487 = vmatpush1.bf16.msra.mxu0 %v2862
  %3488 = vmatprep.subr.bf16.mxu0 %v2867
  %3489 = vmatpush1.bf16.msra.mxu0 %v2866
  %3490 = vmatprep.subr.bf16.mxu0 %v2871
  %3491 = vmatpush1.bf16.msra.mxu0 %v2870
  %3492 = vmatprep.subr.bf16.mxu0 %v2875
  %3493 = vmatpush1.bf16.msra.mxu0 %v2874
  %3494 = vmatprep.subr.bf16.mxu0 %v2879
  %3495 = vmatpush1.bf16.msra.mxu0 %v2878
  %3496 = vmatprep.subr.bf16.mxu0 %v2883
  %3497 = vmatpush1.bf16.msra.mxu0 %v2882
  %3498 = vmatprep.subr.bf16.mxu0 %v2887
  %3499 = vmatpush1.bf16.msra.mxu0 %v2886
  %3500 = vmatprep.subr.bf16.mxu0 %v2891
  %3501 = vmatpush1.bf16.msra.mxu0 %v2890
  %3502 = vmatprep.subr.bf16.mxu0 %v2895
  %3503 = vmatpush1.bf16.msra.mxu0 %v2894
  %3504 = vmatprep.subr.bf16.mxu0 %v2899
  %3505 = vmatpush1.bf16.msra.mxu0 %v2898
  %3506 = vmatprep.subr.bf16.mxu0 %v2903
  %3507 = vmatpush1.bf16.msra.mxu0 %v2902
  %3508 = vmatprep.subr.bf16.mxu0 %v2907
  %3509 = vmatpush1.bf16.msra.mxu0 %v2906
  %3510 = vmatprep.subr.bf16.mxu0 %v2911
  %3511 = vmatpush1.bf16.msra.mxu0 %v2910
  %3512 = vmatprep.subr.bf16.mxu0 %v2915
  %3513 = vmatpush1.bf16.msra.mxu0 %v2914
  %3514 = vmatprep.subr.bf16.mxu0 %v2919
  %3515 = vmatpush1.bf16.msra.mxu0 %v2918
  %3516 = vmatprep.subr.bf16.mxu0 %v2923
  %3517 = vmatpush1.bf16.msra.mxu0 %v2922
  %3518 = vmatprep.mubr.bf16.mxu0 %v2223
  %3519 = vmatmul.mubr.bf16.gmra.mrb[0].mxu0 %v2222
  %v3520 = vpop.f32.mrb[0].mxu0
  %v3521 = vadd.f32 %v2160, %v3520
  %v3522 = vpop.f32.mrb[0].mxu0
  %v3523 = vadd.f32 %v2162, %v3522
  %v3524 = vpop.f32.mrb[0].mxu0
  %v3525 = vadd.f32 %v2164, %v3524
  %v3526 = vpop.f32.mrb[0].mxu0
  %v3527 = vadd.f32 %v2166, %v3526
  %3528 = vmatprep.mubr.bf16.mxu0 %v2230
  %3529 = vmatmul.mubr.bf16.gmra.mrb[0].mxu0 %v2229
  %v3530 = vpop.f32.mrb[0].mxu0
  %v3531 = vadd.f32 %v2170, %v3530
  %v3532 = vpop.f32.mrb[0].mxu0
  %v3533 = vadd.f32 %v2172, %v3532
  %v3534 = vpop.f32.mrb[0].mxu0
  %v3535 = vadd.f32 %v2174, %v3534
  %v3536 = vpop.f32.mrb[0].mxu0
  %v3537 = vadd.f32 %v2176, %v3536
  %3538 = vdwg.mxu0
  %3539 = vmatprep.subr.bf16.mxu0 %v2927
  %3540 = vmatpush1.bf16.msra.mxu0 %v2926
  %3541 = vmatprep.subr.bf16.mxu0 %v2931
  %3542 = vmatpush1.bf16.msra.mxu0 %v2930
  %3543 = vmatprep.subr.bf16.mxu0 %v2935
  %3544 = vmatpush1.bf16.msra.mxu0 %v2934
  %3545 = vmatprep.subr.bf16.mxu0 %v2939
  %3546 = vmatpush1.bf16.msra.mxu0 %v2938
  %3547 = vmatprep.subr.bf16.mxu0 %v2943
  %3548 = vmatpush1.bf16.msra.mxu0 %v2942
  %3549 = vmatprep.subr.bf16.mxu0 %v2947
  %3550 = vmatpush1.bf16.msra.mxu0 %v2946
  %3551 = vmatprep.subr.bf16.mxu0 %v2951
  %3552 = vmatpush1.bf16.msra.mxu0 %v2950
  %3553 = vmatprep.subr.bf16.mxu0 %v2955
  %3554 = vmatpush1.bf16.msra.mxu0 %v2954
  %3555 = vmatprep.subr.bf16.mxu0 %v2959
  %3556 = vmatpush1.bf16.msra.mxu0 %v2958
  %3557 = vmatprep.subr.bf16.mxu0 %v2963
  %3558 = vmatpush1.bf16.msra.mxu0 %v2962
  %3559 = vmatprep.subr.bf16.mxu0 %v2967
  %3560 = vmatpush1.bf16.msra.mxu0 %v2966
  %3561 = vmatprep.subr.bf16.mxu0 %v2971
  %3562 = vmatpush1.bf16.msra.mxu0 %v2970
  %3563 = vmatprep.subr.bf16.mxu0 %v2975
  %3564 = vmatpush1.bf16.msra.mxu0 %v2974
  %3565 = vmatprep.subr.bf16.mxu0 %v2979
  %3566 = vmatpush1.bf16.msra.mxu0 %v2978
  %3567 = vmatprep.subr.bf16.mxu0 %v2983
  %3568 = vmatpush1.bf16.msra.mxu0 %v2982
  %3569 = vmatprep.subr.bf16.mxu0 %v2987
  %3570 = vmatpush1.bf16.msra.mxu0 %v2986
  %3571 = vmatprep.mubr.bf16.mxu0 %v2225
  %3572 = vmatmul.mubr.bf16.gmra.mrb[0].mxu0 %v2224
  %v3573 = vpop.f32.mrb[0].mxu0
  %v3574 = vadd.f32 %v3521, %v3573
  %v3575 = vpop.f32.mrb[0].mxu0
  %v3576 = vadd.f32 %v3523, %v3575
  %v3577 = vpop.f32.mrb[0].mxu0
  %v3578 = vadd.f32 %v3525, %v3577
  %v3579 = vpop.f32.mrb[0].mxu0
  %v3580 = vadd.f32 %v3527, %v3579
  %3581 = vmatprep.mubr.bf16.mxu0 %v2232
  %3582 = vmatmul.mubr.bf16.gmra.mrb[0].mxu0 %v2231
  %v3583 = vpop.f32.mrb[0].mxu0
  %v3584 = vadd.f32 %v3531, %v3583
  %v3585 = vpop.f32.mrb[0].mxu0
  %v3586 = vadd.f32 %v3533, %v3585
  %v3587 = vpop.f32.mrb[0].mxu0
  %v3588 = vadd.f32 %v3535, %v3587
  %v3589 = vpop.f32.mrb[0].mxu0
  %v3590 = vadd.f32 %v3537, %v3589
  %3591 = vdwg.mxu0
  %3592 = vmatprep.subr.bf16.mxu0 %v2991
  %3593 = vmatpush1.bf16.msra.mxu0 %v2990
  %3594 = vmatprep.subr.bf16.mxu0 %v2995
  %3595 = vmatpush1.bf16.msra.mxu0 %v2994
  %3596 = vmatprep.subr.bf16.mxu0 %v2999
  %3597 = vmatpush1.bf16.msra.mxu0 %v2998
  %3598 = vmatprep.subr.bf16.mxu0 %v3003
  %3599 = vmatpush1.bf16.msra.mxu0 %v3002
  %3600 = vmatprep.subr.bf16.mxu0 %v3007
  %3601 = vmatpush1.bf16.msra.mxu0 %v3006
  %3602 = vmatprep.subr.bf16.mxu0 %v3011
  %3603 = vmatpush1.bf16.msra.mxu0 %v3010
  %3604 = vmatprep.subr.bf16.mxu0 %v3015
  %3605 = vmatpush1.bf16.msra.mxu0 %v3014
  %3606 = vmatprep.subr.bf16.mxu0 %v3019
  %3607 = vmatpush1.bf16.msra.mxu0 %v3018
  %3608 = vmatprep.subr.bf16.mxu0 %v3023
  %3609 = vmatpush1.bf16.msra.mxu0 %v3022
  %3610 = vmatprep.subr.bf16.mxu0 %v3027
  %3611 = vmatpush1.bf16.msra.mxu0 %v3026
  %3612 = vmatprep.subr.bf16.mxu0 %v3031
  %3613 = vmatpush1.bf16.msra.mxu0 %v3030
  %3614 = vmatprep.subr.bf16.mxu0 %v3035
  %3615 = vmatpush1.bf16.msra.mxu0 %v3034
  %3616 = vmatprep.subr.bf16.mxu0 %v3039
  %3617 = vmatpush1.bf16.msra.mxu0 %v3038
  %3618 = vmatprep.subr.bf16.mxu0 %v3043
  %3619 = vmatpush1.bf16.msra.mxu0 %v3042
  %3620 = vmatprep.subr.bf16.mxu0 %v3047
  %3621 = vmatpush1.bf16.msra.mxu0 %v3046
  %3622 = vmatprep.subr.bf16.mxu0 %v3051
  %3623 = vmatpush1.bf16.msra.mxu0 %v3050
  %3624 = vmatprep.mubr.bf16.mxu0 %v2227
  %3625 = vmatmul.mubr.bf16.gmra.mrb[0].mxu0 %v2226
  %v3626 = vpop.f32.mrb[0].mxu0
  %v3627 = vadd.f32 %v3574, %v3626
  %v3628 = vpop.f32.mrb[0].mxu0
  %v3629 = vadd.f32 %v3576, %v3628
  %v3630 = vpop.f32.mrb[0].mxu0
  %v3631 = vadd.f32 %v3578, %v3630
  %v3632 = vpop.f32.mrb[0].mxu0
  %v3633 = vadd.f32 %v3580, %v3632
  %3634 = vmatprep.mubr.bf16.mxu0 %v2234
  %3635 = vmatmul.mubr.bf16.gmra.mrb[0].mxu0 %v2233
  %v3636 = vpop.f32.mrb[0].mxu0
  %v3637 = vadd.f32 %v3584, %v3636
  %v3638 = vpop.f32.mrb[0].mxu0
  %v3639 = vadd.f32 %v3586, %v3638
  %v3640 = vpop.f32.mrb[0].mxu0
  %v3641 = vadd.f32 %v3588, %v3640
  %v3642 = vpop.f32.mrb[0].mxu0
  %v3643 = vadd.f32 %v3590, %v3642
  %3644 = vdwg.mxu0
  %3645 = vmatprep.subr.bf16.mxu0 %v3055
  %3646 = vmatpush1.bf16.msra.mxu0 %v3054
  %3647 = vmatprep.subr.bf16.mxu0 %v3059
  %3648 = vmatpush1.bf16.msra.mxu0 %v3058
  %3649 = vmatprep.subr.bf16.mxu0 %v3063
  %3650 = vmatpush1.bf16.msra.mxu0 %v3062
  %3651 = vmatprep.subr.bf16.mxu0 0
  %3652 = vmatpush1.bf16.msra.mxu0 0
  %3653 = vmatprep.subr.bf16.mxu0 0
  %3654 = vmatpush1.bf16.msra.mxu0 0
  %3655 = vmatprep.subr.bf16.mxu0 0
  %3656 = vmatpush1.bf16.msra.mxu0 0
  %3657 = vmatprep.subr.bf16.mxu0 0
  %3658 = vmatpush1.bf16.msra.mxu0 0
  %3659 = vmatprep.subr.bf16.mxu0 0
  %3660 = vmatpush1.bf16.msra.mxu0 0
  %3661 = vmatprep.subr.bf16.mxu0 0
  %3662 = vmatpush1.bf16.msra.mxu0 0
  %3663 = vmatprep.subr.bf16.mxu0 0
  %3664 = vmatpush1.bf16.msra.mxu0 0
  %3665 = vmatprep.subr.bf16.mxu0 0
  %3666 = vmatpush1.bf16.msra.mxu0 0
  %3667 = vmatprep.subr.bf16.mxu0 0
  %3668 = vmatpush1.bf16.msra.mxu0 0
  %3669 = vmatprep.subr.bf16.mxu0 0
  %3670 = vmatpush1.bf16.msra.mxu0 0
  %3671 = vmatprep.subr.bf16.mxu0 0
  %3672 = vmatpush1.bf16.msra.mxu0 0
  %3673 = vmatprep.subr.bf16.mxu0 0
  %3674 = vmatpush1.bf16.msra.mxu0 0
  %3675 = vmatprep.subr.bf16.mxu0 0
  %3676 = vmatpush1.bf16.msra.mxu0 0
  %3677 = vmatprep.mubr.bf16.mxu0 0
  %3678 = vmatmul.mubr.bf16.gmra.mrb[0].mxu0 %v3269
  %v3679 = vpop.f32.mrb[0].mxu0
  %v3680 = vadd.f32 %v3627, %v3679
  %v3681 = vpop.f32.mrb[0].mxu0
  %v3682 = vadd.f32 %v3629, %v3681
  %v3683 = vpop.f32.mrb[0].mxu0
  %v3684 = vadd.f32 %v3631, %v3683
  %v3685 = vpop.f32.mrb[0].mxu0
  %v3686 = vadd.f32 %v3633, %v3685
  %3687 = vmatprep.mubr.bf16.mxu0 0
  %3688 = vmatmul.mubr.bf16.gmra.mrb[0].mxu0 %v3272
  %v3689 = vpop.f32.mrb[0].mxu0
  %v3690 = vadd.f32 %v3637, %v3689
  %v3691 = vpop.f32.mrb[0].mxu0
  %v3692 = vadd.f32 %v3639, %v3691
  %v3693 = vpop.f32.mrb[0].mxu0
  %v3694 = vadd.f32 %v3641, %v3693
  %v3695 = vpop.f32.mrb[0].mxu0
  %v3696 = vadd.f32 %v3643, %v3695
  %3697 = vdwg.mxu0
  %v3698 = vld [vmem:[%s3] sm:$0xf]
  %v3700 = vlaneseq
  %v3701 = vshrl.u32 %v3700, 7
  %v3702 = vsub.s32 0, %v3701
  %v3703 = vrot.slane %v3698, %v3702
  %v3704 = vlaneseq
  %v3705 = vshrl.u32 %v3704, 7
  %v3706 = vsub.s32 1, %v3705
  %v3707 = vrot.slane %v3698, %v3706
  %v3708 = vlaneseq
  %v3709 = vshrl.u32 %v3708, 7
  %v3710 = vsub.s32 2, %v3709
  %v3711 = vrot.slane %v3698, %v3710
  %v3712 = vlaneseq
  %v3713 = vshrl.u32 %v3712, 7
  %v3714 = vsub.s32 3, %v3713
  %v3715 = vrot.slane %v3698, %v3714
  %v3720 = vadd.f32 %v3468, %v3703
  %v3721 = vadd.f32 %v3470, %v3707
  %v3722 = vadd.f32 %v3680, %v3711
  %v3723 = vadd.f32 %v3682, %v3715
  %v3724 = vadd.f32 %v3472, %v3703
  %v3725 = vadd.f32 %v3474, %v3707
  %v3726 = vadd.f32 %v3684, %v3711
  %v3727 = vadd.f32 %v3686, %v3715
  %v3728 = vadd.f32 %v3478, %v3703
  %v3729 = vadd.f32 %v3480, %v3707
  %v3730 = vadd.f32 %v3690, %v3711
  %v3731 = vadd.f32 %v3692, %v3715
  %v3732 = vadd.f32 %v3482, %v3703
  %v3733 = vadd.f32 %v3484, %v3707
  %v3734 = vadd.f32 %v3694, %v3711
  %v3735 = vadd.f32 %v3696, %v3715
  %v3736 = vmax.f32 %v3720, 0.0
  %v3737 = vmax.f32 %v3721, 0.0
  %v3738 = vmax.f32 %v3722, 0.0
  %v3739 = vmax.f32 %v3723, 0.0
  %v3740 = vmax.f32 %v3724, 0.0
  %v3741 = vmax.f32 %v3725, 0.0
  %v3742 = vmax.f32 %v3726, 0.0
  %v3743 = vmax.f32 %v3727, 0.0
  %v3744 = vmax.f32 %v3728, 0.0
  %v3745 = vmax.f32 %v3729, 0.0
  %v3746 = vmax.f32 %v3730, 0.0
  %v3747 = vmax.f32 %v3731, 0.0
  %v3748 = vmax.f32 %v3732, 0.0
  %v3749 = vmax.f32 %v3733, 0.0
  %v3750 = vmax.f32 %v3734, 0.0
  %v3751 = vmax.f32 %v3735, 0.0
  %v3752 = vpack.c.bf16 %v3740, %v3736
  %v3753 = vpack.c.bf16 %v3741, %v3737
  %v3754 = vpack.c.bf16 %v3742, %v3738
  %v3755 = vpack.c.bf16 %v3743, %v3739
  %v3756 = vpack.c.bf16 %v3748, %v3744
  %v3757 = vpack.c.bf16 %v3749, %v3745
  %v3758 = vpack.c.bf16 %v3750, %v3746
  %v3759 = vpack.c.bf16 %v3751, %v3747
  %3760 = vst [vmem:[#allocation2] sm:$0xff] %v3752
  %3761 = vst [vmem:[#allocation2 + $0x8] sm:$0xff] %v3753
  %3762 = vst [vmem:[#allocation2 + $0x10] sm:$0xff] %v3754
  %3763 = vst [vmem:[#allocation2 + $0x18] sm:$0xff] %v3755
  %3764 = vst [vmem:[#allocation2 + $0x20] sm:$0xff] %v3756
  %3765 = vst [vmem:[#allocation2 + $0x28] sm:$0xff] %v3757
  %3766 = vst [vmem:[#allocation2 + $0x30] sm:$0xff] %v3758
  %3767 = vst [vmem:[#allocation2 + $0x38] sm:$0xff] %v3759
  %v3768 = vld [vmem:[%s5] sm:$0x3]
  %v3769 = vld [vmem:[#allocation2] sm:$0x1]
  %v3770 = vld [vmem:[#allocation2 + $0x8] sm:$0x1]
  %v3771 = vld [vmem:[#allocation2 + $0x10] sm:$0x1]
  %v3772 = vld [vmem:[#allocation2 + $0x18] sm:$0x1]
  %v3773 = vld [vmem:[#allocation2 + $0x20] sm:$0x1]
  %v3774 = vld [vmem:[#allocation2 + $0x28] sm:$0x1]
  %v3775 = vld [vmem:[#allocation2 + $0x30] sm:$0x1]
  %v3776 = vld [vmem:[#allocation2 + $0x38] sm:$0x1]
  %v3777 = vld [vmem:[%s4] sm:$0xff]
  %v3778 = vld [vmem:[%s4 + $0x8] sm:$0xff]
  %v3779 = vld [vmem:[%s4 + $0x10] sm:$0xff]
  %v3780 = vld [vmem:[%s4 + $0x18] sm:$0xff]
  %v3781 = vld [vmem:[%s4 + $0x20] sm:$0xff]
  %v3782 = vld [vmem:[%s4 + $0x28] sm:$0xff]
  %v3783 = vld [vmem:[%s4 + $0x30] sm:$0xff]
  %v3784 = vld [vmem:[%s4 + $0x38] sm:$0xff]
  %v3785 = vld [vmem:[%s4 + $0x40] sm:$0xff]
  %v3786 = vld [vmem:[%s4 + $0x48] sm:$0xff]
  %v3787 = vld [vmem:[%s4 + $0x50] sm:$0xff]
  %v3788 = vld [vmem:[%s4 + $0x58] sm:$0xff]
  %v3789 = vld [vmem:[%s4 + $0x60] sm:$0xff]
  %v3790 = vld [vmem:[%s4 + $0x68] sm:$0xff]
  %v3791 = vld [vmem:[%s4 + $0x70] sm:$0xff]
  %v3792 = vld [vmem:[%s4 + $0x78] sm:$0xff]
  %v3793 = vld [vmem:[%s4 + $0x80] sm:$0xff]
  %v3794 = vld [vmem:[%s4 + $0x88] sm:$0xff]
  %v3795 = vld [vmem:[%s4 + $0x90] sm:$0xff]
  %v3796 = vld [vmem:[%s4 + $0x98] sm:$0xff]
  %v3797 = vld [vmem:[%s4 + $0xa0] sm:$0xff]
  %v3798 = vld [vmem:[%s4 + $0xa8] sm:$0xff]
  %v3799 = vld [vmem:[%s4 + $0xb0] sm:$0xff]
  %v3800 = vld [vmem:[%s4 + $0xb8] sm:$0xff]
  %v3801 = vld [vmem:[%s4 + $0xc0] sm:$0xff]
  %v3802 = vld [vmem:[%s4 + $0xc8] sm:$0xff]
  %v3803 = vld [vmem:[%s4 + $0xd0] sm:$0xff]
  %v3804 = vld [vmem:[%s4 + $0xd8] sm:$0xff]
  %v3805 = vld [vmem:[%s4 + $0xe0] sm:$0xff]
  %v3806 = vld [vmem:[%s4 + $0xe8] sm:$0xff]
  %v3807 = vld [vmem:[%s4 + $0xf0] sm:$0xff]
  %v3808 = vld [vmem:[%s4 + $0xf8] sm:$0xff]
  %v3809 = vld [vmem:[%s4 + $0x100] sm:$0xff]
  %v3810 = vld [vmem:[%s4 + $0x108] sm:$0xff]
  %v3811 = vld [vmem:[%s4 + $0x110] sm:$0xff]
  %v3812 = vld [vmem:[%s4 + $0x118] sm:$0xff]
  %v3813 = vld [vmem:[%s4 + $0x120] sm:$0xff]
  %v3814 = vld [vmem:[%s4 + $0x128] sm:$0xff]
  %v3815 = vld [vmem:[%s4 + $0x130] sm:$0xff]
  %v3816 = vld [vmem:[%s4 + $0x138] sm:$0xff]
  %v3817 = vld [vmem:[%s4 + $0x140] sm:$0xff]
  %v3818 = vld [vmem:[%s4 + $0x148] sm:$0xff]
  %v3819 = vld [vmem:[%s4 + $0x150] sm:$0xff]
  %v3820 = vld [vmem:[%s4 + $0x158] sm:$0xff]
  %v3821 = vld [vmem:[%s4 + $0x160] sm:$0xff]
  %v3822 = vld [vmem:[%s4 + $0x168] sm:$0xff]
  %v3823 = vld [vmem:[%s4 + $0x170] sm:$0xff]
  %v3824 = vld [vmem:[%s4 + $0x178] sm:$0xff]
  %v3825 = vld [vmem:[%s4 + $0x180] sm:$0xff]
  %v3826 = vld [vmem:[%s4 + $0x188] sm:$0xff]
  %v3827 = vld [vmem:[%s4 + $0x190] sm:$0xff]
  %v3828 = vld [vmem:[%s4 + $0x198] sm:$0xff]
  %v3829 = vld [vmem:[%s4 + $0x1a0] sm:$0xff]
  %v3830 = vld [vmem:[%s4 + $0x1a8] sm:$0xff]
  %v3831 = vld [vmem:[%s4 + $0x1b0] sm:$0xff]
  %v3832 = vld [vmem:[%s4 + $0x1b8] sm:$0xff]
  %v3833 = vld [vmem:[%s4 + $0x1c0] sm:$0xff]
  %v3834 = vld [vmem:[%s4 + $0x1c8] sm:$0xff]
  %v3835 = vld [vmem:[%s4 + $0x1d0] sm:$0xff]
  %v3836 = vld [vmem:[%s4 + $0x1d8] sm:$0xff]
  %v3837 = vld [vmem:[%s4 + $0x1e0] sm:$0xff]
  %v3838 = vld [vmem:[%s4 + $0x1e8] sm:$0xff]
  %v3839 = vld [vmem:[%s4 + $0x1f0] sm:$0xff]
  %v3840 = vld [vmem:[%s4 + $0x1f8] sm:$0xff]
  %s3841 = scalar_lea.vmem %s4, 512
  %v3842 = vld [vmem:[%s3841] sm:$0xff]
  %v3843 = vld [vmem:[%s3841 + $0x8] sm:$0xff]
  %v3844 = vld [vmem:[%s3841 + $0x10] sm:$0xff]
  %v3845 = vld [vmem:[%s3841 + $0x18] sm:$0xff]
  %v3846 = vld [vmem:[%s3841 + $0x20] sm:$0xff]
  %v3847 = vld [vmem:[%s3841 + $0x28] sm:$0xff]
  %v3848 = vld [vmem:[%s3841 + $0x30] sm:$0xff]
  %v3849 = vld [vmem:[%s3841 + $0x38] sm:$0xff]
  %v3850 = vld [vmem:[%s3841 + $0x40] sm:$0xff]
  %v3851 = vld [vmem:[%s3841 + $0x48] sm:$0xff]
  %v3852 = vld [vmem:[%s3841 + $0x50] sm:$0xff]
  %v3853 = vld [vmem:[%s3841 + $0x58] sm:$0xff]
  %v3854 = vld [vmem:[%s3841 + $0x60] sm:$0xff]
  %v3855 = vld [vmem:[%s3841 + $0x68] sm:$0xff]
  %v3856 = vld [vmem:[%s3841 + $0x70] sm:$0xff]
  %v3857 = vld [vmem:[%s3841 + $0x78] sm:$0xff]
  %v3858 = vld [vmem:[%s3841 + $0x80] sm:$0xff]
  %v3859 = vld [vmem:[%s3841 + $0x88] sm:$0xff]
  %v3860 = vld [vmem:[%s3841 + $0x90] sm:$0xff]
  %v3861 = vld [vmem:[%s3841 + $0x98] sm:$0xff]
  %v3862 = vld [vmem:[%s3841 + $0xa0] sm:$0xff]
  %v3863 = vld [vmem:[%s3841 + $0xa8] sm:$0xff]
  %v3864 = vld [vmem:[%s3841 + $0xb0] sm:$0xff]
  %v3865 = vld [vmem:[%s3841 + $0xb8] sm:$0xff]
  %v3866 = vld [vmem:[%s3841 + $0xc0] sm:$0xff]
  %v3867 = vld [vmem:[%s3841 + $0xc8] sm:$0xff]
  %v3868 = vld [vmem:[%s3841 + $0xd0] sm:$0xff]
  %v3869 = vld [vmem:[%s3841 + $0xd8] sm:$0xff]
  %v3870 = vld [vmem:[%s3841 + $0xe0] sm:$0xff]
  %v3871 = vld [vmem:[%s3841 + $0xe8] sm:$0xff]
  %v3872 = vld [vmem:[%s3841 + $0xf0] sm:$0xff]
  %v3873 = vld [vmem:[%s3841 + $0xf8] sm:$0xff]
  %v3874 = vld [vmem:[%s3841 + $0x100] sm:$0xff]
  %v3875 = vld [vmem:[%s3841 + $0x108] sm:$0xff]
  %v3876 = vld [vmem:[%s3841 + $0x110] sm:$0xff]
  %v3877 = vld [vmem:[%s3841 + $0x118] sm:$0xff]
  %v3878 = vld [vmem:[%s3841 + $0x120] sm:$0xff]
  %v3879 = vld [vmem:[%s3841 + $0x128] sm:$0xff]
  %v3880 = vld [vmem:[%s3841 + $0x130] sm:$0xff]
  %v3881 = vld [vmem:[%s3841 + $0x138] sm:$0xff]
  %v3882 = vld [vmem:[%s3841 + $0x140] sm:$0xff]
  %v3883 = vld [vmem:[%s3841 + $0x148] sm:$0xff]
  %v3884 = vld [vmem:[%s3841 + $0x150] sm:$0xff]
  %v3885 = vld [vmem:[%s3841 + $0x158] sm:$0xff]
  %v3886 = vld [vmem:[%s3841 + $0x160] sm:$0xff]
  %v3887 = vld [vmem:[%s3841 + $0x168] sm:$0xff]
  %v3888 = vld [vmem:[%s3841 + $0x170] sm:$0xff]
  %v3889 = vld [vmem:[%s3841 + $0x178] sm:$0xff]
  %v3890 = vld [vmem:[%s3841 + $0x180] sm:$0xff]
  %v3891 = vld [vmem:[%s3841 + $0x188] sm:$0xff]
  %v3892 = vld [vmem:[%s3841 + $0x190] sm:$0xff]
  %v3893 = vld [vmem:[%s3841 + $0x198] sm:$0xff]
  %v3894 = vld [vmem:[%s3841 + $0x1a0] sm:$0xff]
  %v3895 = vld [vmem:[%s3841 + $0x1a8] sm:$0xff]
  %v3896 = vld [vmem:[%s3841 + $0x1b0] sm:$0xff]
  %v3897 = vld [vmem:[%s3841 + $0x1b8] sm:$0xff]
  %v3898 = vld [vmem:[%s3841 + $0x1c0] sm:$0xff]
  %v3899 = vld [vmem:[%s3841 + $0x1c8] sm:$0xff]
  %v3900 = vld [vmem:[%s3841 + $0x1d0] sm:$0xff]
  %v3901 = vld [vmem:[%s3841 + $0x1d8] sm:$0xff]
  %v3902 = vld [vmem:[%s3841 + $0x1e0] sm:$0xff]
  %v3903 = vld [vmem:[%s3841 + $0x1e8] sm:$0xff]
  %v3904 = vld [vmem:[%s3841 + $0x1f0] sm:$0xff]
  %v3905 = vld [vmem:[%s3841 + $0x1f8] sm:$0xff]
  %v3914 = vunpack.c.l.b16 %v3769
  %v3915 = vunpack.c.l.b16 %v3770
  %v3916 = vunpack.c.l.b16 %v3771
  %v3917 = vunpack.c.l.b16 %v3772
  %v3918 = vunpack.c.l.b16 %v3773
  %v3919 = vunpack.c.l.b16 %v3774
  %v3920 = vunpack.c.l.b16 %v3775
  %v3921 = vunpack.c.l.b16 %v3776
  %v3922 = vrot.slane %v3914, 1
  %vm3923 = vcmask 1041409
  %v3924 = vsel %vm3923, %v3918, %v3922
  %v3925 = vrot.slane %v3915, 1
  %v3926 = vsel %vm3923, %v3919, %v3925
  %v3927 = vrot.slane %v3916, 1
  %v3928 = vsel %vm3923, %v3920, %v3927
  %v3929 = vrot.slane %v3917, 1
  %v3930 = vsel %vm3923, %v3921, %v3929
  %v3931 = vpack.c.b16 %v3924, %v3924
  %v3932 = vpack.c.b16 %v3926, %v3926
  %v3933 = vpack.c.b16 %v3928, %v3928
  %v3934 = vpack.c.b16 %v3930, %v3930
  %v4003 = vunpack.c.l.b16 %v3842
  %v4004 = vunpack.c.h.b16 %v3842
  %v4005 = vunpack.c.l.b16 %v3843
  %v4006 = vunpack.c.h.b16 %v3843
  %v4007 = vunpack.c.l.b16 %v3844
  %v4008 = vunpack.c.h.b16 %v3844
  %v4009 = vunpack.c.l.b16 %v3845
  %v4010 = vunpack.c.h.b16 %v3845
  %v4011 = vunpack.c.l.b16 %v3846
  %v4012 = vunpack.c.h.b16 %v3846
  %v4013 = vunpack.c.l.b16 %v3847
  %v4014 = vunpack.c.h.b16 %v3847
  %v4015 = vunpack.c.l.b16 %v3848
  %v4016 = vunpack.c.h.b16 %v3848
  %v4017 = vunpack.c.l.b16 %v3849
  %v4018 = vunpack.c.h.b16 %v3849
  %v4019 = vunpack.c.l.b16 %v3850
  %v4020 = vunpack.c.h.b16 %v3850
  %v4021 = vunpack.c.l.b16 %v3851
  %v4022 = vunpack.c.h.b16 %v3851
  %v4023 = vunpack.c.l.b16 %v3852
  %v4024 = vunpack.c.h.b16 %v3852
  %v4025 = vunpack.c.l.b16 %v3853
  %v4026 = vunpack.c.h.b16 %v3853
  %v4027 = vunpack.c.l.b16 %v3854
  %v4028 = vunpack.c.h.b16 %v3854
  %v4029 = vunpack.c.l.b16 %v3855
  %v4030 = vunpack.c.h.b16 %v3855
  %v4031 = vunpack.c.l.b16 %v3856
  %v4032 = vunpack.c.h.b16 %v3856
  %v4033 = vunpack.c.l.b16 %v3857
  %v4034 = vunpack.c.h.b16 %v3857
  %v4035 = vunpack.c.l.b16 %v3858
  %v4036 = vunpack.c.h.b16 %v3858
  %v4037 = vunpack.c.l.b16 %v3859
  %v4038 = vunpack.c.h.b16 %v3859
  %v4039 = vunpack.c.l.b16 %v3860
  %v4040 = vunpack.c.h.b16 %v3860
  %v4041 = vunpack.c.l.b16 %v3861
  %v4042 = vunpack.c.h.b16 %v3861
  %v4043 = vunpack.c.l.b16 %v3862
  %v4044 = vunpack.c.h.b16 %v3862
  %v4045 = vunpack.c.l.b16 %v3863
  %v4046 = vunpack.c.h.b16 %v3863
  %v4047 = vunpack.c.l.b16 %v3864
  %v4048 = vunpack.c.h.b16 %v3864
  %v4049 = vunpack.c.l.b16 %v3865
  %v4050 = vunpack.c.h.b16 %v3865
  %v4051 = vunpack.c.l.b16 %v3866
  %v4052 = vunpack.c.h.b16 %v3866
  %v4053 = vunpack.c.l.b16 %v3867
  %v4054 = vunpack.c.h.b16 %v3867
  %v4055 = vunpack.c.l.b16 %v3868
  %v4056 = vunpack.c.h.b16 %v3868
  %v4057 = vunpack.c.l.b16 %v3869
  %v4058 = vunpack.c.h.b16 %v3869
  %v4059 = vunpack.c.l.b16 %v3870
  %v4060 = vunpack.c.h.b16 %v3870
  %v4061 = vunpack.c.l.b16 %v3871
  %v4062 = vunpack.c.h.b16 %v3871
  %v4063 = vunpack.c.l.b16 %v3872
  %v4064 = vunpack.c.h.b16 %v3872
  %v4065 = vunpack.c.l.b16 %v3873
  %v4066 = vunpack.c.h.b16 %v3873
  %v4067 = vunpack.c.l.b16 %v3874
  %v4068 = vunpack.c.h.b16 %v3874
  %v4069 = vunpack.c.l.b16 %v3875
  %v4070 = vunpack.c.h.b16 %v3875
  %v4071 = vunpack.c.l.b16 %v3876
  %v4072 = vunpack.c.h.b16 %v3876
  %v4073 = vunpack.c.l.b16 %v3877
  %v4074 = vunpack.c.h.b16 %v3877
  %v4075 = vunpack.c.l.b16 %v3878
  %v4076 = vunpack.c.h.b16 %v3878
  %v4077 = vunpack.c.l.b16 %v3879
  %v4078 = vunpack.c.h.b16 %v3879
  %v4079 = vunpack.c.l.b16 %v3880
  %v4080 = vunpack.c.h.b16 %v3880
  %v4081 = vunpack.c.l.b16 %v3881
  %v4082 = vunpack.c.h.b16 %v3881
  %v4083 = vunpack.c.l.b16 %v3882
  %v4084 = vunpack.c.h.b16 %v3882
  %v4085 = vunpack.c.l.b16 %v3883
  %v4086 = vunpack.c.h.b16 %v3883
  %v4087 = vunpack.c.l.b16 %v3884
  %v4088 = vunpack.c.h.b16 %v3884
  %v4089 = vunpack.c.l.b16 %v3885
  %v4090 = vunpack.c.h.b16 %v3885
  %v4091 = vunpack.c.l.b16 %v3886
  %v4092 = vunpack.c.h.b16 %v3886
  %v4093 = vunpack.c.l.b16 %v3887
  %v4094 = vunpack.c.h.b16 %v3887
  %v4095 = vunpack.c.l.b16 %v3888
  %v4096 = vunpack.c.h.b16 %v3888
  %v4097 = vunpack.c.l.b16 %v3889
  %v4098 = vunpack.c.h.b16 %v3889
  %v4099 = vunpack.c.l.b16 %v3890
  %v4100 = vunpack.c.h.b16 %v3890
  %v4101 = vunpack.c.l.b16 %v3891
  %v4102 = vunpack.c.h.b16 %v3891
  %v4103 = vunpack.c.l.b16 %v3892
  %v4104 = vunpack.c.h.b16 %v3892
  %v4105 = vunpack.c.l.b16 %v3893
  %v4106 = vunpack.c.h.b16 %v3893
  %v4107 = vunpack.c.l.b16 %v3894
  %v4108 = vunpack.c.h.b16 %v3894
  %v4109 = vunpack.c.l.b16 %v3895
  %v4110 = vunpack.c.h.b16 %v3895
  %v4111 = vunpack.c.l.b16 %v3896
  %v4112 = vunpack.c.h.b16 %v3896
  %v4113 = vunpack.c.l.b16 %v3897
  %v4114 = vunpack.c.h.b16 %v3897
  %v4115 = vunpack.c.l.b16 %v3898
  %v4116 = vunpack.c.h.b16 %v3898
  %v4117 = vunpack.c.l.b16 %v3899
  %v4118 = vunpack.c.h.b16 %v3899
  %v4119 = vunpack.c.l.b16 %v3900
  %v4120 = vunpack.c.h.b16 %v3900
  %v4121 = vunpack.c.l.b16 %v3901
  %v4122 = vunpack.c.h.b16 %v3901
  %v4123 = vunpack.c.l.b16 %v3902
  %v4124 = vunpack.c.h.b16 %v3902
  %v4125 = vunpack.c.l.b16 %v3903
  %v4126 = vunpack.c.h.b16 %v3903
  %v4127 = vunpack.c.l.b16 %v3904
  %v4128 = vunpack.c.h.b16 %v3904
  %v4129 = vunpack.c.l.b16 %v3905
  %v4130 = vunpack.c.h.b16 %v3905
  %v4131 = vpack.c.b16 %v4005, %v4003
  %v4132 = vpack.c.b16 %v4006, %v4004
  %v4133 = vpack.c.b16 %v4009, %v4007
  %v4134 = vpack.c.b16 %v4010, %v4008
  %v4135 = vpack.c.b16 %v4013, %v4011
  %v4136 = vpack.c.b16 %v4014, %v4012
  %v4137 = vpack.c.b16 %v4017, %v4015
  %v4138 = vpack.c.b16 %v4018, %v4016
  %v4139 = vpack.c.b16 %v4021, %v4019
  %v4140 = vpack.c.b16 %v4022, %v4020
  %v4141 = vpack.c.b16 %v4025, %v4023
  %v4142 = vpack.c.b16 %v4026, %v4024
  %v4143 = vpack.c.b16 %v4029, %v4027
  %v4144 = vpack.c.b16 %v4030, %v4028
  %v4145 = vpack.c.b16 %v4033, %v4031
  %v4146 = vpack.c.b16 %v4034, %v4032
  %v4147 = vpack.c.b16 %v4037, %v4035
  %v4148 = vpack.c.b16 %v4038, %v4036
  %v4149 = vpack.c.b16 %v4041, %v4039
  %v4150 = vpack.c.b16 %v4042, %v4040
  %v4151 = vpack.c.b16 %v4045, %v4043
  %v4152 = vpack.c.b16 %v4046, %v4044
  %v4153 = vpack.c.b16 %v4049, %v4047
  %v4154 = vpack.c.b16 %v4050, %v4048
  %v4155 = vpack.c.b16 %v4053, %v4051
  %v4156 = vpack.c.b16 %v4054, %v4052
  %v4157 = vpack.c.b16 %v4057, %v4055
  %v4158 = vpack.c.b16 %v4058, %v4056
  %v4159 = vpack.c.b16 %v4061, %v4059
  %v4160 = vpack.c.b16 %v4062, %v4060
  %v4161 = vpack.c.b16 %v4065, %v4063
  %v4162 = vpack.c.b16 %v4066, %v4064
  %v4163 = vpack.c.b16 %v4069, %v4067
  %v4164 = vpack.c.b16 %v4070, %v4068
  %v4165 = vpack.c.b16 %v4073, %v4071
  %v4166 = vpack.c.b16 %v4074, %v4072
  %v4167 = vpack.c.b16 %v4077, %v4075
  %v4168 = vpack.c.b16 %v4078, %v4076
  %v4169 = vpack.c.b16 %v4081, %v4079
  %v4170 = vpack.c.b16 %v4082, %v4080
  %v4171 = vpack.c.b16 %v4085, %v4083
  %v4172 = vpack.c.b16 %v4086, %v4084
  %v4173 = vpack.c.b16 %v4089, %v4087
  %v4174 = vpack.c.b16 %v4090, %v4088
  %v4175 = vpack.c.b16 %v4093, %v4091
  %v4176 = vpack.c.b16 %v4094, %v4092
  %v4177 = vpack.c.b16 %v4097, %v4095
  %v4178 = vpack.c.b16 %v4098, %v4096
  %v4179 = vpack.c.b16 %v4101, %v4099
  %v4180 = vpack.c.b16 %v4102, %v4100
  %v4181 = vpack.c.b16 %v4105, %v4103
  %v4182 = vpack.c.b16 %v4106, %v4104
  %v4183 = vpack.c.b16 %v4109, %v4107
  %v4184 = vpack.c.b16 %v4110, %v4108
  %v4185 = vpack.c.b16 %v4113, %v4111
  %v4186 = vpack.c.b16 %v4114, %v4112
  %v4187 = vpack.c.b16 %v4117, %v4115
  %v4188 = vpack.c.b16 %v4118, %v4116
  %v4189 = vpack.c.b16 %v4121, %v4119
  %v4190 = vpack.c.b16 %v4122, %v4120
  %v4191 = vpack.c.b16 %v4125, %v4123
  %v4192 = vpack.c.b16 %v4126, %v4124
  %v4193 = vpack.c.b16 %v4129, %v4127
  %v4194 = vpack.c.b16 %v4130, %v4128
  %4259 = vmatprep.subr.bf16.mxu0 %v4132
  %4260 = vmatpush1.bf16.msra.mxu0 %v4131
  %4261 = vmatprep.subr.bf16.mxu0 %v4134
  %4262 = vmatpush1.bf16.msra.mxu0 %v4133
  %4263 = vmatprep.subr.bf16.mxu0 %v4136
  %4264 = vmatpush1.bf16.msra.mxu0 %v4135
  %4265 = vmatprep.subr.bf16.mxu0 %v4138
  %4266 = vmatpush1.bf16.msra.mxu0 %v4137
  %4267 = vmatprep.subr.bf16.mxu0 %v4140
  %4268 = vmatpush1.bf16.msra.mxu0 %v4139
  %4269 = vmatprep.subr.bf16.mxu0 %v4142
  %4270 = vmatpush1.bf16.msra.mxu0 %v4141
  %4271 = vmatprep.subr.bf16.mxu0 %v4144
  %4272 = vmatpush1.bf16.msra.mxu0 %v4143
  %4273 = vmatprep.subr.bf16.mxu0 %v4146
  %4274 = vmatpush1.bf16.msra.mxu0 %v4145
  %4275 = vmatprep.subr.bf16.mxu0 %v4148
  %4276 = vmatpush1.bf16.msra.mxu0 %v4147
  %4277 = vmatprep.subr.bf16.mxu0 %v4150
  %4278 = vmatpush1.bf16.msra.mxu0 %v4149
  %4279 = vmatprep.subr.bf16.mxu0 %v4152
  %4280 = vmatpush1.bf16.msra.mxu0 %v4151
  %4281 = vmatprep.subr.bf16.mxu0 %v4154
  %4282 = vmatpush1.bf16.msra.mxu0 %v4153
  %4283 = vmatprep.subr.bf16.mxu0 %v4156
  %4284 = vmatpush1.bf16.msra.mxu0 %v4155
  %4285 = vmatprep.subr.bf16.mxu0 %v4158
  %4286 = vmatpush1.bf16.msra.mxu0 %v4157
  %4287 = vmatprep.subr.bf16.mxu0 %v4160
  %4288 = vmatpush1.bf16.msra.mxu0 %v4159
  %4289 = vmatprep.subr.bf16.mxu0 %v4162
  %4290 = vmatpush1.bf16.msra.mxu0 %v4161
  %4291 = vmatprep.mubr.bf16.mxu0 %v3932
  %4292 = vmatmul.mubr.bf16.gmra.mrb[0].mxu0 %v3931
  %v4293 = vpop.f32.mrb[0].mxu0
  %v4294 = vadd.f32 0.0, %v4293
  %v4295 = vpop.f32.mrb[0].mxu0
  %v4296 = vadd.f32 0.0, %v4295
  %v4297 = vpop.f32.mrb[0].mxu0
  %v4298 = vpop.f32.mrb[0].mxu0
  %4299 = vdwg.mxu0
  %4300 = vmatprep.subr.bf16.mxu0 %v4164
  %4301 = vmatpush1.bf16.msra.mxu0 %v4163
  %4302 = vmatprep.subr.bf16.mxu0 %v4166
  %4303 = vmatpush1.bf16.msra.mxu0 %v4165
  %4304 = vmatprep.subr.bf16.mxu0 %v4168
  %4305 = vmatpush1.bf16.msra.mxu0 %v4167
  %4306 = vmatprep.subr.bf16.mxu0 %v4170
  %4307 = vmatpush1.bf16.msra.mxu0 %v4169
  %4308 = vmatprep.subr.bf16.mxu0 %v4172
  %4309 = vmatpush1.bf16.msra.mxu0 %v4171
  %4310 = vmatprep.subr.bf16.mxu0 %v4174
  %4311 = vmatpush1.bf16.msra.mxu0 %v4173
  %4312 = vmatprep.subr.bf16.mxu0 %v4176
  %4313 = vmatpush1.bf16.msra.mxu0 %v4175
  %4314 = vmatprep.subr.bf16.mxu0 %v4178
  %4315 = vmatpush1.bf16.msra.mxu0 %v4177
  %4316 = vmatprep.subr.bf16.mxu0 %v4180
  %4317 = vmatpush1.bf16.msra.mxu0 %v4179
  %4318 = vmatprep.subr.bf16.mxu0 %v4182
  %4319 = vmatpush1.bf16.msra.mxu0 %v4181
  %4320 = vmatprep.subr.bf16.mxu0 %v4184
  %4321 = vmatpush1.bf16.msra.mxu0 %v4183
  %4322 = vmatprep.subr.bf16.mxu0 %v4186
  %4323 = vmatpush1.bf16.msra.mxu0 %v4185
  %4324 = vmatprep.subr.bf16.mxu0 %v4188
  %4325 = vmatpush1.bf16.msra.mxu0 %v4187
  %4326 = vmatprep.subr.bf16.mxu0 %v4190
  %4327 = vmatpush1.bf16.msra.mxu0 %v4189
  %4328 = vmatprep.subr.bf16.mxu0 %v4192
  %4329 = vmatpush1.bf16.msra.mxu0 %v4191
  %4330 = vmatprep.subr.bf16.mxu0 %v4194
  %4331 = vmatpush1.bf16.msra.mxu0 %v4193
  %4332 = vmatprep.mubr.bf16.mxu0 %v3934
  %4333 = vmatmul.mubr.bf16.gmra.mrb[0].mxu0 %v3933
  %v4334 = vpop.f32.mrb[0].mxu0
  %v4335 = vadd.f32 %v4294, %v4334
  %v4336 = vpop.f32.mrb[0].mxu0
  %v4337 = vadd.f32 %v4296, %v4336
  %v4338 = vpop.f32.mrb[0].mxu0
  %v4339 = vpop.f32.mrb[0].mxu0
  %4340 = vdwg.mxu0
  %v4341 = vrot.slane %v3918, 7
  %v4342 = vsel %vm3923, %v4341, %v3914
  %v4343 = vrot.slane %v3919, 7
  %v4344 = vsel %vm3923, %v4343, %v3915
  %v4345 = vrot.slane %v3920, 7
  %v4346 = vsel %vm3923, %v4345, %v3916
  %v4347 = vrot.slane %v3921, 7
  %v4348 = vsel %vm3923, %v4347, %v3917
  %v4349 = vpack.c.b16 %v4342, %v4342
  %v4350 = vpack.c.b16 %v4344, %v4344
  %v4351 = vpack.c.b16 %v4346, %v4346
  %v4352 = vpack.c.b16 %v4348, %v4348
  %v4421 = vunpack.c.l.b16 %v3777
  %v4422 = vunpack.c.h.b16 %v3777
  %v4423 = vunpack.c.l.b16 %v3778
  %v4424 = vunpack.c.h.b16 %v3778
  %v4425 = vunpack.c.l.b16 %v3779
  %v4426 = vunpack.c.h.b16 %v3779
  %v4427 = vunpack.c.l.b16 %v3780
  %v4428 = vunpack.c.h.b16 %v3780
  %v4429 = vunpack.c.l.b16 %v3781
  %v4430 = vunpack.c.h.b16 %v3781
  %v4431 = vunpack.c.l.b16 %v3782
  %v4432 = vunpack.c.h.b16 %v3782
  %v4433 = vunpack.c.l.b16 %v3783
  %v4434 = vunpack.c.h.b16 %v3783
  %v4435 = vunpack.c.l.b16 %v3784
  %v4436 = vunpack.c.h.b16 %v3784
  %v4437 = vunpack.c.l.b16 %v3785
  %v4438 = vunpack.c.h.b16 %v3785
  %v4439 = vunpack.c.l.b16 %v3786
  %v4440 = vunpack.c.h.b16 %v3786
  %v4441 = vunpack.c.l.b16 %v3787
  %v4442 = vunpack.c.h.b16 %v3787
  %v4443 = vunpack.c.l.b16 %v3788
  %v4444 = vunpack.c.h.b16 %v3788
  %v4445 = vunpack.c.l.b16 %v3789
  %v4446 = vunpack.c.h.b16 %v3789
  %v4447 = vunpack.c.l.b16 %v3790
  %v4448 = vunpack.c.h.b16 %v3790
  %v4449 = vunpack.c.l.b16 %v3791
  %v4450 = vunpack.c.h.b16 %v3791
  %v4451 = vunpack.c.l.b16 %v3792
  %v4452 = vunpack.c.h.b16 %v3792
  %v4453 = vunpack.c.l.b16 %v3793
  %v4454 = vunpack.c.h.b16 %v3793
  %v4455 = vunpack.c.l.b16 %v3794
  %v4456 = vunpack.c.h.b16 %v3794
  %v4457 = vunpack.c.l.b16 %v3795
  %v4458 = vunpack.c.h.b16 %v3795
  %v4459 = vunpack.c.l.b16 %v3796
  %v4460 = vunpack.c.h.b16 %v3796
  %v4461 = vunpack.c.l.b16 %v3797
  %v4462 = vunpack.c.h.b16 %v3797
  %v4463 = vunpack.c.l.b16 %v3798
  %v4464 = vunpack.c.h.b16 %v3798
  %v4465 = vunpack.c.l.b16 %v3799
  %v4466 = vunpack.c.h.b16 %v3799
  %v4467 = vunpack.c.l.b16 %v3800
  %v4468 = vunpack.c.h.b16 %v3800
  %v4469 = vunpack.c.l.b16 %v3801
  %v4470 = vunpack.c.h.b16 %v3801
  %v4471 = vunpack.c.l.b16 %v3802
  %v4472 = vunpack.c.h.b16 %v3802
  %v4473 = vunpack.c.l.b16 %v3803
  %v4474 = vunpack.c.h.b16 %v3803
  %v4475 = vunpack.c.l.b16 %v3804
  %v4476 = vunpack.c.h.b16 %v3804
  %v4477 = vunpack.c.l.b16 %v3805
  %v4478 = vunpack.c.h.b16 %v3805
  %v4479 = vunpack.c.l.b16 %v3806
  %v4480 = vunpack.c.h.b16 %v3806
  %v4481 = vunpack.c.l.b16 %v3807
  %v4482 = vunpack.c.h.b16 %v3807
  %v4483 = vunpack.c.l.b16 %v3808
  %v4484 = vunpack.c.h.b16 %v3808
  %v4485 = vunpack.c.l.b16 %v3809
  %v4486 = vunpack.c.h.b16 %v3809
  %v4487 = vunpack.c.l.b16 %v3810
  %v4488 = vunpack.c.h.b16 %v3810
  %v4489 = vunpack.c.l.b16 %v3811
  %v4490 = vunpack.c.h.b16 %v3811
  %v4491 = vunpack.c.l.b16 %v3812
  %v4492 = vunpack.c.h.b16 %v3812
  %v4493 = vunpack.c.l.b16 %v3813
  %v4494 = vunpack.c.h.b16 %v3813
  %v4495 = vunpack.c.l.b16 %v3814
  %v4496 = vunpack.c.h.b16 %v3814
  %v4497 = vunpack.c.l.b16 %v3815
  %v4498 = vunpack.c.h.b16 %v3815
  %v4499 = vunpack.c.l.b16 %v3816
  %v4500 = vunpack.c.h.b16 %v3816
  %v4501 = vunpack.c.l.b16 %v3817
  %v4502 = vunpack.c.h.b16 %v3817
  %v4503 = vunpack.c.l.b16 %v3818
  %v4504 = vunpack.c.h.b16 %v3818
  %v4505 = vunpack.c.l.b16 %v3819
  %v4506 = vunpack.c.h.b16 %v3819
  %v4507 = vunpack.c.l.b16 %v3820
  %v4508 = vunpack.c.h.b16 %v3820
  %v4509 = vunpack.c.l.b16 %v3821
  %v4510 = vunpack.c.h.b16 %v3821
  %v4511 = vunpack.c.l.b16 %v3822
  %v4512 = vunpack.c.h.b16 %v3822
  %v4513 = vunpack.c.l.b16 %v3823
  %v4514 = vunpack.c.h.b16 %v3823
  %v4515 = vunpack.c.l.b16 %v3824
  %v4516 = vunpack.c.h.b16 %v3824
  %v4517 = vunpack.c.l.b16 %v3825
  %v4518 = vunpack.c.h.b16 %v3825
  %v4519 = vunpack.c.l.b16 %v3826
  %v4520 = vunpack.c.h.b16 %v3826
  %v4521 = vunpack.c.l.b16 %v3827
  %v4522 = vunpack.c.h.b16 %v3827
  %v4523 = vunpack.c.l.b16 %v3828
  %v4524 = vunpack.c.h.b16 %v3828
  %v4525 = vunpack.c.l.b16 %v3829
  %v4526 = vunpack.c.h.b16 %v3829
  %v4527 = vunpack.c.l.b16 %v3830
  %v4528 = vunpack.c.h.b16 %v3830
  %v4529 = vunpack.c.l.b16 %v3831
  %v4530 = vunpack.c.h.b16 %v3831
  %v4531 = vunpack.c.l.b16 %v3832
  %v4532 = vunpack.c.h.b16 %v3832
  %v4533 = vunpack.c.l.b16 %v3833
  %v4534 = vunpack.c.h.b16 %v3833
  %v4535 = vunpack.c.l.b16 %v3834
  %v4536 = vunpack.c.h.b16 %v3834
  %v4537 = vunpack.c.l.b16 %v3835
  %v4538 = vunpack.c.h.b16 %v3835
  %v4539 = vunpack.c.l.b16 %v3836
  %v4540 = vunpack.c.h.b16 %v3836
  %v4541 = vunpack.c.l.b16 %v3837
  %v4542 = vunpack.c.h.b16 %v3837
  %v4543 = vunpack.c.l.b16 %v3838
  %v4544 = vunpack.c.h.b16 %v3838
  %v4545 = vunpack.c.l.b16 %v3839
  %v4546 = vunpack.c.h.b16 %v3839
  %v4547 = vunpack.c.l.b16 %v3840
  %v4548 = vunpack.c.h.b16 %v3840
  %v4549 = vpack.c.b16 %v4423, %v4421
  %v4550 = vpack.c.b16 %v4424, %v4422
  %v4551 = vpack.c.b16 %v4427, %v4425
  %v4552 = vpack.c.b16 %v4428, %v4426
  %v4553 = vpack.c.b16 %v4431, %v4429
  %v4554 = vpack.c.b16 %v4432, %v4430
  %v4555 = vpack.c.b16 %v4435, %v4433
  %v4556 = vpack.c.b16 %v4436, %v4434
  %v4557 = vpack.c.b16 %v4439, %v4437
  %v4558 = vpack.c.b16 %v4440, %v4438
  %v4559 = vpack.c.b16 %v4443, %v4441
  %v4560 = vpack.c.b16 %v4444, %v4442
  %v4561 = vpack.c.b16 %v4447, %v4445
  %v4562 = vpack.c.b16 %v4448, %v4446
  %v4563 = vpack.c.b16 %v4451, %v4449
  %v4564 = vpack.c.b16 %v4452, %v4450
  %v4565 = vpack.c.b16 %v4455, %v4453
  %v4566 = vpack.c.b16 %v4456, %v4454
  %v4567 = vpack.c.b16 %v4459, %v4457
  %v4568 = vpack.c.b16 %v4460, %v4458
  %v4569 = vpack.c.b16 %v4463, %v4461
  %v4570 = vpack.c.b16 %v4464, %v4462
  %v4571 = vpack.c.b16 %v4467, %v4465
  %v4572 = vpack.c.b16 %v4468, %v4466
  %v4573 = vpack.c.b16 %v4471, %v4469
  %v4574 = vpack.c.b16 %v4472, %v4470
  %v4575 = vpack.c.b16 %v4475, %v4473
  %v4576 = vpack.c.b16 %v4476, %v4474
  %v4577 = vpack.c.b16 %v4479, %v4477
  %v4578 = vpack.c.b16 %v4480, %v4478
  %v4579 = vpack.c.b16 %v4483, %v4481
  %v4580 = vpack.c.b16 %v4484, %v4482
  %v4581 = vpack.c.b16 %v4487, %v4485
  %v4582 = vpack.c.b16 %v4488, %v4486
  %v4583 = vpack.c.b16 %v4491, %v4489
  %v4584 = vpack.c.b16 %v4492, %v4490
  %v4585 = vpack.c.b16 %v4495, %v4493
  %v4586 = vpack.c.b16 %v4496, %v4494
  %v4587 = vpack.c.b16 %v4499, %v4497
  %v4588 = vpack.c.b16 %v4500, %v4498
  %v4589 = vpack.c.b16 %v4503, %v4501
  %v4590 = vpack.c.b16 %v4504, %v4502
  %v4591 = vpack.c.b16 %v4507, %v4505
  %v4592 = vpack.c.b16 %v4508, %v4506
  %v4593 = vpack.c.b16 %v4511, %v4509
  %v4594 = vpack.c.b16 %v4512, %v4510
  %v4595 = vpack.c.b16 %v4515, %v4513
  %v4596 = vpack.c.b16 %v4516, %v4514
  %v4597 = vpack.c.b16 %v4519, %v4517
  %v4598 = vpack.c.b16 %v4520, %v4518
  %v4599 = vpack.c.b16 %v4523, %v4521
  %v4600 = vpack.c.b16 %v4524, %v4522
  %v4601 = vpack.c.b16 %v4527, %v4525
  %v4602 = vpack.c.b16 %v4528, %v4526
  %v4603 = vpack.c.b16 %v4531, %v4529
  %v4604 = vpack.c.b16 %v4532, %v4530
  %v4605 = vpack.c.b16 %v4535, %v4533
  %v4606 = vpack.c.b16 %v4536, %v4534
  %v4607 = vpack.c.b16 %v4539, %v4537
  %v4608 = vpack.c.b16 %v4540, %v4538
  %v4609 = vpack.c.b16 %v4543, %v4541
  %v4610 = vpack.c.b16 %v4544, %v4542
  %v4611 = vpack.c.b16 %v4547, %v4545
  %v4612 = vpack.c.b16 %v4548, %v4546
  %4677 = vmatprep.subr.bf16.mxu0 %v4550
  %4678 = vmatpush1.bf16.msra.mxu0 %v4549
  %4679 = vmatprep.subr.bf16.mxu0 %v4552
  %4680 = vmatpush1.bf16.msra.mxu0 %v4551
  %4681 = vmatprep.subr.bf16.mxu0 %v4554
  %4682 = vmatpush1.bf16.msra.mxu0 %v4553
  %4683 = vmatprep.subr.bf16.mxu0 %v4556
  %4684 = vmatpush1.bf16.msra.mxu0 %v4555
  %4685 = vmatprep.subr.bf16.mxu0 %v4558
  %4686 = vmatpush1.bf16.msra.mxu0 %v4557
  %4687 = vmatprep.subr.bf16.mxu0 %v4560
  %4688 = vmatpush1.bf16.msra.mxu0 %v4559
  %4689 = vmatprep.subr.bf16.mxu0 %v4562
  %4690 = vmatpush1.bf16.msra.mxu0 %v4561
  %4691 = vmatprep.subr.bf16.mxu0 %v4564
  %4692 = vmatpush1.bf16.msra.mxu0 %v4563
  %4693 = vmatprep.subr.bf16.mxu0 %v4566
  %4694 = vmatpush1.bf16.msra.mxu0 %v4565
  %4695 = vmatprep.subr.bf16.mxu0 %v4568
  %4696 = vmatpush1.bf16.msra.mxu0 %v4567
  %4697 = vmatprep.subr.bf16.mxu0 %v4570
  %4698 = vmatpush1.bf16.msra.mxu0 %v4569
  %4699 = vmatprep.subr.bf16.mxu0 %v4572
  %4700 = vmatpush1.bf16.msra.mxu0 %v4571
  %4701 = vmatprep.subr.bf16.mxu0 %v4574
  %4702 = vmatpush1.bf16.msra.mxu0 %v4573
  %4703 = vmatprep.subr.bf16.mxu0 %v4576
  %4704 = vmatpush1.bf16.msra.mxu0 %v4575
  %4705 = vmatprep.subr.bf16.mxu0 %v4578
  %4706 = vmatpush1.bf16.msra.mxu0 %v4577
  %4707 = vmatprep.subr.bf16.mxu0 %v4580
  %4708 = vmatpush1.bf16.msra.mxu0 %v4579
  %4709 = vmatprep.mubr.bf16.mxu0 %v4350
  %4710 = vmatmul.mubr.bf16.gmra.mrb[0].mxu0 %v4349
  %v4711 = vpop.f32.mrb[0].mxu0
  %v4712 = vadd.f32 %v4335, %v4711
  %v4713 = vpop.f32.mrb[0].mxu0
  %v4714 = vadd.f32 %v4337, %v4713
  %v4715 = vpop.f32.mrb[0].mxu0
  %v4716 = vpop.f32.mrb[0].mxu0
  %4717 = vdwg.mxu0
  %4718 = vmatprep.subr.bf16.mxu0 %v4582
  %4719 = vmatpush1.bf16.msra.mxu0 %v4581
  %4720 = vmatprep.subr.bf16.mxu0 %v4584
  %4721 = vmatpush1.bf16.msra.mxu0 %v4583
  %4722 = vmatprep.subr.bf16.mxu0 %v4586
  %4723 = vmatpush1.bf16.msra.mxu0 %v4585
  %4724 = vmatprep.subr.bf16.mxu0 %v4588
  %4725 = vmatpush1.bf16.msra.mxu0 %v4587
  %4726 = vmatprep.subr.bf16.mxu0 %v4590
  %4727 = vmatpush1.bf16.msra.mxu0 %v4589
  %4728 = vmatprep.subr.bf16.mxu0 %v4592
  %4729 = vmatpush1.bf16.msra.mxu0 %v4591
  %4730 = vmatprep.subr.bf16.mxu0 %v4594
  %4731 = vmatpush1.bf16.msra.mxu0 %v4593
  %4732 = vmatprep.subr.bf16.mxu0 %v4596
  %4733 = vmatpush1.bf16.msra.mxu0 %v4595
  %4734 = vmatprep.subr.bf16.mxu0 %v4598
  %4735 = vmatpush1.bf16.msra.mxu0 %v4597
  %4736 = vmatprep.subr.bf16.mxu0 %v4600
  %4737 = vmatpush1.bf16.msra.mxu0 %v4599
  %4738 = vmatprep.subr.bf16.mxu0 %v4602
  %4739 = vmatpush1.bf16.msra.mxu0 %v4601
  %4740 = vmatprep.subr.bf16.mxu0 %v4604
  %4741 = vmatpush1.bf16.msra.mxu0 %v4603
  %4742 = vmatprep.subr.bf16.mxu0 %v4606
  %4743 = vmatpush1.bf16.msra.mxu0 %v4605
  %4744 = vmatprep.subr.bf16.mxu0 %v4608
  %4745 = vmatpush1.bf16.msra.mxu0 %v4607
  %4746 = vmatprep.subr.bf16.mxu0 %v4610
  %4747 = vmatpush1.bf16.msra.mxu0 %v4609
  %4748 = vmatprep.subr.bf16.mxu0 %v4612
  %4749 = vmatpush1.bf16.msra.mxu0 %v4611
  %4750 = vmatprep.mubr.bf16.mxu0 %v4352
  %4751 = vmatmul.mubr.bf16.gmra.mrb[0].mxu0 %v4351
  %v4752 = vpop.f32.mrb[0].mxu0
  %v4753 = vadd.f32 %v4712, %v4752
  %v4754 = vpop.f32.mrb[0].mxu0
  %v4755 = vadd.f32 %v4714, %v4754
  %v4756 = vpop.f32.mrb[0].mxu0
  %v4757 = vpop.f32.mrb[0].mxu0
  %4758 = vdwg.mxu0
  %v4759 = vld [vmem:[#allocation2] sm:$0x2]
  %v4760 = vld [vmem:[#allocation2 + $0x8] sm:$0x2]
  %v4761 = vld [vmem:[#allocation2 + $0x10] sm:$0x2]
  %v4762 = vld [vmem:[#allocation2 + $0x18] sm:$0x2]
  %v4763 = vld [vmem:[#allocation2 + $0x20] sm:$0x2]
  %v4764 = vld [vmem:[#allocation2 + $0x28] sm:$0x2]
  %v4765 = vld [vmem:[#allocation2 + $0x30] sm:$0x2]
  %v4766 = vld [vmem:[#allocation2 + $0x38] sm:$0x2]
  %s4767 = scalar_lea.vmem %s4, 1024
  %v4768 = vld [vmem:[%s4767] sm:$0xff]
  %v4769 = vld [vmem:[%s4767 + $0x8] sm:$0xff]
  %v4770 = vld [vmem:[%s4767 + $0x10] sm:$0xff]
  %v4771 = vld [vmem:[%s4767 + $0x18] sm:$0xff]
  %v4772 = vld [vmem:[%s4767 + $0x20] sm:$0xff]
  %v4773 = vld [vmem:[%s4767 + $0x28] sm:$0xff]
  %v4774 = vld [vmem:[%s4767 + $0x30] sm:$0xff]
  %v4775 = vld [vmem:[%s4767 + $0x38] sm:$0xff]
  %v4776 = vld [vmem:[%s4767 + $0x40] sm:$0xff]
  %v4777 = vld [vmem:[%s4767 + $0x48] sm:$0xff]
  %v4778 = vld [vmem:[%s4767 + $0x50] sm:$0xff]
  %v4779 = vld [vmem:[%s4767 + $0x58] sm:$0xff]
  %v4780 = vld [vmem:[%s4767 + $0x60] sm:$0xff]
  %v4781 = vld [vmem:[%s4767 + $0x68] sm:$0xff]
  %v4782 = vld [vmem:[%s4767 + $0x70] sm:$0xff]
  %v4783 = vld [vmem:[%s4767 + $0x78] sm:$0xff]
  %v4784 = vld [vmem:[%s4767 + $0x80] sm:$0xff]
  %v4785 = vld [vmem:[%s4767 + $0x88] sm:$0xff]
  %v4786 = vld [vmem:[%s4767 + $0x90] sm:$0xff]
  %v4787 = vld [vmem:[%s4767 + $0x98] sm:$0xff]
  %v4788 = vld [vmem:[%s4767 + $0xa0] sm:$0xff]
  %v4789 = vld [vmem:[%s4767 + $0xa8] sm:$0xff]
  %v4790 = vld [vmem:[%s4767 + $0xb0] sm:$0xff]
  %v4791 = vld [vmem:[%s4767 + $0xb8] sm:$0xff]
  %v4792 = vld [vmem:[%s4767 + $0xc0] sm:$0xff]
  %v4793 = vld [vmem:[%s4767 + $0xc8] sm:$0xff]
  %v4794 = vld [vmem:[%s4767 + $0xd0] sm:$0xff]
  %v4795 = vld [vmem:[%s4767 + $0xd8] sm:$0xff]
  %v4796 = vld [vmem:[%s4767 + $0xe0] sm:$0xff]
  %v4797 = vld [vmem:[%s4767 + $0xe8] sm:$0xff]
  %v4798 = vld [vmem:[%s4767 + $0xf0] sm:$0xff]
  %v4799 = vld [vmem:[%s4767 + $0xf8] sm:$0xff]
  %v4800 = vld [vmem:[%s4767 + $0x100] sm:$0xff]
  %v4801 = vld [vmem:[%s4767 + $0x108] sm:$0xff]
  %v4802 = vld [vmem:[%s4767 + $0x110] sm:$0xff]
  %v4803 = vld [vmem:[%s4767 + $0x118] sm:$0xff]
  %v4804 = vld [vmem:[%s4767 + $0x120] sm:$0xff]
  %v4805 = vld [vmem:[%s4767 + $0x128] sm:$0xff]
  %v4806 = vld [vmem:[%s4767 + $0x130] sm:$0xff]
  %v4807 = vld [vmem:[%s4767 + $0x138] sm:$0xff]
  %v4808 = vld [vmem:[%s4767 + $0x140] sm:$0xff]
  %v4809 = vld [vmem:[%s4767 + $0x148] sm:$0xff]
  %v4810 = vld [vmem:[%s4767 + $0x150] sm:$0xff]
  %v4811 = vld [vmem:[%s4767 + $0x158] sm:$0xff]
  %v4812 = vld [vmem:[%s4767 + $0x160] sm:$0xff]
  %v4813 = vld [vmem:[%s4767 + $0x168] sm:$0xff]
  %v4814 = vld [vmem:[%s4767 + $0x170] sm:$0xff]
  %v4815 = vld [vmem:[%s4767 + $0x178] sm:$0xff]
  %v4816 = vld [vmem:[%s4767 + $0x180] sm:$0xff]
  %v4817 = vld [vmem:[%s4767 + $0x188] sm:$0xff]
  %v4818 = vld [vmem:[%s4767 + $0x190] sm:$0xff]
  %v4819 = vld [vmem:[%s4767 + $0x198] sm:$0xff]
  %v4820 = vld [vmem:[%s4767 + $0x1a0] sm:$0xff]
  %v4821 = vld [vmem:[%s4767 + $0x1a8] sm:$0xff]
  %v4822 = vld [vmem:[%s4767 + $0x1b0] sm:$0xff]
  %v4823 = vld [vmem:[%s4767 + $0x1b8] sm:$0xff]
  %v4824 = vld [vmem:[%s4767 + $0x1c0] sm:$0xff]
  %v4825 = vld [vmem:[%s4767 + $0x1c8] sm:$0xff]
  %v4826 = vld [vmem:[%s4767 + $0x1d0] sm:$0xff]
  %v4827 = vld [vmem:[%s4767 + $0x1d8] sm:$0xff]
  %v4828 = vld [vmem:[%s4767 + $0x1e0] sm:$0xff]
  %v4829 = vld [vmem:[%s4767 + $0x1e8] sm:$0xff]
  %v4830 = vld [vmem:[%s4767 + $0x1f0] sm:$0xff]
  %v4831 = vld [vmem:[%s4767 + $0x1f8] sm:$0xff]
  %v4840 = vunpack.c.l.b16 %v4759
  %v4841 = vunpack.c.l.b16 %v4760
  %v4842 = vunpack.c.l.b16 %v4761
  %v4843 = vunpack.c.l.b16 %v4762
  %v4844 = vunpack.c.l.b16 %v4763
  %v4845 = vunpack.c.l.b16 %v4764
  %v4846 = vunpack.c.l.b16 %v4765
  %v4847 = vunpack.c.l.b16 %v4766
  %v4848 = vrot.slane %v4840, 2
  %v4849 = vrot.slane %v4844, 1
  %v4850 = vsel %vm3923, %v4849, %v4848
  %v4851 = vrot.slane %v4841, 2
  %v4852 = vrot.slane %v4845, 1
  %v4853 = vsel %vm3923, %v4852, %v4851
  %v4854 = vrot.slane %v4842, 2
  %v4855 = vrot.slane %v4846, 1
  %v4856 = vsel %vm3923, %v4855, %v4854
  %v4857 = vrot.slane %v4843, 2
  %v4858 = vrot.slane %v4847, 1
  %v4859 = vsel %vm3923, %v4858, %v4857
  %v4860 = vpack.c.b16 %v4850, %v4850
  %v4861 = vpack.c.b16 %v4853, %v4853
  %v4862 = vpack.c.b16 %v4856, %v4856
  %v4863 = vpack.c.b16 %v4859, %v4859
  %v4932 = vunpack.c.l.b16 %v4768
  %v4933 = vunpack.c.h.b16 %v4768
  %v4934 = vunpack.c.l.b16 %v4769
  %v4935 = vunpack.c.h.b16 %v4769
  %v4936 = vunpack.c.l.b16 %v4770
  %v4937 = vunpack.c.h.b16 %v4770
  %v4938 = vunpack.c.l.b16 %v4771
  %v4939 = vunpack.c.h.b16 %v4771
  %v4940 = vunpack.c.l.b16 %v4772
  %v4941 = vunpack.c.h.b16 %v4772
  %v4942 = vunpack.c.l.b16 %v4773
  %v4943 = vunpack.c.h.b16 %v4773
  %v4944 = vunpack.c.l.b16 %v4774
  %v4945 = vunpack.c.h.b16 %v4774
  %v4946 = vunpack.c.l.b16 %v4775
  %v4947 = vunpack.c.h.b16 %v4775
  %v4948 = vunpack.c.l.b16 %v4776
  %v4949 = vunpack.c.h.b16 %v4776
  %v4950 = vunpack.c.l.b16 %v4777
  %v4951 = vunpack.c.h.b16 %v4777
  %v4952 = vunpack.c.l.b16 %v4778
  %v4953 = vunpack.c.h.b16 %v4778
  %v4954 = vunpack.c.l.b16 %v4779
  %v4955 = vunpack.c.h.b16 %v4779
  %v4956 = vunpack.c.l.b16 %v4780
  %v4957 = vunpack.c.h.b16 %v4780
  %v4958 = vunpack.c.l.b16 %v4781
  %v4959 = vunpack.c.h.b16 %v4781
  %v4960 = vunpack.c.l.b16 %v4782
  %v4961 = vunpack.c.h.b16 %v4782
  %v4962 = vunpack.c.l.b16 %v4783
  %v4963 = vunpack.c.h.b16 %v4783
  %v4964 = vunpack.c.l.b16 %v4784
  %v4965 = vunpack.c.h.b16 %v4784
  %v4966 = vunpack.c.l.b16 %v4785
  %v4967 = vunpack.c.h.b16 %v4785
  %v4968 = vunpack.c.l.b16 %v4786
  %v4969 = vunpack.c.h.b16 %v4786
  %v4970 = vunpack.c.l.b16 %v4787
  %v4971 = vunpack.c.h.b16 %v4787
  %v4972 = vunpack.c.l.b16 %v4788
  %v4973 = vunpack.c.h.b16 %v4788
  %v4974 = vunpack.c.l.b16 %v4789
  %v4975 = vunpack.c.h.b16 %v4789
  %v4976 = vunpack.c.l.b16 %v4790
  %v4977 = vunpack.c.h.b16 %v4790
  %v4978 = vunpack.c.l.b16 %v4791
  %v4979 = vunpack.c.h.b16 %v4791
  %v4980 = vunpack.c.l.b16 %v4792
  %v4981 = vunpack.c.h.b16 %v4792
  %v4982 = vunpack.c.l.b16 %v4793
  %v4983 = vunpack.c.h.b16 %v4793
  %v4984 = vunpack.c.l.b16 %v4794
  %v4985 = vunpack.c.h.b16 %v4794
  %v4986 = vunpack.c.l.b16 %v4795
  %v4987 = vunpack.c.h.b16 %v4795
  %v4988 = vunpack.c.l.b16 %v4796
  %v4989 = vunpack.c.h.b16 %v4796
  %v4990 = vunpack.c.l.b16 %v4797
  %v4991 = vunpack.c.h.b16 %v4797
  %v4992 = vunpack.c.l.b16 %v4798
  %v4993 = vunpack.c.h.b16 %v4798
  %v4994 = vunpack.c.l.b16 %v4799
  %v4995 = vunpack.c.h.b16 %v4799
  %v4996 = vunpack.c.l.b16 %v4800
  %v4997 = vunpack.c.h.b16 %v4800
  %v4998 = vunpack.c.l.b16 %v4801
  %v4999 = vunpack.c.h.b16 %v4801
  %v5000 = vunpack.c.l.b16 %v4802
  %v5001 = vunpack.c.h.b16 %v4802
  %v5002 = vunpack.c.l.b16 %v4803
  %v5003 = vunpack.c.h.b16 %v4803
  %v5004 = vunpack.c.l.b16 %v4804
  %v5005 = vunpack.c.h.b16 %v4804
  %v5006 = vunpack.c.l.b16 %v4805
  %v5007 = vunpack.c.h.b16 %v4805
  %v5008 = vunpack.c.l.b16 %v4806
  %v5009 = vunpack.c.h.b16 %v4806
  %v5010 = vunpack.c.l.b16 %v4807
  %v5011 = vunpack.c.h.b16 %v4807
  %v5012 = vunpack.c.l.b16 %v4808
  %v5013 = vunpack.c.h.b16 %v4808
  %v5014 = vunpack.c.l.b16 %v4809
  %v5015 = vunpack.c.h.b16 %v4809
  %v5016 = vunpack.c.l.b16 %v4810
  %v5017 = vunpack.c.h.b16 %v4810
  %v5018 = vunpack.c.l.b16 %v4811
  %v5019 = vunpack.c.h.b16 %v4811
  %v5020 = vunpack.c.l.b16 %v4812
  %v5021 = vunpack.c.h.b16 %v4812
  %v5022 = vunpack.c.l.b16 %v4813
  %v5023 = vunpack.c.h.b16 %v4813
  %v5024 = vunpack.c.l.b16 %v4814
  %v5025 = vunpack.c.h.b16 %v4814
  %v5026 = vunpack.c.l.b16 %v4815
  %v5027 = vunpack.c.h.b16 %v4815
  %v5028 = vunpack.c.l.b16 %v4816
  %v5029 = vunpack.c.h.b16 %v4816
  %v5030 = vunpack.c.l.b16 %v4817
  %v5031 = vunpack.c.h.b16 %v4817
  %v5032 = vunpack.c.l.b16 %v4818
  %v5033 = vunpack.c.h.b16 %v4818
  %v5034 = vunpack.c.l.b16 %v4819
  %v5035 = vunpack.c.h.b16 %v4819
  %v5036 = vunpack.c.l.b16 %v4820
  %v5037 = vunpack.c.h.b16 %v4820
  %v5038 = vunpack.c.l.b16 %v4821
  %v5039 = vunpack.c.h.b16 %v4821
  %v5040 = vunpack.c.l.b16 %v4822
  %v5041 = vunpack.c.h.b16 %v4822
  %v5042 = vunpack.c.l.b16 %v4823
  %v5043 = vunpack.c.h.b16 %v4823
  %v5044 = vunpack.c.l.b16 %v4824
  %v5045 = vunpack.c.h.b16 %v4824
  %v5046 = vunpack.c.l.b16 %v4825
  %v5047 = vunpack.c.h.b16 %v4825
  %v5048 = vunpack.c.l.b16 %v4826
  %v5049 = vunpack.c.h.b16 %v4826
  %v5050 = vunpack.c.l.b16 %v4827
  %v5051 = vunpack.c.h.b16 %v4827
  %v5052 = vunpack.c.l.b16 %v4828
  %v5053 = vunpack.c.h.b16 %v4828
  %v5054 = vunpack.c.l.b16 %v4829
  %v5055 = vunpack.c.h.b16 %v4829
  %v5056 = vunpack.c.l.b16 %v4830
  %v5057 = vunpack.c.h.b16 %v4830
  %v5058 = vunpack.c.l.b16 %v4831
  %v5059 = vunpack.c.h.b16 %v4831
  %v5060 = vpack.c.b16 %v4934, %v4932
  %v5061 = vpack.c.b16 %v4935, %v4933
  %v5062 = vpack.c.b16 %v4938, %v4936
  %v5063 = vpack.c.b16 %v4939, %v4937
  %v5064 = vpack.c.b16 %v4942, %v4940
  %v5065 = vpack.c.b16 %v4943, %v4941
  %v5066 = vpack.c.b16 %v4946, %v4944
  %v5067 = vpack.c.b16 %v4947, %v4945
  %v5068 = vpack.c.b16 %v4950, %v4948
  %v5069 = vpack.c.b16 %v4951, %v4949
  %v5070 = vpack.c.b16 %v4954, %v4952
  %v5071 = vpack.c.b16 %v4955, %v4953
  %v5072 = vpack.c.b16 %v4958, %v4956
  %v5073 = vpack.c.b16 %v4959, %v4957
  %v5074 = vpack.c.b16 %v4962, %v4960
  %v5075 = vpack.c.b16 %v4963, %v4961
  %v5076 = vpack.c.b16 %v4966, %v4964
  %v5077 = vpack.c.b16 %v4967, %v4965
  %v5078 = vpack.c.b16 %v4970, %v4968
  %v5079 = vpack.c.b16 %v4971, %v4969
  %v5080 = vpack.c.b16 %v4974, %v4972
  %v5081 = vpack.c.b16 %v4975, %v4973
  %v5082 = vpack.c.b16 %v4978, %v4976
  %v5083 = vpack.c.b16 %v4979, %v4977
  %v5084 = vpack.c.b16 %v4982, %v4980
  %v5085 = vpack.c.b16 %v4983, %v4981
  %v5086 = vpack.c.b16 %v4986, %v4984
  %v5087 = vpack.c.b16 %v4987, %v4985
  %v5088 = vpack.c.b16 %v4990, %v4988
  %v5089 = vpack.c.b16 %v4991, %v4989
  %v5090 = vpack.c.b16 %v4994, %v4992
  %v5091 = vpack.c.b16 %v4995, %v4993
  %v5092 = vpack.c.b16 %v4998, %v4996
  %v5093 = vpack.c.b16 %v4999, %v4997
  %v5094 = vpack.c.b16 %v5002, %v5000
  %v5095 = vpack.c.b16 %v5003, %v5001
  %v5096 = vpack.c.b16 %v5006, %v5004
  %v5097 = vpack.c.b16 %v5007, %v5005
  %v5098 = vpack.c.b16 %v5010, %v5008
  %v5099 = vpack.c.b16 %v5011, %v5009
  %v5100 = vpack.c.b16 %v5014, %v5012
  %v5101 = vpack.c.b16 %v5015, %v5013
  %v5102 = vpack.c.b16 %v5018, %v5016
  %v5103 = vpack.c.b16 %v5019, %v5017
  %v5104 = vpack.c.b16 %v5022, %v5020
  %v5105 = vpack.c.b16 %v5023, %v5021
  %v5106 = vpack.c.b16 %v5026, %v5024
  %v5107 = vpack.c.b16 %v5027, %v5025
  %v5108 = vpack.c.b16 %v5030, %v5028
  %v5109 = vpack.c.b16 %v5031, %v5029
  %v5110 = vpack.c.b16 %v5034, %v5032
  %v5111 = vpack.c.b16 %v5035, %v5033
  %v5112 = vpack.c.b16 %v5038, %v5036
  %v5113 = vpack.c.b16 %v5039, %v5037
  %v5114 = vpack.c.b16 %v5042, %v5040
  %v5115 = vpack.c.b16 %v5043, %v5041
  %v5116 = vpack.c.b16 %v5046, %v5044
  %v5117 = vpack.c.b16 %v5047, %v5045
  %v5118 = vpack.c.b16 %v5050, %v5048
  %v5119 = vpack.c.b16 %v5051, %v5049
  %v5120 = vpack.c.b16 %v5054, %v5052
  %v5121 = vpack.c.b16 %v5055, %v5053
  %v5122 = vpack.c.b16 %v5058, %v5056
  %v5123 = vpack.c.b16 %v5059, %v5057
  %5188 = vmatprep.subr.bf16.mxu0 %v5061
  %5189 = vmatpush1.bf16.msra.mxu0 %v5060
  %5190 = vmatprep.subr.bf16.mxu0 %v5063
  %5191 = vmatpush1.bf16.msra.mxu0 %v5062
  %5192 = vmatprep.subr.bf16.mxu0 %v5065
  %5193 = vmatpush1.bf16.msra.mxu0 %v5064
  %5194 = vmatprep.subr.bf16.mxu0 %v5067
  %5195 = vmatpush1.bf16.msra.mxu0 %v5066
  %5196 = vmatprep.subr.bf16.mxu0 %v5069
  %5197 = vmatpush1.bf16.msra.mxu0 %v5068
  %5198 = vmatprep.subr.bf16.mxu0 %v5071
  %5199 = vmatpush1.bf16.msra.mxu0 %v5070
  %5200 = vmatprep.subr.bf16.mxu0 %v5073
  %5201 = vmatpush1.bf16.msra.mxu0 %v5072
  %5202 = vmatprep.subr.bf16.mxu0 %v5075
  %5203 = vmatpush1.bf16.msra.mxu0 %v5074
  %5204 = vmatprep.subr.bf16.mxu0 %v5077
  %5205 = vmatpush1.bf16.msra.mxu0 %v5076
  %5206 = vmatprep.subr.bf16.mxu0 %v5079
  %5207 = vmatpush1.bf16.msra.mxu0 %v5078
  %5208 = vmatprep.subr.bf16.mxu0 %v5081
  %5209 = vmatpush1.bf16.msra.mxu0 %v5080
  %5210 = vmatprep.subr.bf16.mxu0 %v5083
  %5211 = vmatpush1.bf16.msra.mxu0 %v5082
  %5212 = vmatprep.subr.bf16.mxu0 %v5085
  %5213 = vmatpush1.bf16.msra.mxu0 %v5084
  %5214 = vmatprep.subr.bf16.mxu0 %v5087
  %5215 = vmatpush1.bf16.msra.mxu0 %v5086
  %5216 = vmatprep.subr.bf16.mxu0 %v5089
  %5217 = vmatpush1.bf16.msra.mxu0 %v5088
  %5218 = vmatprep.subr.bf16.mxu0 %v5091
  %5219 = vmatpush1.bf16.msra.mxu0 %v5090
  %5220 = vmatprep.mubr.bf16.mxu0 %v4861
  %5221 = vmatmul.mubr.bf16.gmra.mrb[0].mxu0 %v4860
  %v5222 = vpop.f32.mrb[0].mxu0
  %v5223 = vadd.f32 0.0, %v5222
  %v5224 = vpop.f32.mrb[0].mxu0
  %v5225 = vadd.f32 0.0, %v5224
  %v5226 = vpop.f32.mrb[0].mxu0
  %v5227 = vpop.f32.mrb[0].mxu0
  %5228 = vdwg.mxu0
  %5229 = vmatprep.subr.bf16.mxu0 %v5093
  %5230 = vmatpush1.bf16.msra.mxu0 %v5092
  %5231 = vmatprep.subr.bf16.mxu0 %v5095
  %5232 = vmatpush1.bf16.msra.mxu0 %v5094
  %5233 = vmatprep.subr.bf16.mxu0 %v5097
  %5234 = vmatpush1.bf16.msra.mxu0 %v5096
  %5235 = vmatprep.subr.bf16.mxu0 %v5099
  %5236 = vmatpush1.bf16.msra.mxu0 %v5098
  %5237 = vmatprep.subr.bf16.mxu0 %v5101
  %5238 = vmatpush1.bf16.msra.mxu0 %v5100
  %5239 = vmatprep.subr.bf16.mxu0 %v5103
  %5240 = vmatpush1.bf16.msra.mxu0 %v5102
  %5241 = vmatprep.subr.bf16.mxu0 %v5105
  %5242 = vmatpush1.bf16.msra.mxu0 %v5104
  %5243 = vmatprep.subr.bf16.mxu0 %v5107
  %5244 = vmatpush1.bf16.msra.mxu0 %v5106
  %5245 = vmatprep.subr.bf16.mxu0 %v5109
  %5246 = vmatpush1.bf16.msra.mxu0 %v5108
  %5247 = vmatprep.subr.bf16.mxu0 %v5111
  %5248 = vmatpush1.bf16.msra.mxu0 %v5110
  %5249 = vmatprep.subr.bf16.mxu0 %v5113
  %5250 = vmatpush1.bf16.msra.mxu0 %v5112
  %5251 = vmatprep.subr.bf16.mxu0 %v5115
  %5252 = vmatpush1.bf16.msra.mxu0 %v5114
  %5253 = vmatprep.subr.bf16.mxu0 %v5117
  %5254 = vmatpush1.bf16.msra.mxu0 %v5116
  %5255 = vmatprep.subr.bf16.mxu0 %v5119
  %5256 = vmatpush1.bf16.msra.mxu0 %v5118
  %5257 = vmatprep.subr.bf16.mxu0 %v5121
  %5258 = vmatpush1.bf16.msra.mxu0 %v5120
  %5259 = vmatprep.subr.bf16.mxu0 %v5123
  %5260 = vmatpush1.bf16.msra.mxu0 %v5122
  %5261 = vmatprep.mubr.bf16.mxu0 %v4863
  %5262 = vmatmul.mubr.bf16.gmra.mrb[0].mxu0 %v4862
  %v5263 = vpop.f32.mrb[0].mxu0
  %v5264 = vadd.f32 %v5223, %v5263
  %v5265 = vpop.f32.mrb[0].mxu0
  %v5266 = vadd.f32 %v5225, %v5265
  %v5267 = vpop.f32.mrb[0].mxu0
  %v5268 = vpop.f32.mrb[0].mxu0
  %5269 = vdwg.mxu0
  %v5270 = vadd.f32 %v4753, %v5264
  %v5271 = vadd.f32 %v4755, %v5266
  %s5272 = scalar_lea.vmem %s4, 1536
  %v5273 = vld [vmem:[%s5272] sm:$0xff]
  %v5274 = vld [vmem:[%s5272 + $0x8] sm:$0xff]
  %v5275 = vld [vmem:[%s5272 + $0x10] sm:$0xff]
  %v5276 = vld [vmem:[%s5272 + $0x18] sm:$0xff]
  %v5277 = vld [vmem:[%s5272 + $0x20] sm:$0xff]
  %v5278 = vld [vmem:[%s5272 + $0x28] sm:$0xff]
  %v5279 = vld [vmem:[%s5272 + $0x30] sm:$0xff]
  %v5280 = vld [vmem:[%s5272 + $0x38] sm:$0xff]
  %v5281 = vld [vmem:[%s5272 + $0x40] sm:$0xff]
  %v5282 = vld [vmem:[%s5272 + $0x48] sm:$0xff]
  %v5283 = vld [vmem:[%s5272 + $0x50] sm:$0xff]
  %v5284 = vld [vmem:[%s5272 + $0x58] sm:$0xff]
  %v5285 = vld [vmem:[%s5272 + $0x60] sm:$0xff]
  %v5286 = vld [vmem:[%s5272 + $0x68] sm:$0xff]
  %v5287 = vld [vmem:[%s5272 + $0x70] sm:$0xff]
  %v5288 = vld [vmem:[%s5272 + $0x78] sm:$0xff]
  %v5289 = vld [vmem:[%s5272 + $0x80] sm:$0xff]
  %v5290 = vld [vmem:[%s5272 + $0x88] sm:$0xff]
  %v5291 = vld [vmem:[%s5272 + $0x90] sm:$0xff]
  %v5292 = vld [vmem:[%s5272 + $0x98] sm:$0xff]
  %v5293 = vld [vmem:[%s5272 + $0xa0] sm:$0xff]
  %v5294 = vld [vmem:[%s5272 + $0xa8] sm:$0xff]
  %v5295 = vld [vmem:[%s5272 + $0xb0] sm:$0xff]
  %v5296 = vld [vmem:[%s5272 + $0xb8] sm:$0xff]
  %v5297 = vld [vmem:[%s5272 + $0xc0] sm:$0xff]
  %v5298 = vld [vmem:[%s5272 + $0xc8] sm:$0xff]
  %v5299 = vld [vmem:[%s5272 + $0xd0] sm:$0xff]
  %v5300 = vld [vmem:[%s5272 + $0xd8] sm:$0xff]
  %v5301 = vld [vmem:[%s5272 + $0xe0] sm:$0xff]
  %v5302 = vld [vmem:[%s5272 + $0xe8] sm:$0xff]
  %v5303 = vld [vmem:[%s5272 + $0xf0] sm:$0xff]
  %v5304 = vld [vmem:[%s5272 + $0xf8] sm:$0xff]
  %v5305 = vld [vmem:[%s5272 + $0x100] sm:$0xff]
  %v5306 = vld [vmem:[%s5272 + $0x108] sm:$0xff]
  %v5307 = vld [vmem:[%s5272 + $0x110] sm:$0xff]
  %v5308 = vld [vmem:[%s5272 + $0x118] sm:$0xff]
  %v5309 = vld [vmem:[%s5272 + $0x120] sm:$0xff]
  %v5310 = vld [vmem:[%s5272 + $0x128] sm:$0xff]
  %v5311 = vld [vmem:[%s5272 + $0x130] sm:$0xff]
  %v5312 = vld [vmem:[%s5272 + $0x138] sm:$0xff]
  %v5313 = vld [vmem:[%s5272 + $0x140] sm:$0xff]
  %v5314 = vld [vmem:[%s5272 + $0x148] sm:$0xff]
  %v5315 = vld [vmem:[%s5272 + $0x150] sm:$0xff]
  %v5316 = vld [vmem:[%s5272 + $0x158] sm:$0xff]
  %v5317 = vld [vmem:[%s5272 + $0x160] sm:$0xff]
  %v5318 = vld [vmem:[%s5272 + $0x168] sm:$0xff]
  %v5319 = vld [vmem:[%s5272 + $0x170] sm:$0xff]
  %v5320 = vld [vmem:[%s5272 + $0x178] sm:$0xff]
  %v5321 = vld [vmem:[%s5272 + $0x180] sm:$0xff]
  %v5322 = vld [vmem:[%s5272 + $0x188] sm:$0xff]
  %v5323 = vld [vmem:[%s5272 + $0x190] sm:$0xff]
  %v5324 = vld [vmem:[%s5272 + $0x198] sm:$0xff]
  %v5325 = vld [vmem:[%s5272 + $0x1a0] sm:$0xff]
  %v5326 = vld [vmem:[%s5272 + $0x1a8] sm:$0xff]
  %v5327 = vld [vmem:[%s5272 + $0x1b0] sm:$0xff]
  %v5328 = vld [vmem:[%s5272 + $0x1b8] sm:$0xff]
  %v5329 = vld [vmem:[%s5272 + $0x1c0] sm:$0xff]
  %v5330 = vld [vmem:[%s5272 + $0x1c8] sm:$0xff]
  %v5331 = vld [vmem:[%s5272 + $0x1d0] sm:$0xff]
  %v5332 = vld [vmem:[%s5272 + $0x1d8] sm:$0xff]
  %v5333 = vld [vmem:[%s5272 + $0x1e0] sm:$0xff]
  %v5334 = vld [vmem:[%s5272 + $0x1e8] sm:$0xff]
  %v5335 = vld [vmem:[%s5272 + $0x1f0] sm:$0xff]
  %v5336 = vld [vmem:[%s5272 + $0x1f8] sm:$0xff]
  %v5337 = vrot.slane %v4840, 3
  %v5338 = vrot.slane %v4844, 2
  %v5339 = vsel %vm3923, %v5338, %v5337
  %v5340 = vrot.slane %v4841, 3
  %v5341 = vrot.slane %v4845, 2
  %v5342 = vsel %vm3923, %v5341, %v5340
  %v5343 = vrot.slane %v4842, 3
  %v5344 = vrot.slane %v4846, 2
  %v5345 = vsel %vm3923, %v5344, %v5343
  %v5346 = vrot.slane %v4843, 3
  %v5347 = vrot.slane %v4847, 2
  %v5348 = vsel %vm3923, %v5347, %v5346
  %v5349 = vpack.c.b16 %v5339, %v5339
  %v5350 = vpack.c.b16 %v5342, %v5342
  %v5351 = vpack.c.b16 %v5345, %v5345
  %v5352 = vpack.c.b16 %v5348, %v5348
  %v5421 = vunpack.c.l.b16 %v5273
  %v5422 = vunpack.c.h.b16 %v5273
  %v5423 = vunpack.c.l.b16 %v5274
  %v5424 = vunpack.c.h.b16 %v5274
  %v5425 = vunpack.c.l.b16 %v5275
  %v5426 = vunpack.c.h.b16 %v5275
  %v5427 = vunpack.c.l.b16 %v5276
  %v5428 = vunpack.c.h.b16 %v5276
  %v5429 = vunpack.c.l.b16 %v5277
  %v5430 = vunpack.c.h.b16 %v5277
  %v5431 = vunpack.c.l.b16 %v5278
  %v5432 = vunpack.c.h.b16 %v5278
  %v5433 = vunpack.c.l.b16 %v5279
  %v5434 = vunpack.c.h.b16 %v5279
  %v5435 = vunpack.c.l.b16 %v5280
  %v5436 = vunpack.c.h.b16 %v5280
  %v5437 = vunpack.c.l.b16 %v5281
  %v5438 = vunpack.c.h.b16 %v5281
  %v5439 = vunpack.c.l.b16 %v5282
  %v5440 = vunpack.c.h.b16 %v5282
  %v5441 = vunpack.c.l.b16 %v5283
  %v5442 = vunpack.c.h.b16 %v5283
  %v5443 = vunpack.c.l.b16 %v5284
  %v5444 = vunpack.c.h.b16 %v5284
  %v5445 = vunpack.c.l.b16 %v5285
  %v5446 = vunpack.c.h.b16 %v5285
  %v5447 = vunpack.c.l.b16 %v5286
  %v5448 = vunpack.c.h.b16 %v5286
  %v5449 = vunpack.c.l.b16 %v5287
  %v5450 = vunpack.c.h.b16 %v5287
  %v5451 = vunpack.c.l.b16 %v5288
  %v5452 = vunpack.c.h.b16 %v5288
  %v5453 = vunpack.c.l.b16 %v5289
  %v5454 = vunpack.c.h.b16 %v5289
  %v5455 = vunpack.c.l.b16 %v5290
  %v5456 = vunpack.c.h.b16 %v5290
  %v5457 = vunpack.c.l.b16 %v5291
  %v5458 = vunpack.c.h.b16 %v5291
  %v5459 = vunpack.c.l.b16 %v5292
  %v5460 = vunpack.c.h.b16 %v5292
  %v5461 = vunpack.c.l.b16 %v5293
  %v5462 = vunpack.c.h.b16 %v5293
  %v5463 = vunpack.c.l.b16 %v5294
  %v5464 = vunpack.c.h.b16 %v5294
  %v5465 = vunpack.c.l.b16 %v5295
  %v5466 = vunpack.c.h.b16 %v5295
  %v5467 = vunpack.c.l.b16 %v5296
  %v5468 = vunpack.c.h.b16 %v5296
  %v5469 = vunpack.c.l.b16 %v5297
  %v5470 = vunpack.c.h.b16 %v5297
  %v5471 = vunpack.c.l.b16 %v5298
  %v5472 = vunpack.c.h.b16 %v5298
  %v5473 = vunpack.c.l.b16 %v5299
  %v5474 = vunpack.c.h.b16 %v5299
  %v5475 = vunpack.c.l.b16 %v5300
  %v5476 = vunpack.c.h.b16 %v5300
  %v5477 = vunpack.c.l.b16 %v5301
  %v5478 = vunpack.c.h.b16 %v5301
  %v5479 = vunpack.c.l.b16 %v5302
  %v5480 = vunpack.c.h.b16 %v5302
  %v5481 = vunpack.c.l.b16 %v5303
  %v5482 = vunpack.c.h.b16 %v5303
  %v5483 = vunpack.c.l.b16 %v5304
  %v5484 = vunpack.c.h.b16 %v5304
  %v5485 = vunpack.c.l.b16 %v5305
  %v5486 = vunpack.c.h.b16 %v5305
  %v5487 = vunpack.c.l.b16 %v5306
  %v5488 = vunpack.c.h.b16 %v5306
  %v5489 = vunpack.c.l.b16 %v5307
  %v5490 = vunpack.c.h.b16 %v5307
  %v5491 = vunpack.c.l.b16 %v5308
  %v5492 = vunpack.c.h.b16 %v5308
  %v5493 = vunpack.c.l.b16 %v5309
  %v5494 = vunpack.c.h.b16 %v5309
  %v5495 = vunpack.c.l.b16 %v5310
  %v5496 = vunpack.c.h.b16 %v5310
  %v5497 = vunpack.c.l.b16 %v5311
  %v5498 = vunpack.c.h.b16 %v5311
  %v5499 = vunpack.c.l.b16 %v5312
  %v5500 = vunpack.c.h.b16 %v5312
  %v5501 = vunpack.c.l.b16 %v5313
  %v5502 = vunpack.c.h.b16 %v5313
  %v5503 = vunpack.c.l.b16 %v5314
  %v5504 = vunpack.c.h.b16 %v5314
  %v5505 = vunpack.c.l.b16 %v5315
  %v5506 = vunpack.c.h.b16 %v5315
  %v5507 = vunpack.c.l.b16 %v5316
  %v5508 = vunpack.c.h.b16 %v5316
  %v5509 = vunpack.c.l.b16 %v5317
  %v5510 = vunpack.c.h.b16 %v5317
  %v5511 = vunpack.c.l.b16 %v5318
  %v5512 = vunpack.c.h.b16 %v5318
  %v5513 = vunpack.c.l.b16 %v5319
  %v5514 = vunpack.c.h.b16 %v5319
  %v5515 = vunpack.c.l.b16 %v5320
  %v5516 = vunpack.c.h.b16 %v5320
  %v5517 = vunpack.c.l.b16 %v5321
  %v5518 = vunpack.c.h.b16 %v5321
  %v5519 = vunpack.c.l.b16 %v5322
  %v5520 = vunpack.c.h.b16 %v5322
  %v5521 = vunpack.c.l.b16 %v5323
  %v5522 = vunpack.c.h.b16 %v5323
  %v5523 = vunpack.c.l.b16 %v5324
  %v5524 = vunpack.c.h.b16 %v5324
  %v5525 = vunpack.c.l.b16 %v5325
  %v5526 = vunpack.c.h.b16 %v5325
  %v5527 = vunpack.c.l.b16 %v5326
  %v5528 = vunpack.c.h.b16 %v5326
  %v5529 = vunpack.c.l.b16 %v5327
  %v5530 = vunpack.c.h.b16 %v5327
  %v5531 = vunpack.c.l.b16 %v5328
  %v5532 = vunpack.c.h.b16 %v5328
  %v5533 = vunpack.c.l.b16 %v5329
  %v5534 = vunpack.c.h.b16 %v5329
  %v5535 = vunpack.c.l.b16 %v5330
  %v5536 = vunpack.c.h.b16 %v5330
  %v5537 = vunpack.c.l.b16 %v5331
  %v5538 = vunpack.c.h.b16 %v5331
  %v5539 = vunpack.c.l.b16 %v5332
  %v5540 = vunpack.c.h.b16 %v5332
  %v5541 = vunpack.c.l.b16 %v5333
  %v5542 = vunpack.c.h.b16 %v5333
  %v5543 = vunpack.c.l.b16 %v5334
  %v5544 = vunpack.c.h.b16 %v5334
  %v5545 = vunpack.c.l.b16 %v5335
  %v5546 = vunpack.c.h.b16 %v5335
  %v5547 = vunpack.c.l.b16 %v5336
  %v5548 = vunpack.c.h.b16 %v5336
  %v5549 = vpack.c.b16 %v5423, %v5421
  %v5550 = vpack.c.b16 %v5424, %v5422
  %v5551 = vpack.c.b16 %v5427, %v5425
  %v5552 = vpack.c.b16 %v5428, %v5426
  %v5553 = vpack.c.b16 %v5431, %v5429
  %v5554 = vpack.c.b16 %v5432, %v5430
  %v5555 = vpack.c.b16 %v5435, %v5433
  %v5556 = vpack.c.b16 %v5436, %v5434
  %v5557 = vpack.c.b16 %v5439, %v5437
  %v5558 = vpack.c.b16 %v5440, %v5438
  %v5559 = vpack.c.b16 %v5443, %v5441
  %v5560 = vpack.c.b16 %v5444, %v5442
  %v5561 = vpack.c.b16 %v5447, %v5445
  %v5562 = vpack.c.b16 %v5448, %v5446
  %v5563 = vpack.c.b16 %v5451, %v5449
  %v5564 = vpack.c.b16 %v5452, %v5450
  %v5565 = vpack.c.b16 %v5455, %v5453
  %v5566 = vpack.c.b16 %v5456, %v5454
  %v5567 = vpack.c.b16 %v5459, %v5457
  %v5568 = vpack.c.b16 %v5460, %v5458
  %v5569 = vpack.c.b16 %v5463, %v5461
  %v5570 = vpack.c.b16 %v5464, %v5462
  %v5571 = vpack.c.b16 %v5467, %v5465
  %v5572 = vpack.c.b16 %v5468, %v5466
  %v5573 = vpack.c.b16 %v5471, %v5469
  %v5574 = vpack.c.b16 %v5472, %v5470
  %v5575 = vpack.c.b16 %v5475, %v5473
  %v5576 = vpack.c.b16 %v5476, %v5474
  %v5577 = vpack.c.b16 %v5479, %v5477
  %v5578 = vpack.c.b16 %v5480, %v5478
  %v5579 = vpack.c.b16 %v5483, %v5481
  %v5580 = vpack.c.b16 %v5484, %v5482
  %v5581 = vpack.c.b16 %v5487, %v5485
  %v5582 = vpack.c.b16 %v5488, %v5486
  %v5583 = vpack.c.b16 %v5491, %v5489
  %v5584 = vpack.c.b16 %v5492, %v5490
  %v5585 = vpack.c.b16 %v5495, %v5493
  %v5586 = vpack.c.b16 %v5496, %v5494
  %v5587 = vpack.c.b16 %v5499, %v5497
  %v5588 = vpack.c.b16 %v5500, %v5498
  %v5589 = vpack.c.b16 %v5503, %v5501
  %v5590 = vpack.c.b16 %v5504, %v5502
  %v5591 = vpack.c.b16 %v5507, %v5505
  %v5592 = vpack.c.b16 %v5508, %v5506
  %v5593 = vpack.c.b16 %v5511, %v5509
  %v5594 = vpack.c.b16 %v5512, %v5510
  %v5595 = vpack.c.b16 %v5515, %v5513
  %v5596 = vpack.c.b16 %v5516, %v5514
  %v5597 = vpack.c.b16 %v5519, %v5517
  %v5598 = vpack.c.b16 %v5520, %v5518
  %v5599 = vpack.c.b16 %v5523, %v5521
  %v5600 = vpack.c.b16 %v5524, %v5522
  %v5601 = vpack.c.b16 %v5527, %v5525
  %v5602 = vpack.c.b16 %v5528, %v5526
  %v5603 = vpack.c.b16 %v5531, %v5529
  %v5604 = vpack.c.b16 %v5532, %v5530
  %v5605 = vpack.c.b16 %v5535, %v5533
  %v5606 = vpack.c.b16 %v5536, %v5534
  %v5607 = vpack.c.b16 %v5539, %v5537
  %v5608 = vpack.c.b16 %v5540, %v5538
  %v5609 = vpack.c.b16 %v5543, %v5541
  %v5610 = vpack.c.b16 %v5544, %v5542
  %v5611 = vpack.c.b16 %v5547, %v5545
  %v5612 = vpack.c.b16 %v5548, %v5546
  %5677 = vmatprep.subr.bf16.mxu0 %v5550
  %5678 = vmatpush1.bf16.msra.mxu0 %v5549
  %5679 = vmatprep.subr.bf16.mxu0 %v5552
  %5680 = vmatpush1.bf16.msra.mxu0 %v5551
  %5681 = vmatprep.subr.bf16.mxu0 %v5554
  %5682 = vmatpush1.bf16.msra.mxu0 %v5553
  %5683 = vmatprep.subr.bf16.mxu0 %v5556
  %5684 = vmatpush1.bf16.msra.mxu0 %v5555
  %5685 = vmatprep.subr.bf16.mxu0 %v5558
  %5686 = vmatpush1.bf16.msra.mxu0 %v5557
  %5687 = vmatprep.subr.bf16.mxu0 %v5560
  %5688 = vmatpush1.bf16.msra.mxu0 %v5559
  %5689 = vmatprep.subr.bf16.mxu0 %v5562
  %5690 = vmatpush1.bf16.msra.mxu0 %v5561
  %5691 = vmatprep.subr.bf16.mxu0 %v5564
  %5692 = vmatpush1.bf16.msra.mxu0 %v5563
  %5693 = vmatprep.subr.bf16.mxu0 %v5566
  %5694 = vmatpush1.bf16.msra.mxu0 %v5565
  %5695 = vmatprep.subr.bf16.mxu0 %v5568
  %5696 = vmatpush1.bf16.msra.mxu0 %v5567
  %5697 = vmatprep.subr.bf16.mxu0 %v5570
  %5698 = vmatpush1.bf16.msra.mxu0 %v5569
  %5699 = vmatprep.subr.bf16.mxu0 %v5572
  %5700 = vmatpush1.bf16.msra.mxu0 %v5571
  %5701 = vmatprep.subr.bf16.mxu0 %v5574
  %5702 = vmatpush1.bf16.msra.mxu0 %v5573
  %5703 = vmatprep.subr.bf16.mxu0 %v5576
  %5704 = vmatpush1.bf16.msra.mxu0 %v5575
  %5705 = vmatprep.subr.bf16.mxu0 %v5578
  %5706 = vmatpush1.bf16.msra.mxu0 %v5577
  %5707 = vmatprep.subr.bf16.mxu0 %v5580
  %5708 = vmatpush1.bf16.msra.mxu0 %v5579
  %5709 = vmatprep.mubr.bf16.mxu0 %v5350
  %5710 = vmatmul.mubr.bf16.gmra.mrb[0].mxu0 %v5349
  %v5711 = vpop.f32.mrb[0].mxu0
  %v5712 = vadd.f32 0.0, %v5711
  %v5713 = vpop.f32.mrb[0].mxu0
  %v5714 = vadd.f32 0.0, %v5713
  %v5715 = vpop.f32.mrb[0].mxu0
  %v5716 = vpop.f32.mrb[0].mxu0
  %5717 = vdwg.mxu0
  %5718 = vmatprep.subr.bf16.mxu0 %v5582
  %5719 = vmatpush1.bf16.msra.mxu0 %v5581
  %5720 = vmatprep.subr.bf16.mxu0 %v5584
  %5721 = vmatpush1.bf16.msra.mxu0 %v5583
  %5722 = vmatprep.subr.bf16.mxu0 %v5586
  %5723 = vmatpush1.bf16.msra.mxu0 %v5585
  %5724 = vmatprep.subr.bf16.mxu0 %v5588
  %5725 = vmatpush1.bf16.msra.mxu0 %v5587
  %5726 = vmatprep.subr.bf16.mxu0 %v5590
  %5727 = vmatpush1.bf16.msra.mxu0 %v5589
  %5728 = vmatprep.subr.bf16.mxu0 %v5592
  %5729 = vmatpush1.bf16.msra.mxu0 %v5591
  %5730 = vmatprep.subr.bf16.mxu0 %v5594
  %5731 = vmatpush1.bf16.msra.mxu0 %v5593
  %5732 = vmatprep.subr.bf16.mxu0 %v5596
  %5733 = vmatpush1.bf16.msra.mxu0 %v5595
  %5734 = vmatprep.subr.bf16.mxu0 %v5598
  %5735 = vmatpush1.bf16.msra.mxu0 %v5597
  %5736 = vmatprep.subr.bf16.mxu0 %v5600
  %5737 = vmatpush1.bf16.msra.mxu0 %v5599
  %5738 = vmatprep.subr.bf16.mxu0 %v5602
  %5739 = vmatpush1.bf16.msra.mxu0 %v5601
  %5740 = vmatprep.subr.bf16.mxu0 %v5604
  %5741 = vmatpush1.bf16.msra.mxu0 %v5603
  %5742 = vmatprep.subr.bf16.mxu0 %v5606
  %5743 = vmatpush1.bf16.msra.mxu0 %v5605
  %5744 = vmatprep.subr.bf16.mxu0 %v5608
  %5745 = vmatpush1.bf16.msra.mxu0 %v5607
  %5746 = vmatprep.subr.bf16.mxu0 %v5610
  %5747 = vmatpush1.bf16.msra.mxu0 %v5609
  %5748 = vmatprep.subr.bf16.mxu0 %v5612
  %5749 = vmatpush1.bf16.msra.mxu0 %v5611
  %5750 = vmatprep.mubr.bf16.mxu0 %v5352
  %5751 = vmatmul.mubr.bf16.gmra.mrb[0].mxu0 %v5351
  %v5752 = vpop.f32.mrb[0].mxu0
  %v5753 = vadd.f32 %v5712, %v5752
  %v5754 = vpop.f32.mrb[0].mxu0
  %v5755 = vadd.f32 %v5714, %v5754
  %v5756 = vpop.f32.mrb[0].mxu0
  %v5757 = vpop.f32.mrb[0].mxu0
  %5758 = vdwg.mxu0
  %v5759 = vadd.f32 %v5270, %v5753
  %v5760 = vadd.f32 %v5271, %v5755
  %v5762 = vlaneseq
  %v5763 = vshrl.u32 %v5762, 7
  %v5764 = vsub.s32 0, %v5763
  %v5765 = vrot.slane %v3768, %v5764
  %v5766 = vlaneseq
  %v5767 = vshrl.u32 %v5766, 7
  %v5768 = vsub.s32 1, %v5767
  %v5769 = vrot.slane %v3768, %v5768
  %v5772 = vadd.f32 %v5759, %v5765
  %v5773 = vadd.f32 %v5760, %v5769
  %v5774 = vmax.f32 %v5772, 0.0
  %v5775 = vmax.f32 %v5773, 0.0
  %v5776 = vpack.c.bf16 %v5774, %v5774
  %v5777 = vpack.c.bf16 %v5775, %v5775
  %v5778 = vld [vmem:[#allocation2] sm:$0x4]
  %v5779 = vld [vmem:[#allocation2 + $0x8] sm:$0x4]
  %v5780 = vld [vmem:[#allocation2 + $0x10] sm:$0x4]
  %v5781 = vld [vmem:[#allocation2 + $0x18] sm:$0x4]
  %v5782 = vld [vmem:[#allocation2 + $0x20] sm:$0x4]
  %v5783 = vld [vmem:[#allocation2 + $0x28] sm:$0x4]
  %v5784 = vld [vmem:[#allocation2 + $0x30] sm:$0x4]
  %v5785 = vld [vmem:[#allocation2 + $0x38] sm:$0x4]
  %v5794 = vunpack.c.l.b16 %v5778
  %v5795 = vunpack.c.l.b16 %v5779
  %v5796 = vunpack.c.l.b16 %v5780
  %v5797 = vunpack.c.l.b16 %v5781
  %v5798 = vunpack.c.l.b16 %v5782
  %v5799 = vunpack.c.l.b16 %v5783
  %v5800 = vunpack.c.l.b16 %v5784
  %v5801 = vunpack.c.l.b16 %v5785
  %v5802 = vrot.slane %v5794, 5
  %v5803 = vrot.slane %v5798, 4
  %v5804 = vsel %vm3923, %v5803, %v5802
  %v5805 = vrot.slane %v5795, 5
  %v5806 = vrot.slane %v5799, 4
  %v5807 = vsel %vm3923, %v5806, %v5805
  %v5808 = vrot.slane %v5796, 5
  %v5809 = vrot.slane %v5800, 4
  %v5810 = vsel %vm3923, %v5809, %v5808
  %v5811 = vrot.slane %v5797, 5
  %v5812 = vrot.slane %v5801, 4
  %v5813 = vsel %vm3923, %v5812, %v5811
  %v5814 = vpack.c.b16 %v5804, %v5804
  %v5815 = vpack.c.b16 %v5807, %v5807
  %v5816 = vpack.c.b16 %v5810, %v5810
  %v5817 = vpack.c.b16 %v5813, %v5813
  %5822 = vmatprep.subr.bf16.mxu0 %v4132
  %5823 = vmatpush1.bf16.msra.mxu0 %v4131
  %5824 = vmatprep.subr.bf16.mxu0 %v4134
  %5825 = vmatpush1.bf16.msra.mxu0 %v4133
  %5826 = vmatprep.subr.bf16.mxu0 %v4136
  %5827 = vmatpush1.bf16.msra.mxu0 %v4135
  %5828 = vmatprep.subr.bf16.mxu0 %v4138
  %5829 = vmatpush1.bf16.msra.mxu0 %v4137
  %5830 = vmatprep.subr.bf16.mxu0 %v4140
  %5831 = vmatpush1.bf16.msra.mxu0 %v4139
  %5832 = vmatprep.subr.bf16.mxu0 %v4142
  %5833 = vmatpush1.bf16.msra.mxu0 %v4141
  %5834 = vmatprep.subr.bf16.mxu0 %v4144
  %5835 = vmatpush1.bf16.msra.mxu0 %v4143
  %5836 = vmatprep.subr.bf16.mxu0 %v4146
  %5837 = vmatpush1.bf16.msra.mxu0 %v4145
  %5838 = vmatprep.subr.bf16.mxu0 %v4148
  %5839 = vmatpush1.bf16.msra.mxu0 %v4147
  %5840 = vmatprep.subr.bf16.mxu0 %v4150
  %5841 = vmatpush1.bf16.msra.mxu0 %v4149
  %5842 = vmatprep.subr.bf16.mxu0 %v4152
  %5843 = vmatpush1.bf16.msra.mxu0 %v4151
  %5844 = vmatprep.subr.bf16.mxu0 %v4154
  %5845 = vmatpush1.bf16.msra.mxu0 %v4153
  %5846 = vmatprep.subr.bf16.mxu0 %v4156
  %5847 = vmatpush1.bf16.msra.mxu0 %v4155
  %5848 = vmatprep.subr.bf16.mxu0 %v4158
  %5849 = vmatpush1.bf16.msra.mxu0 %v4157
  %5850 = vmatprep.subr.bf16.mxu0 %v4160
  %5851 = vmatpush1.bf16.msra.mxu0 %v4159
  %5852 = vmatprep.subr.bf16.mxu0 %v4162
  %5853 = vmatpush1.bf16.msra.mxu0 %v4161
  %5854 = vmatprep.mubr.bf16.mxu0 %v5815
  %5855 = vmatmul.mubr.bf16.gmra.mrb[0].mxu0 %v5814
  %v5856 = vpop.f32.mrb[0].mxu0
  %v5857 = vadd.f32 0.0, %v5856
  %v5858 = vpop.f32.mrb[0].mxu0
  %v5859 = vadd.f32 0.0, %v5858
  %v5860 = vpop.f32.mrb[0].mxu0
  %v5861 = vpop.f32.mrb[0].mxu0
  %5862 = vdwg.mxu0
  %5863 = vmatprep.subr.bf16.mxu0 %v4164
  %5864 = vmatpush1.bf16.msra.mxu0 %v4163
  %5865 = vmatprep.subr.bf16.mxu0 %v4166
  %5866 = vmatpush1.bf16.msra.mxu0 %v4165
  %5867 = vmatprep.subr.bf16.mxu0 %v4168
  %5868 = vmatpush1.bf16.msra.mxu0 %v4167
  %5869 = vmatprep.subr.bf16.mxu0 %v4170
  %5870 = vmatpush1.bf16.msra.mxu0 %v4169
  %5871 = vmatprep.subr.bf16.mxu0 %v4172
  %5872 = vmatpush1.bf16.msra.mxu0 %v4171
  %5873 = vmatprep.subr.bf16.mxu0 %v4174
  %5874 = vmatpush1.bf16.msra.mxu0 %v4173
  %5875 = vmatprep.subr.bf16.mxu0 %v4176
  %5876 = vmatpush1.bf16.msra.mxu0 %v4175
  %5877 = vmatprep.subr.bf16.mxu0 %v4178
  %5878 = vmatpush1.bf16.msra.mxu0 %v4177
  %5879 = vmatprep.subr.bf16.mxu0 %v4180
  %5880 = vmatpush1.bf16.msra.mxu0 %v4179
  %5881 = vmatprep.subr.bf16.mxu0 %v4182
  %5882 = vmatpush1.bf16.msra.mxu0 %v4181
  %5883 = vmatprep.subr.bf16.mxu0 %v4184
  %5884 = vmatpush1.bf16.msra.mxu0 %v4183
  %5885 = vmatprep.subr.bf16.mxu0 %v4186
  %5886 = vmatpush1.bf16.msra.mxu0 %v4185
  %5887 = vmatprep.subr.bf16.mxu0 %v4188
  %5888 = vmatpush1.bf16.msra.mxu0 %v4187
  %5889 = vmatprep.subr.bf16.mxu0 %v4190
  %5890 = vmatpush1.bf16.msra.mxu0 %v4189
  %5891 = vmatprep.subr.bf16.mxu0 %v4192
  %5892 = vmatpush1.bf16.msra.mxu0 %v4191
  %5893 = vmatprep.subr.bf16.mxu0 %v4194
  %5894 = vmatpush1.bf16.msra.mxu0 %v4193
  %5895 = vmatprep.mubr.bf16.mxu0 %v5817
  %5896 = vmatmul.mubr.bf16.gmra.mrb[0].mxu0 %v5816
  %v5897 = vpop.f32.mrb[0].mxu0
  %v5898 = vadd.f32 %v5857, %v5897
  %v5899 = vpop.f32.mrb[0].mxu0
  %v5900 = vadd.f32 %v5859, %v5899
  %v5901 = vpop.f32.mrb[0].mxu0
  %v5902 = vpop.f32.mrb[0].mxu0
  %5903 = vdwg.mxu0
  %v5904 = vrot.slane %v5794, 4
  %v5905 = vrot.slane %v5798, 3
  %v5906 = vsel %vm3923, %v5905, %v5904
  %v5907 = vrot.slane %v5795, 4
  %v5908 = vrot.slane %v5799, 3
  %v5909 = vsel %vm3923, %v5908, %v5907
  %v5910 = vrot.slane %v5796, 4
  %v5911 = vrot.slane %v5800, 3
  %v5912 = vsel %vm3923, %v5911, %v5910
  %v5913 = vrot.slane %v5797, 4
  %v5914 = vrot.slane %v5801, 3
  %v5915 = vsel %vm3923, %v5914, %v5913
  %v5916 = vpack.c.b16 %v5906, %v5906
  %v5917 = vpack.c.b16 %v5909, %v5909
  %v5918 = vpack.c.b16 %v5912, %v5912
  %v5919 = vpack.c.b16 %v5915, %v5915
  %5924 = vmatprep.subr.bf16.mxu0 %v4550
  %5925 = vmatpush1.bf16.msra.mxu0 %v4549
  %5926 = vmatprep.subr.bf16.mxu0 %v4552
  %5927 = vmatpush1.bf16.msra.mxu0 %v4551
  %5928 = vmatprep.subr.bf16.mxu0 %v4554
  %5929 = vmatpush1.bf16.msra.mxu0 %v4553
  %5930 = vmatprep.subr.bf16.mxu0 %v4556
  %5931 = vmatpush1.bf16.msra.mxu0 %v4555
  %5932 = vmatprep.subr.bf16.mxu0 %v4558
  %5933 = vmatpush1.bf16.msra.mxu0 %v4557
  %5934 = vmatprep.subr.bf16.mxu0 %v4560
  %5935 = vmatpush1.bf16.msra.mxu0 %v4559
  %5936 = vmatprep.subr.bf16.mxu0 %v4562
  %5937 = vmatpush1.bf16.msra.mxu0 %v4561
  %5938 = vmatprep.subr.bf16.mxu0 %v4564
  %5939 = vmatpush1.bf16.msra.mxu0 %v4563
  %5940 = vmatprep.subr.bf16.mxu0 %v4566
  %5941 = vmatpush1.bf16.msra.mxu0 %v4565
  %5942 = vmatprep.subr.bf16.mxu0 %v4568
  %5943 = vmatpush1.bf16.msra.mxu0 %v4567
  %5944 = vmatprep.subr.bf16.mxu0 %v4570
  %5945 = vmatpush1.bf16.msra.mxu0 %v4569
  %5946 = vmatprep.subr.bf16.mxu0 %v4572
  %5947 = vmatpush1.bf16.msra.mxu0 %v4571
  %5948 = vmatprep.subr.bf16.mxu0 %v4574
  %5949 = vmatpush1.bf16.msra.mxu0 %v4573
  %5950 = vmatprep.subr.bf16.mxu0 %v4576
  %5951 = vmatpush1.bf16.msra.mxu0 %v4575
  %5952 = vmatprep.subr.bf16.mxu0 %v4578
  %5953 = vmatpush1.bf16.msra.mxu0 %v4577
  %5954 = vmatprep.subr.bf16.mxu0 %v4580
  %5955 = vmatpush1.bf16.msra.mxu0 %v4579
  %5956 = vmatprep.mubr.bf16.mxu0 %v5917
  %5957 = vmatmul.mubr.bf16.gmra.mrb[0].mxu0 %v5916
  %v5958 = vpop.f32.mrb[0].mxu0
  %v5959 = vadd.f32 %v5898, %v5958
  %v5960 = vpop.f32.mrb[0].mxu0
  %v5961 = vadd.f32 %v5900, %v5960
  %v5962 = vpop.f32.mrb[0].mxu0
  %v5963 = vpop.f32.mrb[0].mxu0
  %5964 = vdwg.mxu0
  %5965 = vmatprep.subr.bf16.mxu0 %v4582
  %5966 = vmatpush1.bf16.msra.mxu0 %v4581
  %5967 = vmatprep.subr.bf16.mxu0 %v4584
  %5968 = vmatpush1.bf16.msra.mxu0 %v4583
  %5969 = vmatprep.subr.bf16.mxu0 %v4586
  %5970 = vmatpush1.bf16.msra.mxu0 %v4585
  %5971 = vmatprep.subr.bf16.mxu0 %v4588
  %5972 = vmatpush1.bf16.msra.mxu0 %v4587
  %5973 = vmatprep.subr.bf16.mxu0 %v4590
  %5974 = vmatpush1.bf16.msra.mxu0 %v4589
  %5975 = vmatprep.subr.bf16.mxu0 %v4592
  %5976 = vmatpush1.bf16.msra.mxu0 %v4591
  %5977 = vmatprep.subr.bf16.mxu0 %v4594
  %5978 = vmatpush1.bf16.msra.mxu0 %v4593
  %5979 = vmatprep.subr.bf16.mxu0 %v4596
  %5980 = vmatpush1.bf16.msra.mxu0 %v4595
  %5981 = vmatprep.subr.bf16.mxu0 %v4598
  %5982 = vmatpush1.bf16.msra.mxu0 %v4597
  %5983 = vmatprep.subr.bf16.mxu0 %v4600
  %5984 = vmatpush1.bf16.msra.mxu0 %v4599
  %5985 = vmatprep.subr.bf16.mxu0 %v4602
  %5986 = vmatpush1.bf16.msra.mxu0 %v4601
  %5987 = vmatprep.subr.bf16.mxu0 %v4604
  %5988 = vmatpush1.bf16.msra.mxu0 %v4603
  %5989 = vmatprep.subr.bf16.mxu0 %v4606
  %5990 = vmatpush1.bf16.msra.mxu0 %v4605
  %5991 = vmatprep.subr.bf16.mxu0 %v4608
  %5992 = vmatpush1.bf16.msra.mxu0 %v4607
  %5993 = vmatprep.subr.bf16.mxu0 %v4610
  %5994 = vmatpush1.bf16.msra.mxu0 %v4609
  %5995 = vmatprep.subr.bf16.mxu0 %v4612
  %5996 = vmatpush1.bf16.msra.mxu0 %v4611
  %5997 = vmatprep.mubr.bf16.mxu0 %v5919
  %5998 = vmatmul.mubr.bf16.gmra.mrb[0].mxu0 %v5918
  %v5999 = vpop.f32.mrb[0].mxu0
  %v6000 = vadd.f32 %v5959, %v5999
  %v6001 = vpop.f32.mrb[0].mxu0
  %v6002 = vadd.f32 %v5961, %v6001
  %v6003 = vpop.f32.mrb[0].mxu0
  %v6004 = vpop.f32.mrb[0].mxu0
  %6005 = vdwg.mxu0
  %v6006 = vld [vmem:[#allocation2] sm:$0x8]
  %v6007 = vld [vmem:[#allocation2 + $0x8] sm:$0x8]
  %v6008 = vld [vmem:[#allocation2 + $0x10] sm:$0x8]
  %v6009 = vld [vmem:[#allocation2 + $0x18] sm:$0x8]
  %v6010 = vld [vmem:[#allocation2 + $0x20] sm:$0x8]
  %v6011 = vld [vmem:[#allocation2 + $0x28] sm:$0x8]
  %v6012 = vld [vmem:[#allocation2 + $0x30] sm:$0x8]
  %v6013 = vld [vmem:[#allocation2 + $0x38] sm:$0x8]
  %v6022 = vunpack.c.l.b16 %v6006
  %v6023 = vunpack.c.l.b16 %v6007
  %v6024 = vunpack.c.l.b16 %v6008
  %v6025 = vunpack.c.l.b16 %v6009
  %v6026 = vunpack.c.l.b16 %v6010
  %v6027 = vunpack.c.l.b16 %v6011
  %v6028 = vunpack.c.l.b16 %v6012
  %v6029 = vunpack.c.l.b16 %v6013
  %v6030 = vrot.slane %v6022, 6
  %v6031 = vrot.slane %v6026, 5
  %v6032 = vsel %vm3923, %v6031, %v6030
  %v6033 = vrot.slane %v6023, 6
  %v6034 = vrot.slane %v6027, 5
  %v6035 = vsel %vm3923, %v6034, %v6033
  %v6036 = vrot.slane %v6024, 6
  %v6037 = vrot.slane %v6028, 5
  %v6038 = vsel %vm3923, %v6037, %v6036
  %v6039 = vrot.slane %v6025, 6
  %v6040 = vrot.slane %v6029, 5
  %v6041 = vsel %vm3923, %v6040, %v6039
  %v6042 = vpack.c.b16 %v6032, %v6032
  %v6043 = vpack.c.b16 %v6035, %v6035
  %v6044 = vpack.c.b16 %v6038, %v6038
  %v6045 = vpack.c.b16 %v6041, %v6041
  %6050 = vmatprep.subr.bf16.mxu0 %v5061
  %6051 = vmatpush1.bf16.msra.mxu0 %v5060
  %6052 = vmatprep.subr.bf16.mxu0 %v5063
  %6053 = vmatpush1.bf16.msra.mxu0 %v5062
  %6054 = vmatprep.subr.bf16.mxu0 %v5065
  %6055 = vmatpush1.bf16.msra.mxu0 %v5064
  %6056 = vmatprep.subr.bf16.mxu0 %v5067
  %6057 = vmatpush1.bf16.msra.mxu0 %v5066
  %6058 = vmatprep.subr.bf16.mxu0 %v5069
  %6059 = vmatpush1.bf16.msra.mxu0 %v5068
  %6060 = vmatprep.subr.bf16.mxu0 %v5071
  %6061 = vmatpush1.bf16.msra.mxu0 %v5070
  %6062 = vmatprep.subr.bf16.mxu0 %v5073
  %6063 = vmatpush1.bf16.msra.mxu0 %v5072
  %6064 = vmatprep.subr.bf16.mxu0 %v5075
  %6065 = vmatpush1.bf16.msra.mxu0 %v5074
  %6066 = vmatprep.subr.bf16.mxu0 %v5077
  %6067 = vmatpush1.bf16.msra.mxu0 %v5076
  %6068 = vmatprep.subr.bf16.mxu0 %v5079
  %6069 = vmatpush1.bf16.msra.mxu0 %v5078
  %6070 = vmatprep.subr.bf16.mxu0 %v5081
  %6071 = vmatpush1.bf16.msra.mxu0 %v5080
  %6072 = vmatprep.subr.bf16.mxu0 %v5083
  %6073 = vmatpush1.bf16.msra.mxu0 %v5082
  %6074 = vmatprep.subr.bf16.mxu0 %v5085
  %6075 = vmatpush1.bf16.msra.mxu0 %v5084
  %6076 = vmatprep.subr.bf16.mxu0 %v5087
  %6077 = vmatpush1.bf16.msra.mxu0 %v5086
  %6078 = vmatprep.subr.bf16.mxu0 %v5089
  %6079 = vmatpush1.bf16.msra.mxu0 %v5088
  %6080 = vmatprep.subr.bf16.mxu0 %v5091
  %6081 = vmatpush1.bf16.msra.mxu0 %v5090
  %6082 = vmatprep.mubr.bf16.mxu0 %v6043
  %6083 = vmatmul.mubr.bf16.gmra.mrb[0].mxu0 %v6042
  %v6084 = vpop.f32.mrb[0].mxu0
  %v6085 = vadd.f32 0.0, %v6084
  %v6086 = vpop.f32.mrb[0].mxu0
  %v6087 = vadd.f32 0.0, %v6086
  %v6088 = vpop.f32.mrb[0].mxu0
  %v6089 = vpop.f32.mrb[0].mxu0
  %6090 = vdwg.mxu0
  %6091 = vmatprep.subr.bf16.mxu0 %v5093
  %6092 = vmatpush1.bf16.msra.mxu0 %v5092
  %6093 = vmatprep.subr.bf16.mxu0 %v5095
  %6094 = vmatpush1.bf16.msra.mxu0 %v5094
  %6095 = vmatprep.subr.bf16.mxu0 %v5097
  %6096 = vmatpush1.bf16.msra.mxu0 %v5096
  %6097 = vmatprep.subr.bf16.mxu0 %v5099
  %6098 = vmatpush1.bf16.msra.mxu0 %v5098
  %6099 = vmatprep.subr.bf16.mxu0 %v5101
  %6100 = vmatpush1.bf16.msra.mxu0 %v5100
  %6101 = vmatprep.subr.bf16.mxu0 %v5103
  %6102 = vmatpush1.bf16.msra.mxu0 %v5102
  %6103 = vmatprep.subr.bf16.mxu0 %v5105
  %6104 = vmatpush1.bf16.msra.mxu0 %v5104
  %6105 = vmatprep.subr.bf16.mxu0 %v5107
  %6106 = vmatpush1.bf16.msra.mxu0 %v5106
  %6107 = vmatprep.subr.bf16.mxu0 %v5109
  %6108 = vmatpush1.bf16.msra.mxu0 %v5108
  %6109 = vmatprep.subr.bf16.mxu0 %v5111
  %6110 = vmatpush1.bf16.msra.mxu0 %v5110
  %6111 = vmatprep.subr.bf16.mxu0 %v5113
  %6112 = vmatpush1.bf16.msra.mxu0 %v5112
  %6113 = vmatprep.subr.bf16.mxu0 %v5115
  %6114 = vmatpush1.bf16.msra.mxu0 %v5114
  %6115 = vmatprep.subr.bf16.mxu0 %v5117
  %6116 = vmatpush1.bf16.msra.mxu0 %v5116
  %6117 = vmatprep.subr.bf16.mxu0 %v5119
  %6118 = vmatpush1.bf16.msra.mxu0 %v5118
  %6119 = vmatprep.subr.bf16.mxu0 %v5121
  %6120 = vmatpush1.bf16.msra.mxu0 %v5120
  %6121 = vmatprep.subr.bf16.mxu0 %v5123
  %6122 = vmatpush1.bf16.msra.mxu0 %v5122
  %6123 = vmatprep.mubr.bf16.mxu0 %v6045
  %6124 = vmatmul.mubr.bf16.gmra.mrb[0].mxu0 %v6044
  %v6125 = vpop.f32.mrb[0].mxu0
  %v6126 = vadd.f32 %v6085, %v6125
  %v6127 = vpop.f32.mrb[0].mxu0
  %v6128 = vadd.f32 %v6087, %v6127
  %v6129 = vpop.f32.mrb[0].mxu0
  %v6130 = vpop.f32.mrb[0].mxu0
  %6131 = vdwg.mxu0
  %v6132 = vadd.f32 %v6000, %v6126
  %v6133 = vadd.f32 %v6002, %v6128
  %v6134 = vrot.slane %v6022, 7
  %v6135 = vrot.slane %v6026, 6
  %v6136 = vsel %vm3923, %v6135, %v6134
  %v6137 = vrot.slane %v6023, 7
  %v6138 = vrot.slane %v6027, 6
  %v6139 = vsel %vm3923, %v6138, %v6137
  %v6140 = vrot.slane %v6024, 7
  %v6141 = vrot.slane %v6028, 6
  %v6142 = vsel %vm3923, %v6141, %v6140
  %v6143 = vrot.slane %v6025, 7
  %v6144 = vrot.slane %v6029, 6
  %v6145 = vsel %vm3923, %v6144, %v6143
  %v6146 = vpack.c.b16 %v6136, %v6136
  %v6147 = vpack.c.b16 %v6139, %v6139
  %v6148 = vpack.c.b16 %v6142, %v6142
  %v6149 = vpack.c.b16 %v6145, %v6145
  %6154 = vmatprep.subr.bf16.mxu0 %v5550
  %6155 = vmatpush1.bf16.msra.mxu0 %v5549
  %6156 = vmatprep.subr.bf16.mxu0 %v5552
  %6157 = vmatpush1.bf16.msra.mxu0 %v5551
  %6158 = vmatprep.subr.bf16.mxu0 %v5554
  %6159 = vmatpush1.bf16.msra.mxu0 %v5553
  %6160 = vmatprep.subr.bf16.mxu0 %v5556
  %6161 = vmatpush1.bf16.msra.mxu0 %v5555
  %6162 = vmatprep.subr.bf16.mxu0 %v5558
  %6163 = vmatpush1.bf16.msra.mxu0 %v5557
  %6164 = vmatprep.subr.bf16.mxu0 %v5560
  %6165 = vmatpush1.bf16.msra.mxu0 %v5559
  %6166 = vmatprep.subr.bf16.mxu0 %v5562
  %6167 = vmatpush1.bf16.msra.mxu0 %v5561
  %6168 = vmatprep.subr.bf16.mxu0 %v5564
  %6169 = vmatpush1.bf16.msra.mxu0 %v5563
  %6170 = vmatprep.subr.bf16.mxu0 %v5566
  %6171 = vmatpush1.bf16.msra.mxu0 %v5565
  %6172 = vmatprep.subr.bf16.mxu0 %v5568
  %6173 = vmatpush1.bf16.msra.mxu0 %v5567
  %6174 = vmatprep.subr.bf16.mxu0 %v5570
  %6175 = vmatpush1.bf16.msra.mxu0 %v5569
  %6176 = vmatprep.subr.bf16.mxu0 %v5572
  %6177 = vmatpush1.bf16.msra.mxu0 %v5571
  %6178 = vmatprep.subr.bf16.mxu0 %v5574
  %6179 = vmatpush1.bf16.msra.mxu0 %v5573
  %6180 = vmatprep.subr.bf16.mxu0 %v5576
  %6181 = vmatpush1.bf16.msra.mxu0 %v5575
  %6182 = vmatprep.subr.bf16.mxu0 %v5578
  %6183 = vmatpush1.bf16.msra.mxu0 %v5577
  %6184 = vmatprep.subr.bf16.mxu0 %v5580
  %6185 = vmatpush1.bf16.msra.mxu0 %v5579
  %6186 = vmatprep.mubr.bf16.mxu0 %v6147
  %6187 = vmatmul.mubr.bf16.gmra.mrb[0].mxu0 %v6146
  %v6188 = vpop.f32.mrb[0].mxu0
  %v6189 = vadd.f32 0.0, %v6188
  %v6190 = vpop.f32.mrb[0].mxu0
  %v6191 = vadd.f32 0.0, %v6190
  %v6192 = vpop.f32.mrb[0].mxu0
  %v6193 = vpop.f32.mrb[0].mxu0
  %6194 = vdwg.mxu0
  %6195 = vmatprep.subr.bf16.mxu0 %v5582
  %6196 = vmatpush1.bf16.msra.mxu0 %v5581
  %6197 = vmatprep.subr.bf16.mxu0 %v5584
  %6198 = vmatpush1.bf16.msra.mxu0 %v5583
  %6199 = vmatprep.subr.bf16.mxu0 %v5586
  %6200 = vmatpush1.bf16.msra.mxu0 %v5585
  %6201 = vmatprep.subr.bf16.mxu0 %v5588
  %6202 = vmatpush1.bf16.msra.mxu0 %v5587
  %6203 = vmatprep.subr.bf16.mxu0 %v5590
  %6204 = vmatpush1.bf16.msra.mxu0 %v5589
  %6205 = vmatprep.subr.bf16.mxu0 %v5592
  %6206 = vmatpush1.bf16.msra.mxu0 %v5591
  %6207 = vmatprep.subr.bf16.mxu0 %v5594
  %6208 = vmatpush1.bf16.msra.mxu0 %v5593
  %6209 = vmatprep.subr.bf16.mxu0 %v5596
  %6210 = vmatpush1.bf16.msra.mxu0 %v5595
  %6211 = vmatprep.subr.bf16.mxu0 %v5598
  %6212 = vmatpush1.bf16.msra.mxu0 %v5597
  %6213 = vmatprep.subr.bf16.mxu0 %v5600
  %6214 = vmatpush1.bf16.msra.mxu0 %v5599
  %6215 = vmatprep.subr.bf16.mxu0 %v5602
  %6216 = vmatpush1.bf16.msra.mxu0 %v5601
  %6217 = vmatprep.subr.bf16.mxu0 %v5604
  %6218 = vmatpush1.bf16.msra.mxu0 %v5603
  %6219 = vmatprep.subr.bf16.mxu0 %v5606
  %6220 = vmatpush1.bf16.msra.mxu0 %v5605
  %6221 = vmatprep.subr.bf16.mxu0 %v5608
  %6222 = vmatpush1.bf16.msra.mxu0 %v5607
  %6223 = vmatprep.subr.bf16.mxu0 %v5610
  %6224 = vmatpush1.bf16.msra.mxu0 %v5609
  %6225 = vmatprep.subr.bf16.mxu0 %v5612
  %6226 = vmatpush1.bf16.msra.mxu0 %v5611
  %6227 = vmatprep.mubr.bf16.mxu0 %v6149
  %6228 = vmatmul.mubr.bf16.gmra.mrb[0].mxu0 %v6148
  %v6229 = vpop.f32.mrb[0].mxu0
  %v6230 = vadd.f32 %v6189, %v6229
  %v6231 = vpop.f32.mrb[0].mxu0
  %v6232 = vadd.f32 %v6191, %v6231
  %v6233 = vpop.f32.mrb[0].mxu0
  %v6234 = vpop.f32.mrb[0].mxu0
  %6235 = vdwg.mxu0
  %v6236 = vadd.f32 %v6132, %v6230
  %v6237 = vadd.f32 %v6133, %v6232
  %v6238 = vadd.f32 %v6236, %v5765
  %v6239 = vadd.f32 %v6237, %v5769
  %v6240 = vmax.f32 %v6238, 0.0
  %v6241 = vmax.f32 %v6239, 0.0
  %v6242 = vpack.c.bf16 %v6240, %v6240
  %v6243 = vpack.c.bf16 %v6241, %v6241
  %v6244 = vld [vmem:[#allocation2] sm:$0x10]
  %v6245 = vld [vmem:[#allocation2 + $0x8] sm:$0x10]
  %v6246 = vld [vmem:[#allocation2 + $0x10] sm:$0x10]
  %v6247 = vld [vmem:[#allocation2 + $0x18] sm:$0x10]
  %v6248 = vld [vmem:[#allocation2 + $0x20] sm:$0x10]
  %v6249 = vld [vmem:[#allocation2 + $0x28] sm:$0x10]
  %v6250 = vld [vmem:[#allocation2 + $0x30] sm:$0x10]
  %v6251 = vld [vmem:[#allocation2 + $0x38] sm:$0x10]
  %v6260 = vunpack.c.h.b16 %v6244
  %v6261 = vunpack.c.h.b16 %v6245
  %v6262 = vunpack.c.h.b16 %v6246
  %v6263 = vunpack.c.h.b16 %v6247
  %v6264 = vunpack.c.h.b16 %v6248
  %v6265 = vunpack.c.h.b16 %v6249
  %v6266 = vunpack.c.h.b16 %v6250
  %v6267 = vunpack.c.h.b16 %v6251
  %v6268 = vrot.slane %v6260, 1
  %v6269 = vsel %vm3923, %v6264, %v6268
  %v6270 = vrot.slane %v6261, 1
  %v6271 = vsel %vm3923, %v6265, %v6270
  %v6272 = vrot.slane %v6262, 1
  %v6273 = vsel %vm3923, %v6266, %v6272
  %v6274 = vrot.slane %v6263, 1
  %v6275 = vsel %vm3923, %v6267, %v6274
  %v6276 = vpack.c.b16 %v6269, %v6269
  %v6277 = vpack.c.b16 %v6271, %v6271
  %v6278 = vpack.c.b16 %v6273, %v6273
  %v6279 = vpack.c.b16 %v6275, %v6275
  %6284 = vmatprep.subr.bf16.mxu0 %v4132
  %6285 = vmatpush1.bf16.msra.mxu0 %v4131
  %6286 = vmatprep.subr.bf16.mxu0 %v4134
  %6287 = vmatpush1.bf16.msra.mxu0 %v4133
  %6288 = vmatprep.subr.bf16.mxu0 %v4136
  %6289 = vmatpush1.bf16.msra.mxu0 %v4135
  %6290 = vmatprep.subr.bf16.mxu0 %v4138
  %6291 = vmatpush1.bf16.msra.mxu0 %v4137
  %6292 = vmatprep.subr.bf16.mxu0 %v4140
  %6293 = vmatpush1.bf16.msra.mxu0 %v4139
  %6294 = vmatprep.subr.bf16.mxu0 %v4142
  %6295 = vmatpush1.bf16.msra.mxu0 %v4141
  %6296 = vmatprep.subr.bf16.mxu0 %v4144
  %6297 = vmatpush1.bf16.msra.mxu0 %v4143
  %6298 = vmatprep.subr.bf16.mxu0 %v4146
  %6299 = vmatpush1.bf16.msra.mxu0 %v4145
  %6300 = vmatprep.subr.bf16.mxu0 %v4148
  %6301 = vmatpush1.bf16.msra.mxu0 %v4147
  %6302 = vmatprep.subr.bf16.mxu0 %v4150
  %6303 = vmatpush1.bf16.msra.mxu0 %v4149
  %6304 = vmatprep.subr.bf16.mxu0 %v4152
  %6305 = vmatpush1.bf16.msra.mxu0 %v4151
  %6306 = vmatprep.subr.bf16.mxu0 %v4154
  %6307 = vmatpush1.bf16.msra.mxu0 %v4153
  %6308 = vmatprep.subr.bf16.mxu0 %v4156
  %6309 = vmatpush1.bf16.msra.mxu0 %v4155
  %6310 = vmatprep.subr.bf16.mxu0 %v4158
  %6311 = vmatpush1.bf16.msra.mxu0 %v4157
  %6312 = vmatprep.subr.bf16.mxu0 %v4160
  %6313 = vmatpush1.bf16.msra.mxu0 %v4159
  %6314 = vmatprep.subr.bf16.mxu0 %v4162
  %6315 = vmatpush1.bf16.msra.mxu0 %v4161
  %6316 = vmatprep.mubr.bf16.mxu0 %v6277
  %6317 = vmatmul.mubr.bf16.gmra.mrb[0].mxu0 %v6276
  %v6318 = vpop.f32.mrb[0].mxu0
  %v6319 = vadd.f32 0.0, %v6318
  %v6320 = vpop.f32.mrb[0].mxu0
  %v6321 = vadd.f32 0.0, %v6320
  %v6322 = vpop.f32.mrb[0].mxu0
  %v6323 = vpop.f32.mrb[0].mxu0
  %6324 = vdwg.mxu0
  %6325 = vmatprep.subr.bf16.mxu0 %v4164
  %6326 = vmatpush1.bf16.msra.mxu0 %v4163
  %6327 = vmatprep.subr.bf16.mxu0 %v4166
  %6328 = vmatpush1.bf16.msra.mxu0 %v4165
  %6329 = vmatprep.subr.bf16.mxu0 %v4168
  %6330 = vmatpush1.bf16.msra.mxu0 %v4167
  %6331 = vmatprep.subr.bf16.mxu0 %v4170
  %6332 = vmatpush1.bf16.msra.mxu0 %v4169
  %6333 = vmatprep.subr.bf16.mxu0 %v4172
  %6334 = vmatpush1.bf16.msra.mxu0 %v4171
  %6335 = vmatprep.subr.bf16.mxu0 %v4174
  %6336 = vmatpush1.bf16.msra.mxu0 %v4173
  %6337 = vmatprep.subr.bf16.mxu0 %v4176
  %6338 = vmatpush1.bf16.msra.mxu0 %v4175
  %6339 = vmatprep.subr.bf16.mxu0 %v4178
  %6340 = vmatpush1.bf16.msra.mxu0 %v4177
  %6341 = vmatprep.subr.bf16.mxu0 %v4180
  %6342 = vmatpush1.bf16.msra.mxu0 %v4179
  %6343 = vmatprep.subr.bf16.mxu0 %v4182
  %6344 = vmatpush1.bf16.msra.mxu0 %v4181
  %6345 = vmatprep.subr.bf16.mxu0 %v4184
  %6346 = vmatpush1.bf16.msra.mxu0 %v4183
  %6347 = vmatprep.subr.bf16.mxu0 %v4186
  %6348 = vmatpush1.bf16.msra.mxu0 %v4185
  %6349 = vmatprep.subr.bf16.mxu0 %v4188
  %6350 = vmatpush1.bf16.msra.mxu0 %v4187
  %6351 = vmatprep.subr.bf16.mxu0 %v4190
  %6352 = vmatpush1.bf16.msra.mxu0 %v4189
  %6353 = vmatprep.subr.bf16.mxu0 %v4192
  %6354 = vmatpush1.bf16.msra.mxu0 %v4191
  %6355 = vmatprep.subr.bf16.mxu0 %v4194
  %6356 = vmatpush1.bf16.msra.mxu0 %v4193
  %6357 = vmatprep.mubr.bf16.mxu0 %v6279
  %6358 = vmatmul.mubr.bf16.gmra.mrb[0].mxu0 %v6278
  %v6359 = vpop.f32.mrb[0].mxu0
  %v6360 = vadd.f32 %v6319, %v6359
  %v6361 = vpop.f32.mrb[0].mxu0
  %v6362 = vadd.f32 %v6321, %v6361
  %v6363 = vpop.f32.mrb[0].mxu0
  %v6364 = vpop.f32.mrb[0].mxu0
  %6365 = vdwg.mxu0
  %v6366 = vrot.slane %v6264, 7
  %v6367 = vsel %vm3923, %v6366, %v6260
  %v6368 = vrot.slane %v6265, 7
  %v6369 = vsel %vm3923, %v6368, %v6261
  %v6370 = vrot.slane %v6266, 7
  %v6371 = vsel %vm3923, %v6370, %v6262
  %v6372 = vrot.slane %v6267, 7
  %v6373 = vsel %vm3923, %v6372, %v6263
  %v6374 = vpack.c.b16 %v6367, %v6367
  %v6375 = vpack.c.b16 %v6369, %v6369
  %v6376 = vpack.c.b16 %v6371, %v6371
  %v6377 = vpack.c.b16 %v6373, %v6373
  %6382 = vmatprep.subr.bf16.mxu0 %v4550
  %6383 = vmatpush1.bf16.msra.mxu0 %v4549
  %6384 = vmatprep.subr.bf16.mxu0 %v4552
  %6385 = vmatpush1.bf16.msra.mxu0 %v4551
  %6386 = vmatprep.subr.bf16.mxu0 %v4554
  %6387 = vmatpush1.bf16.msra.mxu0 %v4553
  %6388 = vmatprep.subr.bf16.mxu0 %v4556
  %6389 = vmatpush1.bf16.msra.mxu0 %v4555
  %6390 = vmatprep.subr.bf16.mxu0 %v4558
  %6391 = vmatpush1.bf16.msra.mxu0 %v4557
  %6392 = vmatprep.subr.bf16.mxu0 %v4560
  %6393 = vmatpush1.bf16.msra.mxu0 %v4559
  %6394 = vmatprep.subr.bf16.mxu0 %v4562
  %6395 = vmatpush1.bf16.msra.mxu0 %v4561
  %6396 = vmatprep.subr.bf16.mxu0 %v4564
  %6397 = vmatpush1.bf16.msra.mxu0 %v4563
  %6398 = vmatprep.subr.bf16.mxu0 %v4566
  %6399 = vmatpush1.bf16.msra.mxu0 %v4565
  %6400 = vmatprep.subr.bf16.mxu0 %v4568
  %6401 = vmatpush1.bf16.msra.mxu0 %v4567
  %6402 = vmatprep.subr.bf16.mxu0 %v4570
  %6403 = vmatpush1.bf16.msra.mxu0 %v4569
  %6404 = vmatprep.subr.bf16.mxu0 %v4572
  %6405 = vmatpush1.bf16.msra.mxu0 %v4571
  %6406 = vmatprep.subr.bf16.mxu0 %v4574
  %6407 = vmatpush1.bf16.msra.mxu0 %v4573
  %6408 = vmatprep.subr.bf16.mxu0 %v4576
  %6409 = vmatpush1.bf16.msra.mxu0 %v4575
  %6410 = vmatprep.subr.bf16.mxu0 %v4578
  %6411 = vmatpush1.bf16.msra.mxu0 %v4577
  %6412 = vmatprep.subr.bf16.mxu0 %v4580
  %6413 = vmatpush1.bf16.msra.mxu0 %v4579
  %6414 = vmatprep.mubr.bf16.mxu0 %v6375
  %6415 = vmatmul.mubr.bf16.gmra.mrb[0].mxu0 %v6374
  %v6416 = vpop.f32.mrb[0].mxu0
  %v6417 = vadd.f32 %v6360, %v6416
  %v6418 = vpop.f32.mrb[0].mxu0
  %v6419 = vadd.f32 %v6362, %v6418
  %v6420 = vpop.f32.mrb[0].mxu0
  %v6421 = vpop.f32.mrb[0].mxu0
  %6422 = vdwg.mxu0
  %6423 = vmatprep.subr.bf16.mxu0 %v4582
  %6424 = vmatpush1.bf16.msra.mxu0 %v4581
  %6425 = vmatprep.subr.bf16.mxu0 %v4584
  %6426 = vmatpush1.bf16.msra.mxu0 %v4583
  %6427 = vmatprep.subr.bf16.mxu0 %v4586
  %6428 = vmatpush1.bf16.msra.mxu0 %v4585
  %6429 = vmatprep.subr.bf16.mxu0 %v4588
  %6430 = vmatpush1.bf16.msra.mxu0 %v4587
  %6431 = vmatprep.subr.bf16.mxu0 %v4590
  %6432 = vmatpush1.bf16.msra.mxu0 %v4589
  %6433 = vmatprep.subr.bf16.mxu0 %v4592
  %6434 = vmatpush1.bf16.msra.mxu0 %v4591
  %6435 = vmatprep.subr.bf16.mxu0 %v4594
  %6436 = vmatpush1.bf16.msra.mxu0 %v4593
  %6437 = vmatprep.subr.bf16.mxu0 %v4596
  %6438 = vmatpush1.bf16.msra.mxu0 %v4595
  %6439 = vmatprep.subr.bf16.mxu0 %v4598
  %6440 = vmatpush1.bf16.msra.mxu0 %v4597
  %6441 = vmatprep.subr.bf16.mxu0 %v4600
  %6442 = vmatpush1.bf16.msra.mxu0 %v4599
  %6443 = vmatprep.subr.bf16.mxu0 %v4602
  %6444 = vmatpush1.bf16.msra.mxu0 %v4601
  %6445 = vmatprep.subr.bf16.mxu0 %v4604
  %6446 = vmatpush1.bf16.msra.mxu0 %v4603
  %6447 = vmatprep.subr.bf16.mxu0 %v4606
  %6448 = vmatpush1.bf16.msra.mxu0 %v4605
  %6449 = vmatprep.subr.bf16.mxu0 %v4608
  %6450 = vmatpush1.bf16.msra.mxu0 %v4607
  %6451 = vmatprep.subr.bf16.mxu0 %v4610
  %6452 = vmatpush1.bf16.msra.mxu0 %v4609
  %6453 = vmatprep.subr.bf16.mxu0 %v4612
  %6454 = vmatpush1.bf16.msra.mxu0 %v4611
  %6455 = vmatprep.mubr.bf16.mxu0 %v6377
  %6456 = vmatmul.mubr.bf16.gmra.mrb[0].mxu0 %v6376
  %v6457 = vpop.f32.mrb[0].mxu0
  %v6458 = vadd.f32 %v6417, %v6457
  %v6459 = vpop.f32.mrb[0].mxu0
  %v6460 = vadd.f32 %v6419, %v6459
  %v6461 = vpop.f32.mrb[0].mxu0
  %v6462 = vpop.f32.mrb[0].mxu0
  %6463 = vdwg.mxu0
  %v6464 = vld [vmem:[#allocation2] sm:$0x20]
  %v6465 = vld [vmem:[#allocation2 + $0x8] sm:$0x20]
  %v6466 = vld [vmem:[#allocation2 + $0x10] sm:$0x20]
  %v6467 = vld [vmem:[#allocation2 + $0x18] sm:$0x20]
  %v6468 = vld [vmem:[#allocation2 + $0x20] sm:$0x20]
  %v6469 = vld [vmem:[#allocation2 + $0x28] sm:$0x20]
  %v6470 = vld [vmem:[#allocation2 + $0x30] sm:$0x20]
  %v6471 = vld [vmem:[#allocation2 + $0x38] sm:$0x20]
  %v6480 = vunpack.c.h.b16 %v6464
  %v6481 = vunpack.c.h.b16 %v6465
  %v6482 = vunpack.c.h.b16 %v6466
  %v6483 = vunpack.c.h.b16 %v6467
  %v6484 = vunpack.c.h.b16 %v6468
  %v6485 = vunpack.c.h.b16 %v6469
  %v6486 = vunpack.c.h.b16 %v6470
  %v6487 = vunpack.c.h.b16 %v6471
  %v6488 = vrot.slane %v6480, 2
  %v6489 = vrot.slane %v6484, 1
  %v6490 = vsel %vm3923, %v6489, %v6488
  %v6491 = vrot.slane %v6481, 2
  %v6492 = vrot.slane %v6485, 1
  %v6493 = vsel %vm3923, %v6492, %v6491
  %v6494 = vrot.slane %v6482, 2
  %v6495 = vrot.slane %v6486, 1
  %v6496 = vsel %vm3923, %v6495, %v6494
  %v6497 = vrot.slane %v6483, 2
  %v6498 = vrot.slane %v6487, 1
  %v6499 = vsel %vm3923, %v6498, %v6497
  %v6500 = vpack.c.b16 %v6490, %v6490
  %v6501 = vpack.c.b16 %v6493, %v6493
  %v6502 = vpack.c.b16 %v6496, %v6496
  %v6503 = vpack.c.b16 %v6499, %v6499
  %6508 = vmatprep.subr.bf16.mxu0 %v5061
  %6509 = vmatpush1.bf16.msra.mxu0 %v5060
  %6510 = vmatprep.subr.bf16.mxu0 %v5063
  %6511 = vmatpush1.bf16.msra.mxu0 %v5062
  %6512 = vmatprep.subr.bf16.mxu0 %v5065
  %6513 = vmatpush1.bf16.msra.mxu0 %v5064
  %6514 = vmatprep.subr.bf16.mxu0 %v5067
  %6515 = vmatpush1.bf16.msra.mxu0 %v5066
  %6516 = vmatprep.subr.bf16.mxu0 %v5069
  %6517 = vmatpush1.bf16.msra.mxu0 %v5068
  %6518 = vmatprep.subr.bf16.mxu0 %v5071
  %6519 = vmatpush1.bf16.msra.mxu0 %v5070
  %6520 = vmatprep.subr.bf16.mxu0 %v5073
  %6521 = vmatpush1.bf16.msra.mxu0 %v5072
  %6522 = vmatprep.subr.bf16.mxu0 %v5075
  %6523 = vmatpush1.bf16.msra.mxu0 %v5074
  %6524 = vmatprep.subr.bf16.mxu0 %v5077
  %6525 = vmatpush1.bf16.msra.mxu0 %v5076
  %6526 = vmatprep.subr.bf16.mxu0 %v5079
  %6527 = vmatpush1.bf16.msra.mxu0 %v5078
  %6528 = vmatprep.subr.bf16.mxu0 %v5081
  %6529 = vmatpush1.bf16.msra.mxu0 %v5080
  %6530 = vmatprep.subr.bf16.mxu0 %v5083
  %6531 = vmatpush1.bf16.msra.mxu0 %v5082
  %6532 = vmatprep.subr.bf16.mxu0 %v5085
  %6533 = vmatpush1.bf16.msra.mxu0 %v5084
  %6534 = vmatprep.subr.bf16.mxu0 %v5087
  %6535 = vmatpush1.bf16.msra.mxu0 %v5086
  %6536 = vmatprep.subr.bf16.mxu0 %v5089
  %6537 = vmatpush1.bf16.msra.mxu0 %v5088
  %6538 = vmatprep.subr.bf16.mxu0 %v5091
  %6539 = vmatpush1.bf16.msra.mxu0 %v5090
  %6540 = vmatprep.mubr.bf16.mxu0 %v6501
  %6541 = vmatmul.mubr.bf16.gmra.mrb[0].mxu0 %v6500
  %v6542 = vpop.f32.mrb[0].mxu0
  %v6543 = vadd.f32 0.0, %v6542
  %v6544 = vpop.f32.mrb[0].mxu0
  %v6545 = vadd.f32 0.0, %v6544
  %v6546 = vpop.f32.mrb[0].mxu0
  %v6547 = vpop.f32.mrb[0].mxu0
  %6548 = vdwg.mxu0
  %6549 = vmatprep.subr.bf16.mxu0 %v5093
  %6550 = vmatpush1.bf16.msra.mxu0 %v5092
  %6551 = vmatprep.subr.bf16.mxu0 %v5095
  %6552 = vmatpush1.bf16.msra.mxu0 %v5094
  %6553 = vmatprep.subr.bf16.mxu0 %v5097
  %6554 = vmatpush1.bf16.msra.mxu0 %v5096
  %6555 = vmatprep.subr.bf16.mxu0 %v5099
  %6556 = vmatpush1.bf16.msra.mxu0 %v5098
  %6557 = vmatprep.subr.bf16.mxu0 %v5101
  %6558 = vmatpush1.bf16.msra.mxu0 %v5100
  %6559 = vmatprep.subr.bf16.mxu0 %v5103
  %6560 = vmatpush1.bf16.msra.mxu0 %v5102
  %6561 = vmatprep.subr.bf16.mxu0 %v5105
  %6562 = vmatpush1.bf16.msra.mxu0 %v5104
  %6563 = vmatprep.subr.bf16.mxu0 %v5107
  %6564 = vmatpush1.bf16.msra.mxu0 %v5106
  %6565 = vmatprep.subr.bf16.mxu0 %v5109
  %6566 = vmatpush1.bf16.msra.mxu0 %v5108
  %6567 = vmatprep.subr.bf16.mxu0 %v5111
  %6568 = vmatpush1.bf16.msra.mxu0 %v5110
  %6569 = vmatprep.subr.bf16.mxu0 %v5113
  %6570 = vmatpush1.bf16.msra.mxu0 %v5112
  %6571 = vmatprep.subr.bf16.mxu0 %v5115
  %6572 = vmatpush1.bf16.msra.mxu0 %v5114
  %6573 = vmatprep.subr.bf16.mxu0 %v5117
  %6574 = vmatpush1.bf16.msra.mxu0 %v5116
  %6575 = vmatprep.subr.bf16.mxu0 %v5119
  %6576 = vmatpush1.bf16.msra.mxu0 %v5118
  %6577 = vmatprep.subr.bf16.mxu0 %v5121
  %6578 = vmatpush1.bf16.msra.mxu0 %v5120
  %6579 = vmatprep.subr.bf16.mxu0 %v5123
  %6580 = vmatpush1.bf16.msra.mxu0 %v5122
  %6581 = vmatprep.mubr.bf16.mxu0 %v6503
  %6582 = vmatmul.mubr.bf16.gmra.mrb[0].mxu0 %v6502
  %v6583 = vpop.f32.mrb[0].mxu0
  %v6584 = vadd.f32 %v6543, %v6583
  %v6585 = vpop.f32.mrb[0].mxu0
  %v6586 = vadd.f32 %v6545, %v6585
  %v6587 = vpop.f32.mrb[0].mxu0
  %v6588 = vpop.f32.mrb[0].mxu0
  %6589 = vdwg.mxu0
  %v6590 = vadd.f32 %v6458, %v6584
  %v6591 = vadd.f32 %v6460, %v6586
  %v6592 = vrot.slane %v6480, 3
  %v6593 = vrot.slane %v6484, 2
  %v6594 = vsel %vm3923, %v6593, %v6592
  %v6595 = vrot.slane %v6481, 3
  %v6596 = vrot.slane %v6485, 2
  %v6597 = vsel %vm3923, %v6596, %v6595
  %v6598 = vrot.slane %v6482, 3
  %v6599 = vrot.slane %v6486, 2
  %v6600 = vsel %vm3923, %v6599, %v6598
  %v6601 = vrot.slane %v6483, 3
  %v6602 = vrot.slane %v6487, 2
  %v6603 = vsel %vm3923, %v6602, %v6601
  %v6604 = vpack.c.b16 %v6594, %v6594
  %v6605 = vpack.c.b16 %v6597, %v6597
  %v6606 = vpack.c.b16 %v6600, %v6600
  %v6607 = vpack.c.b16 %v6603, %v6603
  %6612 = vmatprep.subr.bf16.mxu0 %v5550
  %6613 = vmatpush1.bf16.msra.mxu0 %v5549
  %6614 = vmatprep.subr.bf16.mxu0 %v5552
  %6615 = vmatpush1.bf16.msra.mxu0 %v5551
  %6616 = vmatprep.subr.bf16.mxu0 %v5554
  %6617 = vmatpush1.bf16.msra.mxu0 %v5553
  %6618 = vmatprep.subr.bf16.mxu0 %v5556
  %6619 = vmatpush1.bf16.msra.mxu0 %v5555
  %6620 = vmatprep.subr.bf16.mxu0 %v5558
  %6621 = vmatpush1.bf16.msra.mxu0 %v5557
  %6622 = vmatprep.subr.bf16.mxu0 %v5560
  %6623 = vmatpush1.bf16.msra.mxu0 %v5559
  %6624 = vmatprep.subr.bf16.mxu0 %v5562
  %6625 = vmatpush1.bf16.msra.mxu0 %v5561
  %6626 = vmatprep.subr.bf16.mxu0 %v5564
  %6627 = vmatpush1.bf16.msra.mxu0 %v5563
  %6628 = vmatprep.subr.bf16.mxu0 %v5566
  %6629 = vmatpush1.bf16.msra.mxu0 %v5565
  %6630 = vmatprep.subr.bf16.mxu0 %v5568
  %6631 = vmatpush1.bf16.msra.mxu0 %v5567
  %6632 = vmatprep.subr.bf16.mxu0 %v5570
  %6633 = vmatpush1.bf16.msra.mxu0 %v5569
  %6634 = vmatprep.subr.bf16.mxu0 %v5572
  %6635 = vmatpush1.bf16.msra.mxu0 %v5571
  %6636 = vmatprep.subr.bf16.mxu0 %v5574
  %6637 = vmatpush1.bf16.msra.mxu0 %v5573
  %6638 = vmatprep.subr.bf16.mxu0 %v5576
  %6639 = vmatpush1.bf16.msra.mxu0 %v5575
  %6640 = vmatprep.subr.bf16.mxu0 %v5578
  %6641 = vmatpush1.bf16.msra.mxu0 %v5577
  %6642 = vmatprep.subr.bf16.mxu0 %v5580
  %6643 = vmatpush1.bf16.msra.mxu0 %v5579
  %6644 = vmatprep.mubr.bf16.mxu0 %v6605
  %6645 = vmatmul.mubr.bf16.gmra.mrb[0].mxu0 %v6604
  %v6646 = vpop.f32.mrb[0].mxu0
  %v6647 = vadd.f32 0.0, %v6646
  %v6648 = vpop.f32.mrb[0].mxu0
  %v6649 = vadd.f32 0.0, %v6648
  %v6650 = vpop.f32.mrb[0].mxu0
  %v6651 = vpop.f32.mrb[0].mxu0
  %6652 = vdwg.mxu0
  %6653 = vmatprep.subr.bf16.mxu0 %v5582
  %6654 = vmatpush1.bf16.msra.mxu0 %v5581
  %6655 = vmatprep.subr.bf16.mxu0 %v5584
  %6656 = vmatpush1.bf16.msra.mxu0 %v5583
  %6657 = vmatprep.subr.bf16.mxu0 %v5586
  %6658 = vmatpush1.bf16.msra.mxu0 %v5585
  %6659 = vmatprep.subr.bf16.mxu0 %v5588
  %6660 = vmatpush1.bf16.msra.mxu0 %v5587
  %6661 = vmatprep.subr.bf16.mxu0 %v5590
  %6662 = vmatpush1.bf16.msra.mxu0 %v5589
  %6663 = vmatprep.subr.bf16.mxu0 %v5592
  %6664 = vmatpush1.bf16.msra.mxu0 %v5591
  %6665 = vmatprep.subr.bf16.mxu0 %v5594
  %6666 = vmatpush1.bf16.msra.mxu0 %v5593
  %6667 = vmatprep.subr.bf16.mxu0 %v5596
  %6668 = vmatpush1.bf16.msra.mxu0 %v5595
  %6669 = vmatprep.subr.bf16.mxu0 %v5598
  %6670 = vmatpush1.bf16.msra.mxu0 %v5597
  %6671 = vmatprep.subr.bf16.mxu0 %v5600
  %6672 = vmatpush1.bf16.msra.mxu0 %v5599
  %6673 = vmatprep.subr.bf16.mxu0 %v5602
  %6674 = vmatpush1.bf16.msra.mxu0 %v5601
  %6675 = vmatprep.subr.bf16.mxu0 %v5604
  %6676 = vmatpush1.bf16.msra.mxu0 %v5603
  %6677 = vmatprep.subr.bf16.mxu0 %v5606
  %6678 = vmatpush1.bf16.msra.mxu0 %v5605
  %6679 = vmatprep.subr.bf16.mxu0 %v5608
  %6680 = vmatpush1.bf16.msra.mxu0 %v5607
  %6681 = vmatprep.subr.bf16.mxu0 %v5610
  %6682 = vmatpush1.bf16.msra.mxu0 %v5609
  %6683 = vmatprep.subr.bf16.mxu0 %v5612
  %6684 = vmatpush1.bf16.msra.mxu0 %v5611
  %6685 = vmatprep.mubr.bf16.mxu0 %v6607
  %6686 = vmatmul.mubr.bf16.gmra.mrb[0].mxu0 %v6606
  %v6687 = vpop.f32.mrb[0].mxu0
  %v6688 = vadd.f32 %v6647, %v6687
  %v6689 = vpop.f32.mrb[0].mxu0
  %v6690 = vadd.f32 %v6649, %v6689
  %v6691 = vpop.f32.mrb[0].mxu0
  %v6692 = vpop.f32.mrb[0].mxu0
  %6693 = vdwg.mxu0
  %v6694 = vadd.f32 %v6590, %v6688
  %v6695 = vadd.f32 %v6591, %v6690
  %v6696 = vadd.f32 %v6694, %v5765
  %v6697 = vadd.f32 %v6695, %v5769
  %v6698 = vmax.f32 %v6696, 0.0
  %v6699 = vmax.f32 %v6697, 0.0
  %v6700 = vpack.c.bf16 %v6698, %v6698
  %v6701 = vpack.c.bf16 %v6699, %v6699
  %v6702 = vld [vmem:[#allocation2] sm:$0x40]
  %v6703 = vld [vmem:[#allocation2 + $0x8] sm:$0x40]
  %v6704 = vld [vmem:[#allocation2 + $0x10] sm:$0x40]
  %v6705 = vld [vmem:[#allocation2 + $0x18] sm:$0x40]
  %v6706 = vld [vmem:[#allocation2 + $0x20] sm:$0x40]
  %v6707 = vld [vmem:[#allocation2 + $0x28] sm:$0x40]
  %v6708 = vld [vmem:[#allocation2 + $0x30] sm:$0x40]
  %v6709 = vld [vmem:[#allocation2 + $0x38] sm:$0x40]
  %v6718 = vunpack.c.h.b16 %v6702
  %v6719 = vunpack.c.h.b16 %v6703
  %v6720 = vunpack.c.h.b16 %v6704
  %v6721 = vunpack.c.h.b16 %v6705
  %v6722 = vunpack.c.h.b16 %v6706
  %v6723 = vunpack.c.h.b16 %v6707
  %v6724 = vunpack.c.h.b16 %v6708
  %v6725 = vunpack.c.h.b16 %v6709
  %v6726 = vrot.slane %v6718, 5
  %v6727 = vrot.slane %v6722, 4
  %v6728 = vsel %vm3923, %v6727, %v6726
  %v6729 = vrot.slane %v6719, 5
  %v6730 = vrot.slane %v6723, 4
  %v6731 = vsel %vm3923, %v6730, %v6729
  %v6732 = vrot.slane %v6720, 5
  %v6733 = vrot.slane %v6724, 4
  %v6734 = vsel %vm3923, %v6733, %v6732
  %v6735 = vrot.slane %v6721, 5
  %v6736 = vrot.slane %v6725, 4
  %v6737 = vsel %vm3923, %v6736, %v6735
  %v6738 = vpack.c.b16 %v6728, %v6728
  %v6739 = vpack.c.b16 %v6731, %v6731
  %v6740 = vpack.c.b16 %v6734, %v6734
  %v6741 = vpack.c.b16 %v6737, %v6737
  %6746 = vmatprep.subr.bf16.mxu0 %v4132
  %6747 = vmatpush1.bf16.msra.mxu0 %v4131
  %6748 = vmatprep.subr.bf16.mxu0 %v4134
  %6749 = vmatpush1.bf16.msra.mxu0 %v4133
  %6750 = vmatprep.subr.bf16.mxu0 %v4136
  %6751 = vmatpush1.bf16.msra.mxu0 %v4135
  %6752 = vmatprep.subr.bf16.mxu0 %v4138
  %6753 = vmatpush1.bf16.msra.mxu0 %v4137
  %6754 = vmatprep.subr.bf16.mxu0 %v4140
  %6755 = vmatpush1.bf16.msra.mxu0 %v4139
  %6756 = vmatprep.subr.bf16.mxu0 %v4142
  %6757 = vmatpush1.bf16.msra.mxu0 %v4141
  %6758 = vmatprep.subr.bf16.mxu0 %v4144
  %6759 = vmatpush1.bf16.msra.mxu0 %v4143
  %6760 = vmatprep.subr.bf16.mxu0 %v4146
  %6761 = vmatpush1.bf16.msra.mxu0 %v4145
  %6762 = vmatprep.subr.bf16.mxu0 %v4148
  %6763 = vmatpush1.bf16.msra.mxu0 %v4147
  %6764 = vmatprep.subr.bf16.mxu0 %v4150
  %6765 = vmatpush1.bf16.msra.mxu0 %v4149
  %6766 = vmatprep.subr.bf16.mxu0 %v4152
  %6767 = vmatpush1.bf16.msra.mxu0 %v4151
  %6768 = vmatprep.subr.bf16.mxu0 %v4154
  %6769 = vmatpush1.bf16.msra.mxu0 %v4153
  %6770 = vmatprep.subr.bf16.mxu0 %v4156
  %6771 = vmatpush1.bf16.msra.mxu0 %v4155
  %6772 = vmatprep.subr.bf16.mxu0 %v4158
  %6773 = vmatpush1.bf16.msra.mxu0 %v4157
  %6774 = vmatprep.subr.bf16.mxu0 %v4160
  %6775 = vmatpush1.bf16.msra.mxu0 %v4159
  %6776 = vmatprep.subr.bf16.mxu0 %v4162
  %6777 = vmatpush1.bf16.msra.mxu0 %v4161
  %6778 = vmatprep.mubr.bf16.mxu0 %v6739
  %6779 = vmatmul.mubr.bf16.gmra.mrb[0].mxu0 %v6738
  %v6780 = vpop.f32.mrb[0].mxu0
  %v6781 = vadd.f32 0.0, %v6780
  %v6782 = vpop.f32.mrb[0].mxu0
  %v6783 = vadd.f32 0.0, %v6782
  %v6784 = vpop.f32.mrb[0].mxu0
  %v6785 = vpop.f32.mrb[0].mxu0
  %6786 = vdwg.mxu0
  %6787 = vmatprep.subr.bf16.mxu0 %v4164
  %6788 = vmatpush1.bf16.msra.mxu0 %v4163
  %6789 = vmatprep.subr.bf16.mxu0 %v4166
  %6790 = vmatpush1.bf16.msra.mxu0 %v4165
  %6791 = vmatprep.subr.bf16.mxu0 %v4168
  %6792 = vmatpush1.bf16.msra.mxu0 %v4167
  %6793 = vmatprep.subr.bf16.mxu0 %v4170
  %6794 = vmatpush1.bf16.msra.mxu0 %v4169
  %6795 = vmatprep.subr.bf16.mxu0 %v4172
  %6796 = vmatpush1.bf16.msra.mxu0 %v4171
  %6797 = vmatprep.subr.bf16.mxu0 %v4174
  %6798 = vmatpush1.bf16.msra.mxu0 %v4173
  %6799 = vmatprep.subr.bf16.mxu0 %v4176
  %6800 = vmatpush1.bf16.msra.mxu0 %v4175
  %6801 = vmatprep.subr.bf16.mxu0 %v4178
  %6802 = vmatpush1.bf16.msra.mxu0 %v4177
  %6803 = vmatprep.subr.bf16.mxu0 %v4180
  %6804 = vmatpush1.bf16.msra.mxu0 %v4179
  %6805 = vmatprep.subr.bf16.mxu0 %v4182
  %6806 = vmatpush1.bf16.msra.mxu0 %v4181
  %6807 = vmatprep.subr.bf16.mxu0 %v4184
  %6808 = vmatpush1.bf16.msra.mxu0 %v4183
  %6809 = vmatprep.subr.bf16.mxu0 %v4186
  %6810 = vmatpush1.bf16.msra.mxu0 %v4185
  %6811 = vmatprep.subr.bf16.mxu0 %v4188
  %6812 = vmatpush1.bf16.msra.mxu0 %v4187
  %6813 = vmatprep.subr.bf16.mxu0 %v4190
  %6814 = vmatpush1.bf16.msra.mxu0 %v4189
  %6815 = vmatprep.subr.bf16.mxu0 %v4192
  %6816 = vmatpush1.bf16.msra.mxu0 %v4191
  %6817 = vmatprep.subr.bf16.mxu0 %v4194
  %6818 = vmatpush1.bf16.msra.mxu0 %v4193
  %6819 = vmatprep.mubr.bf16.mxu0 %v6741
  %6820 = vmatmul.mubr.bf16.gmra.mrb[0].mxu0 %v6740
  %v6821 = vpop.f32.mrb[0].mxu0
  %v6822 = vadd.f32 %v6781, %v6821
  %v6823 = vpop.f32.mrb[0].mxu0
  %v6824 = vadd.f32 %v6783, %v6823
  %v6825 = vpop.f32.mrb[0].mxu0
  %v6826 = vpop.f32.mrb[0].mxu0
  %6827 = vdwg.mxu0
  %v6828 = vrot.slane %v6718, 4
  %v6829 = vrot.slane %v6722, 3
  %v6830 = vsel %vm3923, %v6829, %v6828
  %v6831 = vrot.slane %v6719, 4
  %v6832 = vrot.slane %v6723, 3
  %v6833 = vsel %vm3923, %v6832, %v6831
  %v6834 = vrot.slane %v6720, 4
  %v6835 = vrot.slane %v6724, 3
  %v6836 = vsel %vm3923, %v6835, %v6834
  %v6837 = vrot.slane %v6721, 4
  %v6838 = vrot.slane %v6725, 3
  %v6839 = vsel %vm3923, %v6838, %v6837
  %v6840 = vpack.c.b16 %v6830, %v6830
  %v6841 = vpack.c.b16 %v6833, %v6833
  %v6842 = vpack.c.b16 %v6836, %v6836
  %v6843 = vpack.c.b16 %v6839, %v6839
  %6848 = vmatprep.subr.bf16.mxu0 %v4550
  %6849 = vmatpush1.bf16.msra.mxu0 %v4549
  %6850 = vmatprep.subr.bf16.mxu0 %v4552
  %6851 = vmatpush1.bf16.msra.mxu0 %v4551
  %6852 = vmatprep.subr.bf16.mxu0 %v4554
  %6853 = vmatpush1.bf16.msra.mxu0 %v4553
  %6854 = vmatprep.subr.bf16.mxu0 %v4556
  %6855 = vmatpush1.bf16.msra.mxu0 %v4555
  %6856 = vmatprep.subr.bf16.mxu0 %v4558
  %6857 = vmatpush1.bf16.msra.mxu0 %v4557
  %6858 = vmatprep.subr.bf16.mxu0 %v4560
  %6859 = vmatpush1.bf16.msra.mxu0 %v4559
  %6860 = vmatprep.subr.bf16.mxu0 %v4562
  %6861 = vmatpush1.bf16.msra.mxu0 %v4561
  %6862 = vmatprep.subr.bf16.mxu0 %v4564
  %6863 = vmatpush1.bf16.msra.mxu0 %v4563
  %6864 = vmatprep.subr.bf16.mxu0 %v4566
  %6865 = vmatpush1.bf16.msra.mxu0 %v4565
  %6866 = vmatprep.subr.bf16.mxu0 %v4568
  %6867 = vmatpush1.bf16.msra.mxu0 %v4567
  %6868 = vmatprep.subr.bf16.mxu0 %v4570
  %6869 = vmatpush1.bf16.msra.mxu0 %v4569
  %6870 = vmatprep.subr.bf16.mxu0 %v4572
  %6871 = vmatpush1.bf16.msra.mxu0 %v4571
  %6872 = vmatprep.subr.bf16.mxu0 %v4574
  %6873 = vmatpush1.bf16.msra.mxu0 %v4573
  %6874 = vmatprep.subr.bf16.mxu0 %v4576
  %6875 = vmatpush1.bf16.msra.mxu0 %v4575
  %6876 = vmatprep.subr.bf16.mxu0 %v4578
  %6877 = vmatpush1.bf16.msra.mxu0 %v4577
  %6878 = vmatprep.subr.bf16.mxu0 %v4580
  %6879 = vmatpush1.bf16.msra.mxu0 %v4579
  %6880 = vmatprep.mubr.bf16.mxu0 %v6841
  %6881 = vmatmul.mubr.bf16.gmra.mrb[0].mxu0 %v6840
  %v6882 = vpop.f32.mrb[0].mxu0
  %v6883 = vadd.f32 %v6822, %v6882
  %v6884 = vpop.f32.mrb[0].mxu0
  %v6885 = vadd.f32 %v6824, %v6884
  %v6886 = vpop.f32.mrb[0].mxu0
  %v6887 = vpop.f32.mrb[0].mxu0
  %6888 = vdwg.mxu0
  %6889 = vmatprep.subr.bf16.mxu0 %v4582
  %6890 = vmatpush1.bf16.msra.mxu0 %v4581
  %6891 = vmatprep.subr.bf16.mxu0 %v4584
  %6892 = vmatpush1.bf16.msra.mxu0 %v4583
  %6893 = vmatprep.subr.bf16.mxu0 %v4586
  %6894 = vmatpush1.bf16.msra.mxu0 %v4585
  %6895 = vmatprep.subr.bf16.mxu0 %v4588
  %6896 = vmatpush1.bf16.msra.mxu0 %v4587
  %6897 = vmatprep.subr.bf16.mxu0 %v4590
  %6898 = vmatpush1.bf16.msra.mxu0 %v4589
  %6899 = vmatprep.subr.bf16.mxu0 %v4592
  %6900 = vmatpush1.bf16.msra.mxu0 %v4591
  %6901 = vmatprep.subr.bf16.mxu0 %v4594
  %6902 = vmatpush1.bf16.msra.mxu0 %v4593
  %6903 = vmatprep.subr.bf16.mxu0 %v4596
  %6904 = vmatpush1.bf16.msra.mxu0 %v4595
  %6905 = vmatprep.subr.bf16.mxu0 %v4598
  %6906 = vmatpush1.bf16.msra.mxu0 %v4597
  %6907 = vmatprep.subr.bf16.mxu0 %v4600
  %6908 = vmatpush1.bf16.msra.mxu0 %v4599
  %6909 = vmatprep.subr.bf16.mxu0 %v4602
  %6910 = vmatpush1.bf16.msra.mxu0 %v4601
  %6911 = vmatprep.subr.bf16.mxu0 %v4604
  %6912 = vmatpush1.bf16.msra.mxu0 %v4603
  %6913 = vmatprep.subr.bf16.mxu0 %v4606
  %6914 = vmatpush1.bf16.msra.mxu0 %v4605
  %6915 = vmatprep.subr.bf16.mxu0 %v4608
  %6916 = vmatpush1.bf16.msra.mxu0 %v4607
  %6917 = vmatprep.subr.bf16.mxu0 %v4610
  %6918 = vmatpush1.bf16.msra.mxu0 %v4609
  %6919 = vmatprep.subr.bf16.mxu0 %v4612
  %6920 = vmatpush1.bf16.msra.mxu0 %v4611
  %6921 = vmatprep.mubr.bf16.mxu0 %v6843
  %6922 = vmatmul.mubr.bf16.gmra.mrb[0].mxu0 %v6842
  %v6923 = vpop.f32.mrb[0].mxu0
  %v6924 = vadd.f32 %v6883, %v6923
  %v6925 = vpop.f32.mrb[0].mxu0
  %v6926 = vadd.f32 %v6885, %v6925
  %v6927 = vpop.f32.mrb[0].mxu0
  %v6928 = vpop.f32.mrb[0].mxu0
  %6929 = vdwg.mxu0
  %v6930 = vld [vmem:[#allocation2] sm:$0x80]
  %v6931 = vld [vmem:[#allocation2 + $0x8] sm:$0x80]
  %v6932 = vld [vmem:[#allocation2 + $0x10] sm:$0x80]
  %v6933 = vld [vmem:[#allocation2 + $0x18] sm:$0x80]
  %v6934 = vld [vmem:[#allocation2 + $0x20] sm:$0x80]
  %v6935 = vld [vmem:[#allocation2 + $0x28] sm:$0x80]
  %v6936 = vld [vmem:[#allocation2 + $0x30] sm:$0x80]
  %v6937 = vld [vmem:[#allocation2 + $0x38] sm:$0x80]
  %v6946 = vunpack.c.h.b16 %v6930
  %v6947 = vunpack.c.h.b16 %v6931
  %v6948 = vunpack.c.h.b16 %v6932
  %v6949 = vunpack.c.h.b16 %v6933
  %v6950 = vunpack.c.h.b16 %v6934
  %v6951 = vunpack.c.h.b16 %v6935
  %v6952 = vunpack.c.h.b16 %v6936
  %v6953 = vunpack.c.h.b16 %v6937
  %v6954 = vrot.slane %v6946, 6
  %v6955 = vrot.slane %v6950, 5
  %v6956 = vsel %vm3923, %v6955, %v6954
  %v6957 = vrot.slane %v6947, 6
  %v6958 = vrot.slane %v6951, 5
  %v6959 = vsel %vm3923, %v6958, %v6957
  %v6960 = vrot.slane %v6948, 6
  %v6961 = vrot.slane %v6952, 5
  %v6962 = vsel %vm3923, %v6961, %v6960
  %v6963 = vrot.slane %v6949, 6
  %v6964 = vrot.slane %v6953, 5
  %v6965 = vsel %vm3923, %v6964, %v6963
  %v6966 = vpack.c.b16 %v6956, %v6956
  %v6967 = vpack.c.b16 %v6959, %v6959
  %v6968 = vpack.c.b16 %v6962, %v6962
  %v6969 = vpack.c.b16 %v6965, %v6965
  %6974 = vmatprep.subr.bf16.mxu0 %v5061
  %6975 = vmatpush1.bf16.msra.mxu0 %v5060
  %6976 = vmatprep.subr.bf16.mxu0 %v5063
  %6977 = vmatpush1.bf16.msra.mxu0 %v5062
  %6978 = vmatprep.subr.bf16.mxu0 %v5065
  %6979 = vmatpush1.bf16.msra.mxu0 %v5064
  %6980 = vmatprep.subr.bf16.mxu0 %v5067
  %6981 = vmatpush1.bf16.msra.mxu0 %v5066
  %6982 = vmatprep.subr.bf16.mxu0 %v5069
  %6983 = vmatpush1.bf16.msra.mxu0 %v5068
  %6984 = vmatprep.subr.bf16.mxu0 %v5071
  %6985 = vmatpush1.bf16.msra.mxu0 %v5070
  %6986 = vmatprep.subr.bf16.mxu0 %v5073
  %6987 = vmatpush1.bf16.msra.mxu0 %v5072
  %6988 = vmatprep.subr.bf16.mxu0 %v5075
  %6989 = vmatpush1.bf16.msra.mxu0 %v5074
  %6990 = vmatprep.subr.bf16.mxu0 %v5077
  %6991 = vmatpush1.bf16.msra.mxu0 %v5076
  %6992 = vmatprep.subr.bf16.mxu0 %v5079
  %6993 = vmatpush1.bf16.msra.mxu0 %v5078
  %6994 = vmatprep.subr.bf16.mxu0 %v5081
  %6995 = vmatpush1.bf16.msra.mxu0 %v5080
  %6996 = vmatprep.subr.bf16.mxu0 %v5083
  %6997 = vmatpush1.bf16.msra.mxu0 %v5082
  %6998 = vmatprep.subr.bf16.mxu0 %v5085
  %6999 = vmatpush1.bf16.msra.mxu0 %v5084
  %7000 = vmatprep.subr.bf16.mxu0 %v5087
  %7001 = vmatpush1.bf16.msra.mxu0 %v5086
  %7002 = vmatprep.subr.bf16.mxu0 %v5089
  %7003 = vmatpush1.bf16.msra.mxu0 %v5088
  %7004 = vmatprep.subr.bf16.mxu0 %v5091
  %7005 = vmatpush1.bf16.msra.mxu0 %v5090
  %7006 = vmatprep.mubr.bf16.mxu0 %v6967
  %7007 = vmatmul.mubr.bf16.gmra.mrb[0].mxu0 %v6966
  %v7008 = vpop.f32.mrb[0].mxu0
  %v7009 = vadd.f32 0.0, %v7008
  %v7010 = vpop.f32.mrb[0].mxu0
  %v7011 = vadd.f32 0.0, %v7010
  %v7012 = vpop.f32.mrb[0].mxu0
  %v7013 = vpop.f32.mrb[0].mxu0
  %7014 = vdwg.mxu0
  %7015 = vmatprep.subr.bf16.mxu0 %v5093
  %7016 = vmatpush1.bf16.msra.mxu0 %v5092
  %7017 = vmatprep.subr.bf16.mxu0 %v5095
  %7018 = vmatpush1.bf16.msra.mxu0 %v5094
  %7019 = vmatprep.subr.bf16.mxu0 %v5097
  %7020 = vmatpush1.bf16.msra.mxu0 %v5096
  %7021 = vmatprep.subr.bf16.mxu0 %v5099
  %7022 = vmatpush1.bf16.msra.mxu0 %v5098
  %7023 = vmatprep.subr.bf16.mxu0 %v5101
  %7024 = vmatpush1.bf16.msra.mxu0 %v5100
  %7025 = vmatprep.subr.bf16.mxu0 %v5103
  %7026 = vmatpush1.bf16.msra.mxu0 %v5102
  %7027 = vmatprep.subr.bf16.mxu0 %v5105
  %7028 = vmatpush1.bf16.msra.mxu0 %v5104
  %7029 = vmatprep.subr.bf16.mxu0 %v5107
  %7030 = vmatpush1.bf16.msra.mxu0 %v5106
  %7031 = vmatprep.subr.bf16.mxu0 %v5109
  %7032 = vmatpush1.bf16.msra.mxu0 %v5108
  %7033 = vmatprep.subr.bf16.mxu0 %v5111
  %7034 = vmatpush1.bf16.msra.mxu0 %v5110
  %7035 = vmatprep.subr.bf16.mxu0 %v5113
  %7036 = vmatpush1.bf16.msra.mxu0 %v5112
  %7037 = vmatprep.subr.bf16.mxu0 %v5115
  %7038 = vmatpush1.bf16.msra.mxu0 %v5114
  %7039 = vmatprep.subr.bf16.mxu0 %v5117
  %7040 = vmatpush1.bf16.msra.mxu0 %v5116
  %7041 = vmatprep.subr.bf16.mxu0 %v5119
  %7042 = vmatpush1.bf16.msra.mxu0 %v5118
  %7043 = vmatprep.subr.bf16.mxu0 %v5121
  %7044 = vmatpush1.bf16.msra.mxu0 %v5120
  %7045 = vmatprep.subr.bf16.mxu0 %v5123
  %7046 = vmatpush1.bf16.msra.mxu0 %v5122
  %7047 = vmatprep.mubr.bf16.mxu0 %v6969
  %7048 = vmatmul.mubr.bf16.gmra.mrb[0].mxu0 %v6968
  %v7049 = vpop.f32.mrb[0].mxu0
  %v7050 = vadd.f32 %v7009, %v7049
  %v7051 = vpop.f32.mrb[0].mxu0
  %v7052 = vadd.f32 %v7011, %v7051
  %v7053 = vpop.f32.mrb[0].mxu0
  %v7054 = vpop.f32.mrb[0].mxu0
  %7055 = vdwg.mxu0
  %v7056 = vadd.f32 %v6924, %v7050
  %v7057 = vadd.f32 %v6926, %v7052
  %v7058 = vrot.slane %v6946, 7
  %v7059 = vrot.slane %v6950, 6
  %v7060 = vsel %vm3923, %v7059, %v7058
  %v7061 = vrot.slane %v6947, 7
  %v7062 = vrot.slane %v6951, 6
  %v7063 = vsel %vm3923, %v7062, %v7061
  %v7064 = vrot.slane %v6948, 7
  %v7065 = vrot.slane %v6952, 6
  %v7066 = vsel %vm3923, %v7065, %v7064
  %v7067 = vrot.slane %v6949, 7
  %v7068 = vrot.slane %v6953, 6
  %v7069 = vsel %vm3923, %v7068, %v7067
  %v7070 = vpack.c.b16 %v7060, %v7060
  %v7071 = vpack.c.b16 %v7063, %v7063
  %v7072 = vpack.c.b16 %v7066, %v7066
  %v7073 = vpack.c.b16 %v7069, %v7069
  %7078 = vmatprep.subr.bf16.mxu0 %v5550
  %7079 = vmatpush1.bf16.msra.mxu0 %v5549
  %7080 = vmatprep.subr.bf16.mxu0 %v5552
  %7081 = vmatpush1.bf16.msra.mxu0 %v5551
  %7082 = vmatprep.subr.bf16.mxu0 %v5554
  %7083 = vmatpush1.bf16.msra.mxu0 %v5553
  %7084 = vmatprep.subr.bf16.mxu0 %v5556
  %7085 = vmatpush1.bf16.msra.mxu0 %v5555
  %7086 = vmatprep.subr.bf16.mxu0 %v5558
  %7087 = vmatpush1.bf16.msra.mxu0 %v5557
  %7088 = vmatprep.subr.bf16.mxu0 %v5560
  %7089 = vmatpush1.bf16.msra.mxu0 %v5559
  %7090 = vmatprep.subr.bf16.mxu0 %v5562
  %7091 = vmatpush1.bf16.msra.mxu0 %v5561
  %7092 = vmatprep.subr.bf16.mxu0 %v5564
  %7093 = vmatpush1.bf16.msra.mxu0 %v5563
  %7094 = vmatprep.subr.bf16.mxu0 %v5566
  %7095 = vmatpush1.bf16.msra.mxu0 %v5565
  %7096 = vmatprep.subr.bf16.mxu0 %v5568
  %7097 = vmatpush1.bf16.msra.mxu0 %v5567
  %7098 = vmatprep.subr.bf16.mxu0 %v5570
  %7099 = vmatpush1.bf16.msra.mxu0 %v5569
  %7100 = vmatprep.subr.bf16.mxu0 %v5572
  %7101 = vmatpush1.bf16.msra.mxu0 %v5571
  %7102 = vmatprep.subr.bf16.mxu0 %v5574
  %7103 = vmatpush1.bf16.msra.mxu0 %v5573
  %7104 = vmatprep.subr.bf16.mxu0 %v5576
  %7105 = vmatpush1.bf16.msra.mxu0 %v5575
  %7106 = vmatprep.subr.bf16.mxu0 %v5578
  %7107 = vmatpush1.bf16.msra.mxu0 %v5577
  %7108 = vmatprep.subr.bf16.mxu0 %v5580
  %7109 = vmatpush1.bf16.msra.mxu0 %v5579
  %7110 = vmatprep.mubr.bf16.mxu0 %v7071
  %7111 = vmatmul.mubr.bf16.gmra.mrb[0].mxu0 %v7070
  %v7112 = vpop.f32.mrb[0].mxu0
  %v7113 = vadd.f32 0.0, %v7112
  %v7114 = vpop.f32.mrb[0].mxu0
  %v7115 = vadd.f32 0.0, %v7114
  %v7116 = vpop.f32.mrb[0].mxu0
  %v7117 = vpop.f32.mrb[0].mxu0
  %7118 = vdwg.mxu0
  %7119 = vmatprep.subr.bf16.mxu0 %v5582
  %7120 = vmatpush1.bf16.msra.mxu0 %v5581
  %7121 = vmatprep.subr.bf16.mxu0 %v5584
  %7122 = vmatpush1.bf16.msra.mxu0 %v5583
  %7123 = vmatprep.subr.bf16.mxu0 %v5586
  %7124 = vmatpush1.bf16.msra.mxu0 %v5585
  %7125 = vmatprep.subr.bf16.mxu0 %v5588
  %7126 = vmatpush1.bf16.msra.mxu0 %v5587
  %7127 = vmatprep.subr.bf16.mxu0 %v5590
  %7128 = vmatpush1.bf16.msra.mxu0 %v5589
  %7129 = vmatprep.subr.bf16.mxu0 %v5592
  %7130 = vmatpush1.bf16.msra.mxu0 %v5591
  %7131 = vmatprep.subr.bf16.mxu0 %v5594
  %7132 = vmatpush1.bf16.msra.mxu0 %v5593
  %7133 = vmatprep.subr.bf16.mxu0 %v5596
  %7134 = vmatpush1.bf16.msra.mxu0 %v5595
  %7135 = vmatprep.subr.bf16.mxu0 %v5598
  %7136 = vmatpush1.bf16.msra.mxu0 %v5597
  %7137 = vmatprep.subr.bf16.mxu0 %v5600
  %7138 = vmatpush1.bf16.msra.mxu0 %v5599
  %7139 = vmatprep.subr.bf16.mxu0 %v5602
  %7140 = vmatpush1.bf16.msra.mxu0 %v5601
  %7141 = vmatprep.subr.bf16.mxu0 %v5604
  %7142 = vmatpush1.bf16.msra.mxu0 %v5603
  %7143 = vmatprep.subr.bf16.mxu0 %v5606
  %7144 = vmatpush1.bf16.msra.mxu0 %v5605
  %7145 = vmatprep.subr.bf16.mxu0 %v5608
  %7146 = vmatpush1.bf16.msra.mxu0 %v5607
  %7147 = vmatprep.subr.bf16.mxu0 %v5610
  %7148 = vmatpush1.bf16.msra.mxu0 %v5609
  %7149 = vmatprep.subr.bf16.mxu0 %v5612
  %7150 = vmatpush1.bf16.msra.mxu0 %v5611
  %7151 = vmatprep.mubr.bf16.mxu0 %v7073
  %7152 = vmatmul.mubr.bf16.gmra.mrb[0].mxu0 %v7072
  %v7153 = vpop.f32.mrb[0].mxu0
  %v7154 = vadd.f32 %v7113, %v7153
  %v7155 = vpop.f32.mrb[0].mxu0
  %v7156 = vadd.f32 %v7115, %v7155
  %v7157 = vpop.f32.mrb[0].mxu0
  %v7158 = vpop.f32.mrb[0].mxu0
  %7159 = vdwg.mxu0
  %v7160 = vadd.f32 %v7056, %v7154
  %v7161 = vadd.f32 %v7057, %v7156
  %v7162 = vadd.f32 %v7160, %v5765
  %v7163 = vadd.f32 %v7161, %v5769
  %v7164 = vmax.f32 %v7162, 0.0
  %v7165 = vmax.f32 %v7163, 0.0
  %v7166 = vpack.c.bf16 %v7164, %v7164
  %v7167 = vpack.c.bf16 %v7165, %v7165
  %v7168 = vld [vmem:[%s6] sm:$0xf]
  %v7169 = vld [vmem:[%s6 + $0x4] sm:$0xf]
  %v7170 = vld [vmem:[%s6 + $0x8] sm:$0xf]
  %v7171 = vld [vmem:[%s6 + $0xc] sm:$0xf]
  %v7172 = vld [vmem:[%s6 + $0x10] sm:$0xf]
  %v7173 = vld [vmem:[%s6 + $0x14] sm:$0xf]
  %v7174 = vld [vmem:[%s6 + $0x18] sm:$0xf]
  %v7175 = vld [vmem:[%s6 + $0x1c] sm:$0xf]
  %v7176 = vld [vmem:[%s6 + $0x20] sm:$0xf]
  %v7177 = vld [vmem:[%s6 + $0x24] sm:$0xf]
  %v7178 = vld [vmem:[%s6 + $0x28] sm:$0xf]
  %v7179 = vld [vmem:[%s6 + $0x2c] sm:$0xf]
  %v7180 = vld [vmem:[%s6 + $0x30] sm:$0xf]
  %v7181 = vld [vmem:[%s6 + $0x34] sm:$0xf]
  %v7182 = vld [vmem:[%s6 + $0x38] sm:$0xf]
  %v7183 = vld [vmem:[%s6 + $0x3c] sm:$0xf]
  %v7184 = vld [vmem:[%s6 + $0x40] sm:$0xf]
  %v7185 = vld [vmem:[%s6 + $0x44] sm:$0xf]
  %v7186 = vld [vmem:[%s6 + $0x48] sm:$0xf]
  %v7187 = vld [vmem:[%s6 + $0x4c] sm:$0xf]
  %v7188 = vld [vmem:[%s6 + $0x50] sm:$0xf]
  %v7189 = vld [vmem:[%s6 + $0x54] sm:$0xf]
  %v7190 = vld [vmem:[%s6 + $0x58] sm:$0xf]
  %v7191 = vld [vmem:[%s6 + $0x5c] sm:$0xf]
  %v7192 = vld [vmem:[%s6 + $0x60] sm:$0xf]
  %v7193 = vld [vmem:[%s6 + $0x64] sm:$0xf]
  %v7194 = vld [vmem:[%s6 + $0x68] sm:$0xf]
  %v7195 = vld [vmem:[%s6 + $0x6c] sm:$0xf]
  %v7196 = vld [vmem:[%s6 + $0x70] sm:$0xf]
  %v7197 = vld [vmem:[%s6 + $0x74] sm:$0xf]
  %v7198 = vld [vmem:[%s6 + $0x78] sm:$0xf]
  %v7199 = vld [vmem:[%s6 + $0x7c] sm:$0xf]
  %v7200 = vld [vmem:[%s6 + $0x80] sm:$0xf]
  %v7201 = vld [vmem:[%s6 + $0x84] sm:$0xf]
  %v7202 = vld [vmem:[%s6 + $0x88] sm:$0xf]
  %v7203 = vld [vmem:[%s6 + $0x8c] sm:$0xf]
  %v7204 = vld [vmem:[%s6 + $0x90] sm:$0xf]
  %v7205 = vld [vmem:[%s6 + $0x94] sm:$0xf]
  %v7206 = vld [vmem:[%s6 + $0x98] sm:$0xf]
  %v7207 = vld [vmem:[%s6 + $0x9c] sm:$0xf]
  %v7208 = vld [vmem:[%s6 + $0xa0] sm:$0xf]
  %v7209 = vld [vmem:[%s6 + $0xa4] sm:$0xf]
  %v7210 = vld [vmem:[%s6 + $0xa8] sm:$0xf]
  %v7211 = vld [vmem:[%s6 + $0xac] sm:$0xf]
  %v7212 = vld [vmem:[%s6 + $0xb0] sm:$0xf]
  %v7213 = vld [vmem:[%s6 + $0xb4] sm:$0xf]
  %v7214 = vld [vmem:[%s6 + $0xb8] sm:$0xf]
  %v7215 = vld [vmem:[%s6 + $0xbc] sm:$0xf]
  %v7216 = vld [vmem:[%s6 + $0xc0] sm:$0xf]
  %v7217 = vld [vmem:[%s6 + $0xc4] sm:$0xf]
  %v7218 = vld [vmem:[%s6 + $0xc8] sm:$0xf]
  %v7219 = vld [vmem:[%s6 + $0xcc] sm:$0xf]
  %v7220 = vld [vmem:[%s6 + $0xd0] sm:$0xf]
  %v7221 = vld [vmem:[%s6 + $0xd4] sm:$0xf]
  %v7222 = vld [vmem:[%s6 + $0xd8] sm:$0xf]
  %v7223 = vld [vmem:[%s6 + $0xdc] sm:$0xf]
  %v7224 = vld [vmem:[%s6 + $0xe0] sm:$0xf]
  %v7225 = vld [vmem:[%s6 + $0xe4] sm:$0xf]
  %v7226 = vld [vmem:[%s6 + $0xe8] sm:$0xf]
  %v7227 = vld [vmem:[%s6 + $0xec] sm:$0xf]
  %v7228 = vld [vmem:[%s6 + $0xf0] sm:$0xf]
  %v7229 = vld [vmem:[%s6 + $0xf4] sm:$0xf]
  %v7230 = vld [vmem:[%s6 + $0xf8] sm:$0xf]
  %v7231 = vld [vmem:[%s6 + $0xfc] sm:$0xf]
  %v7232 = vld [vmem:[%s6 + $0x100] sm:$0xf]
  %v7233 = vld [vmem:[%s6 + $0x104] sm:$0xf]
  %v7234 = vld [vmem:[%s6 + $0x108] sm:$0xf]
  %v7235 = vld [vmem:[%s6 + $0x10c] sm:$0xf]
  %v7236 = vld [vmem:[%s6 + $0x110] sm:$0xf]
  %v7237 = vld [vmem:[%s6 + $0x114] sm:$0xf]
  %v7238 = vld [vmem:[%s6 + $0x118] sm:$0xf]
  %v7239 = vld [vmem:[%s6 + $0x11c] sm:$0xf]
  %v7240 = vld [vmem:[%s6 + $0x120] sm:$0xf]
  %v7241 = vld [vmem:[%s6 + $0x124] sm:$0xf]
  %v7242 = vld [vmem:[%s6 + $0x128] sm:$0xf]
  %v7243 = vld [vmem:[%s6 + $0x12c] sm:$0xf]
  %v7244 = vld [vmem:[%s6 + $0x130] sm:$0xf]
  %v7245 = vld [vmem:[%s6 + $0x134] sm:$0xf]
  %v7246 = vld [vmem:[%s6 + $0x138] sm:$0xf]
  %v7247 = vld [vmem:[%s6 + $0x13c] sm:$0xf]
  %v7248 = vld [vmem:[%s6 + $0x140] sm:$0xf]
  %v7249 = vld [vmem:[%s6 + $0x144] sm:$0xf]
  %v7250 = vld [vmem:[%s6 + $0x148] sm:$0xf]
  %v7251 = vld [vmem:[%s6 + $0x14c] sm:$0xf]
  %v7252 = vld [vmem:[%s6 + $0x150] sm:$0xf]
  %v7253 = vld [vmem:[%s6 + $0x154] sm:$0xf]
  %v7254 = vld [vmem:[%s6 + $0x158] sm:$0xf]
  %v7255 = vld [vmem:[%s6 + $0x15c] sm:$0xf]
  %v7256 = vld [vmem:[%s6 + $0x160] sm:$0xf]
  %v7257 = vld [vmem:[%s6 + $0x164] sm:$0xf]
  %v7258 = vld [vmem:[%s6 + $0x168] sm:$0xf]
  %v7259 = vld [vmem:[%s6 + $0x16c] sm:$0xf]
  %v7260 = vld [vmem:[%s6 + $0x170] sm:$0xf]
  %v7261 = vld [vmem:[%s6 + $0x174] sm:$0xf]
  %v7262 = vld [vmem:[%s6 + $0x178] sm:$0xf]
  %v7263 = vld [vmem:[%s6 + $0x17c] sm:$0xf]
  %v7264 = vld [vmem:[%s6 + $0x180] sm:$0xf]
  %v7265 = vld [vmem:[%s6 + $0x184] sm:$0xf]
  %v7266 = vld [vmem:[%s6 + $0x188] sm:$0xf]
  %v7267 = vld [vmem:[%s6 + $0x18c] sm:$0xf]
  %v7268 = vld [vmem:[%s6 + $0x190] sm:$0xf]
  %v7269 = vld [vmem:[%s6 + $0x194] sm:$0xf]
  %v7270 = vld [vmem:[%s6 + $0x198] sm:$0xf]
  %v7271 = vld [vmem:[%s6 + $0x19c] sm:$0xf]
  %v7272 = vld [vmem:[%s6 + $0x1a0] sm:$0xf]
  %v7273 = vld [vmem:[%s6 + $0x1a4] sm:$0xf]
  %v7274 = vld [vmem:[%s6 + $0x1a8] sm:$0xf]
  %v7275 = vld [vmem:[%s6 + $0x1ac] sm:$0xf]
  %v7276 = vld [vmem:[%s6 + $0x1b0] sm:$0xf]
  %v7277 = vld [vmem:[%s6 + $0x1b4] sm:$0xf]
  %v7278 = vld [vmem:[%s6 + $0x1b8] sm:$0xf]
  %v7279 = vld [vmem:[%s6 + $0x1bc] sm:$0xf]
  %v7280 = vld [vmem:[%s6 + $0x1c0] sm:$0xf]
  %v7281 = vld [vmem:[%s6 + $0x1c4] sm:$0xf]
  %v7282 = vld [vmem:[%s6 + $0x1c8] sm:$0xf]
  %v7283 = vld [vmem:[%s6 + $0x1cc] sm:$0xf]
  %v7284 = vld [vmem:[%s6 + $0x1d0] sm:$0xf]
  %v7285 = vld [vmem:[%s6 + $0x1d4] sm:$0xf]
  %v7286 = vld [vmem:[%s6 + $0x1d8] sm:$0xf]
  %v7287 = vld [vmem:[%s6 + $0x1dc] sm:$0xf]
  %v7288 = vld [vmem:[%s6 + $0x1e0] sm:$0xf]
  %v7289 = vld [vmem:[%s6 + $0x1e4] sm:$0xf]
  %v7290 = vld [vmem:[%s6 + $0x1e8] sm:$0xf]
  %v7291 = vld [vmem:[%s6 + $0x1ec] sm:$0xf]
  %v7292 = vld [vmem:[%s6 + $0x1f0] sm:$0xf]
  %v7293 = vld [vmem:[%s6 + $0x1f4] sm:$0xf]
  %v7294 = vld [vmem:[%s6 + $0x1f8] sm:$0xf]
  %v7295 = vld [vmem:[%s6 + $0x1fc] sm:$0xf]
  %v7296 = vld [vmem:[%s7] sm:$0x1]
  %v7298 = vlaneseq
  %v7299 = vshrl.u32 %v7298, 7
  %v7300 = vsub.s32 0, %v7299
  %v7301 = vrot.slane %v7296, %v7300
  %v7431 = vunpack.c.l.b16 %v7168
  %v7432 = vunpack.c.l.b16 %v7169
  %v7433 = vunpack.c.l.b16 %v7170
  %v7434 = vunpack.c.l.b16 %v7171
  %v7435 = vunpack.c.l.b16 %v7172
  %v7436 = vunpack.c.l.b16 %v7173
  %v7437 = vunpack.c.l.b16 %v7174
  %v7438 = vunpack.c.l.b16 %v7175
  %v7439 = vunpack.c.l.b16 %v7176
  %v7440 = vunpack.c.l.b16 %v7177
  %v7441 = vunpack.c.l.b16 %v7178
  %v7442 = vunpack.c.l.b16 %v7179
  %v7443 = vunpack.c.l.b16 %v7180
  %v7444 = vunpack.c.l.b16 %v7181
  %v7445 = vunpack.c.l.b16 %v7182
  %v7446 = vunpack.c.l.b16 %v7183
  %v7447 = vunpack.c.l.b16 %v7184
  %v7448 = vunpack.c.l.b16 %v7185
  %v7449 = vunpack.c.l.b16 %v7186
  %v7450 = vunpack.c.l.b16 %v7187
  %v7451 = vunpack.c.l.b16 %v7188
  %v7452 = vunpack.c.l.b16 %v7189
  %v7453 = vunpack.c.l.b16 %v7190
  %v7454 = vunpack.c.l.b16 %v7191
  %v7455 = vunpack.c.l.b16 %v7192
  %v7456 = vunpack.c.l.b16 %v7193
  %v7457 = vunpack.c.l.b16 %v7194
  %v7458 = vunpack.c.l.b16 %v7195
  %v7459 = vunpack.c.l.b16 %v7196
  %v7460 = vunpack.c.l.b16 %v7197
  %v7461 = vunpack.c.l.b16 %v7198
  %v7462 = vunpack.c.l.b16 %v7199
  %v7463 = vunpack.c.l.b16 %v7200
  %v7464 = vunpack.c.l.b16 %v7201
  %v7465 = vunpack.c.l.b16 %v7202
  %v7466 = vunpack.c.l.b16 %v7203
  %v7467 = vunpack.c.l.b16 %v7204
  %v7468 = vunpack.c.l.b16 %v7205
  %v7469 = vunpack.c.l.b16 %v7206
  %v7470 = vunpack.c.l.b16 %v7207
  %v7471 = vunpack.c.l.b16 %v7208
  %v7472 = vunpack.c.l.b16 %v7209
  %v7473 = vunpack.c.l.b16 %v7210
  %v7474 = vunpack.c.l.b16 %v7211
  %v7475 = vunpack.c.l.b16 %v7212
  %v7476 = vunpack.c.l.b16 %v7213
  %v7477 = vunpack.c.l.b16 %v7214
  %v7478 = vunpack.c.l.b16 %v7215
  %v7479 = vunpack.c.l.b16 %v7216
  %v7480 = vunpack.c.l.b16 %v7217
  %v7481 = vunpack.c.l.b16 %v7218
  %v7482 = vunpack.c.l.b16 %v7219
  %v7483 = vunpack.c.l.b16 %v7220
  %v7484 = vunpack.c.l.b16 %v7221
  %v7485 = vunpack.c.l.b16 %v7222
  %v7486 = vunpack.c.l.b16 %v7223
  %v7487 = vunpack.c.l.b16 %v7224
  %v7488 = vunpack.c.l.b16 %v7225
  %v7489 = vunpack.c.l.b16 %v7226
  %v7490 = vunpack.c.l.b16 %v7227
  %v7491 = vunpack.c.l.b16 %v7228
  %v7492 = vunpack.c.l.b16 %v7229
  %v7493 = vunpack.c.l.b16 %v7230
  %v7494 = vunpack.c.l.b16 %v7231
  %v7495 = vunpack.c.l.b16 %v7232
  %v7496 = vunpack.c.l.b16 %v7233
  %v7497 = vunpack.c.l.b16 %v7234
  %v7498 = vunpack.c.l.b16 %v7235
  %v7499 = vunpack.c.l.b16 %v7236
  %v7500 = vunpack.c.l.b16 %v7237
  %v7501 = vunpack.c.l.b16 %v7238
  %v7502 = vunpack.c.l.b16 %v7239
  %v7503 = vunpack.c.l.b16 %v7240
  %v7504 = vunpack.c.l.b16 %v7241
  %v7505 = vunpack.c.l.b16 %v7242
  %v7506 = vunpack.c.l.b16 %v7243
  %v7507 = vunpack.c.l.b16 %v7244
  %v7508 = vunpack.c.l.b16 %v7245
  %v7509 = vunpack.c.l.b16 %v7246
  %v7510 = vunpack.c.l.b16 %v7247
  %v7511 = vunpack.c.l.b16 %v7248
  %v7512 = vunpack.c.l.b16 %v7249
  %v7513 = vunpack.c.l.b16 %v7250
  %v7514 = vunpack.c.l.b16 %v7251
  %v7515 = vunpack.c.l.b16 %v7252
  %v7516 = vunpack.c.l.b16 %v7253
  %v7517 = vunpack.c.l.b16 %v7254
  %v7518 = vunpack.c.l.b16 %v7255
  %v7519 = vunpack.c.l.b16 %v7256
  %v7520 = vunpack.c.l.b16 %v7257
  %v7521 = vunpack.c.l.b16 %v7258
  %v7522 = vunpack.c.l.b16 %v7259
  %v7523 = vunpack.c.l.b16 %v7260
  %v7524 = vunpack.c.l.b16 %v7261
  %v7525 = vunpack.c.l.b16 %v7262
  %v7526 = vunpack.c.l.b16 %v7263
  %v7527 = vunpack.c.l.b16 %v7264
  %v7528 = vunpack.c.l.b16 %v7265
  %v7529 = vunpack.c.l.b16 %v7266
  %v7530 = vunpack.c.l.b16 %v7267
  %v7531 = vunpack.c.l.b16 %v7268
  %v7532 = vunpack.c.l.b16 %v7269
  %v7533 = vunpack.c.l.b16 %v7270
  %v7534 = vunpack.c.l.b16 %v7271
  %v7535 = vunpack.c.l.b16 %v7272
  %v7536 = vunpack.c.l.b16 %v7273
  %v7537 = vunpack.c.l.b16 %v7274
  %v7538 = vunpack.c.l.b16 %v7275
  %v7539 = vunpack.c.l.b16 %v7276
  %v7540 = vunpack.c.l.b16 %v7277
  %v7541 = vunpack.c.l.b16 %v7278
  %v7542 = vunpack.c.l.b16 %v7279
  %v7543 = vunpack.c.l.b16 %v7280
  %v7544 = vunpack.c.l.b16 %v7281
  %v7545 = vunpack.c.l.b16 %v7282
  %v7546 = vunpack.c.l.b16 %v7283
  %v7547 = vunpack.c.l.b16 %v7284
  %v7548 = vunpack.c.l.b16 %v7285
  %v7549 = vunpack.c.l.b16 %v7286
  %v7550 = vunpack.c.l.b16 %v7287
  %v7551 = vunpack.c.l.b16 %v7288
  %v7552 = vunpack.c.l.b16 %v7289
  %v7553 = vunpack.c.l.b16 %v7290
  %v7554 = vunpack.c.l.b16 %v7291
  %v7555 = vunpack.c.l.b16 %v7292
  %v7556 = vunpack.c.l.b16 %v7293
  %v7557 = vunpack.c.l.b16 %v7294
  %v7558 = vunpack.c.l.b16 %v7295
  %v7559 = vpack.c.b16 %v7432, %v7431
  %v7560 = vpack.c.b16 %v7434, %v7433
  %v7561 = vpack.c.b16 %v7436, %v7435
  %v7562 = vpack.c.b16 %v7438, %v7437
  %v7563 = vpack.c.b16 %v7440, %v7439
  %v7564 = vpack.c.b16 %v7442, %v7441
  %v7565 = vpack.c.b16 %v7444, %v7443
  %v7566 = vpack.c.b16 %v7446, %v7445
  %v7567 = vpack.c.b16 %v7448, %v7447
  %v7568 = vpack.c.b16 %v7450, %v7449
  %v7569 = vpack.c.b16 %v7452, %v7451
  %v7570 = vpack.c.b16 %v7454, %v7453
  %v7571 = vpack.c.b16 %v7456, %v7455
  %v7572 = vpack.c.b16 %v7458, %v7457
  %v7573 = vpack.c.b16 %v7460, %v7459
  %v7574 = vpack.c.b16 %v7462, %v7461
  %v7575 = vpack.c.b16 %v7464, %v7463
  %v7576 = vpack.c.b16 %v7466, %v7465
  %v7577 = vpack.c.b16 %v7468, %v7467
  %v7578 = vpack.c.b16 %v7470, %v7469
  %v7579 = vpack.c.b16 %v7472, %v7471
  %v7580 = vpack.c.b16 %v7474, %v7473
  %v7581 = vpack.c.b16 %v7476, %v7475
  %v7582 = vpack.c.b16 %v7478, %v7477
  %v7583 = vpack.c.b16 %v7480, %v7479
  %v7584 = vpack.c.b16 %v7482, %v7481
  %v7585 = vpack.c.b16 %v7484, %v7483
  %v7586 = vpack.c.b16 %v7486, %v7485
  %v7587 = vpack.c.b16 %v7488, %v7487
  %v7588 = vpack.c.b16 %v7490, %v7489
  %v7589 = vpack.c.b16 %v7492, %v7491
  %v7590 = vpack.c.b16 %v7494, %v7493
  %v7591 = vpack.c.b16 %v7496, %v7495
  %v7592 = vpack.c.b16 %v7498, %v7497
  %v7593 = vpack.c.b16 %v7500, %v7499
  %v7594 = vpack.c.b16 %v7502, %v7501
  %v7595 = vpack.c.b16 %v7504, %v7503
  %v7596 = vpack.c.b16 %v7506, %v7505
  %v7597 = vpack.c.b16 %v7508, %v7507
  %v7598 = vpack.c.b16 %v7510, %v7509
  %v7599 = vpack.c.b16 %v7512, %v7511
  %v7600 = vpack.c.b16 %v7514, %v7513
  %v7601 = vpack.c.b16 %v7516, %v7515
  %v7602 = vpack.c.b16 %v7518, %v7517
  %v7603 = vpack.c.b16 %v7520, %v7519
  %v7604 = vpack.c.b16 %v7522, %v7521
  %v7605 = vpack.c.b16 %v7524, %v7523
  %v7606 = vpack.c.b16 %v7526, %v7525
  %v7607 = vpack.c.b16 %v7528, %v7527
  %v7608 = vpack.c.b16 %v7530, %v7529
  %v7609 = vpack.c.b16 %v7532, %v7531
  %v7610 = vpack.c.b16 %v7534, %v7533
  %v7611 = vpack.c.b16 %v7536, %v7535
  %v7612 = vpack.c.b16 %v7538, %v7537
  %v7613 = vpack.c.b16 %v7540, %v7539
  %v7614 = vpack.c.b16 %v7542, %v7541
  %v7615 = vpack.c.b16 %v7544, %v7543
  %v7616 = vpack.c.b16 %v7546, %v7545
  %v7617 = vpack.c.b16 %v7548, %v7547
  %v7618 = vpack.c.b16 %v7550, %v7549
  %v7619 = vpack.c.b16 %v7552, %v7551
  %v7620 = vpack.c.b16 %v7554, %v7553
  %v7621 = vpack.c.b16 %v7556, %v7555
  %v7622 = vpack.c.b16 %v7558, %v7557
  %7687 = vmatprep.subr.bf16.mxu0 0
  %7688 = vmatpush1.bf16.msra.mxu0 %v7559
  %7689 = vmatprep.subr.bf16.mxu0 0
  %7690 = vmatpush1.bf16.msra.mxu0 %v7560
  %7691 = vmatprep.subr.bf16.mxu0 0
  %7692 = vmatpush1.bf16.msra.mxu0 %v7561
  %7693 = vmatprep.subr.bf16.mxu0 0
  %7694 = vmatpush1.bf16.msra.mxu0 %v7562
  %7695 = vmatprep.subr.bf16.mxu0 0
  %7696 = vmatpush1.bf16.msra.mxu0 %v7563
  %7697 = vmatprep.subr.bf16.mxu0 0
  %7698 = vmatpush1.bf16.msra.mxu0 %v7564
  %7699 = vmatprep.subr.bf16.mxu0 0
  %7700 = vmatpush1.bf16.msra.mxu0 %v7565
  %7701 = vmatprep.subr.bf16.mxu0 0
  %7702 = vmatpush1.bf16.msra.mxu0 %v7566
  %7703 = vmatprep.subr.bf16.mxu0 0
  %7704 = vmatpush1.bf16.msra.mxu0 %v7567
  %7705 = vmatprep.subr.bf16.mxu0 0
  %7706 = vmatpush1.bf16.msra.mxu0 %v7568
  %7707 = vmatprep.subr.bf16.mxu0 0
  %7708 = vmatpush1.bf16.msra.mxu0 %v7569
  %7709 = vmatprep.subr.bf16.mxu0 0
  %7710 = vmatpush1.bf16.msra.mxu0 %v7570
  %7711 = vmatprep.subr.bf16.mxu0 0
  %7712 = vmatpush1.bf16.msra.mxu0 %v7571
  %7713 = vmatprep.subr.bf16.mxu0 0
  %7714 = vmatpush1.bf16.msra.mxu0 %v7572
  %7715 = vmatprep.subr.bf16.mxu0 0
  %7716 = vmatpush1.bf16.msra.mxu0 %v7573
  %7717 = vmatprep.subr.bf16.mxu0 0
  %7718 = vmatpush1.bf16.msra.mxu0 %v7574
  %7719 = vmatprep.mubr.bf16.mxu0 %v5777
  %7720 = vmatmul.mubr.bf16.gmra.mrb[0].mxu0 %v5776
  %v7721 = vpop.f32.mrb[0].mxu0
  %v7722 = vadd.f32 %v7301, %v7721
  %v7723 = vpop.f32.mrb[0].mxu0
  %v7724 = vpop.f32.mrb[0].mxu0
  %v7725 = vpop.f32.mrb[0].mxu0
  %7726 = vdwg.mxu0
  %7727 = vmatprep.subr.bf16.mxu0 0
  %7728 = vmatpush1.bf16.msra.mxu0 %v7575
  %7729 = vmatprep.subr.bf16.mxu0 0
  %7730 = vmatpush1.bf16.msra.mxu0 %v7576
  %7731 = vmatprep.subr.bf16.mxu0 0
  %7732 = vmatpush1.bf16.msra.mxu0 %v7577
  %7733 = vmatprep.subr.bf16.mxu0 0
  %7734 = vmatpush1.bf16.msra.mxu0 %v7578
  %7735 = vmatprep.subr.bf16.mxu0 0
  %7736 = vmatpush1.bf16.msra.mxu0 %v7579
  %7737 = vmatprep.subr.bf16.mxu0 0
  %7738 = vmatpush1.bf16.msra.mxu0 %v7580
  %7739 = vmatprep.subr.bf16.mxu0 0
  %7740 = vmatpush1.bf16.msra.mxu0 %v7581
  %7741 = vmatprep.subr.bf16.mxu0 0
  %7742 = vmatpush1.bf16.msra.mxu0 %v7582
  %7743 = vmatprep.subr.bf16.mxu0 0
  %7744 = vmatpush1.bf16.msra.mxu0 %v7583
  %7745 = vmatprep.subr.bf16.mxu0 0
  %7746 = vmatpush1.bf16.msra.mxu0 %v7584
  %7747 = vmatprep.subr.bf16.mxu0 0
  %7748 = vmatpush1.bf16.msra.mxu0 %v7585
  %7749 = vmatprep.subr.bf16.mxu0 0
  %7750 = vmatpush1.bf16.msra.mxu0 %v7586
  %7751 = vmatprep.subr.bf16.mxu0 0
  %7752 = vmatpush1.bf16.msra.mxu0 %v7587
  %7753 = vmatprep.subr.bf16.mxu0 0
  %7754 = vmatpush1.bf16.msra.mxu0 %v7588
  %7755 = vmatprep.subr.bf16.mxu0 0
  %7756 = vmatpush1.bf16.msra.mxu0 %v7589
  %7757 = vmatprep.subr.bf16.mxu0 0
  %7758 = vmatpush1.bf16.msra.mxu0 %v7590
  %7759 = vmatprep.mubr.bf16.mxu0 %v6243
  %7760 = vmatmul.mubr.bf16.gmra.mrb[0].mxu0 %v6242
  %v7761 = vpop.f32.mrb[0].mxu0
  %v7762 = vadd.f32 %v7722, %v7761
  %v7763 = vpop.f32.mrb[0].mxu0
  %v7764 = vpop.f32.mrb[0].mxu0
  %v7765 = vpop.f32.mrb[0].mxu0
  %7766 = vdwg.mxu0
  %7767 = vmatprep.subr.bf16.mxu0 0
  %7768 = vmatpush1.bf16.msra.mxu0 %v7591
  %7769 = vmatprep.subr.bf16.mxu0 0
  %7770 = vmatpush1.bf16.msra.mxu0 %v7592
  %7771 = vmatprep.subr.bf16.mxu0 0
  %7772 = vmatpush1.bf16.msra.mxu0 %v7593
  %7773 = vmatprep.subr.bf16.mxu0 0
  %7774 = vmatpush1.bf16.msra.mxu0 %v7594
  %7775 = vmatprep.subr.bf16.mxu0 0
  %7776 = vmatpush1.bf16.msra.mxu0 %v7595
  %7777 = vmatprep.subr.bf16.mxu0 0
  %7778 = vmatpush1.bf16.msra.mxu0 %v7596
  %7779 = vmatprep.subr.bf16.mxu0 0
  %7780 = vmatpush1.bf16.msra.mxu0 %v7597
  %7781 = vmatprep.subr.bf16.mxu0 0
  %7782 = vmatpush1.bf16.msra.mxu0 %v7598
  %7783 = vmatprep.subr.bf16.mxu0 0
  %7784 = vmatpush1.bf16.msra.mxu0 %v7599
  %7785 = vmatprep.subr.bf16.mxu0 0
  %7786 = vmatpush1.bf16.msra.mxu0 %v7600
  %7787 = vmatprep.subr.bf16.mxu0 0
  %7788 = vmatpush1.bf16.msra.mxu0 %v7601
  %7789 = vmatprep.subr.bf16.mxu0 0
  %7790 = vmatpush1.bf16.msra.mxu0 %v7602
  %7791 = vmatprep.subr.bf16.mxu0 0
  %7792 = vmatpush1.bf16.msra.mxu0 %v7603
  %7793 = vmatprep.subr.bf16.mxu0 0
  %7794 = vmatpush1.bf16.msra.mxu0 %v7604
  %7795 = vmatprep.subr.bf16.mxu0 0
  %7796 = vmatpush1.bf16.msra.mxu0 %v7605
  %7797 = vmatprep.subr.bf16.mxu0 0
  %7798 = vmatpush1.bf16.msra.mxu0 %v7606
  %7799 = vmatprep.mubr.bf16.mxu0 %v6701
  %7800 = vmatmul.mubr.bf16.gmra.mrb[0].mxu0 %v6700
  %v7801 = vpop.f32.mrb[0].mxu0
  %v7802 = vadd.f32 %v7762, %v7801
  %v7803 = vpop.f32.mrb[0].mxu0
  %v7804 = vpop.f32.mrb[0].mxu0
  %v7805 = vpop.f32.mrb[0].mxu0
  %7806 = vdwg.mxu0
  %7807 = vmatprep.subr.bf16.mxu0 0
  %7808 = vmatpush1.bf16.msra.mxu0 %v7607
  %7809 = vmatprep.subr.bf16.mxu0 0
  %7810 = vmatpush1.bf16.msra.mxu0 %v7608
  %7811 = vmatprep.subr.bf16.mxu0 0
  %7812 = vmatpush1.bf16.msra.mxu0 %v7609
  %7813 = vmatprep.subr.bf16.mxu0 0
  %7814 = vmatpush1.bf16.msra.mxu0 %v7610
  %7815 = vmatprep.subr.bf16.mxu0 0
  %7816 = vmatpush1.bf16.msra.mxu0 %v7611
  %7817 = vmatprep.subr.bf16.mxu0 0
  %7818 = vmatpush1.bf16.msra.mxu0 %v7612
  %7819 = vmatprep.subr.bf16.mxu0 0
  %7820 = vmatpush1.bf16.msra.mxu0 %v7613
  %7821 = vmatprep.subr.bf16.mxu0 0
  %7822 = vmatpush1.bf16.msra.mxu0 %v7614
  %7823 = vmatprep.subr.bf16.mxu0 0
  %7824 = vmatpush1.bf16.msra.mxu0 %v7615
  %7825 = vmatprep.subr.bf16.mxu0 0
  %7826 = vmatpush1.bf16.msra.mxu0 %v7616
  %7827 = vmatprep.subr.bf16.mxu0 0
  %7828 = vmatpush1.bf16.msra.mxu0 %v7617
  %7829 = vmatprep.subr.bf16.mxu0 0
  %7830 = vmatpush1.bf16.msra.mxu0 %v7618
  %7831 = vmatprep.subr.bf16.mxu0 0
  %7832 = vmatpush1.bf16.msra.mxu0 %v7619
  %7833 = vmatprep.subr.bf16.mxu0 0
  %7834 = vmatpush1.bf16.msra.mxu0 %v7620
  %7835 = vmatprep.subr.bf16.mxu0 0
  %7836 = vmatpush1.bf16.msra.mxu0 %v7621
  %7837 = vmatprep.subr.bf16.mxu0 0
  %7838 = vmatpush1.bf16.msra.mxu0 %v7622
  %7839 = vmatprep.mubr.bf16.mxu0 %v7167
  %7840 = vmatmul.mubr.bf16.gmra.mrb[0].mxu0 %v7166
  %v7841 = vpop.f32.mrb[0].mxu0
  %v7842 = vadd.f32 %v7802, %v7841
  %v7843 = vpop.f32.mrb[0].mxu0
  %v7844 = vpop.f32.mrb[0].mxu0
  %v7845 = vpop.f32.mrb[0].mxu0
  %7846 = vdwg.mxu0
  %v7847 = vmax.f32 %v7842, 0.0
  %v7848 = vpack.c.bf16 %v7847, %v7847
  %v7849 = vld [vmem:[%s8] sm:$0xf]
  %v7850 = vld [vmem:[%s8 + $0x4] sm:$0xf]
  %v7851 = vld [vmem:[%s8 + $0x8] sm:$0xf]
  %v7852 = vld [vmem:[%s8 + $0xc] sm:$0xf]
  %v7853 = vld [vmem:[%s8 + $0x10] sm:$0xf]
  %v7854 = vld [vmem:[%s8 + $0x14] sm:$0xf]
  %v7855 = vld [vmem:[%s8 + $0x18] sm:$0xf]
  %v7856 = vld [vmem:[%s8 + $0x1c] sm:$0xf]
  %v7857 = vld [vmem:[%s1] sm:$0x1]
  %v7858 = vld [vmem:[%s9] sm:$0xf]
  %vm7859 = vcmask 64512
  %v7861 = vsel %vm7859, %v7857, 0
  %vm7863 = vcmask 1043456
  %v7865 = vsel %vm7863, %v7858, 0
  %7867 = vmatprep.subr.bf16.mxu0 0
  %7868 = vmatpush1.bf16.msra.mxu0 %v7865
  %7869 = vmatprep.subr.bf16.mxu0 0
  %7870 = vmatpush1.bf16.msra.mxu0 0
  %7871 = vmatprep.subr.bf16.mxu0 0
  %7872 = vmatpush1.bf16.msra.mxu0 0
  %7873 = vmatprep.subr.bf16.mxu0 0
  %7874 = vmatpush1.bf16.msra.mxu0 0
  %7875 = vmatprep.subr.bf16.mxu0 0
  %7876 = vmatpush1.bf16.msra.mxu0 0
  %7877 = vmatprep.subr.bf16.mxu0 0
  %7878 = vmatpush1.bf16.msra.mxu0 0
  %7879 = vmatprep.subr.bf16.mxu0 0
  %7880 = vmatpush1.bf16.msra.mxu0 0
  %7881 = vmatprep.subr.bf16.mxu0 0
  %7882 = vmatpush1.bf16.msra.mxu0 0
  %7883 = vmatprep.subr.bf16.mxu0 0
  %7884 = vmatpush1.bf16.msra.mxu0 0
  %7885 = vmatprep.subr.bf16.mxu0 0
  %7886 = vmatpush1.bf16.msra.mxu0 0
  %7887 = vmatprep.subr.bf16.mxu0 0
  %7888 = vmatpush1.bf16.msra.mxu0 0
  %7889 = vmatprep.subr.bf16.mxu0 0
  %7890 = vmatpush1.bf16.msra.mxu0 0
  %7891 = vmatprep.subr.bf16.mxu0 0
  %7892 = vmatpush1.bf16.msra.mxu0 0
  %7893 = vmatprep.subr.bf16.mxu0 0
  %7894 = vmatpush1.bf16.msra.mxu0 0
  %7895 = vmatprep.subr.bf16.mxu0 0
  %7896 = vmatpush1.bf16.msra.mxu0 0
  %7897 = vmatprep.subr.bf16.mxu0 0
  %7898 = vmatpush1.bf16.msra.mxu0 0
  %7899 = vmatprep.mubr.bf16.mxu0 0
  %7900 = vmatmul.mubr.bf16.gmra.mrb[0].mxu0 %v7861
  %v7901 = vpop.f32.mrb[0].mxu0
  %v7902 = vadd.f32 0.0, %v7901
  %v7903 = vpop.f32.mrb[0].mxu0
  %v7904 = vpop.f32.mrb[0].mxu0
  %v7905 = vpop.f32.mrb[0].mxu0
  %7906 = vdwg.mxu0
  %v7915 = vunpack.c.l.b16 %v7849
  %v7916 = vunpack.c.l.b16 %v7850
  %v7917 = vunpack.c.l.b16 %v7851
  %v7918 = vunpack.c.l.b16 %v7852
  %v7919 = vunpack.c.l.b16 %v7853
  %v7920 = vunpack.c.l.b16 %v7854
  %v7921 = vunpack.c.l.b16 %v7855
  %v7922 = vunpack.c.l.b16 %v7856
  %v7923 = vpack.c.b16 %v7916, %v7915
  %v7924 = vpack.c.b16 %v7918, %v7917
  %v7925 = vpack.c.b16 %v7920, %v7919
  %v7926 = vpack.c.b16 %v7922, %v7921
  %vm7931 = vcmask 523264
  %v7933 = vsel %vm7931, %v7848, 0
  %7935 = vmatprep.subr.bf16.mxu0 0
  %7936 = vmatpush1.bf16.msra.mxu0 %v7923
  %7937 = vmatprep.subr.bf16.mxu0 0
  %7938 = vmatpush1.bf16.msra.mxu0 %v7924
  %7939 = vmatprep.subr.bf16.mxu0 0
  %7940 = vmatpush1.bf16.msra.mxu0 %v7925
  %7941 = vmatprep.subr.bf16.mxu0 0
  %7942 = vmatpush1.bf16.msra.mxu0 %v7926
  %7943 = vmatprep.subr.bf16.mxu0 0
  %7944 = vmatpush1.bf16.msra.mxu0 0
  %7945 = vmatprep.subr.bf16.mxu0 0
  %7946 = vmatpush1.bf16.msra.mxu0 0
  %7947 = vmatprep.subr.bf16.mxu0 0
  %7948 = vmatpush1.bf16.msra.mxu0 0
  %7949 = vmatprep.subr.bf16.mxu0 0
  %7950 = vmatpush1.bf16.msra.mxu0 0
  %7951 = vmatprep.subr.bf16.mxu0 0
  %7952 = vmatpush1.bf16.msra.mxu0 0
  %7953 = vmatprep.subr.bf16.mxu0 0
  %7954 = vmatpush1.bf16.msra.mxu0 0
  %7955 = vmatprep.subr.bf16.mxu0 0
  %7956 = vmatpush1.bf16.msra.mxu0 0
  %7957 = vmatprep.subr.bf16.mxu0 0
  %7958 = vmatpush1.bf16.msra.mxu0 0
  %7959 = vmatprep.subr.bf16.mxu0 0
  %7960 = vmatpush1.bf16.msra.mxu0 0
  %7961 = vmatprep.subr.bf16.mxu0 0
  %7962 = vmatpush1.bf16.msra.mxu0 0
  %7963 = vmatprep.subr.bf16.mxu0 0
  %7964 = vmatpush1.bf16.msra.mxu0 0
  %7965 = vmatprep.subr.bf16.mxu0 0
  %7966 = vmatpush1.bf16.msra.mxu0 0
  %7967 = vmatprep.mubr.bf16.mxu0 0
  %7968 = vmatmul.mubr.bf16.gmra.mrb[0].mxu0 %v7933
  %v7969 = vpop.f32.mrb[0].mxu0
  %v7970 = vadd.f32 %v7902, %v7969
  %v7971 = vpop.f32.mrb[0].mxu0
  %v7972 = vpop.f32.mrb[0].mxu0
  %v7973 = vpop.f32.mrb[0].mxu0
  %7974 = vdwg.mxu0
  %v7975 = vld [vmem:[%s10] sm:$0x1]
  %v7977 = vlaneseq
  %v7978 = vshrl.u32 %v7977, 7
  %v7979 = vsub.s32 0, %v7978
  %v7980 = vrot.slane %v7975, %v7979
  %v7982 = vadd.f32 %v7970, %v7980
  %v7983 = vmax.f32 %v7982, 0.0
  %v7984 = vpack.c.bf16 %v7983, %v7983
  %v7985 = vld [vmem:[%s11] sm:$0xf]
  %v7986 = vld [vmem:[%s11 + $0x4] sm:$0xf]
  %v7987 = vld [vmem:[%s11 + $0x8] sm:$0xf]
  %v7988 = vld [vmem:[%s11 + $0xc] sm:$0xf]
  %v7989 = vld [vmem:[%s12] sm:$0x1]
  %v7991 = vlaneseq
  %v7992 = vshrl.u32 %v7991, 7
  %v7993 = vsub.s32 0, %v7992
  %v7994 = vrot.slane %v7989, %v7993
  %v8000 = vunpack.c.l.b16 %v7985
  %v8001 = vunpack.c.l.b16 %v7986
  %v8002 = vunpack.c.l.b16 %v7987
  %v8003 = vunpack.c.l.b16 %v7988
  %v8004 = vpack.c.b16 %v8001, %v8000
  %v8005 = vpack.c.b16 %v8003, %v8002
  %vm8008 = vcmask 261120
  %v8010 = vsel %vm8008, %v7984, 0
  %8012 = vmatprep.subr.bf16.mxu0 0
  %8013 = vmatpush1.bf16.msra.mxu0 %v8004
  %8014 = vmatprep.subr.bf16.mxu0 0
  %8015 = vmatpush1.bf16.msra.mxu0 %v8005
  %8016 = vmatprep.subr.bf16.mxu0 0
  %8017 = vmatpush1.bf16.msra.mxu0 0
  %8018 = vmatprep.subr.bf16.mxu0 0
  %8019 = vmatpush1.bf16.msra.mxu0 0
  %8020 = vmatprep.subr.bf16.mxu0 0
  %8021 = vmatpush1.bf16.msra.mxu0 0
  %8022 = vmatprep.subr.bf16.mxu0 0
  %8023 = vmatpush1.bf16.msra.mxu0 0
  %8024 = vmatprep.subr.bf16.mxu0 0
  %8025 = vmatpush1.bf16.msra.mxu0 0
  %8026 = vmatprep.subr.bf16.mxu0 0
  %8027 = vmatpush1.bf16.msra.mxu0 0
  %8028 = vmatprep.subr.bf16.mxu0 0
  %8029 = vmatpush1.bf16.msra.mxu0 0
  %8030 = vmatprep.subr.bf16.mxu0 0
  %8031 = vmatpush1.bf16.msra.mxu0 0
  %8032 = vmatprep.subr.bf16.mxu0 0
  %8033 = vmatpush1.bf16.msra.mxu0 0
  %8034 = vmatprep.subr.bf16.mxu0 0
  %8035 = vmatpush1.bf16.msra.mxu0 0
  %8036 = vmatprep.subr.bf16.mxu0 0
  %8037 = vmatpush1.bf16.msra.mxu0 0
  %8038 = vmatprep.subr.bf16.mxu0 0
  %8039 = vmatpush1.bf16.msra.mxu0 0
  %8040 = vmatprep.subr.bf16.mxu0 0
  %8041 = vmatpush1.bf16.msra.mxu0 0
  %8042 = vmatprep.subr.bf16.mxu0 0
  %8043 = vmatpush1.bf16.msra.mxu0 0
  %8044 = vmatprep.mubr.bf16.mxu0 0
  %8045 = vmatmul.mubr.bf16.gmra.mrb[0].mxu0 %v8010
  %v8046 = vpop.f32.mrb[0].mxu0
  %v8047 = vadd.f32 %v7994, %v8046
  %v8048 = vpop.f32.mrb[0].mxu0
  %v8049 = vpop.f32.mrb[0].mxu0
  %v8050 = vpop.f32.mrb[0].mxu0
  %8051 = vdwg.mxu0
  %vm8052 = vcmask 25600
  %v8053 = vsel %vm8052, %v8047, -inf
  %8054 = vmax.xlane.f32.xlu0 %v8053
  %v8055 = vpop.xlane.xlu0 %8054
  %v8056 = vsub.f32 %v8047, %v8055
  %v8057 = vmul.f32 %v8056, 1.442695
  %v8058 = vpow.pop %v8057
  %v8059 = vsel %vm8052, %v8058, 0.0
  %8060 = vadd.xlane.f32.xlu0 %v8059
  %v8061 = vpop.xlane.xlu0 %8060
  %v8062 = vlog2.pop %v8061
  %v8063 = vmul.f32 %v8062, 0.6931472
  %v8064 = vadd.f32 %v8055, %v8063
  %v8065 = vsub.f32 %v8047, %v8064
  %8066 = vst.msk [vmem:[%s13] sm:$0x3] %vm8052, %v8065
  // Predicated region
  $region54: #{actor_forward.1} parent=0 // pred_check
    _
  $region55: #{actor_forward.1} parent=0 // pred_check_branch
    %8068 = sbr.rel (0) target = $region57
  $region56: #{actor_forward.1} parent=0 // pred_region
    _
  $region57: #{actor_forward.1} parent=0 // pred_fallthru
    _
  // Predicated region
  $region58: #{actor_forward.1} parent=0 // pred_check
    _
  $region59: #{actor_forward.1} parent=0 // pred_check_branch
    %8070 = sbr.rel (0) target = $region61
  $region60: #{actor_forward.1} parent=0 // pred_region
    _
  $region61: #{actor_forward.1} parent=0 // pred_fallthru
    _

</llo_original>
